<compile_context>
chip_gen: v7x
topology: tpu7x:2x2x1
jax: 0.10.0
libtpu: 0.0.40
codegen_flags: <defaults>
</compile_context>

<pallas_src>
import functools

import jax
import jax.numpy as jnp
from jax import lax
from jax.experimental import pallas as pl
from jax.experimental.pallas import tpu as pltpu


# ---------------------------------------------------------------------------
# Fused kernel: one grid step = one batch image, all intermediates in VMEM.
# ---------------------------------------------------------------------------
def _encoder_kernel(x0_ref, w1_ref, b1_ref, wcd2_ref, bcd2_ref, w3_ref, b3_ref,
                    o_ref, cd1_ref, cd2_ref, *, H, W, Cpad):
    """x0_ref  : (1, H, W, Cpad) f32   fused [corr | 49 disp taps | 0 | disp]
       w1_ref  : (Cpad, 128) bf16      block-diag convc1+convd1, b1 f32 (1,128)
       wcd2_ref: (9, 128, 128) bf16    block-diag convc2+convd2, bcd2 f32
       w3_ref  : (9, 128, 128) bf16    final conv, Cout padded 127->128, b3 f32
       o_ref   : (1, H, W, 128) f32    cat([out(127), disp(1)])
       cd1/cd2 : (H+2, W+2, 128) bf16  zero-halo padded activations
    """
    f32 = jnp.float32
    bf16 = jnp.bfloat16
    HC = min(H, max(1, 256 // W))          # row chunk -> M = HC*W ~= 256

    # ---- zero only the 1-px halos (interiors are fully rewritten below) ----
    zrow = jnp.zeros((1, W + 2, 128), bf16)
    zcol = jnp.zeros((H + 2, 1, 128), bf16)
    for ref in (cd1_ref, cd2_ref):
        ref[0:1, :, :] = zrow
        ref[H + 1:H + 2, :, :] = zrow
        ref[:, 0:1, :] = zcol
        ref[:, W + 1:W + 2, :] = zcol

    lane = lax.broadcasted_iota(jnp.int32, (1, 128), 1)
    disp_lane = (lane == 127).astype(f32)   # one-hot mask for the disp channel

    # ---- stage 1: fused convc1 + convd1 -> ReLU -> cd1 = [cor1 | d1] --------
    for h0 in range(0, H, HC):
        hc = min(HC, H - h0)
        m = hc * W
        xb = x0_ref[0, h0:h0 + hc, :, :].reshape(m, Cpad).astype(bf16)
        y = jnp.dot(xb, w1_ref[...], preferred_element_type=f32) + b1_ref[...]
        y = jnp.maximum(y, 0.0)
        cd1_ref[1 + h0:1 + h0 + hc, 1:1 + W, :] = (
            y.reshape(hc, W, 128).astype(bf16))

    # ---- 3x3 convs: one kw-shifted slab load per chunk, kh = vreg slices ----
    def conv3x3(src_ref, w_ref, b_ref, emit):
        for h0 in range(0, H, HC):
            hc = min(HC, H - h0)
            m = hc * W
            acc = jnp.zeros((m, 128), f32)
            for kw in range(3):
                big = src_ref[h0:h0 + hc + 2, kw:kw + W, :]   # (hc+2, W, 128)
                for kh in range(3):
                    tap = big[kh:kh + hc].reshape(m, 128)
                    acc = acc + jnp.dot(tap, w_ref[kh * 3 + kw],
                                        preferred_element_type=f32)
            emit(h0, hc, jnp.maximum(acc + b_ref[...], 0.0))

    # fused convc2 + convd2 (block-diagonal 128x128 weights per tap)
    def emit_cd2(h0, hc, y):
        cd2_ref[1 + h0:1 + h0 + hc, 1:1 + W, :] = (
            y.reshape(hc, W, 128).astype(bf16))

    conv3x3(cd1_ref, wcd2_ref, bcd2_ref, emit_cd2)

    # final conv: lane 127 of the conv result is exactly 0 (zero weight column
    # and bias), so adding the raw f32 disp from the fused input's last lane
    # yields cat([out, disp]) with a single dense 128-lane store.
    def emit_out(h0, hc, y):
        d = x0_ref[0, h0:h0 + hc, :, Cpad - 128:Cpad].reshape(hc * W, 128)
        o_ref[0, h0:h0 + hc, :, :] = (y + d * disp_lane).reshape(hc, W, 128)

    conv3x3(cd2_ref, w3_ref, b3_ref, emit_out)


# ---------------------------------------------------------------------------
# Wrapper (wrapper-side im2col of the 7x7 disp taps = layout plumbing only)
# ---------------------------------------------------------------------------
def _fused_channels(cor_planes):
    return max(128, -(-(cor_planes + 50) // 128) * 128)


def _build_fused_input(disp, corr, Cpad):
    B, H, W, _ = disp.shape
    cp = corr.shape[-1]
    dpad = jnp.pad(disp, ((0, 0), (3, 3), (3, 3), (0, 0)))
    taps = jnp.stack([dpad[:, kh:kh + H, kw:kw + W, 0]
                      for kh in range(7) for kw in range(7)], axis=-1)
    zpad = jnp.zeros((B, H, W, Cpad - cp - 49 - 1), disp.dtype)
    # channels: [0:cp]=corr, [cp:cp+49]=7x7 disp taps, zeros, [Cpad-1]=raw disp
    return jnp.concatenate([corr, taps, zpad, disp], axis=-1)


def motion_encoder_forward(params, disp, corr):
    """disp: (B,H,W,1) f32, corr: (B,H,W,cor_planes) f32 -> (B,H,W,128) f32."""
    B, H, W, _ = disp.shape
    cp = corr.shape[-1]
    assert W % 8 == 0  # TODO(synk): support W % 8 != 0 (sublane-padded reshape)
    Cpad = _fused_channels(cp)
    assert params["w1"].shape == (Cpad, 128)

    x0 = _build_fused_input(disp, corr, Cpad)
    kernel = functools.partial(_encoder_kernel, H=H, W=W, Cpad=Cpad)

    # VMEM budget: double-buffered in/out blocks + weights + scratch, headroom.
    blocks = 2 * H * W * (Cpad + 128) * 4
    weights = 2 * 2 * (Cpad * 128 + 18 * 128 * 128) + 2 * 3 * 128 * 4
    scratch = 2 * (H + 2) * (W + 2) * 128 * 2
    vmem_limit = max(32 << 20,
                     min(int(1.5 * (blocks + weights + scratch)) + (4 << 20),
                         96 << 20))

    return pl.pallas_call(
        kernel,
        out_shape=jax.ShapeDtypeStruct((B, H, W, 128), jnp.float32),
        grid_spec=pltpu.PrefetchScalarGridSpec(
            num_scalar_prefetch=0,
            grid=(B,),
            in_specs=[
                pl.BlockSpec((1, H, W, Cpad), lambda b: (b, 0, 0, 0)),  # fused x0
                pl.BlockSpec((Cpad, 128), lambda b: (0, 0)),            # w1
                pl.BlockSpec((1, 128), lambda b: (0, 0)),               # b1
                pl.BlockSpec((9, 128, 128), lambda b: (0, 0, 0)),       # wcd2
                pl.BlockSpec((1, 128), lambda b: (0, 0)),               # bcd2
                pl.BlockSpec((9, 128, 128), lambda b: (0, 0, 0)),       # w3
                pl.BlockSpec((1, 128), lambda b: (0, 0)),               # b3
            ],
            out_specs=pl.BlockSpec((1, H, W, 128), lambda b: (b, 0, 0, 0)),
            scratch_shapes=[
                pltpu.VMEM((H + 2, W + 2, 128), jnp.bfloat16),  # padded [cor1,d1]
                pltpu.VMEM((H + 2, W + 2, 128), jnp.bfloat16),  # padded [cor2,d2]
            ],
        ),
        compiler_params=pltpu.CompilerParams(
            dimension_semantics=("parallel",),
            vmem_limit_bytes=vmem_limit,
        ),
    )(x0, params["w1"], params["b1"], params["wcd2"], params["bcd2"],
      params["w3"], params["b3"])


# ---------------------------------------------------------------------------
# Parameter packing (PyTorch OIHW -> kernel layout) and pure-JAX reference
# ---------------------------------------------------------------------------
def oihw_to_kio(w):
    """(Cout, Cin, KH, KW) -> (KH*KW, Cin, Cout)."""
    cout, cin, kh, kw = w.shape
    return jnp.transpose(w, (2, 3, 1, 0)).reshape(kh * kw, cin, cout)


def pack_params(tp, cor_planes):
    wc1, bc1 = tp["convc1"]
    wc2, bc2 = tp["convc2"]
    wd1, bd1 = tp["convd1"]
    wd2, bd2 = tp["convd2"]
    wcv, bcv = tp["conv"]
    bf16 = jnp.bfloat16
    Cpad = _fused_channels(cor_planes)

    # fused convc1 + convd1 (block-diagonal), last row = disp passthrough (0)
    w1 = jnp.zeros((Cpad, 128), jnp.float32)
    w1 = w1.at[:cor_planes, 0:64].set(oihw_to_kio(wc1)[0])
    w1 = w1.at[cor_planes:cor_planes + 49, 64:128].set(oihw_to_kio(wd1)[:, 0, :])
    b1 = jnp.concatenate([bc1, bd1]).reshape(1, 128)

    wcd2 = jnp.zeros((9, 128, 128), jnp.float32)        # block-diag c2 / d2
    wcd2 = wcd2.at[:, :64, :64].set(oihw_to_kio(wc2))
    wcd2 = wcd2.at[:, 64:, 64:].set(oihw_to_kio(wd2))
    bcd2 = jnp.concatenate([bc2, bd2]).reshape(1, 128)

    w3 = jnp.pad(oihw_to_kio(wcv), ((0, 0), (0, 0), (0, 1)))   # Cout 127->128
    b3 = jnp.pad(bcv, (0, 1)).reshape(1, 128)

    return {"w1": w1.astype(bf16), "b1": b1,
            "wcd2": wcd2.astype(bf16), "bcd2": bcd2,
            "w3": w3.astype(bf16), "b3": b3}


def _ref_conv(x, w_oihw, b, padding):
    w_hwio = jnp.transpose(w_oihw, (2, 3, 1, 0))
    y = lax.conv_general_dilated(
        x, w_hwio, (1, 1), [(padding, padding), (padding, padding)],
        dimension_numbers=("NHWC", "HWIO", "NHWC"))
    return jnp.maximum(y + b.reshape(1, 1, 1, -1), 0.0)


def ref_forward(tp, disp, corr):
    cor = _ref_conv(corr, *tp["convc1"], padding=0)
    cor = _ref_conv(cor, *tp["convc2"], padding=1)
    d = _ref_conv(disp, *tp["convd1"], padding=3)
    d = _ref_conv(d, *tp["convd2"], padding=1)
    out = _ref_conv(jnp.concatenate([cor, d], axis=-1), *tp["conv"], padding=1)
    return jnp.concatenate([out, disp], axis=-1)


def make_torch_conv_params(key, cout, cin, k):
    kw_key, kb_key = jax.random.split(key)
    fan_in = cin * k * k
    scale = 1.0 / (fan_in ** 0.5)
    w = jax.random.uniform(kw_key, (cout, cin, k, k), jnp.float32, -scale, scale)
    b = jax.random.uniform(kb_key, (cout,), jnp.float32, -scale, scale)
    return w, b


# ---------------------------------------------------------------------------
if __name__ == "__main__":
    B, H, W = 2, 16, 16
    corr_levels, corr_radius = 1, 1
    cor_planes = corr_levels * (2 * corr_radius + 1) * (8 + 1)   # 27

    key = jax.random.PRNGKey(0)
    keys = jax.random.split(key, 7)
    tp = {
        "convc1": make_torch_conv_params(keys[0], 64, cor_planes, 1),
        "convc2": make_torch_conv_params(keys[1], 64, 64, 3),
        "convd1": make_torch_conv_params(keys[2], 64, 1, 7),
        "convd2": make_torch_conv_params(keys[3], 64, 64, 3),
        "conv":   make_torch_conv_params(keys[4], 127, 128, 3),
    }
    params = pack_params(tp, cor_planes)

    disp = jax.random.normal(keys[5], (B, H, W, 1), jnp.float32)
    corr = jax.random.normal(keys[6], (B, H, W, cor_planes), jnp.float32)

    out = jax.block_until_ready(
        jax.jit(motion_encoder_forward)(params, disp, corr))
    ref = jax.block_until_ready(ref_forward(tp, disp, corr))

    assert out.shape == (B, H, W, 128), out.shape
    # bf16 weights/activations (f32 accumulation) -> loose tolerance vs the
    # pure-f32 reference; the disparity passthrough channel must be bit-exact.
    max_err = float(jnp.max(jnp.abs(out - ref)))
    assert jnp.allclose(out, ref, rtol=5e-2, atol=5e-2), max_err
    assert jnp.array_equal(out[..., 127], disp[..., 0])

    print("KERNEL_OK")
</pallas_src>

<mosaic_0001>
module attributes {stable_mosaic.version = 11 : i64} {
  func.func @_encoder_kernel(%arg0: i32, %arg1: memref<1x16x16x128xf32, #tpu.memory_space<vmem>>, %arg2: memref<128x128xbf16, #tpu.memory_space<vmem>>, %arg3: memref<1x128xf32, #tpu.memory_space<vmem>>, %arg4: memref<9x128x128xbf16, #tpu.memory_space<vmem>>, %arg5: memref<1x128xf32, #tpu.memory_space<vmem>>, %arg6: memref<9x128x128xbf16, #tpu.memory_space<vmem>>, %arg7: memref<1x128xf32, #tpu.memory_space<vmem>>, %arg8: memref<1x16x16x128xf32, #tpu.memory_space<vmem>>, %arg9: memref<18x18x128xbf16, #tpu.memory_space<vmem>>, %arg10: memref<18x18x128xbf16, #tpu.memory_space<vmem>>) attributes {dimension_semantics = [#tpu.dimension_semantics<parallel>], iteration_bounds = array<i64: 2>, scalar_prefetch = 0 : i64, scratch_operands = 2 : i64, tpu.core_type = #tpu.core_type<tc>, window_params = [{transform_indices = @transform_0, window_bounds = array<i64: 1, 16, 16, 128>}, {pipeline_mode = #tpu.pipeline_mode<synchronous>, transform_indices = @transform_1, window_bounds = array<i64: 128, 128>}, {pipeline_mode = #tpu.pipeline_mode<synchronous>, transform_indices = @transform_2, window_bounds = array<i64: 1, 128>}, {pipeline_mode = #tpu.pipeline_mode<synchronous>, transform_indices = @transform_3, window_bounds = array<i64: 9, 128, 128>}, {pipeline_mode = #tpu.pipeline_mode<synchronous>, transform_indices = @transform_4, window_bounds = array<i64: 1, 128>}, {pipeline_mode = #tpu.pipeline_mode<synchronous>, transform_indices = @transform_5, window_bounds = array<i64: 9, 128, 128>}, {pipeline_mode = #tpu.pipeline_mode<synchronous>, transform_indices = @transform_6, window_bounds = array<i64: 1, 128>}, {transform_indices = @transform_7, window_bounds = array<i64: 1, 16, 16, 128>}]} {
    %cst = arith.constant 0.000000e+00 : bf16
    %0 = vector.broadcast %cst : bf16 to vector<1x18x128xbf16>
    %cst_0 = arith.constant 0.000000e+00 : bf16
    %1 = vector.broadcast %cst_0 : bf16 to vector<18x1x128xbf16>
    %c0 = arith.constant 0 : index
    %c0_1 = arith.constant 0 : index
    %c0_2 = arith.constant 0 : index
    %2 = vector.load %arg9[%c0, %c0_1, %c0_2] : memref<18x18x128xbf16, #tpu.memory_space<vmem>>, vector<1x18x128xbf16>
    tpu.vector_store %arg9[%c0, %c0_1, %c0_2], %0 {strides = array<i32>} : memref<18x18x128xbf16, #tpu.memory_space<vmem>>, vector<1x18x128xbf16>,
    %c17 = arith.constant 17 : index
    %c0_3 = arith.constant 0 : index
    %c0_4 = arith.constant 0 : index
    %3 = vector.load %arg9[%c17, %c0_3, %c0_4] : memref<18x18x128xbf16, #tpu.memory_space<vmem>>, vector<1x18x128xbf16>
    tpu.vector_store %arg9[%c17, %c0_3, %c0_4], %0 {strides = array<i32>} : memref<18x18x128xbf16, #tpu.memory_space<vmem>>, vector<1x18x128xbf16>,
    %c0_5 = arith.constant 0 : index
    %c0_6 = arith.constant 0 : index
    %c0_7 = arith.constant 0 : index
    %4 = vector.load %arg9[%c0_5, %c0_6, %c0_7] : memref<18x18x128xbf16, #tpu.memory_space<vmem>>, vector<18x1x128xbf16>
    tpu.vector_store %arg9[%c0_5, %c0_6, %c0_7], %1 {strides = array<i32>} : memref<18x18x128xbf16, #tpu.memory_space<vmem>>, vector<18x1x128xbf16>,
    %c0_8 = arith.constant 0 : index
    %c17_9 = arith.constant 17 : index
    %c0_10 = arith.constant 0 : index
    %5 = vector.load %arg9[%c0_8, %c17_9, %c0_10] : memref<18x18x128xbf16, #tpu.memory_space<vmem>>, vector<18x1x128xbf16>
    tpu.vector_store %arg9[%c0_8, %c17_9, %c0_10], %1 {strides = array<i32>} : memref<18x18x128xbf16, #tpu.memory_space<vmem>>, vector<18x1x128xbf16>,
    %c0_11 = arith.constant 0 : index
    %c0_12 = arith.constant 0 : index
    %c0_13 = arith.constant 0 : index
    %6 = vector.load %arg10[%c0_11, %c0_12, %c0_13] : memref<18x18x128xbf16, #tpu.memory_space<vmem>>, vector<1x18x128xbf16>
    tpu.vector_store %arg10[%c0_11, %c0_12, %c0_13], %0 {strides = array<i32>} : memref<18x18x128xbf16, #tpu.memory_space<vmem>>, vector<1x18x128xbf16>,
    %c17_14 = arith.constant 17 : index
    %c0_15 = arith.constant 0 : index
    %c0_16 = arith.constant 0 : index
    %7 = vector.load %arg10[%c17_14, %c0_15, %c0_16] : memref<18x18x128xbf16, #tpu.memory_space<vmem>>, vector<1x18x128xbf16>
    tpu.vector_store %arg10[%c17_14, %c0_15, %c0_16], %0 {strides = array<i32>} : memref<18x18x128xbf16, #tpu.memory_space<vmem>>, vector<1x18x128xbf16>,
    %c0_17 = arith.constant 0 : index
    %c0_18 = arith.constant 0 : index
    %c0_19 = arith.constant 0 : index
    %8 = vector.load %arg10[%c0_17, %c0_18, %c0_19] : memref<18x18x128xbf16, #tpu.memory_space<vmem>>, vector<18x1x128xbf16>
    tpu.vector_store %arg10[%c0_17, %c0_18, %c0_19], %1 {strides = array<i32>} : memref<18x18x128xbf16, #tpu.memory_space<vmem>>, vector<18x1x128xbf16>,
    %c0_20 = arith.constant 0 : index
    %c17_21 = arith.constant 17 : index
    %c0_22 = arith.constant 0 : index
    %9 = vector.load %arg10[%c0_20, %c17_21, %c0_22] : memref<18x18x128xbf16, #tpu.memory_space<vmem>>, vector<18x1x128xbf16>
    tpu.vector_store %arg10[%c0_20, %c17_21, %c0_22], %1 {strides = array<i32>} : memref<18x18x128xbf16, #tpu.memory_space<vmem>>, vector<18x1x128xbf16>,
    %10 = tpu.iota {dimensions = array<i32: 1>} : vector<1x128xi32>
    %c127_i32 = arith.constant 127 : i32
    %11 = vector.broadcast %c127_i32 : i32 to vector<1x128xi32>
    %12 = arith.cmpi eq, %10, %11 : vector<1x128xi32>
    %13 = arith.extui %12 : vector<1x128xi1> to vector<1x128xi32>
    %14 = arith.sitofp %13 : vector<1x128xi32> to vector<1x128xf32>
    %c0_23 = arith.constant 0 : index
    %c0_24 = arith.constant 0 : index
    %c0_25 = arith.constant 0 : index
    %c0_26 = arith.constant 0 : index
    %15 = vector.load %arg1[%c0_23, %c0_24, %c0_25, %c0_26] : memref<1x16x16x128xf32, #tpu.memory_space<vmem>>, vector<1x16x16x128xf32>
    %16 = vector.shape_cast %15 : vector<1x16x16x128xf32> to vector<16x16x128xf32>
    %17 = vector.shape_cast %16 : vector<16x16x128xf32> to vector<256x128xf32>
    %18 = arith.truncf %17 : vector<256x128xf32> to vector<256x128xbf16>
    %c0_27 = arith.constant 0 : index
    %c0_28 = arith.constant 0 : index
    %19 = vector.load %arg2[%c0_27, %c0_28] : memref<128x128xbf16, #tpu.memory_space<vmem>>, vector<128x128xbf16>
    %cst_29 = arith.constant dense<0.000000e+00> : vector<256x128xf32>
    %20 = tpu.matmul %18, %19, %cst_29 {dimension_numbers = #tpu.dot_dimension_numbers<[1], [0], [0], [1], [0, 0, 1, 1], [], []>} : vector<256x128xbf16>, vector<128x128xbf16>, vector<256x128xf32> -> vector<256x128xf32>
    %c0_30 = arith.constant 0 : index
    %c0_31 = arith.constant 0 : index
    %21 = vector.load %arg3[%c0_30, %c0_31] : memref<1x128xf32, #tpu.memory_space<vmem>>, vector<1x128xf32>
    %22 = vector.broadcast %21 : vector<1x128xf32> to vector<256x128xf32>
    %23 = arith.addf %20, %22 : vector<256x128xf32>
    %cst_32 = arith.constant 0.000000e+00 : f32
    %24 = vector.broadcast %cst_32 : f32 to vector<256x128xf32>
    %25 = arith.maximumf %23, %24 : vector<256x128xf32>
    %26 = vector.shape_cast %25 : vector<256x128xf32> to vector<16x16x128xf32>
    %27 = arith.truncf %26 : vector<16x16x128xf32> to vector<16x16x128xbf16>
    %c1 = arith.constant 1 : index
    %c1_33 = arith.constant 1 : index
    %c0_34 = arith.constant 0 : index
    %28 = vector.load %arg9[%c1, %c1_33, %c0_34] : memref<18x18x128xbf16, #tpu.memory_space<vmem>>, vector<16x16x128xbf16>
    tpu.vector_store %arg9[%c1, %c1_33, %c0_34], %27 {strides = array<i32>} : memref<18x18x128xbf16, #tpu.memory_space<vmem>>, vector<16x16x128xbf16>,
    %cst_35 = arith.constant 0.000000e+00 : f32
    %29 = vector.broadcast %cst_35 : f32 to vector<256x128xf32>
    %c0_36 = arith.constant 0 : index
    %c0_37 = arith.constant 0 : index
    %c0_38 = arith.constant 0 : index
    %30 = vector.load %arg9[%c0_36, %c0_37, %c0_38] : memref<18x18x128xbf16, #tpu.memory_space<vmem>>, vector<18x16x128xbf16>
    %31 = vector.extract_strided_slice %30 {offsets = [0, 0, 0], sizes = [16, 16, 128], strides = [1, 1, 1]} : vector<18x16x128xbf16> to vector<16x16x128xbf16>
    %32 = vector.shape_cast %31 : vector<16x16x128xbf16> to vector<256x128xbf16>
    %c0_39 = arith.constant 0 : index
    %c0_40 = arith.constant 0 : index
    %c0_41 = arith.constant 0 : index
    %33 = vector.load %arg4[%c0_39, %c0_40, %c0_41] : memref<9x128x128xbf16, #tpu.memory_space<vmem>>, vector<1x128x128xbf16>
    %34 = vector.shape_cast %33 : vector<1x128x128xbf16> to vector<128x128xbf16>
    %cst_42 = arith.constant dense<0.000000e+00> : vector<256x128xf32>
    %35 = tpu.matmul %32, %34, %cst_42 {dimension_numbers = #tpu.dot_dimension_numbers<[1], [0], [0], [1], [0, 0, 1, 1], [], []>} : vector<256x128xbf16>, vector<128x128xbf16>, vector<256x128xf32> -> vector<256x128xf32>
    %36 = arith.addf %29, %35 : vector<256x128xf32>
    %37 = vector.extract_strided_slice %30 {offsets = [1, 0, 0], sizes = [16, 16, 128], strides = [1, 1, 1]} : vector<18x16x128xbf16> to vector<16x16x128xbf16>
    %38 = vector.shape_cast %37 : vector<16x16x128xbf16> to vector<256x128xbf16>
    %c3 = arith.constant 3 : index
    %c0_43 = arith.constant 0 : index
    %c0_44 = arith.constant 0 : index
    %39 = vector.load %arg4[%c3, %c0_43, %c0_44] : memref<9x128x128xbf16, #tpu.memory_space<vmem>>, vector<1x128x128xbf16>
    %40 = vector.shape_cast %39 : vector<1x128x128xbf16> to vector<128x128xbf16>
    %cst_45 = arith.constant dense<0.000000e+00> : vector<256x128xf32>
    %41 = tpu.matmul %38, %40, %cst_45 {dimension_numbers = #tpu.dot_dimension_numbers<[1], [0], [0], [1], [0, 0, 1, 1], [], []>} : vector<256x128xbf16>, vector<128x128xbf16>, vector<256x128xf32> -> vector<256x128xf32>
    %42 = arith.addf %36, %41 : vector<256x128xf32>
    %43 = vector.extract_strided_slice %30 {offsets = [2, 0, 0], sizes = [16, 16, 128], strides = [1, 1, 1]} : vector<18x16x128xbf16> to vector<16x16x128xbf16>
    %44 = vector.shape_cast %43 : vector<16x16x128xbf16> to vector<256x128xbf16>
    %c6 = arith.constant 6 : index
    %c0_46 = arith.constant 0 : index
    %c0_47 = arith.constant 0 : index
    %45 = vector.load %arg4[%c6, %c0_46, %c0_47] : memref<9x128x128xbf16, #tpu.memory_space<vmem>>, vector<1x128x128xbf16>
    %46 = vector.shape_cast %45 : vector<1x128x128xbf16> to vector<128x128xbf16>
    %cst_48 = arith.constant dense<0.000000e+00> : vector<256x128xf32>
    %47 = tpu.matmul %44, %46, %cst_48 {dimension_numbers = #tpu.dot_dimension_numbers<[1], [0], [0], [1], [0, 0, 1, 1], [], []>} : vector<256x128xbf16>, vector<128x128xbf16>, vector<256x128xf32> -> vector<256x128xf32>
    %48 = arith.addf %42, %47 : vector<256x128xf32>
    %c0_49 = arith.constant 0 : index
    %c1_50 = arith.constant 1 : index
    %c0_51 = arith.constant 0 : index
    %49 = vector.load %arg9[%c0_49, %c1_50, %c0_51] : memref<18x18x128xbf16, #tpu.memory_space<vmem>>, vector<18x16x128xbf16>
    %50 = vector.extract_strided_slice %49 {offsets = [0, 0, 0], sizes = [16, 16, 128], strides = [1, 1, 1]} : vector<18x16x128xbf16> to vector<16x16x128xbf16>
    %51 = vector.shape_cast %50 : vector<16x16x128xbf16> to vector<256x128xbf16>
    %c1_52 = arith.constant 1 : index
    %c0_53 = arith.constant 0 : index
    %c0_54 = arith.constant 0 : index
    %52 = vector.load %arg4[%c1_52, %c0_53, %c0_54] : memref<9x128x128xbf16, #tpu.memory_space<vmem>>, vector<1x128x128xbf16>
    %53 = vector.shape_cast %52 : vector<1x128x128xbf16> to vector<128x128xbf16>
    %cst_55 = arith.constant dense<0.000000e+00> : vector<256x128xf32>
    %54 = tpu.matmul %51, %53, %cst_55 {dimension_numbers = #tpu.dot_dimension_numbers<[1], [0], [0], [1], [0, 0, 1, 1], [], []>} : vector<256x128xbf16>, vector<128x128xbf16>, vector<256x128xf32> -> vector<256x128xf32>
    %55 = arith.addf %48, %54 : vector<256x128xf32>
    %56 = vector.extract_strided_slice %49 {offsets = [1, 0, 0], sizes = [16, 16, 128], strides = [1, 1, 1]} : vector<18x16x128xbf16> to vector<16x16x128xbf16>
    %57 = vector.shape_cast %56 : vector<16x16x128xbf16> to vector<256x128xbf16>
    %c4 = arith.constant 4 : index
    %c0_56 = arith.constant 0 : index
    %c0_57 = arith.constant 0 : index
    %58 = vector.load %arg4[%c4, %c0_56, %c0_57] : memref<9x128x128xbf16, #tpu.memory_space<vmem>>, vector<1x128x128xbf16>
    %59 = vector.shape_cast %58 : vector<1x128x128xbf16> to vector<128x128xbf16>
    %cst_58 = arith.constant dense<0.000000e+00> : vector<256x128xf32>
    %60 = tpu.matmul %57, %59, %cst_58 {dimension_numbers = #tpu.dot_dimension_numbers<[1], [0], [0], [1], [0, 0, 1, 1], [], []>} : vector<256x128xbf16>, vector<128x128xbf16>, vector<256x128xf32> -> vector<256x128xf32>
    %61 = arith.addf %55, %60 : vector<256x128xf32>
    %62 = vector.extract_strided_slice %49 {offsets = [2, 0, 0], sizes = [16, 16, 128], strides = [1, 1, 1]} : vector<18x16x128xbf16> to vector<16x16x128xbf16>
    %63 = vector.shape_cast %62 : vector<16x16x128xbf16> to vector<256x128xbf16>
    %c7 = arith.constant 7 : index
    %c0_59 = arith.constant 0 : index
    %c0_60 = arith.constant 0 : index
    %64 = vector.load %arg4[%c7, %c0_59, %c0_60] : memref<9x128x128xbf16, #tpu.memory_space<vmem>>, vector<1x128x128xbf16>
    %65 = vector.shape_cast %64 : vector<1x128x128xbf16> to vector<128x128xbf16>
    %cst_61 = arith.constant dense<0.000000e+00> : vector<256x128xf32>
    %66 = tpu.matmul %63, %65, %cst_61 {dimension_numbers = #tpu.dot_dimension_numbers<[1], [0], [0], [1], [0, 0, 1, 1], [], []>} : vector<256x128xbf16>, vector<128x128xbf16>, vector<256x128xf32> -> vector<256x128xf32>
    %67 = arith.addf %61, %66 : vector<256x128xf32>
    %c0_62 = arith.constant 0 : index
    %c2 = arith.constant 2 : index
    %c0_63 = arith.constant 0 : index
    %68 = vector.load %arg9[%c0_62, %c2, %c0_63] : memref<18x18x128xbf16, #tpu.memory_space<vmem>>, vector<18x16x128xbf16>
    %69 = vector.extract_strided_slice %68 {offsets = [0, 0, 0], sizes = [16, 16, 128], strides = [1, 1, 1]} : vector<18x16x128xbf16> to vector<16x16x128xbf16>
    %70 = vector.shape_cast %69 : vector<16x16x128xbf16> to vector<256x128xbf16>
    %c2_64 = arith.constant 2 : index
    %c0_65 = arith.constant 0 : index
    %c0_66 = arith.constant 0 : index
    %71 = vector.load %arg4[%c2_64, %c0_65, %c0_66] : memref<9x128x128xbf16, #tpu.memory_space<vmem>>, vector<1x128x128xbf16>
    %72 = vector.shape_cast %71 : vector<1x128x128xbf16> to vector<128x128xbf16>
    %cst_67 = arith.constant dense<0.000000e+00> : vector<256x128xf32>
    %73 = tpu.matmul %70, %72, %cst_67 {dimension_numbers = #tpu.dot_dimension_numbers<[1], [0], [0], [1], [0, 0, 1, 1], [], []>} : vector<256x128xbf16>, vector<128x128xbf16>, vector<256x128xf32> -> vector<256x128xf32>
    %74 = arith.addf %67, %73 : vector<256x128xf32>
    %75 = vector.extract_strided_slice %68 {offsets = [1, 0, 0], sizes = [16, 16, 128], strides = [1, 1, 1]} : vector<18x16x128xbf16> to vector<16x16x128xbf16>
    %76 = vector.shape_cast %75 : vector<16x16x128xbf16> to vector<256x128xbf16>
    %c5 = arith.constant 5 : index
    %c0_68 = arith.constant 0 : index
    %c0_69 = arith.constant 0 : index
    %77 = vector.load %arg4[%c5, %c0_68, %c0_69] : memref<9x128x128xbf16, #tpu.memory_space<vmem>>, vector<1x128x128xbf16>
    %78 = vector.shape_cast %77 : vector<1x128x128xbf16> to vector<128x128xbf16>
    %cst_70 = arith.constant dense<0.000000e+00> : vector<256x128xf32>
    %79 = tpu.matmul %76, %78, %cst_70 {dimension_numbers = #tpu.dot_dimension_numbers<[1], [0], [0], [1], [0, 0, 1, 1], [], []>} : vector<256x128xbf16>, vector<128x128xbf16>, vector<256x128xf32> -> vector<256x128xf32>
    %80 = arith.addf %74, %79 : vector<256x128xf32>
    %81 = vector.extract_strided_slice %68 {offsets = [2, 0, 0], sizes = [16, 16, 128], strides = [1, 1, 1]} : vector<18x16x128xbf16> to vector<16x16x128xbf16>
    %82 = vector.shape_cast %81 : vector<16x16x128xbf16> to vector<256x128xbf16>
    %c8 = arith.constant 8 : index
    %c0_71 = arith.constant 0 : index
    %c0_72 = arith.constant 0 : index
    %83 = vector.load %arg4[%c8, %c0_71, %c0_72] : memref<9x128x128xbf16, #tpu.memory_space<vmem>>, vector<1x128x128xbf16>
    %84 = vector.shape_cast %83 : vector<1x128x128xbf16> to vector<128x128xbf16>
    %cst_73 = arith.constant dense<0.000000e+00> : vector<256x128xf32>
    %85 = tpu.matmul %82, %84, %cst_73 {dimension_numbers = #tpu.dot_dimension_numbers<[1], [0], [0], [1], [0, 0, 1, 1], [], []>} : vector<256x128xbf16>, vector<128x128xbf16>, vector<256x128xf32> -> vector<256x128xf32>
    %86 = arith.addf %80, %85 : vector<256x128xf32>
    %c0_74 = arith.constant 0 : index
    %c0_75 = arith.constant 0 : index
    %87 = vector.load %arg5[%c0_74, %c0_75] : memref<1x128xf32, #tpu.memory_space<vmem>>, vector<1x128xf32>
    %88 = vector.broadcast %87 : vector<1x128xf32> to vector<256x128xf32>
    %89 = arith.addf %86, %88 : vector<256x128xf32>
    %cst_76 = arith.constant 0.000000e+00 : f32
    %90 = vector.broadcast %cst_76 : f32 to vector<256x128xf32>
    %91 = arith.maximumf %89, %90 : vector<256x128xf32>
    %92 = vector.shape_cast %91 : vector<256x128xf32> to vector<16x16x128xf32>
    %93 = arith.truncf %92 : vector<16x16x128xf32> to vector<16x16x128xbf16>
    %c1_77 = arith.constant 1 : index
    %c1_78 = arith.constant 1 : index
    %c0_79 = arith.constant 0 : index
    %94 = vector.load %arg10[%c1_77, %c1_78, %c0_79] : memref<18x18x128xbf16, #tpu.memory_space<vmem>>, vector<16x16x128xbf16>
    tpu.vector_store %arg10[%c1_77, %c1_78, %c0_79], %93 {strides = array<i32>} : memref<18x18x128xbf16, #tpu.memory_space<vmem>>, vector<16x16x128xbf16>,
    %cst_80 = arith.constant 0.000000e+00 : f32
    %95 = vector.broadcast %cst_80 : f32 to vector<256x128xf32>
    %c0_81 = arith.constant 0 : index
    %c0_82 = arith.constant 0 : index
    %c0_83 = arith.constant 0 : index
    %96 = vector.load %arg10[%c0_81, %c0_82, %c0_83] : memref<18x18x128xbf16, #tpu.memory_space<vmem>>, vector<18x16x128xbf16>
    %97 = vector.extract_strided_slice %96 {offsets = [0, 0, 0], sizes = [16, 16, 128], strides = [1, 1, 1]} : vector<18x16x128xbf16> to vector<16x16x128xbf16>
    %98 = vector.shape_cast %97 : vector<16x16x128xbf16> to vector<256x128xbf16>
    %c0_84 = arith.constant 0 : index
    %c0_85 = arith.constant 0 : index
    %c0_86 = arith.constant 0 : index
    %99 = vector.load %arg6[%c0_84, %c0_85, %c0_86] : memref<9x128x128xbf16, #tpu.memory_space<vmem>>, vector<1x128x128xbf16>
    %100 = vector.shape_cast %99 : vector<1x128x128xbf16> to vector<128x128xbf16>
    %cst_87 = arith.constant dense<0.000000e+00> : vector<256x128xf32>
    %101 = tpu.matmul %98, %100, %cst_87 {dimension_numbers = #tpu.dot_dimension_numbers<[1], [0], [0], [1], [0, 0, 1, 1], [], []>} : vector<256x128xbf16>, vector<128x128xbf16>, vector<256x128xf32> -> vector<256x128xf32>
    %102 = arith.addf %95, %101 : vector<256x128xf32>
    %103 = vector.extract_strided_slice %96 {offsets = [1, 0, 0], sizes = [16, 16, 128], strides = [1, 1, 1]} : vector<18x16x128xbf16> to vector<16x16x128xbf16>
    %104 = vector.shape_cast %103 : vector<16x16x128xbf16> to vector<256x128xbf16>
    %c3_88 = arith.constant 3 : index
    %c0_89 = arith.constant 0 : index
    %c0_90 = arith.constant 0 : index
    %105 = vector.load %arg6[%c3_88, %c0_89, %c0_90] : memref<9x128x128xbf16, #tpu.memory_space<vmem>>, vector<1x128x128xbf16>
    %106 = vector.shape_cast %105 : vector<1x128x128xbf16> to vector<128x128xbf16>
    %cst_91 = arith.constant dense<0.000000e+00> : vector<256x128xf32>
    %107 = tpu.matmul %104, %106, %cst_91 {dimension_numbers = #tpu.dot_dimension_numbers<[1], [0], [0], [1], [0, 0, 1, 1], [], []>} : vector<256x128xbf16>, vector<128x128xbf16>, vector<256x128xf32> -> vector<256x128xf32>
    %108 = arith.addf %102, %107 : vector<256x128xf32>
    %109 = vector.extract_strided_slice %96 {offsets = [2, 0, 0], sizes = [16, 16, 128], strides = [1, 1, 1]} : vector<18x16x128xbf16> to vector<16x16x128xbf16>
    %110 = vector.shape_cast %109 : vector<16x16x128xbf16> to vector<256x128xbf16>
    %c6_92 = arith.constant 6 : index
    %c0_93 = arith.constant 0 : index
    %c0_94 = arith.constant 0 : index
    %111 = vector.load %arg6[%c6_92, %c0_93, %c0_94] : memref<9x128x128xbf16, #tpu.memory_space<vmem>>, vector<1x128x128xbf16>
    %112 = vector.shape_cast %111 : vector<1x128x128xbf16> to vector<128x128xbf16>
    %cst_95 = arith.constant dense<0.000000e+00> : vector<256x128xf32>
    %113 = tpu.matmul %110, %112, %cst_95 {dimension_numbers = #tpu.dot_dimension_numbers<[1], [0], [0], [1], [0, 0, 1, 1], [], []>} : vector<256x128xbf16>, vector<128x128xbf16>, vector<256x128xf32> -> vector<256x128xf32>
    %114 = arith.addf %108, %113 : vector<256x128xf32>
    %c0_96 = arith.constant 0 : index
    %c1_97 = arith.constant 1 : index
    %c0_98 = arith.constant 0 : index
    %115 = vector.load %arg10[%c0_96, %c1_97, %c0_98] : memref<18x18x128xbf16, #tpu.memory_space<vmem>>, vector<18x16x128xbf16>
    %116 = vector.extract_strided_slice %115 {offsets = [0, 0, 0], sizes = [16, 16, 128], strides = [1, 1, 1]} : vector<18x16x128xbf16> to vector<16x16x128xbf16>
    %117 = vector.shape_cast %116 : vector<16x16x128xbf16> to vector<256x128xbf16>
    %c1_99 = arith.constant 1 : index
    %c0_100 = arith.constant 0 : index
    %c0_101 = arith.constant 0 : index
    %118 = vector.load %arg6[%c1_99, %c0_100, %c0_101] : memref<9x128x128xbf16, #tpu.memory_space<vmem>>, vector<1x128x128xbf16>
    %119 = vector.shape_cast %118 : vector<1x128x128xbf16> to vector<128x128xbf16>
    %cst_102 = arith.constant dense<0.000000e+00> : vector<256x128xf32>
    %120 = tpu.matmul %117, %119, %cst_102 {dimension_numbers = #tpu.dot_dimension_numbers<[1], [0], [0], [1], [0, 0, 1, 1], [], []>} : vector<256x128xbf16>, vector<128x128xbf16>, vector<256x128xf32> -> vector<256x128xf32>
    %121 = arith.addf %114, %120 : vector<256x128xf32>
    %122 = vector.extract_strided_slice %115 {offsets = [1, 0, 0], sizes = [16, 16, 128], strides = [1, 1, 1]} : vector<18x16x128xbf16> to vector<16x16x128xbf16>
    %123 = vector.shape_cast %122 : vector<16x16x128xbf16> to vector<256x128xbf16>
    %c4_103 = arith.constant 4 : index
    %c0_104 = arith.constant 0 : index
    %c0_105 = arith.constant 0 : index
    %124 = vector.load %arg6[%c4_103, %c0_104, %c0_105] : memref<9x128x128xbf16, #tpu.memory_space<vmem>>, vector<1x128x128xbf16>
    %125 = vector.shape_cast %124 : vector<1x128x128xbf16> to vector<128x128xbf16>
    %cst_106 = arith.constant dense<0.000000e+00> : vector<256x128xf32>
    %126 = tpu.matmul %123, %125, %cst_106 {dimension_numbers = #tpu.dot_dimension_numbers<[1], [0], [0], [1], [0, 0, 1, 1], [], []>} : vector<256x128xbf16>, vector<128x128xbf16>, vector<256x128xf32> -> vector<256x128xf32>
    %127 = arith.addf %121, %126 : vector<256x128xf32>
    %128 = vector.extract_strided_slice %115 {offsets = [2, 0, 0], sizes = [16, 16, 128], strides = [1, 1, 1]} : vector<18x16x128xbf16> to vector<16x16x128xbf16>
    %129 = vector.shape_cast %128 : vector<16x16x128xbf16> to vector<256x128xbf16>
    %c7_107 = arith.constant 7 : index
    %c0_108 = arith.constant 0 : index
    %c0_109 = arith.constant 0 : index
    %130 = vector.load %arg6[%c7_107, %c0_108, %c0_109] : memref<9x128x128xbf16, #tpu.memory_space<vmem>>, vector<1x128x128xbf16>
    %131 = vector.shape_cast %130 : vector<1x128x128xbf16> to vector<128x128xbf16>
    %cst_110 = arith.constant dense<0.000000e+00> : vector<256x128xf32>
    %132 = tpu.matmul %129, %131, %cst_110 {dimension_numbers = #tpu.dot_dimension_numbers<[1], [0], [0], [1], [0, 0, 1, 1], [], []>} : vector<256x128xbf16>, vector<128x128xbf16>, vector<256x128xf32> -> vector<256x128xf32>
    %133 = arith.addf %127, %132 : vector<256x128xf32>
    %c0_111 = arith.constant 0 : index
    %c2_112 = arith.constant 2 : index
    %c0_113 = arith.constant 0 : index
    %134 = vector.load %arg10[%c0_111, %c2_112, %c0_113] : memref<18x18x128xbf16, #tpu.memory_space<vmem>>, vector<18x16x128xbf16>
    %135 = vector.extract_strided_slice %134 {offsets = [0, 0, 0], sizes = [16, 16, 128], strides = [1, 1, 1]} : vector<18x16x128xbf16> to vector<16x16x128xbf16>
    %136 = vector.shape_cast %135 : vector<16x16x128xbf16> to vector<256x128xbf16>
    %c2_114 = arith.constant 2 : index
    %c0_115 = arith.constant 0 : index
    %c0_116 = arith.constant 0 : index
    %137 = vector.load %arg6[%c2_114, %c0_115, %c0_116] : memref<9x128x128xbf16, #tpu.memory_space<vmem>>, vector<1x128x128xbf16>
    %138 = vector.shape_cast %137 : vector<1x128x128xbf16> to vector<128x128xbf16>
    %cst_117 = arith.constant dense<0.000000e+00> : vector<256x128xf32>
    %139 = tpu.matmul %136, %138, %cst_117 {dimension_numbers = #tpu.dot_dimension_numbers<[1], [0], [0], [1], [0, 0, 1, 1], [], []>} : vector<256x128xbf16>, vector<128x128xbf16>, vector<256x128xf32> -> vector<256x128xf32>
    %140 = arith.addf %133, %139 : vector<256x128xf32>
    %141 = vector.extract_strided_slice %134 {offsets = [1, 0, 0], sizes = [16, 16, 128], strides = [1, 1, 1]} : vector<18x16x128xbf16> to vector<16x16x128xbf16>
    %142 = vector.shape_cast %141 : vector<16x16x128xbf16> to vector<256x128xbf16>
    %c5_118 = arith.constant 5 : index
    %c0_119 = arith.constant 0 : index
    %c0_120 = arith.constant 0 : index
    %143 = vector.load %arg6[%c5_118, %c0_119, %c0_120] : memref<9x128x128xbf16, #tpu.memory_space<vmem>>, vector<1x128x128xbf16>
    %144 = vector.shape_cast %143 : vector<1x128x128xbf16> to vector<128x128xbf16>
    %cst_121 = arith.constant dense<0.000000e+00> : vector<256x128xf32>
    %145 = tpu.matmul %142, %144, %cst_121 {dimension_numbers = #tpu.dot_dimension_numbers<[1], [0], [0], [1], [0, 0, 1, 1], [], []>} : vector<256x128xbf16>, vector<128x128xbf16>, vector<256x128xf32> -> vector<256x128xf32>
    %146 = arith.addf %140, %145 : vector<256x128xf32>
    %147 = vector.extract_strided_slice %134 {offsets = [2, 0, 0], sizes = [16, 16, 128], strides = [1, 1, 1]} : vector<18x16x128xbf16> to vector<16x16x128xbf16>
    %148 = vector.shape_cast %147 : vector<16x16x128xbf16> to vector<256x128xbf16>
    %c8_122 = arith.constant 8 : index
    %c0_123 = arith.constant 0 : index
    %c0_124 = arith.constant 0 : index
    %149 = vector.load %arg6[%c8_122, %c0_123, %c0_124] : memref<9x128x128xbf16, #tpu.memory_space<vmem>>, vector<1x128x128xbf16>
    %150 = vector.shape_cast %149 : vector<1x128x128xbf16> to vector<128x128xbf16>
    %cst_125 = arith.constant dense<0.000000e+00> : vector<256x128xf32>
    %151 = tpu.matmul %148, %150, %cst_125 {dimension_numbers = #tpu.dot_dimension_numbers<[1], [0], [0], [1], [0, 0, 1, 1], [], []>} : vector<256x128xbf16>, vector<128x128xbf16>, vector<256x128xf32> -> vector<256x128xf32>
    %152 = arith.addf %146, %151 : vector<256x128xf32>
    %c0_126 = arith.constant 0 : index
    %c0_127 = arith.constant 0 : index
    %153 = vector.load %arg7[%c0_126, %c0_127] : memref<1x128xf32, #tpu.memory_space<vmem>>, vector<1x128xf32>
    %154 = vector.broadcast %153 : vector<1x128xf32> to vector<256x128xf32>
    %155 = arith.addf %152, %154 : vector<256x128xf32>
    %cst_128 = arith.constant 0.000000e+00 : f32
    %156 = vector.broadcast %cst_128 : f32 to vector<256x128xf32>
    %157 = arith.maximumf %155, %156 : vector<256x128xf32>
    %c0_129 = arith.constant 0 : index
    %c0_130 = arith.constant 0 : index
    %c0_131 = arith.constant 0 : index
    %c0_132 = arith.constant 0 : index
    %158 = vector.load %arg1[%c0_129, %c0_130, %c0_131, %c0_132] : memref<1x16x16x128xf32, #tpu.memory_space<vmem>>, vector<1x16x16x128xf32>
    %159 = vector.shape_cast %158 : vector<1x16x16x128xf32> to vector<16x16x128xf32>
    %160 = vector.shape_cast %159 : vector<16x16x128xf32> to vector<256x128xf32>
    %161 = vector.broadcast %14 : vector<1x128xf32> to vector<256x128xf32>
    %162 = arith.mulf %160, %161 : vector<256x128xf32>
    %163 = arith.addf %157, %162 : vector<256x128xf32>
    %164 = vector.shape_cast %163 : vector<256x128xf32> to vector<16x16x128xf32>
    %c0_133 = arith.constant 0 : index
    %c0_134 = arith.constant 0 : index
    %c0_135 = arith.constant 0 : index
    %c0_136 = arith.constant 0 : index
    %165 = vector.load %arg8[%c0_133, %c0_134, %c0_135, %c0_136] : memref<1x16x16x128xf32, #tpu.memory_space<vmem>>, vector<1x16x16x128xf32>
    %166 = vector.shape_cast %165 : vector<1x16x16x128xf32> to vector<16x16x128xf32>
    %167 = vector.shape_cast %164 : vector<16x16x128xf32> to vector<1x16x16x128xf32>
    tpu.vector_store %arg8[%c0_133, %c0_134, %c0_135, %c0_136], %167 {strides = array<i32>} : memref<1x16x16x128xf32, #tpu.memory_space<vmem>>, vector<1x16x16x128xf32>,
    return
  }
  func.func @transform_0(%arg0: i32) -> (i32, i32, i32, i32) {
    %c0_i32 = arith.constant 0 : i32
    %c0_i32_0 = arith.constant 0 : i32
    %c0_i32_1 = arith.constant 0 : i32
    %c0_i32_2 = arith.constant 0 : i32
    return %arg0, %c0_i32, %c0_i32_0, %c0_i32_1 : i32, i32, i32, i32
  }
  func.func @transform_1(%arg0: i32) -> (i32, i32) {
    %c0_i32 = arith.constant 0 : i32
    %c0_i32_0 = arith.constant 0 : i32
    %c0_i32_1 = arith.constant 0 : i32
    return %c0_i32, %c0_i32_0 : i32, i32
  }
  func.func @transform_2(%arg0: i32) -> (i32, i32) {
    %c0_i32 = arith.constant 0 : i32
    %c0_i32_0 = arith.constant 0 : i32
    %c0_i32_1 = arith.constant 0 : i32
    return %c0_i32, %c0_i32_0 : i32, i32
  }
  func.func @transform_3(%arg0: i32) -> (i32, i32, i32) {
    %c0_i32 = arith.constant 0 : i32
    %c0_i32_0 = arith.constant 0 : i32
    %c0_i32_1 = arith.constant 0 : i32
    %c0_i32_2 = arith.constant 0 : i32
    return %c0_i32, %c0_i32_0, %c0_i32_1 : i32, i32, i32
  }
  func.func @transform_4(%arg0: i32) -> (i32, i32) {
    %c0_i32 = arith.constant 0 : i32
    %c0_i32_0 = arith.constant 0 : i32
    %c0_i32_1 = arith.constant 0 : i32
    return %c0_i32, %c0_i32_0 : i32, i32
  }
  func.func @transform_5(%arg0: i32) -> (i32, i32, i32) {
    %c0_i32 = arith.constant 0 : i32
    %c0_i32_0 = arith.constant 0 : i32
    %c0_i32_1 = arith.constant 0 : i32
    %c0_i32_2 = arith.constant 0 : i32
    return %c0_i32, %c0_i32_0, %c0_i32_1 : i32, i32, i32
  }
  func.func @transform_6(%arg0: i32) -> (i32, i32) {
    %c0_i32 = arith.constant 0 : i32
    %c0_i32_0 = arith.constant 0 : i32
    %c0_i32_1 = arith.constant 0 : i32
    return %c0_i32, %c0_i32_0 : i32, i32
  }
  func.func @transform_7(%arg0: i32) -> (i32, i32, i32, i32) {
    %c0_i32 = arith.constant 0 : i32
    %c0_i32_0 = arith.constant 0 : i32
    %c0_i32_1 = arith.constant 0 : i32
    %c0_i32_2 = arith.constant 0 : i32
    return %arg0, %c0_i32, %c0_i32_0, %c0_i32_1 : i32, i32, i32, i32
  }
}

</mosaic_0001>

<llo_original>
// kernel: motion_encoder_forward.1
$region0: #{motion_encoder_forward.1}
  #allocation0 [shape = 'u32[]', space=smem, size = 0x4, offset = 0x4, fixed_abs, tag = 'smem constant byte address 0x4 - core index']
  #allocation1 [shape = 'u32[144,128]{1,0:T(1,128)}', space=vmem, size = 0x12000, scoped, tag = 'internal scratch']
  #allocation2 [shape = 'bf16[18,18,128]{2,1,0:T(8,128)(2,1)}', space=vmem, size = 0x1b000, scoped, tag = 'scratch operand']
  #allocation3 [shape = 'bf16[18,18,128]{2,1,0:T(8,128)(2,1)}', space=vmem, size = 0x1b000, scoped, tag = 'scratch operand']
  %s0 = inlined_call_operand.vmem [shape: f32[2,16,16,128], index: 0, kind: input, shape index: {}]
  %s1 = inlined_call_operand.vmem [shape: bf16[128,128], index: 1, kind: input, shape index: {}]
  %s2 = inlined_call_operand.vmem [shape: f32[1,128], index: 2, kind: input, shape index: {}]
  %s3 = inlined_call_operand.vmem [shape: bf16[9,128,128], index: 3, kind: input, shape index: {}]
  %s4 = inlined_call_operand.vmem [shape: f32[1,128], index: 4, kind: input, shape index: {}]
  %s5 = inlined_call_operand.vmem [shape: bf16[9,128,128], index: 5, kind: input, shape index: {}]
  %s6 = inlined_call_operand.vmem [shape: f32[1,128], index: 6, kind: input, shape index: {}]
  %s7 = inlined_call_operand.hbm [shape: f32[2,16,16,128], index: 7, kind: output, shape index: {}]
  %s8 = sld [smem:[#allocation0]]
  $region61: #{motion_encoder_forward.1} parent=0
    _
  %s10 = ssub.s32 1, %s8
  %s11 = scalar_select 0, %s10, %s8
  $region1: #{motion_encoder_forward.1} parent=0
    #allocation4 [shape = 'u8[262144]{0}', space=vmem, size = 0x40000, scoped, tag = 'output window, operand 0']
    #allocation5 [shape = 's32[2]{0}', space=sflag, size = 0x8, scoped, tag = 'scoped memory for motion_encoder_forward.1']
    %12 = vsyncpa [#allocation5], 0
    %s13 = scalar_lea.sflag [#allocation5], 1
    %14 = vsyncpa %s13, 0
    loop: start=0, step=1, limit=4
    $region2: #{motion_encoder_forward.1} parent=1 // loop_pre_header
      _
    $region3: #{motion_encoder_forward.1} parent=1 // loop_header
      %s16 = sphi 0, %s20
      %p17 = scmp.ge.s32.totalorder %s16, 4
      %s26 = sphi 0, %s28
      %s29 = sphi 0, %s26
      %s30 = sphi 0, %s29
      %s46 = sphi 0, %s30
      %s50 = sphi 0, %s50
      %s52 = sphi 0, %s50
      %s53 = sphi 0, %s52
      %s67 = sphi 0, %s53
      %s71 = sphi 0, %s71
      %s73 = sphi 0, %s71
      %s74 = sphi 0, %s73
      %s88 = sphi 0, %s74
      %s92 = sphi 0, %s92
      %s94 = sphi 0, %s92
      %s95 = sphi 0, %s94
      %s109 = sphi 0, %s95
      %s113 = sphi 0, %s113
      %s115 = sphi 0, %s113
      %s116 = sphi 0, %s115
      %s130 = sphi 0, %s116
      %s134 = sphi 0, %s134
      %s136 = sphi 0, %s134
      %s137 = sphi 0, %s136
      %s151 = sphi 0, %s137
      %s155 = sphi 0, %s155
      %s157 = sphi 0, %s155
      %s158 = sphi 0, %s157
      %s172 = sphi 0, %s158
      %s178 = sphi 0, %s180
      %s181 = sphi 0, %s178
      %s182 = sphi 0, %s181
      %s198 = sphi 0, %s182
    $region4: #{motion_encoder_forward.1} parent=1 // loop_header_branch
      %19 = sbr.rel (%p17) target = $region8
    $region5: #{motion_encoder_forward.1} parent=1 // loop_body
      %s21 = ssub.s32 %s16, 1
      %s22 = ssub.s32 %s16, 2
      %s23 = sadd.s32 %s16, 1
      %s24 = ssub.s32 %s16, %s23
      %p25 = scmp.eq.s32.totalorder %s24, 0
      %s27 = sadd.s32 %s26, 1
      %s28 = scalar_select %p25, %s26, %s27
      %p31 = pneg %p25
      %p32 = scmp.eq.s32.totalorder %s16, 1
      %p33 = por %p31, %p32
      %p34 = scmp.ne.s32.totalorder %s26, %s29
      %p35 = scmp.eq.s32.totalorder %s16, 0
      %p36 = por %p34, %p35
      %p37 = scmp.ne.s32.totalorder %s26, %s29
      %p38 = scmp.eq.s32.totalorder %s21, 1
      %p39 = por %p37, %p38
      %p40 = scmp.ne.s32.totalorder %s29, %s30
      %p41 = scmp.eq.s32.totalorder %s21, 0
      %p42 = por %p40, %p41
      %p43 = scmp.ne.s32.totalorder %s29, %s30
      %p44 = scmp.eq.s32.totalorder %s22, 1
      %p45 = por %p43, %p44
      %p47 = scmp.ne.s32.totalorder %s30, %s46
      %p48 = scmp.eq.s32.totalorder %s22, 0
      %p49 = por %p47, %p48
      %s51 = sadd.s32 %s50, 1
      %p54 = scmp.eq.s32.totalorder %s16, 1
      %p55 = scmp.ne.s32.totalorder %s50, %s52
      %p56 = scmp.eq.s32.totalorder %s16, 0
      %p57 = por %p55, %p56
      %p58 = scmp.ne.s32.totalorder %s50, %s52
      %p59 = scmp.eq.s32.totalorder %s21, 1
      %p60 = por %p58, %p59
      %p61 = scmp.ne.s32.totalorder %s52, %s53
      %p62 = scmp.eq.s32.totalorder %s21, 0
      %p63 = por %p61, %p62
      %p64 = scmp.ne.s32.totalorder %s52, %s53
      %p65 = scmp.eq.s32.totalorder %s22, 1
      %p66 = por %p64, %p65
      %p68 = scmp.ne.s32.totalorder %s53, %s67
      %p69 = scmp.eq.s32.totalorder %s22, 0
      %p70 = por %p68, %p69
      %s72 = sadd.s32 %s71, 1
      %p75 = scmp.eq.s32.totalorder %s16, 1
      %p76 = scmp.ne.s32.totalorder %s71, %s73
      %p77 = scmp.eq.s32.totalorder %s16, 0
      %p78 = por %p76, %p77
      %p79 = scmp.ne.s32.totalorder %s71, %s73
      %p80 = scmp.eq.s32.totalorder %s21, 1
      %p81 = por %p79, %p80
      %p82 = scmp.ne.s32.totalorder %s73, %s74
      %p83 = scmp.eq.s32.totalorder %s21, 0
      %p84 = por %p82, %p83
      %p85 = scmp.ne.s32.totalorder %s73, %s74
      %p86 = scmp.eq.s32.totalorder %s22, 1
      %p87 = por %p85, %p86
      %p89 = scmp.ne.s32.totalorder %s74, %s88
      %p90 = scmp.eq.s32.totalorder %s22, 0
      %p91 = por %p89, %p90
      %s93 = sadd.s32 %s92, 1
      %p96 = scmp.eq.s32.totalorder %s16, 1
      %p97 = scmp.ne.s32.totalorder %s92, %s94
      %p98 = scmp.eq.s32.totalorder %s16, 0
      %p99 = por %p97, %p98
      %p100 = scmp.ne.s32.totalorder %s92, %s94
      %p101 = scmp.eq.s32.totalorder %s21, 1
      %p102 = por %p100, %p101
      %p103 = scmp.ne.s32.totalorder %s94, %s95
      %p104 = scmp.eq.s32.totalorder %s21, 0
      %p105 = por %p103, %p104
      %p106 = scmp.ne.s32.totalorder %s94, %s95
      %p107 = scmp.eq.s32.totalorder %s22, 1
      %p108 = por %p106, %p107
      %p110 = scmp.ne.s32.totalorder %s95, %s109
      %p111 = scmp.eq.s32.totalorder %s22, 0
      %p112 = por %p110, %p111
      %s114 = sadd.s32 %s113, 1
      %p117 = scmp.eq.s32.totalorder %s16, 1
      %p118 = scmp.ne.s32.totalorder %s113, %s115
      %p119 = scmp.eq.s32.totalorder %s16, 0
      %p120 = por %p118, %p119
      %p121 = scmp.ne.s32.totalorder %s113, %s115
      %p122 = scmp.eq.s32.totalorder %s21, 1
      %p123 = por %p121, %p122
      %p124 = scmp.ne.s32.totalorder %s115, %s116
      %p125 = scmp.eq.s32.totalorder %s21, 0
      %p126 = por %p124, %p125
      %p127 = scmp.ne.s32.totalorder %s115, %s116
      %p128 = scmp.eq.s32.totalorder %s22, 1
      %p129 = por %p127, %p128
      %p131 = scmp.ne.s32.totalorder %s116, %s130
      %p132 = scmp.eq.s32.totalorder %s22, 0
      %p133 = por %p131, %p132
      %s135 = sadd.s32 %s134, 1
      %p138 = scmp.eq.s32.totalorder %s16, 1
      %p139 = scmp.ne.s32.totalorder %s134, %s136
      %p140 = scmp.eq.s32.totalorder %s16, 0
      %p141 = por %p139, %p140
      %p142 = scmp.ne.s32.totalorder %s134, %s136
      %p143 = scmp.eq.s32.totalorder %s21, 1
      %p144 = por %p142, %p143
      %p145 = scmp.ne.s32.totalorder %s136, %s137
      %p146 = scmp.eq.s32.totalorder %s21, 0
      %p147 = por %p145, %p146
      %p148 = scmp.ne.s32.totalorder %s136, %s137
      %p149 = scmp.eq.s32.totalorder %s22, 1
      %p150 = por %p148, %p149
      %p152 = scmp.ne.s32.totalorder %s137, %s151
      %p153 = scmp.eq.s32.totalorder %s22, 0
      %p154 = por %p152, %p153
      %s156 = sadd.s32 %s155, 1
      %p159 = scmp.eq.s32.totalorder %s16, 1
      %p160 = scmp.ne.s32.totalorder %s155, %s157
      %p161 = scmp.eq.s32.totalorder %s16, 0
      %p162 = por %p160, %p161
      %p163 = scmp.ne.s32.totalorder %s155, %s157
      %p164 = scmp.eq.s32.totalorder %s21, 1
      %p165 = por %p163, %p164
      %p166 = scmp.ne.s32.totalorder %s157, %s158
      %p167 = scmp.eq.s32.totalorder %s21, 0
      %p168 = por %p166, %p167
      %p169 = scmp.ne.s32.totalorder %s157, %s158
      %p170 = scmp.eq.s32.totalorder %s22, 1
      %p171 = por %p169, %p170
      %p173 = scmp.ne.s32.totalorder %s158, %s172
      %p174 = scmp.eq.s32.totalorder %s22, 0
      %p175 = por %p173, %p174
      %s176 = ssub.s32 %s16, %s23
      %p177 = scmp.eq.s32.totalorder %s176, 0
      %s179 = sadd.s32 %s178, 1
      %s180 = scalar_select %p177, %s178, %s179
      %p183 = pneg %p177
      %p184 = scmp.eq.s32.totalorder %s16, 1
      %p185 = por %p183, %p184
      %p186 = scmp.ne.s32.totalorder %s178, %s181
      %p187 = scmp.eq.s32.totalorder %s16, 0
      %p188 = por %p186, %p187
      %p189 = scmp.ne.s32.totalorder %s178, %s181
      %p190 = scmp.eq.s32.totalorder %s21, 1
      %p191 = por %p189, %p190
      %p192 = scmp.ne.s32.totalorder %s181, %s182
      %p193 = scmp.eq.s32.totalorder %s21, 0
      %p194 = por %p192, %p193
      %p195 = scmp.ne.s32.totalorder %s181, %s182
      %p196 = scmp.eq.s32.totalorder %s22, 1
      %p197 = por %p195, %p196
      %p199 = scmp.ne.s32.totalorder %s182, %s198
      %p200 = scmp.eq.s32.totalorder %s22, 0
      %p201 = por %p199, %p200
      %p202 = scmp.le.s32.totalorder 1, %s16
      %p203 = scmp.lt.s32.totalorder %s16, 3
      %p204 = pnand %p202, %p203
      %p205 = pneg %p204
      // Predicated region
      $region9: #{motion_encoder_forward.1} parent=5 // pred_check
        _
      $region10: #{motion_encoder_forward.1} parent=5 // pred_check_branch
        %207 = sbr.rel (%p204) target = $region12
      $region11: #{motion_encoder_forward.1} parent=5 // pred_region
        %s208 = ssub.s32 %s16, 1
        // Predicated region
        $region13: #{motion_encoder_forward.1} parent=11 // pred_check
          %p209 = pneg %p63
        $region14: #{motion_encoder_forward.1} parent=11 // pred_check_branch
          %211 = sbr.rel (%p209) target = $region16
        $region15: #{motion_encoder_forward.1} parent=11 // pred_region
          _
        $region16: #{motion_encoder_forward.1} parent=11 // pred_fallthru
          _
        // Predicated region
        $region17: #{motion_encoder_forward.1} parent=11 // pred_check
          %p212 = pneg %p84
        $region18: #{motion_encoder_forward.1} parent=11 // pred_check_branch
          %214 = sbr.rel (%p212) target = $region20
        $region19: #{motion_encoder_forward.1} parent=11 // pred_region
          _
        $region20: #{motion_encoder_forward.1} parent=11 // pred_fallthru
          _
        // Predicated region
        $region21: #{motion_encoder_forward.1} parent=11 // pred_check
          %p215 = pneg %p105
        $region22: #{motion_encoder_forward.1} parent=11 // pred_check_branch
          %217 = sbr.rel (%p215) target = $region24
        $region23: #{motion_encoder_forward.1} parent=11 // pred_region
          _
        $region24: #{motion_encoder_forward.1} parent=11 // pred_fallthru
          _
        // Predicated region
        $region25: #{motion_encoder_forward.1} parent=11 // pred_check
          %p218 = pneg %p126
        $region26: #{motion_encoder_forward.1} parent=11 // pred_check_branch
          %220 = sbr.rel (%p218) target = $region28
        $region27: #{motion_encoder_forward.1} parent=11 // pred_region
          _
        $region28: #{motion_encoder_forward.1} parent=11 // pred_fallthru
          _
        // Predicated region
        $region29: #{motion_encoder_forward.1} parent=11 // pred_check
          %p221 = pneg %p147
        $region30: #{motion_encoder_forward.1} parent=11 // pred_check_branch
          %223 = sbr.rel (%p221) target = $region32
        $region31: #{motion_encoder_forward.1} parent=11 // pred_region
          _
        $region32: #{motion_encoder_forward.1} parent=11 // pred_fallthru
          _
        // Predicated region
        $region33: #{motion_encoder_forward.1} parent=11 // pred_check
          %p224 = pneg %p168
        $region34: #{motion_encoder_forward.1} parent=11 // pred_check_branch
          %226 = sbr.rel (%p224) target = $region36
        $region35: #{motion_encoder_forward.1} parent=11 // pred_region
          _
        $region36: #{motion_encoder_forward.1} parent=11 // pred_fallthru
          _
      $region12: #{motion_encoder_forward.1} parent=5 // pred_fallthru
        _
      %p227 = scmp.lt.s32.totalorder %s16, 2
      // Predicated region
      $region37: #{motion_encoder_forward.1} parent=5 // pred_check
        %p228 = pneg %p227
      $region38: #{motion_encoder_forward.1} parent=5 // pred_check_branch
        %230 = sbr.rel (%p228) target = $region40
      $region39: #{motion_encoder_forward.1} parent=5 // pred_region
        // Predicated region
        $region41: #{motion_encoder_forward.1} parent=39 // pred_check
          %p231 = pneg %p36
        $region42: #{motion_encoder_forward.1} parent=39 // pred_check_branch
          %233 = sbr.rel (%p231) target = $region44
        $region43: #{motion_encoder_forward.1} parent=39 // pred_region
          %p234 = scmp.lt.s32.totalorder %s16, 1
          %s235 = scalar_select %p234, %s16, 1
          %s236 = smul.addr %s235, 32
          %s237 = smul.addr %s236, 8
          %s238 = scalar_lea.vmem %s0, %s237
        $region44: #{motion_encoder_forward.1} parent=39 // pred_fallthru
          _
      $region40: #{motion_encoder_forward.1} parent=5 // pred_fallthru
        _
      %p239 = scmp.le.s32.totalorder 1, %s16
      %p240 = scmp.lt.s32.totalorder %s16, 3
      %p241 = pnand %p239, %p240
      %p242 = pneg %p241
      // Predicated region
      $region45: #{motion_encoder_forward.1} parent=5 // pred_check
        _
      $region46: #{motion_encoder_forward.1} parent=5 // pred_check_branch
        %244 = sbr.rel (%p241) target = $region48
      $region47: #{motion_encoder_forward.1} parent=5 // pred_region
        %s245 = ssub.s32 %s16, 1
        %p246 = scmp.lt.s32.totalorder %s21, 1
        %s247 = scalar_select %p246, %s21, 1
        %s248 = smul.addr %s247, 32
        %s249 = smul.addr %s248, 8
        %s250 = scalar_lea.vmem %s0, %s249
        %p251 = pneg %p42
        %p252 = pneg %p39
        %p253 = pneg %p63
        %p254 = pneg %p60
        %p255 = pneg %p84
        %p256 = pneg %p81
        %p257 = pneg %p105
        %p258 = pneg %p102
        %p259 = pneg %p126
        %p260 = pneg %p123
        %p261 = pneg %p147
        %p262 = pneg %p144
        %p263 = pneg %p168
        %p264 = pneg %p165
        %p265 = pneg %p194
        %p266 = pneg %p191
        %s267 = sand.u32 %s181, 1
        %s268 = scalar_lea.sflag [#allocation5], %s267
        %s269 = sand.u32 %s181, 1
        %s270 = smul.addr %s269, 256
        %s271 = scalar_lea.vmem [#allocation4], %s270
        %p272 = scmp.lt.s32.totalorder %s21, 1
        %s273 = scalar_select %p272, %s21, 1
        %s274 = smul.addr %s273, 32
        %s275 = smul.addr %s274, 8
        %s276 = scalar_lea.vmem %s0, %s275
        %278 = vst [vmem:[#allocation2] sm:$0xf] 0
        %279 = vst [vmem:[#allocation2 + $0x4] sm:$0xf] 0
        %280 = vst [vmem:[#allocation2 + $0x8] sm:$0x1] 0
        %s281 = scalar_lea.vmem [#allocation2], 204
        %282 = vst [vmem:[%s281] sm:$0xf] 0
        %283 = vst [vmem:[%s281 + $0x4] sm:$0xf] 0
        %284 = vst [vmem:[%s281 + $0x8] sm:$0x1] 0
        %vm285 = vcmask 1040384
        %vm286 = vsmask.f32 256
        %vm287 = vmand %vm285, %vm286
        %v288 = vld [vmem:[#allocation2] sm:$0x1]
        %v289 = vsel %vm287, 0, %v288
        %290 = vst [vmem:[#allocation2] sm:$0x1] %v289
        %v291 = vld [vmem:[#allocation2 + $0xc] sm:$0x1]
        %v292 = vsel %vm287, 0, %v291
        %293 = vst [vmem:[#allocation2 + $0xc] sm:$0x1] %v292
        %v294 = vld [vmem:[#allocation2 + $0x18] sm:$0x1]
        %v295 = vsel %vm287, 0, %v294
        %296 = vst [vmem:[#allocation2 + $0x18] sm:$0x1] %v295
        %v297 = vld [vmem:[#allocation2 + $0x24] sm:$0x1]
        %v298 = vsel %vm287, 0, %v297
        %299 = vst [vmem:[#allocation2 + $0x24] sm:$0x1] %v298
        %v300 = vld [vmem:[#allocation2 + $0x30] sm:$0x1]
        %v301 = vsel %vm287, 0, %v300
        %302 = vst [vmem:[#allocation2 + $0x30] sm:$0x1] %v301
        %v303 = vld [vmem:[#allocation2 + $0x3c] sm:$0x1]
        %v304 = vsel %vm287, 0, %v303
        %305 = vst [vmem:[#allocation2 + $0x3c] sm:$0x1] %v304
        %v306 = vld [vmem:[#allocation2 + $0x48] sm:$0x1]
        %v307 = vsel %vm287, 0, %v306
        %308 = vst [vmem:[#allocation2 + $0x48] sm:$0x1] %v307
        %v309 = vld [vmem:[#allocation2 + $0x54] sm:$0x1]
        %v310 = vsel %vm287, 0, %v309
        %311 = vst [vmem:[#allocation2 + $0x54] sm:$0x1] %v310
        %v312 = vld [vmem:[#allocation2 + $0x60] sm:$0x1]
        %v313 = vsel %vm287, 0, %v312
        %314 = vst [vmem:[#allocation2 + $0x60] sm:$0x1] %v313
        %v315 = vld [vmem:[#allocation2 + $0x6c] sm:$0x1]
        %v316 = vsel %vm287, 0, %v315
        %317 = vst [vmem:[#allocation2 + $0x6c] sm:$0x1] %v316
        %v318 = vld [vmem:[#allocation2 + $0x78] sm:$0x1]
        %v319 = vsel %vm287, 0, %v318
        %320 = vst [vmem:[#allocation2 + $0x78] sm:$0x1] %v319
        %v321 = vld [vmem:[#allocation2 + $0x84] sm:$0x1]
        %v322 = vsel %vm287, 0, %v321
        %323 = vst [vmem:[#allocation2 + $0x84] sm:$0x1] %v322
        %v324 = vld [vmem:[#allocation2 + $0x90] sm:$0x1]
        %v325 = vsel %vm287, 0, %v324
        %326 = vst [vmem:[#allocation2 + $0x90] sm:$0x1] %v325
        %v327 = vld [vmem:[#allocation2 + $0x9c] sm:$0x1]
        %v328 = vsel %vm287, 0, %v327
        %329 = vst [vmem:[#allocation2 + $0x9c] sm:$0x1] %v328
        %v330 = vld [vmem:[#allocation2 + $0xa8] sm:$0x1]
        %v331 = vsel %vm287, 0, %v330
        %332 = vst [vmem:[#allocation2 + $0xa8] sm:$0x1] %v331
        %v333 = vld [vmem:[#allocation2 + $0xb4] sm:$0x1]
        %v334 = vsel %vm287, 0, %v333
        %335 = vst [vmem:[#allocation2 + $0xb4] sm:$0x1] %v334
        %v336 = vld [vmem:[#allocation2 + $0xc0] sm:$0x1]
        %v337 = vsel %vm287, 0, %v336
        %338 = vst [vmem:[#allocation2 + $0xc0] sm:$0x1] %v337
        %v339 = vld [vmem:[#allocation2 + $0xcc] sm:$0x1]
        %v340 = vsel %vm287, 0, %v339
        %341 = vst [vmem:[#allocation2 + $0xcc] sm:$0x1] %v340
        %vm342 = vsmask.f32 7938
        %vm343 = vmand %vm285, %vm342
        %v344 = vld [vmem:[#allocation2 + $0x8] sm:$0x1]
        %v345 = vsel %vm343, 0, %v344
        %346 = vst [vmem:[#allocation2 + $0x8] sm:$0x1] %v345
        %v347 = vld [vmem:[#allocation2 + $0x14] sm:$0x1]
        %v348 = vsel %vm343, 0, %v347
        %349 = vst [vmem:[#allocation2 + $0x14] sm:$0x1] %v348
        %v350 = vld [vmem:[#allocation2 + $0x20] sm:$0x1]
        %v351 = vsel %vm343, 0, %v350
        %352 = vst [vmem:[#allocation2 + $0x20] sm:$0x1] %v351
        %v353 = vld [vmem:[#allocation2 + $0x2c] sm:$0x1]
        %v354 = vsel %vm343, 0, %v353
        %355 = vst [vmem:[#allocation2 + $0x2c] sm:$0x1] %v354
        %v356 = vld [vmem:[#allocation2 + $0x38] sm:$0x1]
        %v357 = vsel %vm343, 0, %v356
        %358 = vst [vmem:[#allocation2 + $0x38] sm:$0x1] %v357
        %v359 = vld [vmem:[#allocation2 + $0x44] sm:$0x1]
        %v360 = vsel %vm343, 0, %v359
        %361 = vst [vmem:[#allocation2 + $0x44] sm:$0x1] %v360
        %v362 = vld [vmem:[#allocation2 + $0x50] sm:$0x1]
        %v363 = vsel %vm343, 0, %v362
        %364 = vst [vmem:[#allocation2 + $0x50] sm:$0x1] %v363
        %v365 = vld [vmem:[#allocation2 + $0x5c] sm:$0x1]
        %v366 = vsel %vm343, 0, %v365
        %367 = vst [vmem:[#allocation2 + $0x5c] sm:$0x1] %v366
        %v368 = vld [vmem:[#allocation2 + $0x68] sm:$0x1]
        %v369 = vsel %vm343, 0, %v368
        %370 = vst [vmem:[#allocation2 + $0x68] sm:$0x1] %v369
        %v371 = vld [vmem:[#allocation2 + $0x74] sm:$0x1]
        %v372 = vsel %vm343, 0, %v371
        %373 = vst [vmem:[#allocation2 + $0x74] sm:$0x1] %v372
        %v374 = vld [vmem:[#allocation2 + $0x80] sm:$0x1]
        %v375 = vsel %vm343, 0, %v374
        %376 = vst [vmem:[#allocation2 + $0x80] sm:$0x1] %v375
        %v377 = vld [vmem:[#allocation2 + $0x8c] sm:$0x1]
        %v378 = vsel %vm343, 0, %v377
        %379 = vst [vmem:[#allocation2 + $0x8c] sm:$0x1] %v378
        %v380 = vld [vmem:[#allocation2 + $0x98] sm:$0x1]
        %v381 = vsel %vm343, 0, %v380
        %382 = vst [vmem:[#allocation2 + $0x98] sm:$0x1] %v381
        %v383 = vld [vmem:[#allocation2 + $0xa4] sm:$0x1]
        %v384 = vsel %vm343, 0, %v383
        %385 = vst [vmem:[#allocation2 + $0xa4] sm:$0x1] %v384
        %v386 = vld [vmem:[#allocation2 + $0xb0] sm:$0x1]
        %v387 = vsel %vm343, 0, %v386
        %388 = vst [vmem:[#allocation2 + $0xb0] sm:$0x1] %v387
        %v389 = vld [vmem:[#allocation2 + $0xbc] sm:$0x1]
        %v390 = vsel %vm343, 0, %v389
        %391 = vst [vmem:[#allocation2 + $0xbc] sm:$0x1] %v390
        %v392 = vld [vmem:[#allocation2 + $0xc8] sm:$0x1]
        %v393 = vsel %vm343, 0, %v392
        %394 = vst [vmem:[#allocation2 + $0xc8] sm:$0x1] %v393
        %v395 = vld [vmem:[#allocation2 + $0xd4] sm:$0x1]
        %v396 = vsel %vm343, 0, %v395
        %397 = vst [vmem:[#allocation2 + $0xd4] sm:$0x1] %v396
        %398 = vst [vmem:[#allocation3] sm:$0xf] 0
        %399 = vst [vmem:[#allocation3 + $0x4] sm:$0xf] 0
        %400 = vst [vmem:[#allocation3 + $0x8] sm:$0x1] 0
        %s401 = scalar_lea.vmem [#allocation3], 204
        %402 = vst [vmem:[%s401] sm:$0xf] 0
        %403 = vst [vmem:[%s401 + $0x4] sm:$0xf] 0
        %404 = vst [vmem:[%s401 + $0x8] sm:$0x1] 0
        %v405 = vld [vmem:[#allocation3] sm:$0x1]
        %v406 = vsel %vm287, 0, %v405
        %407 = vst [vmem:[#allocation3] sm:$0x1] %v406
        %v408 = vld [vmem:[#allocation3 + $0xc] sm:$0x1]
        %v409 = vsel %vm287, 0, %v408
        %410 = vst [vmem:[#allocation3 + $0xc] sm:$0x1] %v409
        %v411 = vld [vmem:[#allocation3 + $0x18] sm:$0x1]
        %v412 = vsel %vm287, 0, %v411
        %413 = vst [vmem:[#allocation3 + $0x18] sm:$0x1] %v412
        %v414 = vld [vmem:[#allocation3 + $0x24] sm:$0x1]
        %v415 = vsel %vm287, 0, %v414
        %416 = vst [vmem:[#allocation3 + $0x24] sm:$0x1] %v415
        %v417 = vld [vmem:[#allocation3 + $0x30] sm:$0x1]
        %v418 = vsel %vm287, 0, %v417
        %419 = vst [vmem:[#allocation3 + $0x30] sm:$0x1] %v418
        %v420 = vld [vmem:[#allocation3 + $0x3c] sm:$0x1]
        %v421 = vsel %vm287, 0, %v420
        %422 = vst [vmem:[#allocation3 + $0x3c] sm:$0x1] %v421
        %v423 = vld [vmem:[#allocation3 + $0x48] sm:$0x1]
        %v424 = vsel %vm287, 0, %v423
        %425 = vst [vmem:[#allocation3 + $0x48] sm:$0x1] %v424
        %v426 = vld [vmem:[#allocation3 + $0x54] sm:$0x1]
        %v427 = vsel %vm287, 0, %v426
        %428 = vst [vmem:[#allocation3 + $0x54] sm:$0x1] %v427
        %v429 = vld [vmem:[#allocation3 + $0x60] sm:$0x1]
        %v430 = vsel %vm287, 0, %v429
        %431 = vst [vmem:[#allocation3 + $0x60] sm:$0x1] %v430
        %v432 = vld [vmem:[#allocation3 + $0x6c] sm:$0x1]
        %v433 = vsel %vm287, 0, %v432
        %434 = vst [vmem:[#allocation3 + $0x6c] sm:$0x1] %v433
        %v435 = vld [vmem:[#allocation3 + $0x78] sm:$0x1]
        %v436 = vsel %vm287, 0, %v435
        %437 = vst [vmem:[#allocation3 + $0x78] sm:$0x1] %v436
        %v438 = vld [vmem:[#allocation3 + $0x84] sm:$0x1]
        %v439 = vsel %vm287, 0, %v438
        %440 = vst [vmem:[#allocation3 + $0x84] sm:$0x1] %v439
        %v441 = vld [vmem:[#allocation3 + $0x90] sm:$0x1]
        %v442 = vsel %vm287, 0, %v441
        %443 = vst [vmem:[#allocation3 + $0x90] sm:$0x1] %v442
        %v444 = vld [vmem:[#allocation3 + $0x9c] sm:$0x1]
        %v445 = vsel %vm287, 0, %v444
        %446 = vst [vmem:[#allocation3 + $0x9c] sm:$0x1] %v445
        %v447 = vld [vmem:[#allocation3 + $0xa8] sm:$0x1]
        %v448 = vsel %vm287, 0, %v447
        %449 = vst [vmem:[#allocation3 + $0xa8] sm:$0x1] %v448
        %v450 = vld [vmem:[#allocation3 + $0xb4] sm:$0x1]
        %v451 = vsel %vm287, 0, %v450
        %452 = vst [vmem:[#allocation3 + $0xb4] sm:$0x1] %v451
        %v453 = vld [vmem:[#allocation3 + $0xc0] sm:$0x1]
        %v454 = vsel %vm287, 0, %v453
        %455 = vst [vmem:[#allocation3 + $0xc0] sm:$0x1] %v454
        %v456 = vld [vmem:[#allocation3 + $0xcc] sm:$0x1]
        %v457 = vsel %vm287, 0, %v456
        %458 = vst [vmem:[#allocation3 + $0xcc] sm:$0x1] %v457
        %v459 = vld [vmem:[#allocation3 + $0x8] sm:$0x1]
        %v460 = vsel %vm343, 0, %v459
        %461 = vst [vmem:[#allocation3 + $0x8] sm:$0x1] %v460
        %v462 = vld [vmem:[#allocation3 + $0x14] sm:$0x1]
        %v463 = vsel %vm343, 0, %v462
        %464 = vst [vmem:[#allocation3 + $0x14] sm:$0x1] %v463
        %v465 = vld [vmem:[#allocation3 + $0x20] sm:$0x1]
        %v466 = vsel %vm343, 0, %v465
        %467 = vst [vmem:[#allocation3 + $0x20] sm:$0x1] %v466
        %v468 = vld [vmem:[#allocation3 + $0x2c] sm:$0x1]
        %v469 = vsel %vm343, 0, %v468
        %470 = vst [vmem:[#allocation3 + $0x2c] sm:$0x1] %v469
        %v471 = vld [vmem:[#allocation3 + $0x38] sm:$0x1]
        %v472 = vsel %vm343, 0, %v471
        %473 = vst [vmem:[#allocation3 + $0x38] sm:$0x1] %v472
        %v474 = vld [vmem:[#allocation3 + $0x44] sm:$0x1]
        %v475 = vsel %vm343, 0, %v474
        %476 = vst [vmem:[#allocation3 + $0x44] sm:$0x1] %v475
        %v477 = vld [vmem:[#allocation3 + $0x50] sm:$0x1]
        %v478 = vsel %vm343, 0, %v477
        %479 = vst [vmem:[#allocation3 + $0x50] sm:$0x1] %v478
        %v480 = vld [vmem:[#allocation3 + $0x5c] sm:$0x1]
        %v481 = vsel %vm343, 0, %v480
        %482 = vst [vmem:[#allocation3 + $0x5c] sm:$0x1] %v481
        %v483 = vld [vmem:[#allocation3 + $0x68] sm:$0x1]
        %v484 = vsel %vm343, 0, %v483
        %485 = vst [vmem:[#allocation3 + $0x68] sm:$0x1] %v484
        %v486 = vld [vmem:[#allocation3 + $0x74] sm:$0x1]
        %v487 = vsel %vm343, 0, %v486
        %488 = vst [vmem:[#allocation3 + $0x74] sm:$0x1] %v487
        %v489 = vld [vmem:[#allocation3 + $0x80] sm:$0x1]
        %v490 = vsel %vm343, 0, %v489
        %491 = vst [vmem:[#allocation3 + $0x80] sm:$0x1] %v490
        %v492 = vld [vmem:[#allocation3 + $0x8c] sm:$0x1]
        %v493 = vsel %vm343, 0, %v492
        %494 = vst [vmem:[#allocation3 + $0x8c] sm:$0x1] %v493
        %v495 = vld [vmem:[#allocation3 + $0x98] sm:$0x1]
        %v496 = vsel %vm343, 0, %v495
        %497 = vst [vmem:[#allocation3 + $0x98] sm:$0x1] %v496
        %v498 = vld [vmem:[#allocation3 + $0xa4] sm:$0x1]
        %v499 = vsel %vm343, 0, %v498
        %500 = vst [vmem:[#allocation3 + $0xa4] sm:$0x1] %v499
        %v501 = vld [vmem:[#allocation3 + $0xb0] sm:$0x1]
        %v502 = vsel %vm343, 0, %v501
        %503 = vst [vmem:[#allocation3 + $0xb0] sm:$0x1] %v502
        %v504 = vld [vmem:[#allocation3 + $0xbc] sm:$0x1]
        %v505 = vsel %vm343, 0, %v504
        %506 = vst [vmem:[#allocation3 + $0xbc] sm:$0x1] %v505
        %v507 = vld [vmem:[#allocation3 + $0xc8] sm:$0x1]
        %v508 = vsel %vm343, 0, %v507
        %509 = vst [vmem:[#allocation3 + $0xc8] sm:$0x1] %v508
        %v510 = vld [vmem:[#allocation3 + $0xd4] sm:$0x1]
        %v511 = vsel %vm343, 0, %v510
        %512 = vst [vmem:[#allocation3 + $0xd4] sm:$0x1] %v511
        %v513 = vlaneseq
        %v514 = vand.u32 %v513, 127
        %vm515 = vcmp.eq.s32.totalorder %v514, 127
        %v516 = vsel %vm515, 1, 0
        %v517 = vcvt.s32.f32 %v516
        %v518 = vld [vmem:[%s276] sm:$0xff]
        %v519 = vld [vmem:[%s276 + $0x8] sm:$0xff]
        %v520 = vld [vmem:[%s276 + $0x10] sm:$0xff]
        %v521 = vld [vmem:[%s276 + $0x18] sm:$0xff]
        %v522 = vld [vmem:[%s276 + $0x20] sm:$0xff]
        %v523 = vld [vmem:[%s276 + $0x28] sm:$0xff]
        %v524 = vld [vmem:[%s276 + $0x30] sm:$0xff]
        %v525 = vld [vmem:[%s276 + $0x38] sm:$0xff]
        %v526 = vld [vmem:[%s276 + $0x40] sm:$0xff]
        %v527 = vld [vmem:[%s276 + $0x48] sm:$0xff]
        %v528 = vld [vmem:[%s276 + $0x50] sm:$0xff]
        %v529 = vld [vmem:[%s276 + $0x58] sm:$0xff]
        %v530 = vld [vmem:[%s276 + $0x60] sm:$0xff]
        %v531 = vld [vmem:[%s276 + $0x68] sm:$0xff]
        %v532 = vld [vmem:[%s276 + $0x70] sm:$0xff]
        %v533 = vld [vmem:[%s276 + $0x78] sm:$0xff]
        %v534 = vld [vmem:[%s276 + $0x80] sm:$0xff]
        %v535 = vld [vmem:[%s276 + $0x88] sm:$0xff]
        %v536 = vld [vmem:[%s276 + $0x90] sm:$0xff]
        %v537 = vld [vmem:[%s276 + $0x98] sm:$0xff]
        %v538 = vld [vmem:[%s276 + $0xa0] sm:$0xff]
        %v539 = vld [vmem:[%s276 + $0xa8] sm:$0xff]
        %v540 = vld [vmem:[%s276 + $0xb0] sm:$0xff]
        %v541 = vld [vmem:[%s276 + $0xb8] sm:$0xff]
        %v542 = vld [vmem:[%s276 + $0xc0] sm:$0xff]
        %v543 = vld [vmem:[%s276 + $0xc8] sm:$0xff]
        %v544 = vld [vmem:[%s276 + $0xd0] sm:$0xff]
        %v545 = vld [vmem:[%s276 + $0xd8] sm:$0xff]
        %v546 = vld [vmem:[%s276 + $0xe0] sm:$0xff]
        %v547 = vld [vmem:[%s276 + $0xe8] sm:$0xff]
        %v548 = vld [vmem:[%s276 + $0xf0] sm:$0xff]
        %v549 = vld [vmem:[%s276 + $0xf8] sm:$0xff]
        %v550 = vpack.c.bf16 %v519, %v518
        %v551 = vpack.c.bf16 %v521, %v520
        %v552 = vpack.c.bf16 %v523, %v522
        %v553 = vpack.c.bf16 %v525, %v524
        %v554 = vpack.c.bf16 %v527, %v526
        %v555 = vpack.c.bf16 %v529, %v528
        %v556 = vpack.c.bf16 %v531, %v530
        %v557 = vpack.c.bf16 %v533, %v532
        %v558 = vpack.c.bf16 %v535, %v534
        %v559 = vpack.c.bf16 %v537, %v536
        %v560 = vpack.c.bf16 %v539, %v538
        %v561 = vpack.c.bf16 %v541, %v540
        %v562 = vpack.c.bf16 %v543, %v542
        %v563 = vpack.c.bf16 %v545, %v544
        %v564 = vpack.c.bf16 %v547, %v546
        %v565 = vpack.c.bf16 %v549, %v548
        %v566 = vld [vmem:[%s1] sm:$0xf]
        %v567 = vld [vmem:[%s1 + $0x4] sm:$0xf]
        %v568 = vld [vmem:[%s1 + $0x8] sm:$0xf]
        %v569 = vld [vmem:[%s1 + $0xc] sm:$0xf]
        %v570 = vld [vmem:[%s1 + $0x10] sm:$0xf]
        %v571 = vld [vmem:[%s1 + $0x14] sm:$0xf]
        %v572 = vld [vmem:[%s1 + $0x18] sm:$0xf]
        %v573 = vld [vmem:[%s1 + $0x1c] sm:$0xf]
        %v574 = vld [vmem:[%s1 + $0x20] sm:$0xf]
        %v575 = vld [vmem:[%s1 + $0x24] sm:$0xf]
        %v576 = vld [vmem:[%s1 + $0x28] sm:$0xf]
        %v577 = vld [vmem:[%s1 + $0x2c] sm:$0xf]
        %v578 = vld [vmem:[%s1 + $0x30] sm:$0xf]
        %v579 = vld [vmem:[%s1 + $0x34] sm:$0xf]
        %v580 = vld [vmem:[%s1 + $0x38] sm:$0xf]
        %v581 = vld [vmem:[%s1 + $0x3c] sm:$0xf]
        %v582 = vld [vmem:[%s2] sm:$0x1]
        %v584 = vlaneseq
        %v585 = vshrl.u32 %v584, 7
        %v586 = vsub.s32 0, %v585
        %v587 = vrot.slane %v582, %v586
        %v605 = vunpack.c.l.b16 %v566
        %v606 = vunpack.c.l.b16 %v567
        %v607 = vunpack.c.l.b16 %v568
        %v608 = vunpack.c.l.b16 %v569
        %v609 = vunpack.c.l.b16 %v570
        %v610 = vunpack.c.l.b16 %v571
        %v611 = vunpack.c.l.b16 %v572
        %v612 = vunpack.c.l.b16 %v573
        %v613 = vunpack.c.l.b16 %v574
        %v614 = vunpack.c.l.b16 %v575
        %v615 = vunpack.c.l.b16 %v576
        %v616 = vunpack.c.l.b16 %v577
        %v617 = vunpack.c.l.b16 %v578
        %v618 = vunpack.c.l.b16 %v579
        %v619 = vunpack.c.l.b16 %v580
        %v620 = vunpack.c.l.b16 %v581
        %v621 = vpack.c.b16 %v606, %v605
        %v622 = vpack.c.b16 %v608, %v607
        %v623 = vpack.c.b16 %v610, %v609
        %v624 = vpack.c.b16 %v612, %v611
        %v625 = vpack.c.b16 %v614, %v613
        %v626 = vpack.c.b16 %v616, %v615
        %v627 = vpack.c.b16 %v618, %v617
        %v628 = vpack.c.b16 %v620, %v619
        %637 = vmatprep.subr.bf16.mxu0 0
        %638 = vmatpush1.bf16.msra.mxu0 %v621
        %639 = vmatprep.subr.bf16.mxu0 0
        %640 = vmatpush1.bf16.msra.mxu0 %v622
        %641 = vmatprep.subr.bf16.mxu0 0
        %642 = vmatpush1.bf16.msra.mxu0 %v623
        %643 = vmatprep.subr.bf16.mxu0 0
        %644 = vmatpush1.bf16.msra.mxu0 %v624
        %645 = vmatprep.subr.bf16.mxu0 0
        %646 = vmatpush1.bf16.msra.mxu0 %v625
        %647 = vmatprep.subr.bf16.mxu0 0
        %648 = vmatpush1.bf16.msra.mxu0 %v626
        %649 = vmatprep.subr.bf16.mxu0 0
        %650 = vmatpush1.bf16.msra.mxu0 %v627
        %651 = vmatprep.subr.bf16.mxu0 0
        %652 = vmatpush1.bf16.msra.mxu0 %v628
        %653 = vmatprep.subr.bf16.mxu0 0
        %654 = vmatpush1.bf16.msra.mxu0 0
        %655 = vmatprep.subr.bf16.mxu0 0
        %656 = vmatpush1.bf16.msra.mxu0 0
        %657 = vmatprep.subr.bf16.mxu0 0
        %658 = vmatpush1.bf16.msra.mxu0 0
        %659 = vmatprep.subr.bf16.mxu0 0
        %660 = vmatpush1.bf16.msra.mxu0 0
        %661 = vmatprep.subr.bf16.mxu0 0
        %662 = vmatpush1.bf16.msra.mxu0 0
        %663 = vmatprep.subr.bf16.mxu0 0
        %664 = vmatpush1.bf16.msra.mxu0 0
        %665 = vmatprep.subr.bf16.mxu0 0
        %666 = vmatpush1.bf16.msra.mxu0 0
        %667 = vmatprep.subr.bf16.mxu0 0
        %668 = vmatpush1.bf16.msra.mxu0 0
        %669 = vmatprep.mubr.bf16.mxu0 0
        %670 = vmatmul.mubr.bf16.gmra.mrb[0].mxu0 %v550
        %v671 = vpop.f32.mrb[0].mxu0
        %v672 = vadd.f32 %v587, %v671
        %v673 = vpop.f32.mrb[0].mxu0
        %v674 = vpop.f32.mrb[0].mxu0
        %v675 = vadd.f32 %v587, %v674
        %v676 = vpop.f32.mrb[0].mxu0
        %677 = vmatprep.mubr.bf16.mxu0 0
        %678 = vmatmul.mubr.bf16.gmra.mrb[0].mxu0 %v551
        %v679 = vpop.f32.mrb[0].mxu0
        %v680 = vadd.f32 %v587, %v679
        %v681 = vpop.f32.mrb[0].mxu0
        %v682 = vpop.f32.mrb[0].mxu0
        %v683 = vadd.f32 %v587, %v682
        %v684 = vpop.f32.mrb[0].mxu0
        %685 = vmatprep.mubr.bf16.mxu0 0
        %686 = vmatmul.mubr.bf16.gmra.mrb[0].mxu0 %v552
        %v687 = vpop.f32.mrb[0].mxu0
        %v688 = vadd.f32 %v587, %v687
        %v689 = vpop.f32.mrb[0].mxu0
        %v690 = vpop.f32.mrb[0].mxu0
        %v691 = vadd.f32 %v587, %v690
        %v692 = vpop.f32.mrb[0].mxu0
        %693 = vmatprep.mubr.bf16.mxu0 0
        %694 = vmatmul.mubr.bf16.gmra.mrb[0].mxu0 %v553
        %v695 = vpop.f32.mrb[0].mxu0
        %v696 = vadd.f32 %v587, %v695
        %v697 = vpop.f32.mrb[0].mxu0
        %v698 = vpop.f32.mrb[0].mxu0
        %v699 = vadd.f32 %v587, %v698
        %v700 = vpop.f32.mrb[0].mxu0
        %701 = vmatprep.mubr.bf16.mxu0 0
        %702 = vmatmul.mubr.bf16.gmra.mrb[0].mxu0 %v554
        %v703 = vpop.f32.mrb[0].mxu0
        %v704 = vadd.f32 %v587, %v703
        %v705 = vpop.f32.mrb[0].mxu0
        %v706 = vpop.f32.mrb[0].mxu0
        %v707 = vadd.f32 %v587, %v706
        %v708 = vpop.f32.mrb[0].mxu0
        %709 = vmatprep.mubr.bf16.mxu0 0
        %710 = vmatmul.mubr.bf16.gmra.mrb[0].mxu0 %v555
        %v711 = vpop.f32.mrb[0].mxu0
        %v712 = vadd.f32 %v587, %v711
        %v713 = vpop.f32.mrb[0].mxu0
        %v714 = vpop.f32.mrb[0].mxu0
        %v715 = vadd.f32 %v587, %v714
        %v716 = vpop.f32.mrb[0].mxu0
        %717 = vmatprep.mubr.bf16.mxu0 0
        %718 = vmatmul.mubr.bf16.gmra.mrb[0].mxu0 %v556
        %v719 = vpop.f32.mrb[0].mxu0
        %v720 = vadd.f32 %v587, %v719
        %v721 = vpop.f32.mrb[0].mxu0
        %v722 = vpop.f32.mrb[0].mxu0
        %v723 = vadd.f32 %v587, %v722
        %v724 = vpop.f32.mrb[0].mxu0
        %725 = vmatprep.mubr.bf16.mxu0 0
        %726 = vmatmul.mubr.bf16.gmra.mrb[0].mxu0 %v557
        %v727 = vpop.f32.mrb[0].mxu0
        %v728 = vadd.f32 %v587, %v727
        %v729 = vpop.f32.mrb[0].mxu0
        %v730 = vpop.f32.mrb[0].mxu0
        %v731 = vadd.f32 %v587, %v730
        %v732 = vpop.f32.mrb[0].mxu0
        %733 = vmatprep.mubr.bf16.mxu0 0
        %734 = vmatmul.mubr.bf16.gmra.mrb[0].mxu0 %v558
        %v735 = vpop.f32.mrb[0].mxu0
        %v736 = vadd.f32 %v587, %v735
        %v737 = vpop.f32.mrb[0].mxu0
        %v738 = vpop.f32.mrb[0].mxu0
        %v739 = vadd.f32 %v587, %v738
        %v740 = vpop.f32.mrb[0].mxu0
        %741 = vmatprep.mubr.bf16.mxu0 0
        %742 = vmatmul.mubr.bf16.gmra.mrb[0].mxu0 %v559
        %v743 = vpop.f32.mrb[0].mxu0
        %v744 = vadd.f32 %v587, %v743
        %v745 = vpop.f32.mrb[0].mxu0
        %v746 = vpop.f32.mrb[0].mxu0
        %v747 = vadd.f32 %v587, %v746
        %v748 = vpop.f32.mrb[0].mxu0
        %749 = vmatprep.mubr.bf16.mxu0 0
        %750 = vmatmul.mubr.bf16.gmra.mrb[0].mxu0 %v560
        %v751 = vpop.f32.mrb[0].mxu0
        %v752 = vadd.f32 %v587, %v751
        %v753 = vpop.f32.mrb[0].mxu0
        %v754 = vpop.f32.mrb[0].mxu0
        %v755 = vadd.f32 %v587, %v754
        %v756 = vpop.f32.mrb[0].mxu0
        %757 = vmatprep.mubr.bf16.mxu0 0
        %758 = vmatmul.mubr.bf16.gmra.mrb[0].mxu0 %v561
        %v759 = vpop.f32.mrb[0].mxu0
        %v760 = vadd.f32 %v587, %v759
        %v761 = vpop.f32.mrb[0].mxu0
        %v762 = vpop.f32.mrb[0].mxu0
        %v763 = vadd.f32 %v587, %v762
        %v764 = vpop.f32.mrb[0].mxu0
        %765 = vmatprep.mubr.bf16.mxu0 0
        %766 = vmatmul.mubr.bf16.gmra.mrb[0].mxu0 %v562
        %v767 = vpop.f32.mrb[0].mxu0
        %v768 = vadd.f32 %v587, %v767
        %v769 = vpop.f32.mrb[0].mxu0
        %v770 = vpop.f32.mrb[0].mxu0
        %v771 = vadd.f32 %v587, %v770
        %v772 = vpop.f32.mrb[0].mxu0
        %773 = vmatprep.mubr.bf16.mxu0 0
        %774 = vmatmul.mubr.bf16.gmra.mrb[0].mxu0 %v563
        %v775 = vpop.f32.mrb[0].mxu0
        %v776 = vadd.f32 %v587, %v775
        %v777 = vpop.f32.mrb[0].mxu0
        %v778 = vpop.f32.mrb[0].mxu0
        %v779 = vadd.f32 %v587, %v778
        %v780 = vpop.f32.mrb[0].mxu0
        %781 = vmatprep.mubr.bf16.mxu0 0
        %782 = vmatmul.mubr.bf16.gmra.mrb[0].mxu0 %v564
        %v783 = vpop.f32.mrb[0].mxu0
        %v784 = vadd.f32 %v587, %v783
        %v785 = vpop.f32.mrb[0].mxu0
        %v786 = vpop.f32.mrb[0].mxu0
        %v787 = vadd.f32 %v587, %v786
        %v788 = vpop.f32.mrb[0].mxu0
        %789 = vmatprep.mubr.bf16.mxu0 0
        %790 = vmatmul.mubr.bf16.gmra.mrb[0].mxu0 %v565
        %v791 = vpop.f32.mrb[0].mxu0
        %v792 = vadd.f32 %v587, %v791
        %v793 = vpop.f32.mrb[0].mxu0
        %v794 = vpop.f32.mrb[0].mxu0
        %v795 = vadd.f32 %v587, %v794
        %v796 = vpop.f32.mrb[0].mxu0
        %797 = vdwg.mxu0
        %v798 = vmax.f32 %v672, 0.0
        %v799 = vmax.f32 %v675, 0.0
        %v800 = vmax.f32 %v680, 0.0
        %v801 = vmax.f32 %v683, 0.0
        %v802 = vmax.f32 %v688, 0.0
        %v803 = vmax.f32 %v691, 0.0
        %v804 = vmax.f32 %v696, 0.0
        %v805 = vmax.f32 %v699, 0.0
        %v806 = vmax.f32 %v704, 0.0
        %v807 = vmax.f32 %v707, 0.0
        %v808 = vmax.f32 %v712, 0.0
        %v809 = vmax.f32 %v715, 0.0
        %v810 = vmax.f32 %v720, 0.0
        %v811 = vmax.f32 %v723, 0.0
        %v812 = vmax.f32 %v728, 0.0
        %v813 = vmax.f32 %v731, 0.0
        %v814 = vmax.f32 %v736, 0.0
        %v815 = vmax.f32 %v739, 0.0
        %v816 = vmax.f32 %v744, 0.0
        %v817 = vmax.f32 %v747, 0.0
        %v818 = vmax.f32 %v752, 0.0
        %v819 = vmax.f32 %v755, 0.0
        %v820 = vmax.f32 %v760, 0.0
        %v821 = vmax.f32 %v763, 0.0
        %v822 = vmax.f32 %v768, 0.0
        %v823 = vmax.f32 %v771, 0.0
        %v824 = vmax.f32 %v776, 0.0
        %v825 = vmax.f32 %v779, 0.0
        %v826 = vmax.f32 %v784, 0.0
        %v827 = vmax.f32 %v787, 0.0
        %v828 = vmax.f32 %v792, 0.0
        %v829 = vmax.f32 %v795, 0.0
        %v830 = vpack.c.bf16 %v799, %v798
        %v831 = vpack.c.bf16 %v801, %v800
        %v832 = vpack.c.bf16 %v803, %v802
        %v833 = vpack.c.bf16 %v805, %v804
        %v834 = vpack.c.bf16 %v807, %v806
        %v835 = vpack.c.bf16 %v809, %v808
        %v836 = vpack.c.bf16 %v811, %v810
        %v837 = vpack.c.bf16 %v813, %v812
        %v838 = vpack.c.bf16 %v815, %v814
        %v839 = vpack.c.bf16 %v817, %v816
        %v840 = vpack.c.bf16 %v819, %v818
        %v841 = vpack.c.bf16 %v821, %v820
        %v842 = vpack.c.bf16 %v823, %v822
        %v843 = vpack.c.bf16 %v825, %v824
        %v844 = vpack.c.bf16 %v827, %v826
        %v845 = vpack.c.bf16 %v829, %v828
        %v862 = vunpack.c.l.b16 %v830
        %v863 = vunpack.c.h.b16 %v830
        %v864 = vunpack.c.l.b16 %v831
        %v865 = vunpack.c.h.b16 %v831
        %v866 = vunpack.c.l.b16 %v832
        %v867 = vunpack.c.h.b16 %v832
        %v868 = vunpack.c.l.b16 %v833
        %v869 = vunpack.c.h.b16 %v833
        %v870 = vunpack.c.l.b16 %v834
        %v871 = vunpack.c.h.b16 %v834
        %v872 = vunpack.c.l.b16 %v835
        %v873 = vunpack.c.h.b16 %v835
        %v874 = vunpack.c.l.b16 %v836
        %v875 = vunpack.c.h.b16 %v836
        %v876 = vunpack.c.l.b16 %v837
        %v877 = vunpack.c.h.b16 %v837
        %v878 = vunpack.c.l.b16 %v838
        %v879 = vunpack.c.h.b16 %v838
        %v880 = vunpack.c.l.b16 %v839
        %v881 = vunpack.c.h.b16 %v839
        %v882 = vunpack.c.l.b16 %v840
        %v883 = vunpack.c.h.b16 %v840
        %v884 = vunpack.c.l.b16 %v841
        %v885 = vunpack.c.h.b16 %v841
        %v886 = vunpack.c.l.b16 %v842
        %v887 = vunpack.c.h.b16 %v842
        %v888 = vunpack.c.l.b16 %v843
        %v889 = vunpack.c.h.b16 %v843
        %v890 = vunpack.c.l.b16 %v844
        %v891 = vunpack.c.h.b16 %v844
        %v892 = vunpack.c.l.b16 %v845
        %v893 = vunpack.c.h.b16 %v845
        %v894 = vpack.c.b16 %v862, %v862
        %v895 = vpack.c.b16 %v863, %v863
        %v896 = vpack.c.b16 %v864, %v864
        %v897 = vpack.c.b16 %v865, %v865
        %v898 = vpack.c.b16 %v866, %v866
        %v899 = vpack.c.b16 %v867, %v867
        %v900 = vpack.c.b16 %v868, %v868
        %v901 = vpack.c.b16 %v869, %v869
        %v902 = vpack.c.b16 %v870, %v870
        %v903 = vpack.c.b16 %v871, %v871
        %v904 = vpack.c.b16 %v872, %v872
        %v905 = vpack.c.b16 %v873, %v873
        %v906 = vpack.c.b16 %v874, %v874
        %v907 = vpack.c.b16 %v875, %v875
        %v908 = vpack.c.b16 %v876, %v876
        %v909 = vpack.c.b16 %v877, %v877
        %v910 = vpack.c.b16 %v878, %v878
        %v911 = vpack.c.b16 %v879, %v879
        %v912 = vpack.c.b16 %v880, %v880
        %v913 = vpack.c.b16 %v881, %v881
        %v914 = vpack.c.b16 %v882, %v882
        %v915 = vpack.c.b16 %v883, %v883
        %v916 = vpack.c.b16 %v884, %v884
        %v917 = vpack.c.b16 %v885, %v885
        %v918 = vpack.c.b16 %v886, %v886
        %v919 = vpack.c.b16 %v887, %v887
        %v920 = vpack.c.b16 %v888, %v888
        %v921 = vpack.c.b16 %v889, %v889
        %v922 = vpack.c.b16 %v890, %v890
        %v923 = vpack.c.b16 %v891, %v891
        %v924 = vpack.c.b16 %v892, %v892
        %v925 = vpack.c.b16 %v893, %v893
        %vm926 = vsmask.f32 4368
        %vm927 = vmor %vm286, %vm926
        %v929 = vshrl.u32 %v894, 16
        %v931 = vrot.slane %v929, 7
        %v932 = vshll.u32 %v894, 16
        %v934 = vor.u32 %v931, %v932
        %v935 = vrot.slane %v931, 4
        %v937 = vshrl.u32 %v895, 16
        %v939 = vrot.slane %v937, 7
        %v940 = vshll.u32 %v895, 16
        %v942 = vor.u32 %v939, %v940
        %v943 = vsel %vm927, %v935, %v942
        %v944 = vrot.slane %v939, 4
        %v946 = vshrl.u32 %v896, 16
        %v948 = vrot.slane %v946, 7
        %v949 = vshll.u32 %v896, 16
        %v951 = vor.u32 %v948, %v949
        %v952 = vrot.slane %v948, 4
        %v954 = vshrl.u32 %v897, 16
        %v956 = vrot.slane %v954, 7
        %v957 = vshll.u32 %v897, 16
        %v959 = vor.u32 %v956, %v957
        %v960 = vsel %vm927, %v952, %v959
        %v961 = vrot.slane %v956, 4
        %v963 = vshrl.u32 %v898, 16
        %v965 = vrot.slane %v963, 7
        %v966 = vshll.u32 %v898, 16
        %v968 = vor.u32 %v965, %v966
        %v969 = vrot.slane %v965, 4
        %v971 = vshrl.u32 %v899, 16
        %v973 = vrot.slane %v971, 7
        %v974 = vshll.u32 %v899, 16
        %v976 = vor.u32 %v973, %v974
        %v977 = vsel %vm927, %v969, %v976
        %v978 = vrot.slane %v973, 4
        %v980 = vshrl.u32 %v900, 16
        %v982 = vrot.slane %v980, 7
        %v983 = vshll.u32 %v900, 16
        %v985 = vor.u32 %v982, %v983
        %v986 = vrot.slane %v982, 4
        %v988 = vshrl.u32 %v901, 16
        %v990 = vrot.slane %v988, 7
        %v991 = vshll.u32 %v901, 16
        %v993 = vor.u32 %v990, %v991
        %v994 = vsel %vm927, %v986, %v993
        %v995 = vrot.slane %v990, 4
        %v997 = vshrl.u32 %v902, 16
        %v999 = vrot.slane %v997, 7
        %v1000 = vshll.u32 %v902, 16
        %v1002 = vor.u32 %v999, %v1000
        %v1003 = vrot.slane %v999, 4
        %v1005 = vshrl.u32 %v903, 16
        %v1007 = vrot.slane %v1005, 7
        %v1008 = vshll.u32 %v903, 16
        %v1010 = vor.u32 %v1007, %v1008
        %v1011 = vsel %vm927, %v1003, %v1010
        %v1012 = vrot.slane %v1007, 4
        %v1014 = vshrl.u32 %v904, 16
        %v1016 = vrot.slane %v1014, 7
        %v1017 = vshll.u32 %v904, 16
        %v1019 = vor.u32 %v1016, %v1017
        %v1020 = vrot.slane %v1016, 4
        %v1022 = vshrl.u32 %v905, 16
        %v1024 = vrot.slane %v1022, 7
        %v1025 = vshll.u32 %v905, 16
        %v1027 = vor.u32 %v1024, %v1025
        %v1028 = vsel %vm927, %v1020, %v1027
        %v1029 = vrot.slane %v1024, 4
        %v1031 = vshrl.u32 %v906, 16
        %v1033 = vrot.slane %v1031, 7
        %v1034 = vshll.u32 %v906, 16
        %v1036 = vor.u32 %v1033, %v1034
        %v1037 = vrot.slane %v1033, 4
        %v1039 = vshrl.u32 %v907, 16
        %v1041 = vrot.slane %v1039, 7
        %v1042 = vshll.u32 %v907, 16
        %v1044 = vor.u32 %v1041, %v1042
        %v1045 = vsel %vm927, %v1037, %v1044
        %v1046 = vrot.slane %v1041, 4
        %v1048 = vshrl.u32 %v908, 16
        %v1050 = vrot.slane %v1048, 7
        %v1051 = vshll.u32 %v908, 16
        %v1053 = vor.u32 %v1050, %v1051
        %v1054 = vrot.slane %v1050, 4
        %v1056 = vshrl.u32 %v909, 16
        %v1058 = vrot.slane %v1056, 7
        %v1059 = vshll.u32 %v909, 16
        %v1061 = vor.u32 %v1058, %v1059
        %v1062 = vsel %vm927, %v1054, %v1061
        %v1063 = vrot.slane %v1058, 4
        %v1065 = vshrl.u32 %v910, 16
        %v1067 = vrot.slane %v1065, 7
        %v1068 = vshll.u32 %v910, 16
        %v1070 = vor.u32 %v1067, %v1068
        %v1071 = vrot.slane %v1067, 4
        %v1073 = vshrl.u32 %v911, 16
        %v1075 = vrot.slane %v1073, 7
        %v1076 = vshll.u32 %v911, 16
        %v1078 = vor.u32 %v1075, %v1076
        %v1079 = vsel %vm927, %v1071, %v1078
        %v1080 = vrot.slane %v1075, 4
        %v1082 = vshrl.u32 %v912, 16
        %v1084 = vrot.slane %v1082, 7
        %v1085 = vshll.u32 %v912, 16
        %v1087 = vor.u32 %v1084, %v1085
        %v1088 = vrot.slane %v1084, 4
        %v1090 = vshrl.u32 %v913, 16
        %v1092 = vrot.slane %v1090, 7
        %v1093 = vshll.u32 %v913, 16
        %v1095 = vor.u32 %v1092, %v1093
        %v1096 = vsel %vm927, %v1088, %v1095
        %v1097 = vrot.slane %v1092, 4
        %v1099 = vshrl.u32 %v914, 16
        %v1101 = vrot.slane %v1099, 7
        %v1102 = vshll.u32 %v914, 16
        %v1104 = vor.u32 %v1101, %v1102
        %v1105 = vrot.slane %v1101, 4
        %v1107 = vshrl.u32 %v915, 16
        %v1109 = vrot.slane %v1107, 7
        %v1110 = vshll.u32 %v915, 16
        %v1112 = vor.u32 %v1109, %v1110
        %v1113 = vsel %vm927, %v1105, %v1112
        %v1114 = vrot.slane %v1109, 4
        %v1116 = vshrl.u32 %v916, 16
        %v1118 = vrot.slane %v1116, 7
        %v1119 = vshll.u32 %v916, 16
        %v1121 = vor.u32 %v1118, %v1119
        %v1122 = vrot.slane %v1118, 4
        %v1124 = vshrl.u32 %v917, 16
        %v1126 = vrot.slane %v1124, 7
        %v1127 = vshll.u32 %v917, 16
        %v1129 = vor.u32 %v1126, %v1127
        %v1130 = vsel %vm927, %v1122, %v1129
        %v1131 = vrot.slane %v1126, 4
        %v1133 = vshrl.u32 %v918, 16
        %v1135 = vrot.slane %v1133, 7
        %v1136 = vshll.u32 %v918, 16
        %v1138 = vor.u32 %v1135, %v1136
        %v1139 = vrot.slane %v1135, 4
        %v1141 = vshrl.u32 %v919, 16
        %v1143 = vrot.slane %v1141, 7
        %v1144 = vshll.u32 %v919, 16
        %v1146 = vor.u32 %v1143, %v1144
        %v1147 = vsel %vm927, %v1139, %v1146
        %v1148 = vrot.slane %v1143, 4
        %v1150 = vshrl.u32 %v920, 16
        %v1152 = vrot.slane %v1150, 7
        %v1153 = vshll.u32 %v920, 16
        %v1155 = vor.u32 %v1152, %v1153
        %v1156 = vrot.slane %v1152, 4
        %v1158 = vshrl.u32 %v921, 16
        %v1160 = vrot.slane %v1158, 7
        %v1161 = vshll.u32 %v921, 16
        %v1163 = vor.u32 %v1160, %v1161
        %v1164 = vsel %vm927, %v1156, %v1163
        %v1165 = vrot.slane %v1160, 4
        %v1167 = vshrl.u32 %v922, 16
        %v1169 = vrot.slane %v1167, 7
        %v1170 = vshll.u32 %v922, 16
        %v1172 = vor.u32 %v1169, %v1170
        %v1173 = vrot.slane %v1169, 4
        %v1175 = vshrl.u32 %v923, 16
        %v1177 = vrot.slane %v1175, 7
        %v1178 = vshll.u32 %v923, 16
        %v1180 = vor.u32 %v1177, %v1178
        %v1181 = vsel %vm927, %v1173, %v1180
        %v1182 = vrot.slane %v1177, 4
        %v1184 = vshrl.u32 %v924, 16
        %v1186 = vrot.slane %v1184, 7
        %v1187 = vshll.u32 %v924, 16
        %v1189 = vor.u32 %v1186, %v1187
        %v1190 = vrot.slane %v1186, 4
        %v1192 = vshrl.u32 %v925, 16
        %v1194 = vrot.slane %v1192, 7
        %v1195 = vshll.u32 %v925, 16
        %v1197 = vor.u32 %v1194, %v1195
        %v1198 = vsel %vm927, %v1190, %v1197
        %v1199 = vrot.slane %v1194, 4
        %s1248 = scalar_lea.vmem [#allocation2], 12
        %vm1249 = vcmask 1043456
        %vm1250 = vmand %vm1249, %vm342
        %v1251 = vld [vmem:[%s1248] sm:$0xf]
        %v1252 = vsel %vm1250, %v934, %v1251
        %1253 = vst [vmem:[%s1248] sm:$0xf] %v1252
        %1254 = vst [vmem:[%s1248 + $0x4] sm:$0xf] %v943
        %v1255 = vld [vmem:[%s1248 + $0x8] sm:$0x1]
        %v1256 = vsel %vm287, %v944, %v1255
        %1257 = vst [vmem:[%s1248 + $0x8] sm:$0x1] %v1256
        %v1258 = vld [vmem:[%s1248 + $0xc] sm:$0xf]
        %v1259 = vsel %vm1250, %v951, %v1258
        %1260 = vst [vmem:[%s1248 + $0xc] sm:$0xf] %v1259
        %1261 = vst [vmem:[%s1248 + $0x10] sm:$0xf] %v960
        %v1262 = vld [vmem:[%s1248 + $0x14] sm:$0x1]
        %v1263 = vsel %vm287, %v961, %v1262
        %1264 = vst [vmem:[%s1248 + $0x14] sm:$0x1] %v1263
        %v1265 = vld [vmem:[%s1248 + $0x18] sm:$0xf]
        %v1266 = vsel %vm1250, %v968, %v1265
        %1267 = vst [vmem:[%s1248 + $0x18] sm:$0xf] %v1266
        %1268 = vst [vmem:[%s1248 + $0x1c] sm:$0xf] %v977
        %v1269 = vld [vmem:[%s1248 + $0x20] sm:$0x1]
        %v1270 = vsel %vm287, %v978, %v1269
        %1271 = vst [vmem:[%s1248 + $0x20] sm:$0x1] %v1270
        %v1272 = vld [vmem:[%s1248 + $0x24] sm:$0xf]
        %v1273 = vsel %vm1250, %v985, %v1272
        %1274 = vst [vmem:[%s1248 + $0x24] sm:$0xf] %v1273
        %1275 = vst [vmem:[%s1248 + $0x28] sm:$0xf] %v994
        %v1276 = vld [vmem:[%s1248 + $0x2c] sm:$0x1]
        %v1277 = vsel %vm287, %v995, %v1276
        %1278 = vst [vmem:[%s1248 + $0x2c] sm:$0x1] %v1277
        %v1279 = vld [vmem:[%s1248 + $0x30] sm:$0xf]
        %v1280 = vsel %vm1250, %v1002, %v1279
        %1281 = vst [vmem:[%s1248 + $0x30] sm:$0xf] %v1280
        %1282 = vst [vmem:[%s1248 + $0x34] sm:$0xf] %v1011
        %v1283 = vld [vmem:[%s1248 + $0x38] sm:$0x1]
        %v1284 = vsel %vm287, %v1012, %v1283
        %1285 = vst [vmem:[%s1248 + $0x38] sm:$0x1] %v1284
        %v1286 = vld [vmem:[%s1248 + $0x3c] sm:$0xf]
        %v1287 = vsel %vm1250, %v1019, %v1286
        %1288 = vst [vmem:[%s1248 + $0x3c] sm:$0xf] %v1287
        %1289 = vst [vmem:[%s1248 + $0x40] sm:$0xf] %v1028
        %v1290 = vld [vmem:[%s1248 + $0x44] sm:$0x1]
        %v1291 = vsel %vm287, %v1029, %v1290
        %1292 = vst [vmem:[%s1248 + $0x44] sm:$0x1] %v1291
        %v1293 = vld [vmem:[%s1248 + $0x48] sm:$0xf]
        %v1294 = vsel %vm1250, %v1036, %v1293
        %1295 = vst [vmem:[%s1248 + $0x48] sm:$0xf] %v1294
        %1296 = vst [vmem:[%s1248 + $0x4c] sm:$0xf] %v1045
        %v1297 = vld [vmem:[%s1248 + $0x50] sm:$0x1]
        %v1298 = vsel %vm287, %v1046, %v1297
        %1299 = vst [vmem:[%s1248 + $0x50] sm:$0x1] %v1298
        %v1300 = vld [vmem:[%s1248 + $0x54] sm:$0xf]
        %v1301 = vsel %vm1250, %v1053, %v1300
        %1302 = vst [vmem:[%s1248 + $0x54] sm:$0xf] %v1301
        %1303 = vst [vmem:[%s1248 + $0x58] sm:$0xf] %v1062
        %v1304 = vld [vmem:[%s1248 + $0x5c] sm:$0x1]
        %v1305 = vsel %vm287, %v1063, %v1304
        %1306 = vst [vmem:[%s1248 + $0x5c] sm:$0x1] %v1305
        %v1307 = vld [vmem:[%s1248 + $0x60] sm:$0xf]
        %v1308 = vsel %vm1250, %v1070, %v1307
        %1309 = vst [vmem:[%s1248 + $0x60] sm:$0xf] %v1308
        %1310 = vst [vmem:[%s1248 + $0x64] sm:$0xf] %v1079
        %v1311 = vld [vmem:[%s1248 + $0x68] sm:$0x1]
        %v1312 = vsel %vm287, %v1080, %v1311
        %1313 = vst [vmem:[%s1248 + $0x68] sm:$0x1] %v1312
        %v1314 = vld [vmem:[%s1248 + $0x6c] sm:$0xf]
        %v1315 = vsel %vm1250, %v1087, %v1314
        %1316 = vst [vmem:[%s1248 + $0x6c] sm:$0xf] %v1315
        %1317 = vst [vmem:[%s1248 + $0x70] sm:$0xf] %v1096
        %v1318 = vld [vmem:[%s1248 + $0x74] sm:$0x1]
        %v1319 = vsel %vm287, %v1097, %v1318
        %1320 = vst [vmem:[%s1248 + $0x74] sm:$0x1] %v1319
        %v1321 = vld [vmem:[%s1248 + $0x78] sm:$0xf]
        %v1322 = vsel %vm1250, %v1104, %v1321
        %1323 = vst [vmem:[%s1248 + $0x78] sm:$0xf] %v1322
        %1324 = vst [vmem:[%s1248 + $0x7c] sm:$0xf] %v1113
        %v1325 = vld [vmem:[%s1248 + $0x80] sm:$0x1]
        %v1326 = vsel %vm287, %v1114, %v1325
        %1327 = vst [vmem:[%s1248 + $0x80] sm:$0x1] %v1326
        %v1328 = vld [vmem:[%s1248 + $0x84] sm:$0xf]
        %v1329 = vsel %vm1250, %v1121, %v1328
        %1330 = vst [vmem:[%s1248 + $0x84] sm:$0xf] %v1329
        %1331 = vst [vmem:[%s1248 + $0x88] sm:$0xf] %v1130
        %v1332 = vld [vmem:[%s1248 + $0x8c] sm:$0x1]
        %v1333 = vsel %vm287, %v1131, %v1332
        %1334 = vst [vmem:[%s1248 + $0x8c] sm:$0x1] %v1333
        %v1335 = vld [vmem:[%s1248 + $0x90] sm:$0xf]
        %v1336 = vsel %vm1250, %v1138, %v1335
        %1337 = vst [vmem:[%s1248 + $0x90] sm:$0xf] %v1336
        %1338 = vst [vmem:[%s1248 + $0x94] sm:$0xf] %v1147
        %v1339 = vld [vmem:[%s1248 + $0x98] sm:$0x1]
        %v1340 = vsel %vm287, %v1148, %v1339
        %1341 = vst [vmem:[%s1248 + $0x98] sm:$0x1] %v1340
        %v1342 = vld [vmem:[%s1248 + $0x9c] sm:$0xf]
        %v1343 = vsel %vm1250, %v1155, %v1342
        %1344 = vst [vmem:[%s1248 + $0x9c] sm:$0xf] %v1343
        %1345 = vst [vmem:[%s1248 + $0xa0] sm:$0xf] %v1164
        %v1346 = vld [vmem:[%s1248 + $0xa4] sm:$0x1]
        %v1347 = vsel %vm287, %v1165, %v1346
        %1348 = vst [vmem:[%s1248 + $0xa4] sm:$0x1] %v1347
        %v1349 = vld [vmem:[%s1248 + $0xa8] sm:$0xf]
        %v1350 = vsel %vm1250, %v1172, %v1349
        %1351 = vst [vmem:[%s1248 + $0xa8] sm:$0xf] %v1350
        %1352 = vst [vmem:[%s1248 + $0xac] sm:$0xf] %v1181
        %v1353 = vld [vmem:[%s1248 + $0xb0] sm:$0x1]
        %v1354 = vsel %vm287, %v1182, %v1353
        %1355 = vst [vmem:[%s1248 + $0xb0] sm:$0x1] %v1354
        %v1356 = vld [vmem:[%s1248 + $0xb4] sm:$0xf]
        %v1357 = vsel %vm1250, %v1189, %v1356
        %1358 = vst [vmem:[%s1248 + $0xb4] sm:$0xf] %v1357
        %1359 = vst [vmem:[%s1248 + $0xb8] sm:$0xf] %v1198
        %v1360 = vld [vmem:[%s1248 + $0xbc] sm:$0x1]
        %v1361 = vsel %vm287, %v1199, %v1360
        %1362 = vst [vmem:[%s1248 + $0xbc] sm:$0x1] %v1361
        %v1363 = vld [vmem:[#allocation2] sm:$0xf]
        %v1364 = vld [vmem:[#allocation2 + $0x4] sm:$0xf]
        %v1365 = vld [vmem:[#allocation2 + $0xc] sm:$0xf]
        %v1366 = vld [vmem:[#allocation2 + $0x10] sm:$0xf]
        %v1367 = vld [vmem:[#allocation2 + $0x18] sm:$0xf]
        %v1368 = vld [vmem:[#allocation2 + $0x1c] sm:$0xf]
        %v1369 = vld [vmem:[#allocation2 + $0x24] sm:$0xf]
        %v1370 = vld [vmem:[#allocation2 + $0x28] sm:$0xf]
        %v1371 = vld [vmem:[#allocation2 + $0x30] sm:$0xf]
        %v1372 = vld [vmem:[#allocation2 + $0x34] sm:$0xf]
        %v1373 = vld [vmem:[#allocation2 + $0x3c] sm:$0xf]
        %v1374 = vld [vmem:[#allocation2 + $0x40] sm:$0xf]
        %v1375 = vld [vmem:[#allocation2 + $0x48] sm:$0xf]
        %v1376 = vld [vmem:[#allocation2 + $0x4c] sm:$0xf]
        %v1377 = vld [vmem:[#allocation2 + $0x54] sm:$0xf]
        %v1378 = vld [vmem:[#allocation2 + $0x58] sm:$0xf]
        %v1379 = vld [vmem:[#allocation2 + $0x60] sm:$0xf]
        %v1380 = vld [vmem:[#allocation2 + $0x64] sm:$0xf]
        %v1381 = vld [vmem:[#allocation2 + $0x6c] sm:$0xf]
        %v1382 = vld [vmem:[#allocation2 + $0x70] sm:$0xf]
        %v1383 = vld [vmem:[#allocation2 + $0x78] sm:$0xf]
        %v1384 = vld [vmem:[#allocation2 + $0x7c] sm:$0xf]
        %v1385 = vld [vmem:[#allocation2 + $0x84] sm:$0xf]
        %v1386 = vld [vmem:[#allocation2 + $0x88] sm:$0xf]
        %v1387 = vld [vmem:[#allocation2 + $0x90] sm:$0xf]
        %v1388 = vld [vmem:[#allocation2 + $0x94] sm:$0xf]
        %v1389 = vld [vmem:[#allocation2 + $0x9c] sm:$0xf]
        %v1390 = vld [vmem:[#allocation2 + $0xa0] sm:$0xf]
        %v1391 = vld [vmem:[#allocation2 + $0xa8] sm:$0xf]
        %v1392 = vld [vmem:[#allocation2 + $0xac] sm:$0xf]
        %v1393 = vld [vmem:[#allocation2 + $0xb4] sm:$0xf]
        %v1394 = vld [vmem:[#allocation2 + $0xb8] sm:$0xf]
        %v1395 = vld [vmem:[#allocation2 + $0xc0] sm:$0xf]
        %v1396 = vld [vmem:[#allocation2 + $0xc4] sm:$0xf]
        %v1397 = vld [vmem:[#allocation2 + $0xcc] sm:$0xf]
        %v1398 = vld [vmem:[#allocation2 + $0xd0] sm:$0xf]
        %v1399 = vld [vmem:[%s3] sm:$0xf]
        %v1400 = vld [vmem:[%s3 + $0x4] sm:$0xf]
        %v1401 = vld [vmem:[%s3 + $0x8] sm:$0xf]
        %v1402 = vld [vmem:[%s3 + $0xc] sm:$0xf]
        %v1403 = vld [vmem:[%s3 + $0x10] sm:$0xf]
        %v1404 = vld [vmem:[%s3 + $0x14] sm:$0xf]
        %v1405 = vld [vmem:[%s3 + $0x18] sm:$0xf]
        %v1406 = vld [vmem:[%s3 + $0x1c] sm:$0xf]
        %v1407 = vld [vmem:[%s3 + $0x20] sm:$0xf]
        %v1408 = vld [vmem:[%s3 + $0x24] sm:$0xf]
        %v1409 = vld [vmem:[%s3 + $0x28] sm:$0xf]
        %v1410 = vld [vmem:[%s3 + $0x2c] sm:$0xf]
        %v1411 = vld [vmem:[%s3 + $0x30] sm:$0xf]
        %v1412 = vld [vmem:[%s3 + $0x34] sm:$0xf]
        %v1413 = vld [vmem:[%s3 + $0x38] sm:$0xf]
        %v1414 = vld [vmem:[%s3 + $0x3c] sm:$0xf]
        %s1415 = scalar_lea.vmem %s3, 192
        %v1416 = vld [vmem:[%s1415] sm:$0xf]
        %v1417 = vld [vmem:[%s1415 + $0x4] sm:$0xf]
        %v1418 = vld [vmem:[%s1415 + $0x8] sm:$0xf]
        %v1419 = vld [vmem:[%s1415 + $0xc] sm:$0xf]
        %v1420 = vld [vmem:[%s1415 + $0x10] sm:$0xf]
        %v1421 = vld [vmem:[%s1415 + $0x14] sm:$0xf]
        %v1422 = vld [vmem:[%s1415 + $0x18] sm:$0xf]
        %v1423 = vld [vmem:[%s1415 + $0x1c] sm:$0xf]
        %v1424 = vld [vmem:[%s1415 + $0x20] sm:$0xf]
        %v1425 = vld [vmem:[%s1415 + $0x24] sm:$0xf]
        %v1426 = vld [vmem:[%s1415 + $0x28] sm:$0xf]
        %v1427 = vld [vmem:[%s1415 + $0x2c] sm:$0xf]
        %v1428 = vld [vmem:[%s1415 + $0x30] sm:$0xf]
        %v1429 = vld [vmem:[%s1415 + $0x34] sm:$0xf]
        %v1430 = vld [vmem:[%s1415 + $0x38] sm:$0xf]
        %v1431 = vld [vmem:[%s1415 + $0x3c] sm:$0xf]
        %v1464 = vunpack.c.l.b16 %v1365
        %v1465 = vunpack.c.l.b16 %v1366
        %v1466 = vunpack.c.l.b16 %v1367
        %v1467 = vunpack.c.l.b16 %v1368
        %v1468 = vunpack.c.l.b16 %v1369
        %v1469 = vunpack.c.l.b16 %v1370
        %v1470 = vunpack.c.l.b16 %v1371
        %v1471 = vunpack.c.l.b16 %v1372
        %v1472 = vunpack.c.l.b16 %v1373
        %v1473 = vunpack.c.l.b16 %v1374
        %v1474 = vunpack.c.l.b16 %v1375
        %v1475 = vunpack.c.l.b16 %v1376
        %v1476 = vunpack.c.l.b16 %v1377
        %v1477 = vunpack.c.l.b16 %v1378
        %v1478 = vunpack.c.l.b16 %v1379
        %v1479 = vunpack.c.l.b16 %v1380
        %v1480 = vunpack.c.l.b16 %v1381
        %v1481 = vunpack.c.l.b16 %v1382
        %v1482 = vunpack.c.l.b16 %v1383
        %v1483 = vunpack.c.l.b16 %v1384
        %v1484 = vunpack.c.l.b16 %v1385
        %v1485 = vunpack.c.l.b16 %v1386
        %v1486 = vunpack.c.l.b16 %v1387
        %v1487 = vunpack.c.l.b16 %v1388
        %v1488 = vunpack.c.l.b16 %v1389
        %v1489 = vunpack.c.l.b16 %v1390
        %v1490 = vunpack.c.l.b16 %v1391
        %v1491 = vunpack.c.l.b16 %v1392
        %v1492 = vunpack.c.l.b16 %v1393
        %v1493 = vunpack.c.l.b16 %v1394
        %v1494 = vunpack.c.l.b16 %v1395
        %v1495 = vunpack.c.l.b16 %v1396
        %v1496 = vpack.c.b16 %v1465, %v1464
        %v1497 = vpack.c.b16 %v1467, %v1466
        %v1498 = vpack.c.b16 %v1469, %v1468
        %v1499 = vpack.c.b16 %v1471, %v1470
        %v1500 = vpack.c.b16 %v1473, %v1472
        %v1501 = vpack.c.b16 %v1475, %v1474
        %v1502 = vpack.c.b16 %v1477, %v1476
        %v1503 = vpack.c.b16 %v1479, %v1478
        %v1504 = vpack.c.b16 %v1481, %v1480
        %v1505 = vpack.c.b16 %v1483, %v1482
        %v1506 = vpack.c.b16 %v1485, %v1484
        %v1507 = vpack.c.b16 %v1487, %v1486
        %v1508 = vpack.c.b16 %v1489, %v1488
        %v1509 = vpack.c.b16 %v1491, %v1490
        %v1510 = vpack.c.b16 %v1493, %v1492
        %v1511 = vpack.c.b16 %v1495, %v1494
        %v1544 = vunpack.c.l.b16 %v1416
        %v1545 = vunpack.c.l.b16 %v1417
        %v1546 = vunpack.c.l.b16 %v1418
        %v1547 = vunpack.c.l.b16 %v1419
        %v1548 = vunpack.c.l.b16 %v1420
        %v1549 = vunpack.c.l.b16 %v1421
        %v1550 = vunpack.c.l.b16 %v1422
        %v1551 = vunpack.c.l.b16 %v1423
        %v1552 = vunpack.c.l.b16 %v1424
        %v1553 = vunpack.c.l.b16 %v1425
        %v1554 = vunpack.c.l.b16 %v1426
        %v1555 = vunpack.c.l.b16 %v1427
        %v1556 = vunpack.c.l.b16 %v1428
        %v1557 = vunpack.c.l.b16 %v1429
        %v1558 = vunpack.c.l.b16 %v1430
        %v1559 = vunpack.c.l.b16 %v1431
        %v1560 = vpack.c.b16 %v1545, %v1544
        %v1561 = vpack.c.b16 %v1547, %v1546
        %v1562 = vpack.c.b16 %v1549, %v1548
        %v1563 = vpack.c.b16 %v1551, %v1550
        %v1564 = vpack.c.b16 %v1553, %v1552
        %v1565 = vpack.c.b16 %v1555, %v1554
        %v1566 = vpack.c.b16 %v1557, %v1556
        %v1567 = vpack.c.b16 %v1559, %v1558
        %1576 = vmatprep.subr.bf16.mxu0 0
        %1577 = vmatpush1.bf16.msra.mxu0 %v1560
        %1578 = vmatprep.subr.bf16.mxu0 0
        %1579 = vmatpush1.bf16.msra.mxu0 %v1561
        %1580 = vmatprep.subr.bf16.mxu0 0
        %1581 = vmatpush1.bf16.msra.mxu0 %v1562
        %1582 = vmatprep.subr.bf16.mxu0 0
        %1583 = vmatpush1.bf16.msra.mxu0 %v1563
        %1584 = vmatprep.subr.bf16.mxu0 0
        %1585 = vmatpush1.bf16.msra.mxu0 %v1564
        %1586 = vmatprep.subr.bf16.mxu0 0
        %1587 = vmatpush1.bf16.msra.mxu0 %v1565
        %1588 = vmatprep.subr.bf16.mxu0 0
        %1589 = vmatpush1.bf16.msra.mxu0 %v1566
        %1590 = vmatprep.subr.bf16.mxu0 0
        %1591 = vmatpush1.bf16.msra.mxu0 %v1567
        %1592 = vmatprep.subr.bf16.mxu0 0
        %1593 = vmatpush1.bf16.msra.mxu0 0
        %1594 = vmatprep.subr.bf16.mxu0 0
        %1595 = vmatpush1.bf16.msra.mxu0 0
        %1596 = vmatprep.subr.bf16.mxu0 0
        %1597 = vmatpush1.bf16.msra.mxu0 0
        %1598 = vmatprep.subr.bf16.mxu0 0
        %1599 = vmatpush1.bf16.msra.mxu0 0
        %1600 = vmatprep.subr.bf16.mxu0 0
        %1601 = vmatpush1.bf16.msra.mxu0 0
        %1602 = vmatprep.subr.bf16.mxu0 0
        %1603 = vmatpush1.bf16.msra.mxu0 0
        %1604 = vmatprep.subr.bf16.mxu0 0
        %1605 = vmatpush1.bf16.msra.mxu0 0
        %1606 = vmatprep.subr.bf16.mxu0 0
        %1607 = vmatpush1.bf16.msra.mxu0 0
        %1608 = vmatprep.mubr.bf16.mxu0 0
        %1609 = vmatmul.mubr.bf16.gmra.mrb[0].mxu0 %v1496
        %v1610 = vpop.f32.mrb[0].mxu0
        %v1611 = vadd.f32 0.0, %v1610
        %v1612 = vpop.f32.mrb[0].mxu0
        %v1613 = vpop.f32.mrb[0].mxu0
        %v1614 = vadd.f32 0.0, %v1613
        %v1615 = vpop.f32.mrb[0].mxu0
        %1616 = vmatprep.mubr.bf16.mxu0 0
        %1617 = vmatmul.mubr.bf16.gmra.mrb[0].mxu0 %v1497
        %v1618 = vpop.f32.mrb[0].mxu0
        %v1619 = vadd.f32 0.0, %v1618
        %v1620 = vpop.f32.mrb[0].mxu0
        %v1621 = vpop.f32.mrb[0].mxu0
        %v1622 = vadd.f32 0.0, %v1621
        %v1623 = vpop.f32.mrb[0].mxu0
        %1624 = vmatprep.mubr.bf16.mxu0 0
        %1625 = vmatmul.mubr.bf16.gmra.mrb[0].mxu0 %v1498
        %v1626 = vpop.f32.mrb[0].mxu0
        %v1627 = vadd.f32 0.0, %v1626
        %v1628 = vpop.f32.mrb[0].mxu0
        %v1629 = vpop.f32.mrb[0].mxu0
        %v1630 = vadd.f32 0.0, %v1629
        %v1631 = vpop.f32.mrb[0].mxu0
        %1632 = vmatprep.mubr.bf16.mxu0 0
        %1633 = vmatmul.mubr.bf16.gmra.mrb[0].mxu0 %v1499
        %v1634 = vpop.f32.mrb[0].mxu0
        %v1635 = vadd.f32 0.0, %v1634
        %v1636 = vpop.f32.mrb[0].mxu0
        %v1637 = vpop.f32.mrb[0].mxu0
        %v1638 = vadd.f32 0.0, %v1637
        %v1639 = vpop.f32.mrb[0].mxu0
        %1640 = vmatprep.mubr.bf16.mxu0 0
        %1641 = vmatmul.mubr.bf16.gmra.mrb[0].mxu0 %v1500
        %v1642 = vpop.f32.mrb[0].mxu0
        %v1643 = vadd.f32 0.0, %v1642
        %v1644 = vpop.f32.mrb[0].mxu0
        %v1645 = vpop.f32.mrb[0].mxu0
        %v1646 = vadd.f32 0.0, %v1645
        %v1647 = vpop.f32.mrb[0].mxu0
        %1648 = vmatprep.mubr.bf16.mxu0 0
        %1649 = vmatmul.mubr.bf16.gmra.mrb[0].mxu0 %v1501
        %v1650 = vpop.f32.mrb[0].mxu0
        %v1651 = vadd.f32 0.0, %v1650
        %v1652 = vpop.f32.mrb[0].mxu0
        %v1653 = vpop.f32.mrb[0].mxu0
        %v1654 = vadd.f32 0.0, %v1653
        %v1655 = vpop.f32.mrb[0].mxu0
        %1656 = vmatprep.mubr.bf16.mxu0 0
        %1657 = vmatmul.mubr.bf16.gmra.mrb[0].mxu0 %v1502
        %v1658 = vpop.f32.mrb[0].mxu0
        %v1659 = vadd.f32 0.0, %v1658
        %v1660 = vpop.f32.mrb[0].mxu0
        %v1661 = vpop.f32.mrb[0].mxu0
        %v1662 = vadd.f32 0.0, %v1661
        %v1663 = vpop.f32.mrb[0].mxu0
        %1664 = vmatprep.mubr.bf16.mxu0 0
        %1665 = vmatmul.mubr.bf16.gmra.mrb[0].mxu0 %v1503
        %v1666 = vpop.f32.mrb[0].mxu0
        %v1667 = vadd.f32 0.0, %v1666
        %v1668 = vpop.f32.mrb[0].mxu0
        %v1669 = vpop.f32.mrb[0].mxu0
        %v1670 = vadd.f32 0.0, %v1669
        %v1671 = vpop.f32.mrb[0].mxu0
        %1672 = vmatprep.mubr.bf16.mxu0 0
        %1673 = vmatmul.mubr.bf16.gmra.mrb[0].mxu0 %v1504
        %v1674 = vpop.f32.mrb[0].mxu0
        %v1675 = vadd.f32 0.0, %v1674
        %v1676 = vpop.f32.mrb[0].mxu0
        %v1677 = vpop.f32.mrb[0].mxu0
        %v1678 = vadd.f32 0.0, %v1677
        %v1679 = vpop.f32.mrb[0].mxu0
        %1680 = vmatprep.mubr.bf16.mxu0 0
        %1681 = vmatmul.mubr.bf16.gmra.mrb[0].mxu0 %v1505
        %v1682 = vpop.f32.mrb[0].mxu0
        %v1683 = vadd.f32 0.0, %v1682
        %v1684 = vpop.f32.mrb[0].mxu0
        %v1685 = vpop.f32.mrb[0].mxu0
        %v1686 = vadd.f32 0.0, %v1685
        %v1687 = vpop.f32.mrb[0].mxu0
        %1688 = vmatprep.mubr.bf16.mxu0 0
        %1689 = vmatmul.mubr.bf16.gmra.mrb[0].mxu0 %v1506
        %v1690 = vpop.f32.mrb[0].mxu0
        %v1691 = vadd.f32 0.0, %v1690
        %v1692 = vpop.f32.mrb[0].mxu0
        %v1693 = vpop.f32.mrb[0].mxu0
        %v1694 = vadd.f32 0.0, %v1693
        %v1695 = vpop.f32.mrb[0].mxu0
        %1696 = vmatprep.mubr.bf16.mxu0 0
        %1697 = vmatmul.mubr.bf16.gmra.mrb[0].mxu0 %v1507
        %v1698 = vpop.f32.mrb[0].mxu0
        %v1699 = vadd.f32 0.0, %v1698
        %v1700 = vpop.f32.mrb[0].mxu0
        %v1701 = vpop.f32.mrb[0].mxu0
        %v1702 = vadd.f32 0.0, %v1701
        %v1703 = vpop.f32.mrb[0].mxu0
        %1704 = vmatprep.mubr.bf16.mxu0 0
        %1705 = vmatmul.mubr.bf16.gmra.mrb[0].mxu0 %v1508
        %v1706 = vpop.f32.mrb[0].mxu0
        %v1707 = vadd.f32 0.0, %v1706
        %v1708 = vpop.f32.mrb[0].mxu0
        %v1709 = vpop.f32.mrb[0].mxu0
        %v1710 = vadd.f32 0.0, %v1709
        %v1711 = vpop.f32.mrb[0].mxu0
        %1712 = vmatprep.mubr.bf16.mxu0 0
        %1713 = vmatmul.mubr.bf16.gmra.mrb[0].mxu0 %v1509
        %v1714 = vpop.f32.mrb[0].mxu0
        %v1715 = vadd.f32 0.0, %v1714
        %v1716 = vpop.f32.mrb[0].mxu0
        %v1717 = vpop.f32.mrb[0].mxu0
        %v1718 = vadd.f32 0.0, %v1717
        %v1719 = vpop.f32.mrb[0].mxu0
        %1720 = vmatprep.mubr.bf16.mxu0 0
        %1721 = vmatmul.mubr.bf16.gmra.mrb[0].mxu0 %v1510
        %v1722 = vpop.f32.mrb[0].mxu0
        %v1723 = vadd.f32 0.0, %v1722
        %v1724 = vpop.f32.mrb[0].mxu0
        %v1725 = vpop.f32.mrb[0].mxu0
        %v1726 = vadd.f32 0.0, %v1725
        %v1727 = vpop.f32.mrb[0].mxu0
        %1728 = vmatprep.mubr.bf16.mxu0 0
        %1729 = vmatmul.mubr.bf16.gmra.mrb[0].mxu0 %v1511
        %v1730 = vpop.f32.mrb[0].mxu0
        %v1731 = vadd.f32 0.0, %v1730
        %v1732 = vpop.f32.mrb[0].mxu0
        %v1733 = vpop.f32.mrb[0].mxu0
        %v1734 = vadd.f32 0.0, %v1733
        %v1735 = vpop.f32.mrb[0].mxu0
        %1736 = vdwg.mxu0
        %v1739 = vunpack.c.l.b16 %v1363
        %v1740 = vunpack.c.l.b16 %v1364
        %v1741 = vpack.c.b16 %v1740, %v1739
        %v1759 = vunpack.c.l.b16 %v1399
        %v1760 = vunpack.c.l.b16 %v1400
        %v1761 = vunpack.c.l.b16 %v1401
        %v1762 = vunpack.c.l.b16 %v1402
        %v1763 = vunpack.c.l.b16 %v1403
        %v1764 = vunpack.c.l.b16 %v1404
        %v1765 = vunpack.c.l.b16 %v1405
        %v1766 = vunpack.c.l.b16 %v1406
        %v1767 = vunpack.c.l.b16 %v1407
        %v1768 = vunpack.c.l.b16 %v1408
        %v1769 = vunpack.c.l.b16 %v1409
        %v1770 = vunpack.c.l.b16 %v1410
        %v1771 = vunpack.c.l.b16 %v1411
        %v1772 = vunpack.c.l.b16 %v1412
        %v1773 = vunpack.c.l.b16 %v1413
        %v1774 = vunpack.c.l.b16 %v1414
        %v1775 = vpack.c.b16 %v1760, %v1759
        %v1776 = vpack.c.b16 %v1762, %v1761
        %v1777 = vpack.c.b16 %v1764, %v1763
        %v1778 = vpack.c.b16 %v1766, %v1765
        %v1779 = vpack.c.b16 %v1768, %v1767
        %v1780 = vpack.c.b16 %v1770, %v1769
        %v1781 = vpack.c.b16 %v1772, %v1771
        %v1782 = vpack.c.b16 %v1774, %v1773
        %1791 = vmatprep.subr.bf16.mxu0 0
        %1792 = vmatpush1.bf16.msra.mxu0 %v1775
        %1793 = vmatprep.subr.bf16.mxu0 0
        %1794 = vmatpush1.bf16.msra.mxu0 %v1776
        %1795 = vmatprep.subr.bf16.mxu0 0
        %1796 = vmatpush1.bf16.msra.mxu0 %v1777
        %1797 = vmatprep.subr.bf16.mxu0 0
        %1798 = vmatpush1.bf16.msra.mxu0 %v1778
        %1799 = vmatprep.subr.bf16.mxu0 0
        %1800 = vmatpush1.bf16.msra.mxu0 %v1779
        %1801 = vmatprep.subr.bf16.mxu0 0
        %1802 = vmatpush1.bf16.msra.mxu0 %v1780
        %1803 = vmatprep.subr.bf16.mxu0 0
        %1804 = vmatpush1.bf16.msra.mxu0 %v1781
        %1805 = vmatprep.subr.bf16.mxu0 0
        %1806 = vmatpush1.bf16.msra.mxu0 %v1782
        %1807 = vmatprep.subr.bf16.mxu0 0
        %1808 = vmatpush1.bf16.msra.mxu0 0
        %1809 = vmatprep.subr.bf16.mxu0 0
        %1810 = vmatpush1.bf16.msra.mxu0 0
        %1811 = vmatprep.subr.bf16.mxu0 0
        %1812 = vmatpush1.bf16.msra.mxu0 0
        %1813 = vmatprep.subr.bf16.mxu0 0
        %1814 = vmatpush1.bf16.msra.mxu0 0
        %1815 = vmatprep.subr.bf16.mxu0 0
        %1816 = vmatpush1.bf16.msra.mxu0 0
        %1817 = vmatprep.subr.bf16.mxu0 0
        %1818 = vmatpush1.bf16.msra.mxu0 0
        %1819 = vmatprep.subr.bf16.mxu0 0
        %1820 = vmatpush1.bf16.msra.mxu0 0
        %1821 = vmatprep.subr.bf16.mxu0 0
        %1822 = vmatpush1.bf16.msra.mxu0 0
        %1823 = vmatprep.mubr.bf16.mxu0 0
        %1824 = vmatmul.mubr.bf16.gmra.mrb[0].mxu0 %v1741
        %v1825 = vpop.f32.mrb[0].mxu0
        %v1826 = vadd.f32 %v1611, %v1825
        %v1827 = vpop.f32.mrb[0].mxu0
        %v1828 = vpop.f32.mrb[0].mxu0
        %v1829 = vadd.f32 %v1614, %v1828
        %v1830 = vpop.f32.mrb[0].mxu0
        %1831 = vmatprep.mubr.bf16.mxu0 0
        %1832 = vmatmul.mubr.bf16.gmra.mrb[0].mxu0 %v1496
        %v1833 = vpop.f32.mrb[0].mxu0
        %v1834 = vadd.f32 %v1619, %v1833
        %v1835 = vpop.f32.mrb[0].mxu0
        %v1836 = vpop.f32.mrb[0].mxu0
        %v1837 = vadd.f32 %v1622, %v1836
        %v1838 = vpop.f32.mrb[0].mxu0
        %1839 = vmatprep.mubr.bf16.mxu0 0
        %1840 = vmatmul.mubr.bf16.gmra.mrb[0].mxu0 %v1497
        %v1841 = vpop.f32.mrb[0].mxu0
        %v1842 = vadd.f32 %v1627, %v1841
        %v1843 = vpop.f32.mrb[0].mxu0
        %v1844 = vpop.f32.mrb[0].mxu0
        %v1845 = vadd.f32 %v1630, %v1844
        %v1846 = vpop.f32.mrb[0].mxu0
        %1847 = vmatprep.mubr.bf16.mxu0 0
        %1848 = vmatmul.mubr.bf16.gmra.mrb[0].mxu0 %v1498
        %v1849 = vpop.f32.mrb[0].mxu0
        %v1850 = vadd.f32 %v1635, %v1849
        %v1851 = vpop.f32.mrb[0].mxu0
        %v1852 = vpop.f32.mrb[0].mxu0
        %v1853 = vadd.f32 %v1638, %v1852
        %v1854 = vpop.f32.mrb[0].mxu0
        %1855 = vmatprep.mubr.bf16.mxu0 0
        %1856 = vmatmul.mubr.bf16.gmra.mrb[0].mxu0 %v1499
        %v1857 = vpop.f32.mrb[0].mxu0
        %v1858 = vadd.f32 %v1643, %v1857
        %v1859 = vpop.f32.mrb[0].mxu0
        %v1860 = vpop.f32.mrb[0].mxu0
        %v1861 = vadd.f32 %v1646, %v1860
        %v1862 = vpop.f32.mrb[0].mxu0
        %1863 = vmatprep.mubr.bf16.mxu0 0
        %1864 = vmatmul.mubr.bf16.gmra.mrb[0].mxu0 %v1500
        %v1865 = vpop.f32.mrb[0].mxu0
        %v1866 = vadd.f32 %v1651, %v1865
        %v1867 = vpop.f32.mrb[0].mxu0
        %v1868 = vpop.f32.mrb[0].mxu0
        %v1869 = vadd.f32 %v1654, %v1868
        %v1870 = vpop.f32.mrb[0].mxu0
        %1871 = vmatprep.mubr.bf16.mxu0 0
        %1872 = vmatmul.mubr.bf16.gmra.mrb[0].mxu0 %v1501
        %v1873 = vpop.f32.mrb[0].mxu0
        %v1874 = vadd.f32 %v1659, %v1873
        %v1875 = vpop.f32.mrb[0].mxu0
        %v1876 = vpop.f32.mrb[0].mxu0
        %v1877 = vadd.f32 %v1662, %v1876
        %v1878 = vpop.f32.mrb[0].mxu0
        %1879 = vmatprep.mubr.bf16.mxu0 0
        %1880 = vmatmul.mubr.bf16.gmra.mrb[0].mxu0 %v1502
        %v1881 = vpop.f32.mrb[0].mxu0
        %v1882 = vadd.f32 %v1667, %v1881
        %v1883 = vpop.f32.mrb[0].mxu0
        %v1884 = vpop.f32.mrb[0].mxu0
        %v1885 = vadd.f32 %v1670, %v1884
        %v1886 = vpop.f32.mrb[0].mxu0
        %1887 = vmatprep.mubr.bf16.mxu0 0
        %1888 = vmatmul.mubr.bf16.gmra.mrb[0].mxu0 %v1503
        %v1889 = vpop.f32.mrb[0].mxu0
        %v1890 = vadd.f32 %v1675, %v1889
        %v1891 = vpop.f32.mrb[0].mxu0
        %v1892 = vpop.f32.mrb[0].mxu0
        %v1893 = vadd.f32 %v1678, %v1892
        %v1894 = vpop.f32.mrb[0].mxu0
        %1895 = vmatprep.mubr.bf16.mxu0 0
        %1896 = vmatmul.mubr.bf16.gmra.mrb[0].mxu0 %v1504
        %v1897 = vpop.f32.mrb[0].mxu0
        %v1898 = vadd.f32 %v1683, %v1897
        %v1899 = vpop.f32.mrb[0].mxu0
        %v1900 = vpop.f32.mrb[0].mxu0
        %v1901 = vadd.f32 %v1686, %v1900
        %v1902 = vpop.f32.mrb[0].mxu0
        %1903 = vmatprep.mubr.bf16.mxu0 0
        %1904 = vmatmul.mubr.bf16.gmra.mrb[0].mxu0 %v1505
        %v1905 = vpop.f32.mrb[0].mxu0
        %v1906 = vadd.f32 %v1691, %v1905
        %v1907 = vpop.f32.mrb[0].mxu0
        %v1908 = vpop.f32.mrb[0].mxu0
        %v1909 = vadd.f32 %v1694, %v1908
        %v1910 = vpop.f32.mrb[0].mxu0
        %1911 = vmatprep.mubr.bf16.mxu0 0
        %1912 = vmatmul.mubr.bf16.gmra.mrb[0].mxu0 %v1506
        %v1913 = vpop.f32.mrb[0].mxu0
        %v1914 = vadd.f32 %v1699, %v1913
        %v1915 = vpop.f32.mrb[0].mxu0
        %v1916 = vpop.f32.mrb[0].mxu0
        %v1917 = vadd.f32 %v1702, %v1916
        %v1918 = vpop.f32.mrb[0].mxu0
        %1919 = vmatprep.mubr.bf16.mxu0 0
        %1920 = vmatmul.mubr.bf16.gmra.mrb[0].mxu0 %v1507
        %v1921 = vpop.f32.mrb[0].mxu0
        %v1922 = vadd.f32 %v1707, %v1921
        %v1923 = vpop.f32.mrb[0].mxu0
        %v1924 = vpop.f32.mrb[0].mxu0
        %v1925 = vadd.f32 %v1710, %v1924
        %v1926 = vpop.f32.mrb[0].mxu0
        %1927 = vmatprep.mubr.bf16.mxu0 0
        %1928 = vmatmul.mubr.bf16.gmra.mrb[0].mxu0 %v1508
        %v1929 = vpop.f32.mrb[0].mxu0
        %v1930 = vadd.f32 %v1715, %v1929
        %v1931 = vpop.f32.mrb[0].mxu0
        %v1932 = vpop.f32.mrb[0].mxu0
        %v1933 = vadd.f32 %v1718, %v1932
        %v1934 = vpop.f32.mrb[0].mxu0
        %1935 = vmatprep.mubr.bf16.mxu0 0
        %1936 = vmatmul.mubr.bf16.gmra.mrb[0].mxu0 %v1509
        %v1937 = vpop.f32.mrb[0].mxu0
        %v1938 = vadd.f32 %v1723, %v1937
        %v1939 = vpop.f32.mrb[0].mxu0
        %v1940 = vpop.f32.mrb[0].mxu0
        %v1941 = vadd.f32 %v1726, %v1940
        %v1942 = vpop.f32.mrb[0].mxu0
        %1943 = vmatprep.mubr.bf16.mxu0 0
        %1944 = vmatmul.mubr.bf16.gmra.mrb[0].mxu0 %v1510
        %v1945 = vpop.f32.mrb[0].mxu0
        %v1946 = vadd.f32 %v1731, %v1945
        %v1947 = vpop.f32.mrb[0].mxu0
        %v1948 = vpop.f32.mrb[0].mxu0
        %v1949 = vadd.f32 %v1734, %v1948
        %v1950 = vpop.f32.mrb[0].mxu0
        %1951 = vdwg.mxu0
        %s1952 = scalar_lea.vmem %s3, 384
        %v1953 = vld [vmem:[%s1952] sm:$0xf]
        %v1954 = vld [vmem:[%s1952 + $0x4] sm:$0xf]
        %v1955 = vld [vmem:[%s1952 + $0x8] sm:$0xf]
        %v1956 = vld [vmem:[%s1952 + $0xc] sm:$0xf]
        %v1957 = vld [vmem:[%s1952 + $0x10] sm:$0xf]
        %v1958 = vld [vmem:[%s1952 + $0x14] sm:$0xf]
        %v1959 = vld [vmem:[%s1952 + $0x18] sm:$0xf]
        %v1960 = vld [vmem:[%s1952 + $0x1c] sm:$0xf]
        %v1961 = vld [vmem:[%s1952 + $0x20] sm:$0xf]
        %v1962 = vld [vmem:[%s1952 + $0x24] sm:$0xf]
        %v1963 = vld [vmem:[%s1952 + $0x28] sm:$0xf]
        %v1964 = vld [vmem:[%s1952 + $0x2c] sm:$0xf]
        %v1965 = vld [vmem:[%s1952 + $0x30] sm:$0xf]
        %v1966 = vld [vmem:[%s1952 + $0x34] sm:$0xf]
        %v1967 = vld [vmem:[%s1952 + $0x38] sm:$0xf]
        %v1968 = vld [vmem:[%s1952 + $0x3c] sm:$0xf]
        %v1971 = vunpack.c.l.b16 %v1397
        %v1972 = vunpack.c.l.b16 %v1398
        %v1973 = vpack.c.b16 %v1972, %v1971
        %v1991 = vunpack.c.l.b16 %v1953
        %v1992 = vunpack.c.l.b16 %v1954
        %v1993 = vunpack.c.l.b16 %v1955
        %v1994 = vunpack.c.l.b16 %v1956
        %v1995 = vunpack.c.l.b16 %v1957
        %v1996 = vunpack.c.l.b16 %v1958
        %v1997 = vunpack.c.l.b16 %v1959
        %v1998 = vunpack.c.l.b16 %v1960
        %v1999 = vunpack.c.l.b16 %v1961
        %v2000 = vunpack.c.l.b16 %v1962
        %v2001 = vunpack.c.l.b16 %v1963
        %v2002 = vunpack.c.l.b16 %v1964
        %v2003 = vunpack.c.l.b16 %v1965
        %v2004 = vunpack.c.l.b16 %v1966
        %v2005 = vunpack.c.l.b16 %v1967
        %v2006 = vunpack.c.l.b16 %v1968
        %v2007 = vpack.c.b16 %v1992, %v1991
        %v2008 = vpack.c.b16 %v1994, %v1993
        %v2009 = vpack.c.b16 %v1996, %v1995
        %v2010 = vpack.c.b16 %v1998, %v1997
        %v2011 = vpack.c.b16 %v2000, %v1999
        %v2012 = vpack.c.b16 %v2002, %v2001
        %v2013 = vpack.c.b16 %v2004, %v2003
        %v2014 = vpack.c.b16 %v2006, %v2005
        %2023 = vmatprep.subr.bf16.mxu0 0
        %2024 = vmatpush1.bf16.msra.mxu0 %v2007
        %2025 = vmatprep.subr.bf16.mxu0 0
        %2026 = vmatpush1.bf16.msra.mxu0 %v2008
        %2027 = vmatprep.subr.bf16.mxu0 0
        %2028 = vmatpush1.bf16.msra.mxu0 %v2009
        %2029 = vmatprep.subr.bf16.mxu0 0
        %2030 = vmatpush1.bf16.msra.mxu0 %v2010
        %2031 = vmatprep.subr.bf16.mxu0 0
        %2032 = vmatpush1.bf16.msra.mxu0 %v2011
        %2033 = vmatprep.subr.bf16.mxu0 0
        %2034 = vmatpush1.bf16.msra.mxu0 %v2012
        %2035 = vmatprep.subr.bf16.mxu0 0
        %2036 = vmatpush1.bf16.msra.mxu0 %v2013
        %2037 = vmatprep.subr.bf16.mxu0 0
        %2038 = vmatpush1.bf16.msra.mxu0 %v2014
        %2039 = vmatprep.subr.bf16.mxu0 0
        %2040 = vmatpush1.bf16.msra.mxu0 0
        %2041 = vmatprep.subr.bf16.mxu0 0
        %2042 = vmatpush1.bf16.msra.mxu0 0
        %2043 = vmatprep.subr.bf16.mxu0 0
        %2044 = vmatpush1.bf16.msra.mxu0 0
        %2045 = vmatprep.subr.bf16.mxu0 0
        %2046 = vmatpush1.bf16.msra.mxu0 0
        %2047 = vmatprep.subr.bf16.mxu0 0
        %2048 = vmatpush1.bf16.msra.mxu0 0
        %2049 = vmatprep.subr.bf16.mxu0 0
        %2050 = vmatpush1.bf16.msra.mxu0 0
        %2051 = vmatprep.subr.bf16.mxu0 0
        %2052 = vmatpush1.bf16.msra.mxu0 0
        %2053 = vmatprep.subr.bf16.mxu0 0
        %2054 = vmatpush1.bf16.msra.mxu0 0
        %2055 = vmatprep.mubr.bf16.mxu0 0
        %2056 = vmatmul.mubr.bf16.gmra.mrb[0].mxu0 %v1497
        %v2057 = vpop.f32.mrb[0].mxu0
        %v2058 = vadd.f32 0.0, %v2057
        %v2059 = vpop.f32.mrb[0].mxu0
        %v2060 = vpop.f32.mrb[0].mxu0
        %v2061 = vadd.f32 0.0, %v2060
        %v2062 = vpop.f32.mrb[0].mxu0
        %2063 = vmatprep.mubr.bf16.mxu0 0
        %2064 = vmatmul.mubr.bf16.gmra.mrb[0].mxu0 %v1498
        %v2065 = vpop.f32.mrb[0].mxu0
        %v2066 = vadd.f32 0.0, %v2065
        %v2067 = vpop.f32.mrb[0].mxu0
        %v2068 = vpop.f32.mrb[0].mxu0
        %v2069 = vadd.f32 0.0, %v2068
        %v2070 = vpop.f32.mrb[0].mxu0
        %2071 = vmatprep.mubr.bf16.mxu0 0
        %2072 = vmatmul.mubr.bf16.gmra.mrb[0].mxu0 %v1499
        %v2073 = vpop.f32.mrb[0].mxu0
        %v2074 = vadd.f32 0.0, %v2073
        %v2075 = vpop.f32.mrb[0].mxu0
        %v2076 = vpop.f32.mrb[0].mxu0
        %v2077 = vadd.f32 0.0, %v2076
        %v2078 = vpop.f32.mrb[0].mxu0
        %2079 = vmatprep.mubr.bf16.mxu0 0
        %2080 = vmatmul.mubr.bf16.gmra.mrb[0].mxu0 %v1500
        %v2081 = vpop.f32.mrb[0].mxu0
        %v2082 = vadd.f32 0.0, %v2081
        %v2083 = vpop.f32.mrb[0].mxu0
        %v2084 = vpop.f32.mrb[0].mxu0
        %v2085 = vadd.f32 0.0, %v2084
        %v2086 = vpop.f32.mrb[0].mxu0
        %2087 = vmatprep.mubr.bf16.mxu0 0
        %2088 = vmatmul.mubr.bf16.gmra.mrb[0].mxu0 %v1501
        %v2089 = vpop.f32.mrb[0].mxu0
        %v2090 = vadd.f32 0.0, %v2089
        %v2091 = vpop.f32.mrb[0].mxu0
        %v2092 = vpop.f32.mrb[0].mxu0
        %v2093 = vadd.f32 0.0, %v2092
        %v2094 = vpop.f32.mrb[0].mxu0
        %2095 = vmatprep.mubr.bf16.mxu0 0
        %2096 = vmatmul.mubr.bf16.gmra.mrb[0].mxu0 %v1502
        %v2097 = vpop.f32.mrb[0].mxu0
        %v2098 = vadd.f32 0.0, %v2097
        %v2099 = vpop.f32.mrb[0].mxu0
        %v2100 = vpop.f32.mrb[0].mxu0
        %v2101 = vadd.f32 0.0, %v2100
        %v2102 = vpop.f32.mrb[0].mxu0
        %2103 = vmatprep.mubr.bf16.mxu0 0
        %2104 = vmatmul.mubr.bf16.gmra.mrb[0].mxu0 %v1503
        %v2105 = vpop.f32.mrb[0].mxu0
        %v2106 = vadd.f32 0.0, %v2105
        %v2107 = vpop.f32.mrb[0].mxu0
        %v2108 = vpop.f32.mrb[0].mxu0
        %v2109 = vadd.f32 0.0, %v2108
        %v2110 = vpop.f32.mrb[0].mxu0
        %2111 = vmatprep.mubr.bf16.mxu0 0
        %2112 = vmatmul.mubr.bf16.gmra.mrb[0].mxu0 %v1504
        %v2113 = vpop.f32.mrb[0].mxu0
        %v2114 = vadd.f32 0.0, %v2113
        %v2115 = vpop.f32.mrb[0].mxu0
        %v2116 = vpop.f32.mrb[0].mxu0
        %v2117 = vadd.f32 0.0, %v2116
        %v2118 = vpop.f32.mrb[0].mxu0
        %2119 = vmatprep.mubr.bf16.mxu0 0
        %2120 = vmatmul.mubr.bf16.gmra.mrb[0].mxu0 %v1505
        %v2121 = vpop.f32.mrb[0].mxu0
        %v2122 = vadd.f32 0.0, %v2121
        %v2123 = vpop.f32.mrb[0].mxu0
        %v2124 = vpop.f32.mrb[0].mxu0
        %v2125 = vadd.f32 0.0, %v2124
        %v2126 = vpop.f32.mrb[0].mxu0
        %2127 = vmatprep.mubr.bf16.mxu0 0
        %2128 = vmatmul.mubr.bf16.gmra.mrb[0].mxu0 %v1506
        %v2129 = vpop.f32.mrb[0].mxu0
        %v2130 = vadd.f32 0.0, %v2129
        %v2131 = vpop.f32.mrb[0].mxu0
        %v2132 = vpop.f32.mrb[0].mxu0
        %v2133 = vadd.f32 0.0, %v2132
        %v2134 = vpop.f32.mrb[0].mxu0
        %2135 = vmatprep.mubr.bf16.mxu0 0
        %2136 = vmatmul.mubr.bf16.gmra.mrb[0].mxu0 %v1507
        %v2137 = vpop.f32.mrb[0].mxu0
        %v2138 = vadd.f32 0.0, %v2137
        %v2139 = vpop.f32.mrb[0].mxu0
        %v2140 = vpop.f32.mrb[0].mxu0
        %v2141 = vadd.f32 0.0, %v2140
        %v2142 = vpop.f32.mrb[0].mxu0
        %2143 = vmatprep.mubr.bf16.mxu0 0
        %2144 = vmatmul.mubr.bf16.gmra.mrb[0].mxu0 %v1508
        %v2145 = vpop.f32.mrb[0].mxu0
        %v2146 = vadd.f32 0.0, %v2145
        %v2147 = vpop.f32.mrb[0].mxu0
        %v2148 = vpop.f32.mrb[0].mxu0
        %v2149 = vadd.f32 0.0, %v2148
        %v2150 = vpop.f32.mrb[0].mxu0
        %2151 = vmatprep.mubr.bf16.mxu0 0
        %2152 = vmatmul.mubr.bf16.gmra.mrb[0].mxu0 %v1509
        %v2153 = vpop.f32.mrb[0].mxu0
        %v2154 = vadd.f32 0.0, %v2153
        %v2155 = vpop.f32.mrb[0].mxu0
        %v2156 = vpop.f32.mrb[0].mxu0
        %v2157 = vadd.f32 0.0, %v2156
        %v2158 = vpop.f32.mrb[0].mxu0
        %2159 = vmatprep.mubr.bf16.mxu0 0
        %2160 = vmatmul.mubr.bf16.gmra.mrb[0].mxu0 %v1510
        %v2161 = vpop.f32.mrb[0].mxu0
        %v2162 = vadd.f32 0.0, %v2161
        %v2163 = vpop.f32.mrb[0].mxu0
        %v2164 = vpop.f32.mrb[0].mxu0
        %v2165 = vadd.f32 0.0, %v2164
        %v2166 = vpop.f32.mrb[0].mxu0
        %2167 = vmatprep.mubr.bf16.mxu0 0
        %2168 = vmatmul.mubr.bf16.gmra.mrb[0].mxu0 %v1511
        %v2169 = vpop.f32.mrb[0].mxu0
        %v2170 = vadd.f32 0.0, %v2169
        %v2171 = vpop.f32.mrb[0].mxu0
        %v2172 = vpop.f32.mrb[0].mxu0
        %v2173 = vadd.f32 0.0, %v2172
        %v2174 = vpop.f32.mrb[0].mxu0
        %2175 = vmatprep.mubr.bf16.mxu0 0
        %2176 = vmatmul.mubr.bf16.gmra.mrb[0].mxu0 %v1973
        %v2177 = vpop.f32.mrb[0].mxu0
        %v2178 = vadd.f32 0.0, %v2177
        %v2179 = vpop.f32.mrb[0].mxu0
        %v2180 = vpop.f32.mrb[0].mxu0
        %v2181 = vadd.f32 0.0, %v2180
        %v2182 = vpop.f32.mrb[0].mxu0
        %2183 = vdwg.mxu0
        %v2184 = vadd.f32 %v1826, %v2058
        %v2185 = vadd.f32 %v1829, %v2061
        %v2186 = vadd.f32 %v1834, %v2066
        %v2187 = vadd.f32 %v1837, %v2069
        %v2188 = vadd.f32 %v1842, %v2074
        %v2189 = vadd.f32 %v1845, %v2077
        %v2190 = vadd.f32 %v1850, %v2082
        %v2191 = vadd.f32 %v1853, %v2085
        %v2192 = vadd.f32 %v1858, %v2090
        %v2193 = vadd.f32 %v1861, %v2093
        %v2194 = vadd.f32 %v1866, %v2098
        %v2195 = vadd.f32 %v1869, %v2101
        %v2196 = vadd.f32 %v1874, %v2106
        %v2197 = vadd.f32 %v1877, %v2109
        %v2198 = vadd.f32 %v1882, %v2114
        %v2199 = vadd.f32 %v1885, %v2117
        %v2200 = vadd.f32 %v1890, %v2122
        %v2201 = vadd.f32 %v1893, %v2125
        %v2202 = vadd.f32 %v1898, %v2130
        %v2203 = vadd.f32 %v1901, %v2133
        %v2204 = vadd.f32 %v1906, %v2138
        %v2205 = vadd.f32 %v1909, %v2141
        %v2206 = vadd.f32 %v1914, %v2146
        %v2207 = vadd.f32 %v1917, %v2149
        %v2208 = vadd.f32 %v1922, %v2154
        %v2209 = vadd.f32 %v1925, %v2157
        %v2210 = vadd.f32 %v1930, %v2162
        %v2211 = vadd.f32 %v1933, %v2165
        %v2212 = vadd.f32 %v1938, %v2170
        %v2213 = vadd.f32 %v1941, %v2173
        %v2214 = vadd.f32 %v1946, %v2178
        %v2215 = vadd.f32 %v1949, %v2181
        %v2216 = vld [vmem:[#allocation2] sm:$0xf]
        %v2217 = vld [vmem:[#allocation2 + $0x4] sm:$0xf]
        %v2218 = vld [vmem:[#allocation2 + $0x8] sm:$0x1]
        %v2219 = vld [vmem:[#allocation2 + $0xc] sm:$0xf]
        %v2220 = vld [vmem:[#allocation2 + $0x10] sm:$0xf]
        %v2221 = vld [vmem:[#allocation2 + $0x14] sm:$0x1]
        %v2222 = vld [vmem:[#allocation2 + $0x18] sm:$0xf]
        %v2223 = vld [vmem:[#allocation2 + $0x1c] sm:$0xf]
        %v2224 = vld [vmem:[#allocation2 + $0x20] sm:$0x1]
        %v2225 = vld [vmem:[#allocation2 + $0x24] sm:$0xf]
        %v2226 = vld [vmem:[#allocation2 + $0x28] sm:$0xf]
        %v2227 = vld [vmem:[#allocation2 + $0x2c] sm:$0x1]
        %v2228 = vld [vmem:[#allocation2 + $0x30] sm:$0xf]
        %v2229 = vld [vmem:[#allocation2 + $0x34] sm:$0xf]
        %v2230 = vld [vmem:[#allocation2 + $0x38] sm:$0x1]
        %v2231 = vld [vmem:[#allocation2 + $0x3c] sm:$0xf]
        %v2232 = vld [vmem:[#allocation2 + $0x40] sm:$0xf]
        %v2233 = vld [vmem:[#allocation2 + $0x44] sm:$0x1]
        %v2234 = vld [vmem:[#allocation2 + $0x48] sm:$0xf]
        %v2235 = vld [vmem:[#allocation2 + $0x4c] sm:$0xf]
        %v2236 = vld [vmem:[#allocation2 + $0x50] sm:$0x1]
        %v2237 = vld [vmem:[#allocation2 + $0x54] sm:$0xf]
        %v2238 = vld [vmem:[#allocation2 + $0x58] sm:$0xf]
        %v2239 = vld [vmem:[#allocation2 + $0x5c] sm:$0x1]
        %v2240 = vld [vmem:[#allocation2 + $0x60] sm:$0xf]
        %v2241 = vld [vmem:[#allocation2 + $0x64] sm:$0xf]
        %v2242 = vld [vmem:[#allocation2 + $0x68] sm:$0x1]
        %v2243 = vld [vmem:[#allocation2 + $0x6c] sm:$0xf]
        %v2244 = vld [vmem:[#allocation2 + $0x70] sm:$0xf]
        %v2245 = vld [vmem:[#allocation2 + $0x74] sm:$0x1]
        %v2246 = vld [vmem:[#allocation2 + $0x78] sm:$0xf]
        %v2247 = vld [vmem:[#allocation2 + $0x7c] sm:$0xf]
        %v2248 = vld [vmem:[#allocation2 + $0x80] sm:$0x1]
        %v2249 = vld [vmem:[#allocation2 + $0x84] sm:$0xf]
        %v2250 = vld [vmem:[#allocation2 + $0x88] sm:$0xf]
        %v2251 = vld [vmem:[#allocation2 + $0x8c] sm:$0x1]
        %v2252 = vld [vmem:[#allocation2 + $0x90] sm:$0xf]
        %v2253 = vld [vmem:[#allocation2 + $0x94] sm:$0xf]
        %v2254 = vld [vmem:[#allocation2 + $0x98] sm:$0x1]
        %v2255 = vld [vmem:[#allocation2 + $0x9c] sm:$0xf]
        %v2256 = vld [vmem:[#allocation2 + $0xa0] sm:$0xf]
        %v2257 = vld [vmem:[#allocation2 + $0xa4] sm:$0x1]
        %v2258 = vld [vmem:[#allocation2 + $0xa8] sm:$0xf]
        %v2259 = vld [vmem:[#allocation2 + $0xac] sm:$0xf]
        %v2260 = vld [vmem:[#allocation2 + $0xb0] sm:$0x1]
        %v2261 = vld [vmem:[#allocation2 + $0xb4] sm:$0xf]
        %v2262 = vld [vmem:[#allocation2 + $0xb8] sm:$0xf]
        %v2263 = vld [vmem:[#allocation2 + $0xbc] sm:$0x1]
        %v2264 = vld [vmem:[#allocation2 + $0xc0] sm:$0xf]
        %v2265 = vld [vmem:[#allocation2 + $0xc4] sm:$0xf]
        %v2266 = vld [vmem:[#allocation2 + $0xc8] sm:$0x1]
        %v2267 = vld [vmem:[#allocation2 + $0xcc] sm:$0xf]
        %v2268 = vld [vmem:[#allocation2 + $0xd0] sm:$0xf]
        %v2269 = vld [vmem:[#allocation2 + $0xd4] sm:$0x1]
        %vm2270 = vsmask.f32 3328
        %vm2271 = vsmask.f32 7440
        %vm2272 = vmor %vm2270, %vm2271
        %v2274 = vshrl.u32 %v2216, 16
        %v2276 = vrot.slane %v2274, 4
        %v2277 = vshll.u32 %v2216, 16
        %v2279 = vrot.slane %v2277, 5
        %v2280 = vor.u32 %v2276, %v2279
        %v2281 = vrot.slane %v2280, 4
        %v2283 = vshll.u32 %v2217, 16
        %v2285 = vrot.slane %v2283, 5
        %v2286 = vsel %vm2272, %v2281, %v2285
        %v2287 = vshrl.u32 %v2217, 16
        %v2289 = vrot.slane %v2287, 4
        %v2290 = vor.u32 %v2289, %v2285
        %v2291 = vrot.slane %v2290, 4
        %v2293 = vshll.u32 %v2218, 16
        %v2295 = vrot.slane %v2293, 5
        %v2296 = vsel %vm2272, %v2291, %v2295
        %v2298 = vshrl.u32 %v2219, 16
        %v2300 = vrot.slane %v2298, 4
        %v2301 = vshll.u32 %v2219, 16
        %v2303 = vrot.slane %v2301, 5
        %v2304 = vor.u32 %v2300, %v2303
        %v2305 = vrot.slane %v2304, 4
        %v2307 = vshll.u32 %v2220, 16
        %v2309 = vrot.slane %v2307, 5
        %v2310 = vsel %vm2272, %v2305, %v2309
        %v2311 = vshrl.u32 %v2220, 16
        %v2313 = vrot.slane %v2311, 4
        %v2314 = vor.u32 %v2313, %v2309
        %v2315 = vrot.slane %v2314, 4
        %v2317 = vshll.u32 %v2221, 16
        %v2319 = vrot.slane %v2317, 5
        %v2320 = vsel %vm2272, %v2315, %v2319
        %v2322 = vshrl.u32 %v2222, 16
        %v2324 = vrot.slane %v2322, 4
        %v2325 = vshll.u32 %v2222, 16
        %v2327 = vrot.slane %v2325, 5
        %v2328 = vor.u32 %v2324, %v2327
        %v2329 = vrot.slane %v2328, 4
        %v2331 = vshll.u32 %v2223, 16
        %v2333 = vrot.slane %v2331, 5
        %v2334 = vsel %vm2272, %v2329, %v2333
        %v2335 = vshrl.u32 %v2223, 16
        %v2337 = vrot.slane %v2335, 4
        %v2338 = vor.u32 %v2337, %v2333
        %v2339 = vrot.slane %v2338, 4
        %v2341 = vshll.u32 %v2224, 16
        %v2343 = vrot.slane %v2341, 5
        %v2344 = vsel %vm2272, %v2339, %v2343
        %v2346 = vshrl.u32 %v2225, 16
        %v2348 = vrot.slane %v2346, 4
        %v2349 = vshll.u32 %v2225, 16
        %v2351 = vrot.slane %v2349, 5
        %v2352 = vor.u32 %v2348, %v2351
        %v2353 = vrot.slane %v2352, 4
        %v2355 = vshll.u32 %v2226, 16
        %v2357 = vrot.slane %v2355, 5
        %v2358 = vsel %vm2272, %v2353, %v2357
        %v2359 = vshrl.u32 %v2226, 16
        %v2361 = vrot.slane %v2359, 4
        %v2362 = vor.u32 %v2361, %v2357
        %v2363 = vrot.slane %v2362, 4
        %v2365 = vshll.u32 %v2227, 16
        %v2367 = vrot.slane %v2365, 5
        %v2368 = vsel %vm2272, %v2363, %v2367
        %v2370 = vshrl.u32 %v2228, 16
        %v2372 = vrot.slane %v2370, 4
        %v2373 = vshll.u32 %v2228, 16
        %v2375 = vrot.slane %v2373, 5
        %v2376 = vor.u32 %v2372, %v2375
        %v2377 = vrot.slane %v2376, 4
        %v2379 = vshll.u32 %v2229, 16
        %v2381 = vrot.slane %v2379, 5
        %v2382 = vsel %vm2272, %v2377, %v2381
        %v2383 = vshrl.u32 %v2229, 16
        %v2385 = vrot.slane %v2383, 4
        %v2386 = vor.u32 %v2385, %v2381
        %v2387 = vrot.slane %v2386, 4
        %v2389 = vshll.u32 %v2230, 16
        %v2391 = vrot.slane %v2389, 5
        %v2392 = vsel %vm2272, %v2387, %v2391
        %v2394 = vshrl.u32 %v2231, 16
        %v2396 = vrot.slane %v2394, 4
        %v2397 = vshll.u32 %v2231, 16
        %v2399 = vrot.slane %v2397, 5
        %v2400 = vor.u32 %v2396, %v2399
        %v2401 = vrot.slane %v2400, 4
        %v2403 = vshll.u32 %v2232, 16
        %v2405 = vrot.slane %v2403, 5
        %v2406 = vsel %vm2272, %v2401, %v2405
        %v2407 = vshrl.u32 %v2232, 16
        %v2409 = vrot.slane %v2407, 4
        %v2410 = vor.u32 %v2409, %v2405
        %v2411 = vrot.slane %v2410, 4
        %v2413 = vshll.u32 %v2233, 16
        %v2415 = vrot.slane %v2413, 5
        %v2416 = vsel %vm2272, %v2411, %v2415
        %v2418 = vshrl.u32 %v2234, 16
        %v2420 = vrot.slane %v2418, 4
        %v2421 = vshll.u32 %v2234, 16
        %v2423 = vrot.slane %v2421, 5
        %v2424 = vor.u32 %v2420, %v2423
        %v2425 = vrot.slane %v2424, 4
        %v2427 = vshll.u32 %v2235, 16
        %v2429 = vrot.slane %v2427, 5
        %v2430 = vsel %vm2272, %v2425, %v2429
        %v2431 = vshrl.u32 %v2235, 16
        %v2433 = vrot.slane %v2431, 4
        %v2434 = vor.u32 %v2433, %v2429
        %v2435 = vrot.slane %v2434, 4
        %v2437 = vshll.u32 %v2236, 16
        %v2439 = vrot.slane %v2437, 5
        %v2440 = vsel %vm2272, %v2435, %v2439
        %v2442 = vshrl.u32 %v2237, 16
        %v2444 = vrot.slane %v2442, 4
        %v2445 = vshll.u32 %v2237, 16
        %v2447 = vrot.slane %v2445, 5
        %v2448 = vor.u32 %v2444, %v2447
        %v2449 = vrot.slane %v2448, 4
        %v2451 = vshll.u32 %v2238, 16
        %v2453 = vrot.slane %v2451, 5
        %v2454 = vsel %vm2272, %v2449, %v2453
        %v2455 = vshrl.u32 %v2238, 16
        %v2457 = vrot.slane %v2455, 4
        %v2458 = vor.u32 %v2457, %v2453
        %v2459 = vrot.slane %v2458, 4
        %v2461 = vshll.u32 %v2239, 16
        %v2463 = vrot.slane %v2461, 5
        %v2464 = vsel %vm2272, %v2459, %v2463
        %v2466 = vshrl.u32 %v2240, 16
        %v2468 = vrot.slane %v2466, 4
        %v2469 = vshll.u32 %v2240, 16
        %v2471 = vrot.slane %v2469, 5
        %v2472 = vor.u32 %v2468, %v2471
        %v2473 = vrot.slane %v2472, 4
        %v2475 = vshll.u32 %v2241, 16
        %v2477 = vrot.slane %v2475, 5
        %v2478 = vsel %vm2272, %v2473, %v2477
        %v2479 = vshrl.u32 %v2241, 16
        %v2481 = vrot.slane %v2479, 4
        %v2482 = vor.u32 %v2481, %v2477
        %v2483 = vrot.slane %v2482, 4
        %v2485 = vshll.u32 %v2242, 16
        %v2487 = vrot.slane %v2485, 5
        %v2488 = vsel %vm2272, %v2483, %v2487
        %v2490 = vshrl.u32 %v2243, 16
        %v2492 = vrot.slane %v2490, 4
        %v2493 = vshll.u32 %v2243, 16
        %v2495 = vrot.slane %v2493, 5
        %v2496 = vor.u32 %v2492, %v2495
        %v2497 = vrot.slane %v2496, 4
        %v2499 = vshll.u32 %v2244, 16
        %v2501 = vrot.slane %v2499, 5
        %v2502 = vsel %vm2272, %v2497, %v2501
        %v2503 = vshrl.u32 %v2244, 16
        %v2505 = vrot.slane %v2503, 4
        %v2506 = vor.u32 %v2505, %v2501
        %v2507 = vrot.slane %v2506, 4
        %v2509 = vshll.u32 %v2245, 16
        %v2511 = vrot.slane %v2509, 5
        %v2512 = vsel %vm2272, %v2507, %v2511
        %v2514 = vshrl.u32 %v2246, 16
        %v2516 = vrot.slane %v2514, 4
        %v2517 = vshll.u32 %v2246, 16
        %v2519 = vrot.slane %v2517, 5
        %v2520 = vor.u32 %v2516, %v2519
        %v2521 = vrot.slane %v2520, 4
        %v2523 = vshll.u32 %v2247, 16
        %v2525 = vrot.slane %v2523, 5
        %v2526 = vsel %vm2272, %v2521, %v2525
        %v2527 = vshrl.u32 %v2247, 16
        %v2529 = vrot.slane %v2527, 4
        %v2530 = vor.u32 %v2529, %v2525
        %v2531 = vrot.slane %v2530, 4
        %v2533 = vshll.u32 %v2248, 16
        %v2535 = vrot.slane %v2533, 5
        %v2536 = vsel %vm2272, %v2531, %v2535
        %v2538 = vshrl.u32 %v2249, 16
        %v2540 = vrot.slane %v2538, 4
        %v2541 = vshll.u32 %v2249, 16
        %v2543 = vrot.slane %v2541, 5
        %v2544 = vor.u32 %v2540, %v2543
        %v2545 = vrot.slane %v2544, 4
        %v2547 = vshll.u32 %v2250, 16
        %v2549 = vrot.slane %v2547, 5
        %v2550 = vsel %vm2272, %v2545, %v2549
        %v2551 = vshrl.u32 %v2250, 16
        %v2553 = vrot.slane %v2551, 4
        %v2554 = vor.u32 %v2553, %v2549
        %v2555 = vrot.slane %v2554, 4
        %v2557 = vshll.u32 %v2251, 16
        %v2559 = vrot.slane %v2557, 5
        %v2560 = vsel %vm2272, %v2555, %v2559
        %v2562 = vshrl.u32 %v2252, 16
        %v2564 = vrot.slane %v2562, 4
        %v2565 = vshll.u32 %v2252, 16
        %v2567 = vrot.slane %v2565, 5
        %v2568 = vor.u32 %v2564, %v2567
        %v2569 = vrot.slane %v2568, 4
        %v2571 = vshll.u32 %v2253, 16
        %v2573 = vrot.slane %v2571, 5
        %v2574 = vsel %vm2272, %v2569, %v2573
        %v2575 = vshrl.u32 %v2253, 16
        %v2577 = vrot.slane %v2575, 4
        %v2578 = vor.u32 %v2577, %v2573
        %v2579 = vrot.slane %v2578, 4
        %v2581 = vshll.u32 %v2254, 16
        %v2583 = vrot.slane %v2581, 5
        %v2584 = vsel %vm2272, %v2579, %v2583
        %v2586 = vshrl.u32 %v2255, 16
        %v2588 = vrot.slane %v2586, 4
        %v2589 = vshll.u32 %v2255, 16
        %v2591 = vrot.slane %v2589, 5
        %v2592 = vor.u32 %v2588, %v2591
        %v2593 = vrot.slane %v2592, 4
        %v2595 = vshll.u32 %v2256, 16
        %v2597 = vrot.slane %v2595, 5
        %v2598 = vsel %vm2272, %v2593, %v2597
        %v2599 = vshrl.u32 %v2256, 16
        %v2601 = vrot.slane %v2599, 4
        %v2602 = vor.u32 %v2601, %v2597
        %v2603 = vrot.slane %v2602, 4
        %v2605 = vshll.u32 %v2257, 16
        %v2607 = vrot.slane %v2605, 5
        %v2608 = vsel %vm2272, %v2603, %v2607
        %v2610 = vshrl.u32 %v2258, 16
        %v2612 = vrot.slane %v2610, 4
        %v2613 = vshll.u32 %v2258, 16
        %v2615 = vrot.slane %v2613, 5
        %v2616 = vor.u32 %v2612, %v2615
        %v2617 = vrot.slane %v2616, 4
        %v2619 = vshll.u32 %v2259, 16
        %v2621 = vrot.slane %v2619, 5
        %v2622 = vsel %vm2272, %v2617, %v2621
        %v2623 = vshrl.u32 %v2259, 16
        %v2625 = vrot.slane %v2623, 4
        %v2626 = vor.u32 %v2625, %v2621
        %v2627 = vrot.slane %v2626, 4
        %v2629 = vshll.u32 %v2260, 16
        %v2631 = vrot.slane %v2629, 5
        %v2632 = vsel %vm2272, %v2627, %v2631
        %v2634 = vshrl.u32 %v2261, 16
        %v2636 = vrot.slane %v2634, 4
        %v2637 = vshll.u32 %v2261, 16
        %v2639 = vrot.slane %v2637, 5
        %v2640 = vor.u32 %v2636, %v2639
        %v2641 = vrot.slane %v2640, 4
        %v2643 = vshll.u32 %v2262, 16
        %v2645 = vrot.slane %v2643, 5
        %v2646 = vsel %vm2272, %v2641, %v2645
        %v2647 = vshrl.u32 %v2262, 16
        %v2649 = vrot.slane %v2647, 4
        %v2650 = vor.u32 %v2649, %v2645
        %v2651 = vrot.slane %v2650, 4
        %v2653 = vshll.u32 %v2263, 16
        %v2655 = vrot.slane %v2653, 5
        %v2656 = vsel %vm2272, %v2651, %v2655
        %s2657 = scalar_lea.vmem %s3, 64
        %v2658 = vld [vmem:[%s2657] sm:$0xf]
        %v2659 = vld [vmem:[%s2657 + $0x4] sm:$0xf]
        %v2660 = vld [vmem:[%s2657 + $0x8] sm:$0xf]
        %v2661 = vld [vmem:[%s2657 + $0xc] sm:$0xf]
        %v2662 = vld [vmem:[%s2657 + $0x10] sm:$0xf]
        %v2663 = vld [vmem:[%s2657 + $0x14] sm:$0xf]
        %v2664 = vld [vmem:[%s2657 + $0x18] sm:$0xf]
        %v2665 = vld [vmem:[%s2657 + $0x1c] sm:$0xf]
        %v2666 = vld [vmem:[%s2657 + $0x20] sm:$0xf]
        %v2667 = vld [vmem:[%s2657 + $0x24] sm:$0xf]
        %v2668 = vld [vmem:[%s2657 + $0x28] sm:$0xf]
        %v2669 = vld [vmem:[%s2657 + $0x2c] sm:$0xf]
        %v2670 = vld [vmem:[%s2657 + $0x30] sm:$0xf]
        %v2671 = vld [vmem:[%s2657 + $0x34] sm:$0xf]
        %v2672 = vld [vmem:[%s2657 + $0x38] sm:$0xf]
        %v2673 = vld [vmem:[%s2657 + $0x3c] sm:$0xf]
        %v2674 = vunpack.c.l.b16 %v2286
        %v2675 = vunpack.c.l.b16 %v2296
        %v2676 = vunpack.c.l.b16 %v2310
        %v2677 = vunpack.c.l.b16 %v2320
        %v2678 = vunpack.c.l.b16 %v2334
        %v2679 = vunpack.c.l.b16 %v2344
        %v2680 = vunpack.c.l.b16 %v2358
        %v2681 = vunpack.c.l.b16 %v2368
        %v2682 = vunpack.c.l.b16 %v2382
        %v2683 = vunpack.c.l.b16 %v2392
        %v2684 = vunpack.c.l.b16 %v2406
        %v2685 = vunpack.c.l.b16 %v2416
        %v2686 = vunpack.c.l.b16 %v2430
        %v2687 = vunpack.c.l.b16 %v2440
        %v2688 = vunpack.c.l.b16 %v2454
        %v2689 = vunpack.c.l.b16 %v2464
        %v2690 = vunpack.c.l.b16 %v2478
        %v2691 = vunpack.c.l.b16 %v2488
        %v2692 = vunpack.c.l.b16 %v2502
        %v2693 = vunpack.c.l.b16 %v2512
        %v2694 = vunpack.c.l.b16 %v2526
        %v2695 = vunpack.c.l.b16 %v2536
        %v2696 = vunpack.c.l.b16 %v2550
        %v2697 = vunpack.c.l.b16 %v2560
        %v2698 = vunpack.c.l.b16 %v2574
        %v2699 = vunpack.c.l.b16 %v2584
        %v2700 = vunpack.c.l.b16 %v2598
        %v2701 = vunpack.c.l.b16 %v2608
        %v2702 = vunpack.c.l.b16 %v2622
        %v2703 = vunpack.c.l.b16 %v2632
        %v2704 = vunpack.c.l.b16 %v2646
        %v2705 = vunpack.c.l.b16 %v2656
        %v2706 = vpack.c.b16 %v2675, %v2674
        %v2707 = vpack.c.b16 %v2677, %v2676
        %v2708 = vpack.c.b16 %v2679, %v2678
        %v2709 = vpack.c.b16 %v2681, %v2680
        %v2710 = vpack.c.b16 %v2683, %v2682
        %v2711 = vpack.c.b16 %v2685, %v2684
        %v2712 = vpack.c.b16 %v2687, %v2686
        %v2713 = vpack.c.b16 %v2689, %v2688
        %v2714 = vpack.c.b16 %v2691, %v2690
        %v2715 = vpack.c.b16 %v2693, %v2692
        %v2716 = vpack.c.b16 %v2695, %v2694
        %v2717 = vpack.c.b16 %v2697, %v2696
        %v2718 = vpack.c.b16 %v2699, %v2698
        %v2719 = vpack.c.b16 %v2701, %v2700
        %v2720 = vpack.c.b16 %v2703, %v2702
        %v2721 = vpack.c.b16 %v2705, %v2704
        %v2754 = vunpack.c.l.b16 %v2658
        %v2755 = vunpack.c.l.b16 %v2659
        %v2756 = vunpack.c.l.b16 %v2660
        %v2757 = vunpack.c.l.b16 %v2661
        %v2758 = vunpack.c.l.b16 %v2662
        %v2759 = vunpack.c.l.b16 %v2663
        %v2760 = vunpack.c.l.b16 %v2664
        %v2761 = vunpack.c.l.b16 %v2665
        %v2762 = vunpack.c.l.b16 %v2666
        %v2763 = vunpack.c.l.b16 %v2667
        %v2764 = vunpack.c.l.b16 %v2668
        %v2765 = vunpack.c.l.b16 %v2669
        %v2766 = vunpack.c.l.b16 %v2670
        %v2767 = vunpack.c.l.b16 %v2671
        %v2768 = vunpack.c.l.b16 %v2672
        %v2769 = vunpack.c.l.b16 %v2673
        %v2770 = vpack.c.b16 %v2755, %v2754
        %v2771 = vpack.c.b16 %v2757, %v2756
        %v2772 = vpack.c.b16 %v2759, %v2758
        %v2773 = vpack.c.b16 %v2761, %v2760
        %v2774 = vpack.c.b16 %v2763, %v2762
        %v2775 = vpack.c.b16 %v2765, %v2764
        %v2776 = vpack.c.b16 %v2767, %v2766
        %v2777 = vpack.c.b16 %v2769, %v2768
        %2786 = vmatprep.subr.bf16.mxu0 0
        %2787 = vmatpush1.bf16.msra.mxu0 %v2770
        %2788 = vmatprep.subr.bf16.mxu0 0
        %2789 = vmatpush1.bf16.msra.mxu0 %v2771
        %2790 = vmatprep.subr.bf16.mxu0 0
        %2791 = vmatpush1.bf16.msra.mxu0 %v2772
        %2792 = vmatprep.subr.bf16.mxu0 0
        %2793 = vmatpush1.bf16.msra.mxu0 %v2773
        %2794 = vmatprep.subr.bf16.mxu0 0
        %2795 = vmatpush1.bf16.msra.mxu0 %v2774
        %2796 = vmatprep.subr.bf16.mxu0 0
        %2797 = vmatpush1.bf16.msra.mxu0 %v2775
        %2798 = vmatprep.subr.bf16.mxu0 0
        %2799 = vmatpush1.bf16.msra.mxu0 %v2776
        %2800 = vmatprep.subr.bf16.mxu0 0
        %2801 = vmatpush1.bf16.msra.mxu0 %v2777
        %2802 = vmatprep.subr.bf16.mxu0 0
        %2803 = vmatpush1.bf16.msra.mxu0 0
        %2804 = vmatprep.subr.bf16.mxu0 0
        %2805 = vmatpush1.bf16.msra.mxu0 0
        %2806 = vmatprep.subr.bf16.mxu0 0
        %2807 = vmatpush1.bf16.msra.mxu0 0
        %2808 = vmatprep.subr.bf16.mxu0 0
        %2809 = vmatpush1.bf16.msra.mxu0 0
        %2810 = vmatprep.subr.bf16.mxu0 0
        %2811 = vmatpush1.bf16.msra.mxu0 0
        %2812 = vmatprep.subr.bf16.mxu0 0
        %2813 = vmatpush1.bf16.msra.mxu0 0
        %2814 = vmatprep.subr.bf16.mxu0 0
        %2815 = vmatpush1.bf16.msra.mxu0 0
        %2816 = vmatprep.subr.bf16.mxu0 0
        %2817 = vmatpush1.bf16.msra.mxu0 0
        %2818 = vmatprep.mubr.bf16.mxu0 0
        %2819 = vmatmul.mubr.bf16.gmra.mrb[0].mxu0 %v2706
        %v2820 = vpop.f32.mrb[0].mxu0
        %v2821 = vadd.f32 0.0, %v2820
        %v2822 = vpop.f32.mrb[0].mxu0
        %v2823 = vpop.f32.mrb[0].mxu0
        %v2824 = vadd.f32 0.0, %v2823
        %v2825 = vpop.f32.mrb[0].mxu0
        %2826 = vmatprep.mubr.bf16.mxu0 0
        %2827 = vmatmul.mubr.bf16.gmra.mrb[0].mxu0 %v2707
        %v2828 = vpop.f32.mrb[0].mxu0
        %v2829 = vadd.f32 0.0, %v2828
        %v2830 = vpop.f32.mrb[0].mxu0
        %v2831 = vpop.f32.mrb[0].mxu0
        %v2832 = vadd.f32 0.0, %v2831
        %v2833 = vpop.f32.mrb[0].mxu0
        %2834 = vmatprep.mubr.bf16.mxu0 0
        %2835 = vmatmul.mubr.bf16.gmra.mrb[0].mxu0 %v2708
        %v2836 = vpop.f32.mrb[0].mxu0
        %v2837 = vadd.f32 0.0, %v2836
        %v2838 = vpop.f32.mrb[0].mxu0
        %v2839 = vpop.f32.mrb[0].mxu0
        %v2840 = vadd.f32 0.0, %v2839
        %v2841 = vpop.f32.mrb[0].mxu0
        %2842 = vmatprep.mubr.bf16.mxu0 0
        %2843 = vmatmul.mubr.bf16.gmra.mrb[0].mxu0 %v2709
        %v2844 = vpop.f32.mrb[0].mxu0
        %v2845 = vadd.f32 0.0, %v2844
        %v2846 = vpop.f32.mrb[0].mxu0
        %v2847 = vpop.f32.mrb[0].mxu0
        %v2848 = vadd.f32 0.0, %v2847
        %v2849 = vpop.f32.mrb[0].mxu0
        %2850 = vmatprep.mubr.bf16.mxu0 0
        %2851 = vmatmul.mubr.bf16.gmra.mrb[0].mxu0 %v2710
        %v2852 = vpop.f32.mrb[0].mxu0
        %v2853 = vadd.f32 0.0, %v2852
        %v2854 = vpop.f32.mrb[0].mxu0
        %v2855 = vpop.f32.mrb[0].mxu0
        %v2856 = vadd.f32 0.0, %v2855
        %v2857 = vpop.f32.mrb[0].mxu0
        %2858 = vmatprep.mubr.bf16.mxu0 0
        %2859 = vmatmul.mubr.bf16.gmra.mrb[0].mxu0 %v2711
        %v2860 = vpop.f32.mrb[0].mxu0
        %v2861 = vadd.f32 0.0, %v2860
        %v2862 = vpop.f32.mrb[0].mxu0
        %v2863 = vpop.f32.mrb[0].mxu0
        %v2864 = vadd.f32 0.0, %v2863
        %v2865 = vpop.f32.mrb[0].mxu0
        %2866 = vmatprep.mubr.bf16.mxu0 0
        %2867 = vmatmul.mubr.bf16.gmra.mrb[0].mxu0 %v2712
        %v2868 = vpop.f32.mrb[0].mxu0
        %v2869 = vadd.f32 0.0, %v2868
        %v2870 = vpop.f32.mrb[0].mxu0
        %v2871 = vpop.f32.mrb[0].mxu0
        %v2872 = vadd.f32 0.0, %v2871
        %v2873 = vpop.f32.mrb[0].mxu0
        %2874 = vmatprep.mubr.bf16.mxu0 0
        %2875 = vmatmul.mubr.bf16.gmra.mrb[0].mxu0 %v2713
        %v2876 = vpop.f32.mrb[0].mxu0
        %v2877 = vadd.f32 0.0, %v2876
        %v2878 = vpop.f32.mrb[0].mxu0
        %v2879 = vpop.f32.mrb[0].mxu0
        %v2880 = vadd.f32 0.0, %v2879
        %v2881 = vpop.f32.mrb[0].mxu0
        %2882 = vmatprep.mubr.bf16.mxu0 0
        %2883 = vmatmul.mubr.bf16.gmra.mrb[0].mxu0 %v2714
        %v2884 = vpop.f32.mrb[0].mxu0
        %v2885 = vadd.f32 0.0, %v2884
        %v2886 = vpop.f32.mrb[0].mxu0
        %v2887 = vpop.f32.mrb[0].mxu0
        %v2888 = vadd.f32 0.0, %v2887
        %v2889 = vpop.f32.mrb[0].mxu0
        %2890 = vmatprep.mubr.bf16.mxu0 0
        %2891 = vmatmul.mubr.bf16.gmra.mrb[0].mxu0 %v2715
        %v2892 = vpop.f32.mrb[0].mxu0
        %v2893 = vadd.f32 0.0, %v2892
        %v2894 = vpop.f32.mrb[0].mxu0
        %v2895 = vpop.f32.mrb[0].mxu0
        %v2896 = vadd.f32 0.0, %v2895
        %v2897 = vpop.f32.mrb[0].mxu0
        %2898 = vmatprep.mubr.bf16.mxu0 0
        %2899 = vmatmul.mubr.bf16.gmra.mrb[0].mxu0 %v2716
        %v2900 = vpop.f32.mrb[0].mxu0
        %v2901 = vadd.f32 0.0, %v2900
        %v2902 = vpop.f32.mrb[0].mxu0
        %v2903 = vpop.f32.mrb[0].mxu0
        %v2904 = vadd.f32 0.0, %v2903
        %v2905 = vpop.f32.mrb[0].mxu0
        %2906 = vmatprep.mubr.bf16.mxu0 0
        %2907 = vmatmul.mubr.bf16.gmra.mrb[0].mxu0 %v2717
        %v2908 = vpop.f32.mrb[0].mxu0
        %v2909 = vadd.f32 0.0, %v2908
        %v2910 = vpop.f32.mrb[0].mxu0
        %v2911 = vpop.f32.mrb[0].mxu0
        %v2912 = vadd.f32 0.0, %v2911
        %v2913 = vpop.f32.mrb[0].mxu0
        %2914 = vmatprep.mubr.bf16.mxu0 0
        %2915 = vmatmul.mubr.bf16.gmra.mrb[0].mxu0 %v2718
        %v2916 = vpop.f32.mrb[0].mxu0
        %v2917 = vadd.f32 0.0, %v2916
        %v2918 = vpop.f32.mrb[0].mxu0
        %v2919 = vpop.f32.mrb[0].mxu0
        %v2920 = vadd.f32 0.0, %v2919
        %v2921 = vpop.f32.mrb[0].mxu0
        %2922 = vmatprep.mubr.bf16.mxu0 0
        %2923 = vmatmul.mubr.bf16.gmra.mrb[0].mxu0 %v2719
        %v2924 = vpop.f32.mrb[0].mxu0
        %v2925 = vadd.f32 0.0, %v2924
        %v2926 = vpop.f32.mrb[0].mxu0
        %v2927 = vpop.f32.mrb[0].mxu0
        %v2928 = vadd.f32 0.0, %v2927
        %v2929 = vpop.f32.mrb[0].mxu0
        %2930 = vmatprep.mubr.bf16.mxu0 0
        %2931 = vmatmul.mubr.bf16.gmra.mrb[0].mxu0 %v2720
        %v2932 = vpop.f32.mrb[0].mxu0
        %v2933 = vadd.f32 0.0, %v2932
        %v2934 = vpop.f32.mrb[0].mxu0
        %v2935 = vpop.f32.mrb[0].mxu0
        %v2936 = vadd.f32 0.0, %v2935
        %v2937 = vpop.f32.mrb[0].mxu0
        %2938 = vmatprep.mubr.bf16.mxu0 0
        %2939 = vmatmul.mubr.bf16.gmra.mrb[0].mxu0 %v2721
        %v2940 = vpop.f32.mrb[0].mxu0
        %v2941 = vadd.f32 0.0, %v2940
        %v2942 = vpop.f32.mrb[0].mxu0
        %v2943 = vpop.f32.mrb[0].mxu0
        %v2944 = vadd.f32 0.0, %v2943
        %v2945 = vpop.f32.mrb[0].mxu0
        %2946 = vdwg.mxu0
        %v2947 = vadd.f32 %v2184, %v2821
        %v2948 = vadd.f32 %v2185, %v2824
        %v2949 = vadd.f32 %v2186, %v2829
        %v2950 = vadd.f32 %v2187, %v2832
        %v2951 = vadd.f32 %v2188, %v2837
        %v2952 = vadd.f32 %v2189, %v2840
        %v2953 = vadd.f32 %v2190, %v2845
        %v2954 = vadd.f32 %v2191, %v2848
        %v2955 = vadd.f32 %v2192, %v2853
        %v2956 = vadd.f32 %v2193, %v2856
        %v2957 = vadd.f32 %v2194, %v2861
        %v2958 = vadd.f32 %v2195, %v2864
        %v2959 = vadd.f32 %v2196, %v2869
        %v2960 = vadd.f32 %v2197, %v2872
        %v2961 = vadd.f32 %v2198, %v2877
        %v2962 = vadd.f32 %v2199, %v2880
        %v2963 = vadd.f32 %v2200, %v2885
        %v2964 = vadd.f32 %v2201, %v2888
        %v2965 = vadd.f32 %v2202, %v2893
        %v2966 = vadd.f32 %v2203, %v2896
        %v2967 = vadd.f32 %v2204, %v2901
        %v2968 = vadd.f32 %v2205, %v2904
        %v2969 = vadd.f32 %v2206, %v2909
        %v2970 = vadd.f32 %v2207, %v2912
        %v2971 = vadd.f32 %v2208, %v2917
        %v2972 = vadd.f32 %v2209, %v2920
        %v2973 = vadd.f32 %v2210, %v2925
        %v2974 = vadd.f32 %v2211, %v2928
        %v2975 = vadd.f32 %v2212, %v2933
        %v2976 = vadd.f32 %v2213, %v2936
        %v2977 = vadd.f32 %v2214, %v2941
        %v2978 = vadd.f32 %v2215, %v2944
        %v2980 = vshrl.u32 %v2264, 16
        %v2982 = vrot.slane %v2980, 4
        %v2983 = vshll.u32 %v2264, 16
        %v2985 = vrot.slane %v2983, 5
        %v2986 = vor.u32 %v2982, %v2985
        %v2987 = vrot.slane %v2986, 4
        %v2989 = vshll.u32 %v2265, 16
        %v2991 = vrot.slane %v2989, 5
        %v2992 = vsel %vm2272, %v2987, %v2991
        %v2993 = vshrl.u32 %v2265, 16
        %v2995 = vrot.slane %v2993, 4
        %v2996 = vor.u32 %v2995, %v2991
        %v2997 = vrot.slane %v2996, 4
        %v2999 = vshll.u32 %v2266, 16
        %v3001 = vrot.slane %v2999, 5
        %v3002 = vsel %vm2272, %v2997, %v3001
        %s3003 = scalar_lea.vmem %s3, 256
        %v3004 = vld [vmem:[%s3003] sm:$0xf]
        %v3005 = vld [vmem:[%s3003 + $0x4] sm:$0xf]
        %v3006 = vld [vmem:[%s3003 + $0x8] sm:$0xf]
        %v3007 = vld [vmem:[%s3003 + $0xc] sm:$0xf]
        %v3008 = vld [vmem:[%s3003 + $0x10] sm:$0xf]
        %v3009 = vld [vmem:[%s3003 + $0x14] sm:$0xf]
        %v3010 = vld [vmem:[%s3003 + $0x18] sm:$0xf]
        %v3011 = vld [vmem:[%s3003 + $0x1c] sm:$0xf]
        %v3012 = vld [vmem:[%s3003 + $0x20] sm:$0xf]
        %v3013 = vld [vmem:[%s3003 + $0x24] sm:$0xf]
        %v3014 = vld [vmem:[%s3003 + $0x28] sm:$0xf]
        %v3015 = vld [vmem:[%s3003 + $0x2c] sm:$0xf]
        %v3016 = vld [vmem:[%s3003 + $0x30] sm:$0xf]
        %v3017 = vld [vmem:[%s3003 + $0x34] sm:$0xf]
        %v3018 = vld [vmem:[%s3003 + $0x38] sm:$0xf]
        %v3019 = vld [vmem:[%s3003 + $0x3c] sm:$0xf]
        %v3020 = vunpack.c.l.b16 %v2992
        %v3021 = vunpack.c.l.b16 %v3002
        %v3022 = vpack.c.b16 %v3021, %v3020
        %v3040 = vunpack.c.l.b16 %v3004
        %v3041 = vunpack.c.l.b16 %v3005
        %v3042 = vunpack.c.l.b16 %v3006
        %v3043 = vunpack.c.l.b16 %v3007
        %v3044 = vunpack.c.l.b16 %v3008
        %v3045 = vunpack.c.l.b16 %v3009
        %v3046 = vunpack.c.l.b16 %v3010
        %v3047 = vunpack.c.l.b16 %v3011
        %v3048 = vunpack.c.l.b16 %v3012
        %v3049 = vunpack.c.l.b16 %v3013
        %v3050 = vunpack.c.l.b16 %v3014
        %v3051 = vunpack.c.l.b16 %v3015
        %v3052 = vunpack.c.l.b16 %v3016
        %v3053 = vunpack.c.l.b16 %v3017
        %v3054 = vunpack.c.l.b16 %v3018
        %v3055 = vunpack.c.l.b16 %v3019
        %v3056 = vpack.c.b16 %v3041, %v3040
        %v3057 = vpack.c.b16 %v3043, %v3042
        %v3058 = vpack.c.b16 %v3045, %v3044
        %v3059 = vpack.c.b16 %v3047, %v3046
        %v3060 = vpack.c.b16 %v3049, %v3048
        %v3061 = vpack.c.b16 %v3051, %v3050
        %v3062 = vpack.c.b16 %v3053, %v3052
        %v3063 = vpack.c.b16 %v3055, %v3054
        %3072 = vmatprep.subr.bf16.mxu0 0
        %3073 = vmatpush1.bf16.msra.mxu0 %v3056
        %3074 = vmatprep.subr.bf16.mxu0 0
        %3075 = vmatpush1.bf16.msra.mxu0 %v3057
        %3076 = vmatprep.subr.bf16.mxu0 0
        %3077 = vmatpush1.bf16.msra.mxu0 %v3058
        %3078 = vmatprep.subr.bf16.mxu0 0
        %3079 = vmatpush1.bf16.msra.mxu0 %v3059
        %3080 = vmatprep.subr.bf16.mxu0 0
        %3081 = vmatpush1.bf16.msra.mxu0 %v3060
        %3082 = vmatprep.subr.bf16.mxu0 0
        %3083 = vmatpush1.bf16.msra.mxu0 %v3061
        %3084 = vmatprep.subr.bf16.mxu0 0
        %3085 = vmatpush1.bf16.msra.mxu0 %v3062
        %3086 = vmatprep.subr.bf16.mxu0 0
        %3087 = vmatpush1.bf16.msra.mxu0 %v3063
        %3088 = vmatprep.subr.bf16.mxu0 0
        %3089 = vmatpush1.bf16.msra.mxu0 0
        %3090 = vmatprep.subr.bf16.mxu0 0
        %3091 = vmatpush1.bf16.msra.mxu0 0
        %3092 = vmatprep.subr.bf16.mxu0 0
        %3093 = vmatpush1.bf16.msra.mxu0 0
        %3094 = vmatprep.subr.bf16.mxu0 0
        %3095 = vmatpush1.bf16.msra.mxu0 0
        %3096 = vmatprep.subr.bf16.mxu0 0
        %3097 = vmatpush1.bf16.msra.mxu0 0
        %3098 = vmatprep.subr.bf16.mxu0 0
        %3099 = vmatpush1.bf16.msra.mxu0 0
        %3100 = vmatprep.subr.bf16.mxu0 0
        %3101 = vmatpush1.bf16.msra.mxu0 0
        %3102 = vmatprep.subr.bf16.mxu0 0
        %3103 = vmatpush1.bf16.msra.mxu0 0
        %3104 = vmatprep.mubr.bf16.mxu0 0
        %3105 = vmatmul.mubr.bf16.gmra.mrb[0].mxu0 %v2707
        %v3106 = vpop.f32.mrb[0].mxu0
        %v3107 = vadd.f32 0.0, %v3106
        %v3108 = vpop.f32.mrb[0].mxu0
        %v3109 = vpop.f32.mrb[0].mxu0
        %v3110 = vadd.f32 0.0, %v3109
        %v3111 = vpop.f32.mrb[0].mxu0
        %3112 = vmatprep.mubr.bf16.mxu0 0
        %3113 = vmatmul.mubr.bf16.gmra.mrb[0].mxu0 %v2708
        %v3114 = vpop.f32.mrb[0].mxu0
        %v3115 = vadd.f32 0.0, %v3114
        %v3116 = vpop.f32.mrb[0].mxu0
        %v3117 = vpop.f32.mrb[0].mxu0
        %v3118 = vadd.f32 0.0, %v3117
        %v3119 = vpop.f32.mrb[0].mxu0
        %3120 = vmatprep.mubr.bf16.mxu0 0
        %3121 = vmatmul.mubr.bf16.gmra.mrb[0].mxu0 %v2709
        %v3122 = vpop.f32.mrb[0].mxu0
        %v3123 = vadd.f32 0.0, %v3122
        %v3124 = vpop.f32.mrb[0].mxu0
        %v3125 = vpop.f32.mrb[0].mxu0
        %v3126 = vadd.f32 0.0, %v3125
        %v3127 = vpop.f32.mrb[0].mxu0
        %3128 = vmatprep.mubr.bf16.mxu0 0
        %3129 = vmatmul.mubr.bf16.gmra.mrb[0].mxu0 %v2710
        %v3130 = vpop.f32.mrb[0].mxu0
        %v3131 = vadd.f32 0.0, %v3130
        %v3132 = vpop.f32.mrb[0].mxu0
        %v3133 = vpop.f32.mrb[0].mxu0
        %v3134 = vadd.f32 0.0, %v3133
        %v3135 = vpop.f32.mrb[0].mxu0
        %3136 = vmatprep.mubr.bf16.mxu0 0
        %3137 = vmatmul.mubr.bf16.gmra.mrb[0].mxu0 %v2711
        %v3138 = vpop.f32.mrb[0].mxu0
        %v3139 = vadd.f32 0.0, %v3138
        %v3140 = vpop.f32.mrb[0].mxu0
        %v3141 = vpop.f32.mrb[0].mxu0
        %v3142 = vadd.f32 0.0, %v3141
        %v3143 = vpop.f32.mrb[0].mxu0
        %3144 = vmatprep.mubr.bf16.mxu0 0
        %3145 = vmatmul.mubr.bf16.gmra.mrb[0].mxu0 %v2712
        %v3146 = vpop.f32.mrb[0].mxu0
        %v3147 = vadd.f32 0.0, %v3146
        %v3148 = vpop.f32.mrb[0].mxu0
        %v3149 = vpop.f32.mrb[0].mxu0
        %v3150 = vadd.f32 0.0, %v3149
        %v3151 = vpop.f32.mrb[0].mxu0
        %3152 = vmatprep.mubr.bf16.mxu0 0
        %3153 = vmatmul.mubr.bf16.gmra.mrb[0].mxu0 %v2713
        %v3154 = vpop.f32.mrb[0].mxu0
        %v3155 = vadd.f32 0.0, %v3154
        %v3156 = vpop.f32.mrb[0].mxu0
        %v3157 = vpop.f32.mrb[0].mxu0
        %v3158 = vadd.f32 0.0, %v3157
        %v3159 = vpop.f32.mrb[0].mxu0
        %3160 = vmatprep.mubr.bf16.mxu0 0
        %3161 = vmatmul.mubr.bf16.gmra.mrb[0].mxu0 %v2714
        %v3162 = vpop.f32.mrb[0].mxu0
        %v3163 = vadd.f32 0.0, %v3162
        %v3164 = vpop.f32.mrb[0].mxu0
        %v3165 = vpop.f32.mrb[0].mxu0
        %v3166 = vadd.f32 0.0, %v3165
        %v3167 = vpop.f32.mrb[0].mxu0
        %3168 = vmatprep.mubr.bf16.mxu0 0
        %3169 = vmatmul.mubr.bf16.gmra.mrb[0].mxu0 %v2715
        %v3170 = vpop.f32.mrb[0].mxu0
        %v3171 = vadd.f32 0.0, %v3170
        %v3172 = vpop.f32.mrb[0].mxu0
        %v3173 = vpop.f32.mrb[0].mxu0
        %v3174 = vadd.f32 0.0, %v3173
        %v3175 = vpop.f32.mrb[0].mxu0
        %3176 = vmatprep.mubr.bf16.mxu0 0
        %3177 = vmatmul.mubr.bf16.gmra.mrb[0].mxu0 %v2716
        %v3178 = vpop.f32.mrb[0].mxu0
        %v3179 = vadd.f32 0.0, %v3178
        %v3180 = vpop.f32.mrb[0].mxu0
        %v3181 = vpop.f32.mrb[0].mxu0
        %v3182 = vadd.f32 0.0, %v3181
        %v3183 = vpop.f32.mrb[0].mxu0
        %3184 = vmatprep.mubr.bf16.mxu0 0
        %3185 = vmatmul.mubr.bf16.gmra.mrb[0].mxu0 %v2717
        %v3186 = vpop.f32.mrb[0].mxu0
        %v3187 = vadd.f32 0.0, %v3186
        %v3188 = vpop.f32.mrb[0].mxu0
        %v3189 = vpop.f32.mrb[0].mxu0
        %v3190 = vadd.f32 0.0, %v3189
        %v3191 = vpop.f32.mrb[0].mxu0
        %3192 = vmatprep.mubr.bf16.mxu0 0
        %3193 = vmatmul.mubr.bf16.gmra.mrb[0].mxu0 %v2718
        %v3194 = vpop.f32.mrb[0].mxu0
        %v3195 = vadd.f32 0.0, %v3194
        %v3196 = vpop.f32.mrb[0].mxu0
        %v3197 = vpop.f32.mrb[0].mxu0
        %v3198 = vadd.f32 0.0, %v3197
        %v3199 = vpop.f32.mrb[0].mxu0
        %3200 = vmatprep.mubr.bf16.mxu0 0
        %3201 = vmatmul.mubr.bf16.gmra.mrb[0].mxu0 %v2719
        %v3202 = vpop.f32.mrb[0].mxu0
        %v3203 = vadd.f32 0.0, %v3202
        %v3204 = vpop.f32.mrb[0].mxu0
        %v3205 = vpop.f32.mrb[0].mxu0
        %v3206 = vadd.f32 0.0, %v3205
        %v3207 = vpop.f32.mrb[0].mxu0
        %3208 = vmatprep.mubr.bf16.mxu0 0
        %3209 = vmatmul.mubr.bf16.gmra.mrb[0].mxu0 %v2720
        %v3210 = vpop.f32.mrb[0].mxu0
        %v3211 = vadd.f32 0.0, %v3210
        %v3212 = vpop.f32.mrb[0].mxu0
        %v3213 = vpop.f32.mrb[0].mxu0
        %v3214 = vadd.f32 0.0, %v3213
        %v3215 = vpop.f32.mrb[0].mxu0
        %3216 = vmatprep.mubr.bf16.mxu0 0
        %3217 = vmatmul.mubr.bf16.gmra.mrb[0].mxu0 %v2721
        %v3218 = vpop.f32.mrb[0].mxu0
        %v3219 = vadd.f32 0.0, %v3218
        %v3220 = vpop.f32.mrb[0].mxu0
        %v3221 = vpop.f32.mrb[0].mxu0
        %v3222 = vadd.f32 0.0, %v3221
        %v3223 = vpop.f32.mrb[0].mxu0
        %3224 = vmatprep.mubr.bf16.mxu0 0
        %3225 = vmatmul.mubr.bf16.gmra.mrb[0].mxu0 %v3022
        %v3226 = vpop.f32.mrb[0].mxu0
        %v3227 = vadd.f32 0.0, %v3226
        %v3228 = vpop.f32.mrb[0].mxu0
        %v3229 = vpop.f32.mrb[0].mxu0
        %v3230 = vadd.f32 0.0, %v3229
        %v3231 = vpop.f32.mrb[0].mxu0
        %3232 = vdwg.mxu0
        %v3233 = vadd.f32 %v2947, %v3107
        %v3234 = vadd.f32 %v2948, %v3110
        %v3235 = vadd.f32 %v2949, %v3115
        %v3236 = vadd.f32 %v2950, %v3118
        %v3237 = vadd.f32 %v2951, %v3123
        %v3238 = vadd.f32 %v2952, %v3126
        %v3239 = vadd.f32 %v2953, %v3131
        %v3240 = vadd.f32 %v2954, %v3134
        %v3241 = vadd.f32 %v2955, %v3139
        %v3242 = vadd.f32 %v2956, %v3142
        %v3243 = vadd.f32 %v2957, %v3147
        %v3244 = vadd.f32 %v2958, %v3150
        %v3245 = vadd.f32 %v2959, %v3155
        %v3246 = vadd.f32 %v2960, %v3158
        %v3247 = vadd.f32 %v2961, %v3163
        %v3248 = vadd.f32 %v2962, %v3166
        %v3249 = vadd.f32 %v2963, %v3171
        %v3250 = vadd.f32 %v2964, %v3174
        %v3251 = vadd.f32 %v2965, %v3179
        %v3252 = vadd.f32 %v2966, %v3182
        %v3253 = vadd.f32 %v2967, %v3187
        %v3254 = vadd.f32 %v2968, %v3190
        %v3255 = vadd.f32 %v2969, %v3195
        %v3256 = vadd.f32 %v2970, %v3198
        %v3257 = vadd.f32 %v2971, %v3203
        %v3258 = vadd.f32 %v2972, %v3206
        %v3259 = vadd.f32 %v2973, %v3211
        %v3260 = vadd.f32 %v2974, %v3214
        %v3261 = vadd.f32 %v2975, %v3219
        %v3262 = vadd.f32 %v2976, %v3222
        %v3263 = vadd.f32 %v2977, %v3227
        %v3264 = vadd.f32 %v2978, %v3230
        %v3266 = vshrl.u32 %v2267, 16
        %v3268 = vrot.slane %v3266, 4
        %v3269 = vshll.u32 %v2267, 16
        %v3271 = vrot.slane %v3269, 5
        %v3272 = vor.u32 %v3268, %v3271
        %v3273 = vrot.slane %v3272, 4
        %v3275 = vshll.u32 %v2268, 16
        %v3277 = vrot.slane %v3275, 5
        %v3278 = vsel %vm2272, %v3273, %v3277
        %v3279 = vshrl.u32 %v2268, 16
        %v3281 = vrot.slane %v3279, 4
        %v3282 = vor.u32 %v3281, %v3277
        %v3283 = vrot.slane %v3282, 4
        %v3285 = vshll.u32 %v2269, 16
        %v3287 = vrot.slane %v3285, 5
        %v3288 = vsel %vm2272, %v3283, %v3287
        %s3289 = scalar_lea.vmem %s3, 448
        %v3290 = vld [vmem:[%s3289] sm:$0xf]
        %v3291 = vld [vmem:[%s3289 + $0x4] sm:$0xf]
        %v3292 = vld [vmem:[%s3289 + $0x8] sm:$0xf]
        %v3293 = vld [vmem:[%s3289 + $0xc] sm:$0xf]
        %v3294 = vld [vmem:[%s3289 + $0x10] sm:$0xf]
        %v3295 = vld [vmem:[%s3289 + $0x14] sm:$0xf]
        %v3296 = vld [vmem:[%s3289 + $0x18] sm:$0xf]
        %v3297 = vld [vmem:[%s3289 + $0x1c] sm:$0xf]
        %v3298 = vld [vmem:[%s3289 + $0x20] sm:$0xf]
        %v3299 = vld [vmem:[%s3289 + $0x24] sm:$0xf]
        %v3300 = vld [vmem:[%s3289 + $0x28] sm:$0xf]
        %v3301 = vld [vmem:[%s3289 + $0x2c] sm:$0xf]
        %v3302 = vld [vmem:[%s3289 + $0x30] sm:$0xf]
        %v3303 = vld [vmem:[%s3289 + $0x34] sm:$0xf]
        %v3304 = vld [vmem:[%s3289 + $0x38] sm:$0xf]
        %v3305 = vld [vmem:[%s3289 + $0x3c] sm:$0xf]
        %v3306 = vunpack.c.l.b16 %v3278
        %v3307 = vunpack.c.l.b16 %v3288
        %v3308 = vpack.c.b16 %v3307, %v3306
        %v3326 = vunpack.c.l.b16 %v3290
        %v3327 = vunpack.c.l.b16 %v3291
        %v3328 = vunpack.c.l.b16 %v3292
        %v3329 = vunpack.c.l.b16 %v3293
        %v3330 = vunpack.c.l.b16 %v3294
        %v3331 = vunpack.c.l.b16 %v3295
        %v3332 = vunpack.c.l.b16 %v3296
        %v3333 = vunpack.c.l.b16 %v3297
        %v3334 = vunpack.c.l.b16 %v3298
        %v3335 = vunpack.c.l.b16 %v3299
        %v3336 = vunpack.c.l.b16 %v3300
        %v3337 = vunpack.c.l.b16 %v3301
        %v3338 = vunpack.c.l.b16 %v3302
        %v3339 = vunpack.c.l.b16 %v3303
        %v3340 = vunpack.c.l.b16 %v3304
        %v3341 = vunpack.c.l.b16 %v3305
        %v3342 = vpack.c.b16 %v3327, %v3326
        %v3343 = vpack.c.b16 %v3329, %v3328
        %v3344 = vpack.c.b16 %v3331, %v3330
        %v3345 = vpack.c.b16 %v3333, %v3332
        %v3346 = vpack.c.b16 %v3335, %v3334
        %v3347 = vpack.c.b16 %v3337, %v3336
        %v3348 = vpack.c.b16 %v3339, %v3338
        %v3349 = vpack.c.b16 %v3341, %v3340
        %3358 = vmatprep.subr.bf16.mxu0 0
        %3359 = vmatpush1.bf16.msra.mxu0 %v3342
        %3360 = vmatprep.subr.bf16.mxu0 0
        %3361 = vmatpush1.bf16.msra.mxu0 %v3343
        %3362 = vmatprep.subr.bf16.mxu0 0
        %3363 = vmatpush1.bf16.msra.mxu0 %v3344
        %3364 = vmatprep.subr.bf16.mxu0 0
        %3365 = vmatpush1.bf16.msra.mxu0 %v3345
        %3366 = vmatprep.subr.bf16.mxu0 0
        %3367 = vmatpush1.bf16.msra.mxu0 %v3346
        %3368 = vmatprep.subr.bf16.mxu0 0
        %3369 = vmatpush1.bf16.msra.mxu0 %v3347
        %3370 = vmatprep.subr.bf16.mxu0 0
        %3371 = vmatpush1.bf16.msra.mxu0 %v3348
        %3372 = vmatprep.subr.bf16.mxu0 0
        %3373 = vmatpush1.bf16.msra.mxu0 %v3349
        %3374 = vmatprep.subr.bf16.mxu0 0
        %3375 = vmatpush1.bf16.msra.mxu0 0
        %3376 = vmatprep.subr.bf16.mxu0 0
        %3377 = vmatpush1.bf16.msra.mxu0 0
        %3378 = vmatprep.subr.bf16.mxu0 0
        %3379 = vmatpush1.bf16.msra.mxu0 0
        %3380 = vmatprep.subr.bf16.mxu0 0
        %3381 = vmatpush1.bf16.msra.mxu0 0
        %3382 = vmatprep.subr.bf16.mxu0 0
        %3383 = vmatpush1.bf16.msra.mxu0 0
        %3384 = vmatprep.subr.bf16.mxu0 0
        %3385 = vmatpush1.bf16.msra.mxu0 0
        %3386 = vmatprep.subr.bf16.mxu0 0
        %3387 = vmatpush1.bf16.msra.mxu0 0
        %3388 = vmatprep.subr.bf16.mxu0 0
        %3389 = vmatpush1.bf16.msra.mxu0 0
        %3390 = vmatprep.mubr.bf16.mxu0 0
        %3391 = vmatmul.mubr.bf16.gmra.mrb[0].mxu0 %v2708
        %v3392 = vpop.f32.mrb[0].mxu0
        %v3393 = vadd.f32 0.0, %v3392
        %v3394 = vpop.f32.mrb[0].mxu0
        %v3395 = vpop.f32.mrb[0].mxu0
        %v3396 = vadd.f32 0.0, %v3395
        %v3397 = vpop.f32.mrb[0].mxu0
        %3398 = vmatprep.mubr.bf16.mxu0 0
        %3399 = vmatmul.mubr.bf16.gmra.mrb[0].mxu0 %v2709
        %v3400 = vpop.f32.mrb[0].mxu0
        %v3401 = vadd.f32 0.0, %v3400
        %v3402 = vpop.f32.mrb[0].mxu0
        %v3403 = vpop.f32.mrb[0].mxu0
        %v3404 = vadd.f32 0.0, %v3403
        %v3405 = vpop.f32.mrb[0].mxu0
        %3406 = vmatprep.mubr.bf16.mxu0 0
        %3407 = vmatmul.mubr.bf16.gmra.mrb[0].mxu0 %v2710
        %v3408 = vpop.f32.mrb[0].mxu0
        %v3409 = vadd.f32 0.0, %v3408
        %v3410 = vpop.f32.mrb[0].mxu0
        %v3411 = vpop.f32.mrb[0].mxu0
        %v3412 = vadd.f32 0.0, %v3411
        %v3413 = vpop.f32.mrb[0].mxu0
        %3414 = vmatprep.mubr.bf16.mxu0 0
        %3415 = vmatmul.mubr.bf16.gmra.mrb[0].mxu0 %v2711
        %v3416 = vpop.f32.mrb[0].mxu0
        %v3417 = vadd.f32 0.0, %v3416
        %v3418 = vpop.f32.mrb[0].mxu0
        %v3419 = vpop.f32.mrb[0].mxu0
        %v3420 = vadd.f32 0.0, %v3419
        %v3421 = vpop.f32.mrb[0].mxu0
        %3422 = vmatprep.mubr.bf16.mxu0 0
        %3423 = vmatmul.mubr.bf16.gmra.mrb[0].mxu0 %v2712
        %v3424 = vpop.f32.mrb[0].mxu0
        %v3425 = vadd.f32 0.0, %v3424
        %v3426 = vpop.f32.mrb[0].mxu0
        %v3427 = vpop.f32.mrb[0].mxu0
        %v3428 = vadd.f32 0.0, %v3427
        %v3429 = vpop.f32.mrb[0].mxu0
        %3430 = vmatprep.mubr.bf16.mxu0 0
        %3431 = vmatmul.mubr.bf16.gmra.mrb[0].mxu0 %v2713
        %v3432 = vpop.f32.mrb[0].mxu0
        %v3433 = vadd.f32 0.0, %v3432
        %v3434 = vpop.f32.mrb[0].mxu0
        %v3435 = vpop.f32.mrb[0].mxu0
        %v3436 = vadd.f32 0.0, %v3435
        %v3437 = vpop.f32.mrb[0].mxu0
        %3438 = vmatprep.mubr.bf16.mxu0 0
        %3439 = vmatmul.mubr.bf16.gmra.mrb[0].mxu0 %v2714
        %v3440 = vpop.f32.mrb[0].mxu0
        %v3441 = vadd.f32 0.0, %v3440
        %v3442 = vpop.f32.mrb[0].mxu0
        %v3443 = vpop.f32.mrb[0].mxu0
        %v3444 = vadd.f32 0.0, %v3443
        %v3445 = vpop.f32.mrb[0].mxu0
        %3446 = vmatprep.mubr.bf16.mxu0 0
        %3447 = vmatmul.mubr.bf16.gmra.mrb[0].mxu0 %v2715
        %v3448 = vpop.f32.mrb[0].mxu0
        %v3449 = vadd.f32 0.0, %v3448
        %v3450 = vpop.f32.mrb[0].mxu0
        %v3451 = vpop.f32.mrb[0].mxu0
        %v3452 = vadd.f32 0.0, %v3451
        %v3453 = vpop.f32.mrb[0].mxu0
        %3454 = vmatprep.mubr.bf16.mxu0 0
        %3455 = vmatmul.mubr.bf16.gmra.mrb[0].mxu0 %v2716
        %v3456 = vpop.f32.mrb[0].mxu0
        %v3457 = vadd.f32 0.0, %v3456
        %v3458 = vpop.f32.mrb[0].mxu0
        %v3459 = vpop.f32.mrb[0].mxu0
        %v3460 = vadd.f32 0.0, %v3459
        %v3461 = vpop.f32.mrb[0].mxu0
        %3462 = vmatprep.mubr.bf16.mxu0 0
        %3463 = vmatmul.mubr.bf16.gmra.mrb[0].mxu0 %v2717
        %v3464 = vpop.f32.mrb[0].mxu0
        %v3465 = vadd.f32 0.0, %v3464
        %v3466 = vpop.f32.mrb[0].mxu0
        %v3467 = vpop.f32.mrb[0].mxu0
        %v3468 = vadd.f32 0.0, %v3467
        %v3469 = vpop.f32.mrb[0].mxu0
        %3470 = vmatprep.mubr.bf16.mxu0 0
        %3471 = vmatmul.mubr.bf16.gmra.mrb[0].mxu0 %v2718
        %v3472 = vpop.f32.mrb[0].mxu0
        %v3473 = vadd.f32 0.0, %v3472
        %v3474 = vpop.f32.mrb[0].mxu0
        %v3475 = vpop.f32.mrb[0].mxu0
        %v3476 = vadd.f32 0.0, %v3475
        %v3477 = vpop.f32.mrb[0].mxu0
        %3478 = vmatprep.mubr.bf16.mxu0 0
        %3479 = vmatmul.mubr.bf16.gmra.mrb[0].mxu0 %v2719
        %v3480 = vpop.f32.mrb[0].mxu0
        %v3481 = vadd.f32 0.0, %v3480
        %v3482 = vpop.f32.mrb[0].mxu0
        %v3483 = vpop.f32.mrb[0].mxu0
        %v3484 = vadd.f32 0.0, %v3483
        %v3485 = vpop.f32.mrb[0].mxu0
        %3486 = vmatprep.mubr.bf16.mxu0 0
        %3487 = vmatmul.mubr.bf16.gmra.mrb[0].mxu0 %v2720
        %v3488 = vpop.f32.mrb[0].mxu0
        %v3489 = vadd.f32 0.0, %v3488
        %v3490 = vpop.f32.mrb[0].mxu0
        %v3491 = vpop.f32.mrb[0].mxu0
        %v3492 = vadd.f32 0.0, %v3491
        %v3493 = vpop.f32.mrb[0].mxu0
        %3494 = vmatprep.mubr.bf16.mxu0 0
        %3495 = vmatmul.mubr.bf16.gmra.mrb[0].mxu0 %v2721
        %v3496 = vpop.f32.mrb[0].mxu0
        %v3497 = vadd.f32 0.0, %v3496
        %v3498 = vpop.f32.mrb[0].mxu0
        %v3499 = vpop.f32.mrb[0].mxu0
        %v3500 = vadd.f32 0.0, %v3499
        %v3501 = vpop.f32.mrb[0].mxu0
        %3502 = vmatprep.mubr.bf16.mxu0 0
        %3503 = vmatmul.mubr.bf16.gmra.mrb[0].mxu0 %v3022
        %v3504 = vpop.f32.mrb[0].mxu0
        %v3505 = vadd.f32 0.0, %v3504
        %v3506 = vpop.f32.mrb[0].mxu0
        %v3507 = vpop.f32.mrb[0].mxu0
        %v3508 = vadd.f32 0.0, %v3507
        %v3509 = vpop.f32.mrb[0].mxu0
        %3510 = vmatprep.mubr.bf16.mxu0 0
        %3511 = vmatmul.mubr.bf16.gmra.mrb[0].mxu0 %v3308
        %v3512 = vpop.f32.mrb[0].mxu0
        %v3513 = vadd.f32 0.0, %v3512
        %v3514 = vpop.f32.mrb[0].mxu0
        %v3515 = vpop.f32.mrb[0].mxu0
        %v3516 = vadd.f32 0.0, %v3515
        %v3517 = vpop.f32.mrb[0].mxu0
        %3518 = vdwg.mxu0
        %v3519 = vadd.f32 %v3233, %v3393
        %v3520 = vadd.f32 %v3234, %v3396
        %v3521 = vadd.f32 %v3235, %v3401
        %v3522 = vadd.f32 %v3236, %v3404
        %v3523 = vadd.f32 %v3237, %v3409
        %v3524 = vadd.f32 %v3238, %v3412
        %v3525 = vadd.f32 %v3239, %v3417
        %v3526 = vadd.f32 %v3240, %v3420
        %v3527 = vadd.f32 %v3241, %v3425
        %v3528 = vadd.f32 %v3242, %v3428
        %v3529 = vadd.f32 %v3243, %v3433
        %v3530 = vadd.f32 %v3244, %v3436
        %v3531 = vadd.f32 %v3245, %v3441
        %v3532 = vadd.f32 %v3246, %v3444
        %v3533 = vadd.f32 %v3247, %v3449
        %v3534 = vadd.f32 %v3248, %v3452
        %v3535 = vadd.f32 %v3249, %v3457
        %v3536 = vadd.f32 %v3250, %v3460
        %v3537 = vadd.f32 %v3251, %v3465
        %v3538 = vadd.f32 %v3252, %v3468
        %v3539 = vadd.f32 %v3253, %v3473
        %v3540 = vadd.f32 %v3254, %v3476
        %v3541 = vadd.f32 %v3255, %v3481
        %v3542 = vadd.f32 %v3256, %v3484
        %v3543 = vadd.f32 %v3257, %v3489
        %v3544 = vadd.f32 %v3258, %v3492
        %v3545 = vadd.f32 %v3259, %v3497
        %v3546 = vadd.f32 %v3260, %v3500
        %v3547 = vadd.f32 %v3261, %v3505
        %v3548 = vadd.f32 %v3262, %v3508
        %v3549 = vadd.f32 %v3263, %v3513
        %v3550 = vadd.f32 %v3264, %v3516
        %v3551 = vld [vmem:[#allocation2] sm:$0xe]
        %v3552 = vld [vmem:[#allocation2 + $0xc] sm:$0xe]
        %v3553 = vld [vmem:[#allocation2 + $0x18] sm:$0xe]
        %v3554 = vld [vmem:[#allocation2 + $0x24] sm:$0xe]
        %v3555 = vld [vmem:[#allocation2 + $0x30] sm:$0xe]
        %v3556 = vld [vmem:[#allocation2 + $0x3c] sm:$0xe]
        %v3557 = vld [vmem:[#allocation2 + $0x48] sm:$0xe]
        %v3558 = vld [vmem:[#allocation2 + $0x54] sm:$0xe]
        %v3559 = vld [vmem:[#allocation2 + $0x60] sm:$0xe]
        %v3560 = vld [vmem:[#allocation2 + $0x6c] sm:$0xe]
        %v3561 = vld [vmem:[#allocation2 + $0x78] sm:$0xe]
        %v3562 = vld [vmem:[#allocation2 + $0x84] sm:$0xe]
        %v3563 = vld [vmem:[#allocation2 + $0x90] sm:$0xe]
        %v3564 = vld [vmem:[#allocation2 + $0x9c] sm:$0xe]
        %v3565 = vld [vmem:[#allocation2 + $0xa8] sm:$0xe]
        %v3566 = vld [vmem:[#allocation2 + $0xb4] sm:$0xe]
        %v3567 = vld [vmem:[#allocation2 + $0xc0] sm:$0xe]
        %v3568 = vld [vmem:[#allocation2 + $0xcc] sm:$0xe]
        %vm3617 = vcmask 1042432
        %vm3618 = vcmask 1046532
        %vm3619 = vmor %vm3617, %vm3618
        %v3620 = vrot.slane %v3551, 5
        %v3621 = vrot.slane %v3620, 4
        %v3622 = vrot.slane %v2217, 5
        %v3623 = vsel %vm3619, %v3621, %v3622
        %v3624 = vrot.slane %v3622, 4
        %v3625 = vrot.slane %v2218, 5
        %v3626 = vsel %vm3619, %v3624, %v3625
        %v3627 = vrot.slane %v3552, 5
        %v3628 = vrot.slane %v3627, 4
        %v3629 = vrot.slane %v2220, 5
        %v3630 = vsel %vm3619, %v3628, %v3629
        %v3631 = vrot.slane %v3629, 4
        %v3632 = vrot.slane %v2221, 5
        %v3633 = vsel %vm3619, %v3631, %v3632
        %v3634 = vrot.slane %v3553, 5
        %v3635 = vrot.slane %v3634, 4
        %v3636 = vrot.slane %v2223, 5
        %v3637 = vsel %vm3619, %v3635, %v3636
        %v3638 = vrot.slane %v3636, 4
        %v3639 = vrot.slane %v2224, 5
        %v3640 = vsel %vm3619, %v3638, %v3639
        %v3641 = vrot.slane %v3554, 5
        %v3642 = vrot.slane %v3641, 4
        %v3643 = vrot.slane %v2226, 5
        %v3644 = vsel %vm3619, %v3642, %v3643
        %v3645 = vrot.slane %v3643, 4
        %v3646 = vrot.slane %v2227, 5
        %v3647 = vsel %vm3619, %v3645, %v3646
        %v3648 = vrot.slane %v3555, 5
        %v3649 = vrot.slane %v3648, 4
        %v3650 = vrot.slane %v2229, 5
        %v3651 = vsel %vm3619, %v3649, %v3650
        %v3652 = vrot.slane %v3650, 4
        %v3653 = vrot.slane %v2230, 5
        %v3654 = vsel %vm3619, %v3652, %v3653
        %v3655 = vrot.slane %v3556, 5
        %v3656 = vrot.slane %v3655, 4
        %v3657 = vrot.slane %v2232, 5
        %v3658 = vsel %vm3619, %v3656, %v3657
        %v3659 = vrot.slane %v3657, 4
        %v3660 = vrot.slane %v2233, 5
        %v3661 = vsel %vm3619, %v3659, %v3660
        %v3662 = vrot.slane %v3557, 5
        %v3663 = vrot.slane %v3662, 4
        %v3664 = vrot.slane %v2235, 5
        %v3665 = vsel %vm3619, %v3663, %v3664
        %v3666 = vrot.slane %v3664, 4
        %v3667 = vrot.slane %v2236, 5
        %v3668 = vsel %vm3619, %v3666, %v3667
        %v3669 = vrot.slane %v3558, 5
        %v3670 = vrot.slane %v3669, 4
        %v3671 = vrot.slane %v2238, 5
        %v3672 = vsel %vm3619, %v3670, %v3671
        %v3673 = vrot.slane %v3671, 4
        %v3674 = vrot.slane %v2239, 5
        %v3675 = vsel %vm3619, %v3673, %v3674
        %v3676 = vrot.slane %v3559, 5
        %v3677 = vrot.slane %v3676, 4
        %v3678 = vrot.slane %v2241, 5
        %v3679 = vsel %vm3619, %v3677, %v3678
        %v3680 = vrot.slane %v3678, 4
        %v3681 = vrot.slane %v2242, 5
        %v3682 = vsel %vm3619, %v3680, %v3681
        %v3683 = vrot.slane %v3560, 5
        %v3684 = vrot.slane %v3683, 4
        %v3685 = vrot.slane %v2244, 5
        %v3686 = vsel %vm3619, %v3684, %v3685
        %v3687 = vrot.slane %v3685, 4
        %v3688 = vrot.slane %v2245, 5
        %v3689 = vsel %vm3619, %v3687, %v3688
        %v3690 = vrot.slane %v3561, 5
        %v3691 = vrot.slane %v3690, 4
        %v3692 = vrot.slane %v2247, 5
        %v3693 = vsel %vm3619, %v3691, %v3692
        %v3694 = vrot.slane %v3692, 4
        %v3695 = vrot.slane %v2248, 5
        %v3696 = vsel %vm3619, %v3694, %v3695
        %v3697 = vrot.slane %v3562, 5
        %v3698 = vrot.slane %v3697, 4
        %v3699 = vrot.slane %v2250, 5
        %v3700 = vsel %vm3619, %v3698, %v3699
        %v3701 = vrot.slane %v3699, 4
        %v3702 = vrot.slane %v2251, 5
        %v3703 = vsel %vm3619, %v3701, %v3702
        %v3704 = vrot.slane %v3563, 5
        %v3705 = vrot.slane %v3704, 4
        %v3706 = vrot.slane %v2253, 5
        %v3707 = vsel %vm3619, %v3705, %v3706
        %v3708 = vrot.slane %v3706, 4
        %v3709 = vrot.slane %v2254, 5
        %v3710 = vsel %vm3619, %v3708, %v3709
        %v3711 = vrot.slane %v3564, 5
        %v3712 = vrot.slane %v3711, 4
        %v3713 = vrot.slane %v2256, 5
        %v3714 = vsel %vm3619, %v3712, %v3713
        %v3715 = vrot.slane %v3713, 4
        %v3716 = vrot.slane %v2257, 5
        %v3717 = vsel %vm3619, %v3715, %v3716
        %v3718 = vrot.slane %v3565, 5
        %v3719 = vrot.slane %v3718, 4
        %v3720 = vrot.slane %v2259, 5
        %v3721 = vsel %vm3619, %v3719, %v3720
        %v3722 = vrot.slane %v3720, 4
        %v3723 = vrot.slane %v2260, 5
        %v3724 = vsel %vm3619, %v3722, %v3723
        %v3725 = vrot.slane %v3566, 5
        %v3726 = vrot.slane %v3725, 4
        %v3727 = vrot.slane %v2262, 5
        %v3728 = vsel %vm3619, %v3726, %v3727
        %v3729 = vrot.slane %v3727, 4
        %v3730 = vrot.slane %v2263, 5
        %v3731 = vsel %vm3619, %v3729, %v3730
        %s3732 = scalar_lea.vmem %s3, 128
        %v3733 = vld [vmem:[%s3732] sm:$0xf]
        %v3734 = vld [vmem:[%s3732 + $0x4] sm:$0xf]
        %v3735 = vld [vmem:[%s3732 + $0x8] sm:$0xf]
        %v3736 = vld [vmem:[%s3732 + $0xc] sm:$0xf]
        %v3737 = vld [vmem:[%s3732 + $0x10] sm:$0xf]
        %v3738 = vld [vmem:[%s3732 + $0x14] sm:$0xf]
        %v3739 = vld [vmem:[%s3732 + $0x18] sm:$0xf]
        %v3740 = vld [vmem:[%s3732 + $0x1c] sm:$0xf]
        %v3741 = vld [vmem:[%s3732 + $0x20] sm:$0xf]
        %v3742 = vld [vmem:[%s3732 + $0x24] sm:$0xf]
        %v3743 = vld [vmem:[%s3732 + $0x28] sm:$0xf]
        %v3744 = vld [vmem:[%s3732 + $0x2c] sm:$0xf]
        %v3745 = vld [vmem:[%s3732 + $0x30] sm:$0xf]
        %v3746 = vld [vmem:[%s3732 + $0x34] sm:$0xf]
        %v3747 = vld [vmem:[%s3732 + $0x38] sm:$0xf]
        %v3748 = vld [vmem:[%s3732 + $0x3c] sm:$0xf]
        %v3749 = vunpack.c.l.b16 %v3623
        %v3750 = vunpack.c.l.b16 %v3626
        %v3751 = vunpack.c.l.b16 %v3630
        %v3752 = vunpack.c.l.b16 %v3633
        %v3753 = vunpack.c.l.b16 %v3637
        %v3754 = vunpack.c.l.b16 %v3640
        %v3755 = vunpack.c.l.b16 %v3644
        %v3756 = vunpack.c.l.b16 %v3647
        %v3757 = vunpack.c.l.b16 %v3651
        %v3758 = vunpack.c.l.b16 %v3654
        %v3759 = vunpack.c.l.b16 %v3658
        %v3760 = vunpack.c.l.b16 %v3661
        %v3761 = vunpack.c.l.b16 %v3665
        %v3762 = vunpack.c.l.b16 %v3668
        %v3763 = vunpack.c.l.b16 %v3672
        %v3764 = vunpack.c.l.b16 %v3675
        %v3765 = vunpack.c.l.b16 %v3679
        %v3766 = vunpack.c.l.b16 %v3682
        %v3767 = vunpack.c.l.b16 %v3686
        %v3768 = vunpack.c.l.b16 %v3689
        %v3769 = vunpack.c.l.b16 %v3693
        %v3770 = vunpack.c.l.b16 %v3696
        %v3771 = vunpack.c.l.b16 %v3700
        %v3772 = vunpack.c.l.b16 %v3703
        %v3773 = vunpack.c.l.b16 %v3707
        %v3774 = vunpack.c.l.b16 %v3710
        %v3775 = vunpack.c.l.b16 %v3714
        %v3776 = vunpack.c.l.b16 %v3717
        %v3777 = vunpack.c.l.b16 %v3721
        %v3778 = vunpack.c.l.b16 %v3724
        %v3779 = vunpack.c.l.b16 %v3728
        %v3780 = vunpack.c.l.b16 %v3731
        %v3781 = vpack.c.b16 %v3750, %v3749
        %v3782 = vpack.c.b16 %v3752, %v3751
        %v3783 = vpack.c.b16 %v3754, %v3753
        %v3784 = vpack.c.b16 %v3756, %v3755
        %v3785 = vpack.c.b16 %v3758, %v3757
        %v3786 = vpack.c.b16 %v3760, %v3759
        %v3787 = vpack.c.b16 %v3762, %v3761
        %v3788 = vpack.c.b16 %v3764, %v3763
        %v3789 = vpack.c.b16 %v3766, %v3765
        %v3790 = vpack.c.b16 %v3768, %v3767
        %v3791 = vpack.c.b16 %v3770, %v3769
        %v3792 = vpack.c.b16 %v3772, %v3771
        %v3793 = vpack.c.b16 %v3774, %v3773
        %v3794 = vpack.c.b16 %v3776, %v3775
        %v3795 = vpack.c.b16 %v3778, %v3777
        %v3796 = vpack.c.b16 %v3780, %v3779
        %v3829 = vunpack.c.l.b16 %v3733
        %v3830 = vunpack.c.l.b16 %v3734
        %v3831 = vunpack.c.l.b16 %v3735
        %v3832 = vunpack.c.l.b16 %v3736
        %v3833 = vunpack.c.l.b16 %v3737
        %v3834 = vunpack.c.l.b16 %v3738
        %v3835 = vunpack.c.l.b16 %v3739
        %v3836 = vunpack.c.l.b16 %v3740
        %v3837 = vunpack.c.l.b16 %v3741
        %v3838 = vunpack.c.l.b16 %v3742
        %v3839 = vunpack.c.l.b16 %v3743
        %v3840 = vunpack.c.l.b16 %v3744
        %v3841 = vunpack.c.l.b16 %v3745
        %v3842 = vunpack.c.l.b16 %v3746
        %v3843 = vunpack.c.l.b16 %v3747
        %v3844 = vunpack.c.l.b16 %v3748
        %v3845 = vpack.c.b16 %v3830, %v3829
        %v3846 = vpack.c.b16 %v3832, %v3831
        %v3847 = vpack.c.b16 %v3834, %v3833
        %v3848 = vpack.c.b16 %v3836, %v3835
        %v3849 = vpack.c.b16 %v3838, %v3837
        %v3850 = vpack.c.b16 %v3840, %v3839
        %v3851 = vpack.c.b16 %v3842, %v3841
        %v3852 = vpack.c.b16 %v3844, %v3843
        %3861 = vmatprep.subr.bf16.mxu0 0
        %3862 = vmatpush1.bf16.msra.mxu0 %v3845
        %3863 = vmatprep.subr.bf16.mxu0 0
        %3864 = vmatpush1.bf16.msra.mxu0 %v3846
        %3865 = vmatprep.subr.bf16.mxu0 0
        %3866 = vmatpush1.bf16.msra.mxu0 %v3847
        %3867 = vmatprep.subr.bf16.mxu0 0
        %3868 = vmatpush1.bf16.msra.mxu0 %v3848
        %3869 = vmatprep.subr.bf16.mxu0 0
        %3870 = vmatpush1.bf16.msra.mxu0 %v3849
        %3871 = vmatprep.subr.bf16.mxu0 0
        %3872 = vmatpush1.bf16.msra.mxu0 %v3850
        %3873 = vmatprep.subr.bf16.mxu0 0
        %3874 = vmatpush1.bf16.msra.mxu0 %v3851
        %3875 = vmatprep.subr.bf16.mxu0 0
        %3876 = vmatpush1.bf16.msra.mxu0 %v3852
        %3877 = vmatprep.subr.bf16.mxu0 0
        %3878 = vmatpush1.bf16.msra.mxu0 0
        %3879 = vmatprep.subr.bf16.mxu0 0
        %3880 = vmatpush1.bf16.msra.mxu0 0
        %3881 = vmatprep.subr.bf16.mxu0 0
        %3882 = vmatpush1.bf16.msra.mxu0 0
        %3883 = vmatprep.subr.bf16.mxu0 0
        %3884 = vmatpush1.bf16.msra.mxu0 0
        %3885 = vmatprep.subr.bf16.mxu0 0
        %3886 = vmatpush1.bf16.msra.mxu0 0
        %3887 = vmatprep.subr.bf16.mxu0 0
        %3888 = vmatpush1.bf16.msra.mxu0 0
        %3889 = vmatprep.subr.bf16.mxu0 0
        %3890 = vmatpush1.bf16.msra.mxu0 0
        %3891 = vmatprep.subr.bf16.mxu0 0
        %3892 = vmatpush1.bf16.msra.mxu0 0
        %3893 = vmatprep.mubr.bf16.mxu0 0
        %3894 = vmatmul.mubr.bf16.gmra.mrb[0].mxu0 %v3781
        %v3895 = vpop.f32.mrb[0].mxu0
        %v3896 = vadd.f32 0.0, %v3895
        %v3897 = vpop.f32.mrb[0].mxu0
        %v3898 = vpop.f32.mrb[0].mxu0
        %v3899 = vadd.f32 0.0, %v3898
        %v3900 = vpop.f32.mrb[0].mxu0
        %3901 = vmatprep.mubr.bf16.mxu0 0
        %3902 = vmatmul.mubr.bf16.gmra.mrb[0].mxu0 %v3782
        %v3903 = vpop.f32.mrb[0].mxu0
        %v3904 = vadd.f32 0.0, %v3903
        %v3905 = vpop.f32.mrb[0].mxu0
        %v3906 = vpop.f32.mrb[0].mxu0
        %v3907 = vadd.f32 0.0, %v3906
        %v3908 = vpop.f32.mrb[0].mxu0
        %3909 = vmatprep.mubr.bf16.mxu0 0
        %3910 = vmatmul.mubr.bf16.gmra.mrb[0].mxu0 %v3783
        %v3911 = vpop.f32.mrb[0].mxu0
        %v3912 = vadd.f32 0.0, %v3911
        %v3913 = vpop.f32.mrb[0].mxu0
        %v3914 = vpop.f32.mrb[0].mxu0
        %v3915 = vadd.f32 0.0, %v3914
        %v3916 = vpop.f32.mrb[0].mxu0
        %3917 = vmatprep.mubr.bf16.mxu0 0
        %3918 = vmatmul.mubr.bf16.gmra.mrb[0].mxu0 %v3784
        %v3919 = vpop.f32.mrb[0].mxu0
        %v3920 = vadd.f32 0.0, %v3919
        %v3921 = vpop.f32.mrb[0].mxu0
        %v3922 = vpop.f32.mrb[0].mxu0
        %v3923 = vadd.f32 0.0, %v3922
        %v3924 = vpop.f32.mrb[0].mxu0
        %3925 = vmatprep.mubr.bf16.mxu0 0
        %3926 = vmatmul.mubr.bf16.gmra.mrb[0].mxu0 %v3785
        %v3927 = vpop.f32.mrb[0].mxu0
        %v3928 = vadd.f32 0.0, %v3927
        %v3929 = vpop.f32.mrb[0].mxu0
        %v3930 = vpop.f32.mrb[0].mxu0
        %v3931 = vadd.f32 0.0, %v3930
        %v3932 = vpop.f32.mrb[0].mxu0
        %3933 = vmatprep.mubr.bf16.mxu0 0
        %3934 = vmatmul.mubr.bf16.gmra.mrb[0].mxu0 %v3786
        %v3935 = vpop.f32.mrb[0].mxu0
        %v3936 = vadd.f32 0.0, %v3935
        %v3937 = vpop.f32.mrb[0].mxu0
        %v3938 = vpop.f32.mrb[0].mxu0
        %v3939 = vadd.f32 0.0, %v3938
        %v3940 = vpop.f32.mrb[0].mxu0
        %3941 = vmatprep.mubr.bf16.mxu0 0
        %3942 = vmatmul.mubr.bf16.gmra.mrb[0].mxu0 %v3787
        %v3943 = vpop.f32.mrb[0].mxu0
        %v3944 = vadd.f32 0.0, %v3943
        %v3945 = vpop.f32.mrb[0].mxu0
        %v3946 = vpop.f32.mrb[0].mxu0
        %v3947 = vadd.f32 0.0, %v3946
        %v3948 = vpop.f32.mrb[0].mxu0
        %3949 = vmatprep.mubr.bf16.mxu0 0
        %3950 = vmatmul.mubr.bf16.gmra.mrb[0].mxu0 %v3788
        %v3951 = vpop.f32.mrb[0].mxu0
        %v3952 = vadd.f32 0.0, %v3951
        %v3953 = vpop.f32.mrb[0].mxu0
        %v3954 = vpop.f32.mrb[0].mxu0
        %v3955 = vadd.f32 0.0, %v3954
        %v3956 = vpop.f32.mrb[0].mxu0
        %3957 = vmatprep.mubr.bf16.mxu0 0
        %3958 = vmatmul.mubr.bf16.gmra.mrb[0].mxu0 %v3789
        %v3959 = vpop.f32.mrb[0].mxu0
        %v3960 = vadd.f32 0.0, %v3959
        %v3961 = vpop.f32.mrb[0].mxu0
        %v3962 = vpop.f32.mrb[0].mxu0
        %v3963 = vadd.f32 0.0, %v3962
        %v3964 = vpop.f32.mrb[0].mxu0
        %3965 = vmatprep.mubr.bf16.mxu0 0
        %3966 = vmatmul.mubr.bf16.gmra.mrb[0].mxu0 %v3790
        %v3967 = vpop.f32.mrb[0].mxu0
        %v3968 = vadd.f32 0.0, %v3967
        %v3969 = vpop.f32.mrb[0].mxu0
        %v3970 = vpop.f32.mrb[0].mxu0
        %v3971 = vadd.f32 0.0, %v3970
        %v3972 = vpop.f32.mrb[0].mxu0
        %3973 = vmatprep.mubr.bf16.mxu0 0
        %3974 = vmatmul.mubr.bf16.gmra.mrb[0].mxu0 %v3791
        %v3975 = vpop.f32.mrb[0].mxu0
        %v3976 = vadd.f32 0.0, %v3975
        %v3977 = vpop.f32.mrb[0].mxu0
        %v3978 = vpop.f32.mrb[0].mxu0
        %v3979 = vadd.f32 0.0, %v3978
        %v3980 = vpop.f32.mrb[0].mxu0
        %3981 = vmatprep.mubr.bf16.mxu0 0
        %3982 = vmatmul.mubr.bf16.gmra.mrb[0].mxu0 %v3792
        %v3983 = vpop.f32.mrb[0].mxu0
        %v3984 = vadd.f32 0.0, %v3983
        %v3985 = vpop.f32.mrb[0].mxu0
        %v3986 = vpop.f32.mrb[0].mxu0
        %v3987 = vadd.f32 0.0, %v3986
        %v3988 = vpop.f32.mrb[0].mxu0
        %3989 = vmatprep.mubr.bf16.mxu0 0
        %3990 = vmatmul.mubr.bf16.gmra.mrb[0].mxu0 %v3793
        %v3991 = vpop.f32.mrb[0].mxu0
        %v3992 = vadd.f32 0.0, %v3991
        %v3993 = vpop.f32.mrb[0].mxu0
        %v3994 = vpop.f32.mrb[0].mxu0
        %v3995 = vadd.f32 0.0, %v3994
        %v3996 = vpop.f32.mrb[0].mxu0
        %3997 = vmatprep.mubr.bf16.mxu0 0
        %3998 = vmatmul.mubr.bf16.gmra.mrb[0].mxu0 %v3794
        %v3999 = vpop.f32.mrb[0].mxu0
        %v4000 = vadd.f32 0.0, %v3999
        %v4001 = vpop.f32.mrb[0].mxu0
        %v4002 = vpop.f32.mrb[0].mxu0
        %v4003 = vadd.f32 0.0, %v4002
        %v4004 = vpop.f32.mrb[0].mxu0
        %4005 = vmatprep.mubr.bf16.mxu0 0
        %4006 = vmatmul.mubr.bf16.gmra.mrb[0].mxu0 %v3795
        %v4007 = vpop.f32.mrb[0].mxu0
        %v4008 = vadd.f32 0.0, %v4007
        %v4009 = vpop.f32.mrb[0].mxu0
        %v4010 = vpop.f32.mrb[0].mxu0
        %v4011 = vadd.f32 0.0, %v4010
        %v4012 = vpop.f32.mrb[0].mxu0
        %4013 = vmatprep.mubr.bf16.mxu0 0
        %4014 = vmatmul.mubr.bf16.gmra.mrb[0].mxu0 %v3796
        %v4015 = vpop.f32.mrb[0].mxu0
        %v4016 = vadd.f32 0.0, %v4015
        %v4017 = vpop.f32.mrb[0].mxu0
        %v4018 = vpop.f32.mrb[0].mxu0
        %v4019 = vadd.f32 0.0, %v4018
        %v4020 = vpop.f32.mrb[0].mxu0
        %4021 = vdwg.mxu0
        %v4022 = vadd.f32 %v3519, %v3896
        %v4023 = vadd.f32 %v3520, %v3899
        %v4024 = vadd.f32 %v3521, %v3904
        %v4025 = vadd.f32 %v3522, %v3907
        %v4026 = vadd.f32 %v3523, %v3912
        %v4027 = vadd.f32 %v3524, %v3915
        %v4028 = vadd.f32 %v3525, %v3920
        %v4029 = vadd.f32 %v3526, %v3923
        %v4030 = vadd.f32 %v3527, %v3928
        %v4031 = vadd.f32 %v3528, %v3931
        %v4032 = vadd.f32 %v3529, %v3936
        %v4033 = vadd.f32 %v3530, %v3939
        %v4034 = vadd.f32 %v3531, %v3944
        %v4035 = vadd.f32 %v3532, %v3947
        %v4036 = vadd.f32 %v3533, %v3952
        %v4037 = vadd.f32 %v3534, %v3955
        %v4038 = vadd.f32 %v3535, %v3960
        %v4039 = vadd.f32 %v3536, %v3963
        %v4040 = vadd.f32 %v3537, %v3968
        %v4041 = vadd.f32 %v3538, %v3971
        %v4042 = vadd.f32 %v3539, %v3976
        %v4043 = vadd.f32 %v3540, %v3979
        %v4044 = vadd.f32 %v3541, %v3984
        %v4045 = vadd.f32 %v3542, %v3987
        %v4046 = vadd.f32 %v3543, %v3992
        %v4047 = vadd.f32 %v3544, %v3995
        %v4048 = vadd.f32 %v3545, %v4000
        %v4049 = vadd.f32 %v3546, %v4003
        %v4050 = vadd.f32 %v3547, %v4008
        %v4051 = vadd.f32 %v3548, %v4011
        %v4052 = vadd.f32 %v3549, %v4016
        %v4053 = vadd.f32 %v3550, %v4019
        %v4057 = vrot.slane %v3567, 5
        %v4058 = vrot.slane %v4057, 4
        %v4059 = vrot.slane %v2265, 5
        %v4060 = vsel %vm3619, %v4058, %v4059
        %v4061 = vrot.slane %v4059, 4
        %v4062 = vrot.slane %v2266, 5
        %v4063 = vsel %vm3619, %v4061, %v4062
        %s4064 = scalar_lea.vmem %s3, 320
        %v4065 = vld [vmem:[%s4064] sm:$0xf]
        %v4066 = vld [vmem:[%s4064 + $0x4] sm:$0xf]
        %v4067 = vld [vmem:[%s4064 + $0x8] sm:$0xf]
        %v4068 = vld [vmem:[%s4064 + $0xc] sm:$0xf]
        %v4069 = vld [vmem:[%s4064 + $0x10] sm:$0xf]
        %v4070 = vld [vmem:[%s4064 + $0x14] sm:$0xf]
        %v4071 = vld [vmem:[%s4064 + $0x18] sm:$0xf]
        %v4072 = vld [vmem:[%s4064 + $0x1c] sm:$0xf]
        %v4073 = vld [vmem:[%s4064 + $0x20] sm:$0xf]
        %v4074 = vld [vmem:[%s4064 + $0x24] sm:$0xf]
        %v4075 = vld [vmem:[%s4064 + $0x28] sm:$0xf]
        %v4076 = vld [vmem:[%s4064 + $0x2c] sm:$0xf]
        %v4077 = vld [vmem:[%s4064 + $0x30] sm:$0xf]
        %v4078 = vld [vmem:[%s4064 + $0x34] sm:$0xf]
        %v4079 = vld [vmem:[%s4064 + $0x38] sm:$0xf]
        %v4080 = vld [vmem:[%s4064 + $0x3c] sm:$0xf]
        %v4081 = vunpack.c.l.b16 %v4060
        %v4082 = vunpack.c.l.b16 %v4063
        %v4083 = vpack.c.b16 %v4082, %v4081
        %v4101 = vunpack.c.l.b16 %v4065
        %v4102 = vunpack.c.l.b16 %v4066
        %v4103 = vunpack.c.l.b16 %v4067
        %v4104 = vunpack.c.l.b16 %v4068
        %v4105 = vunpack.c.l.b16 %v4069
        %v4106 = vunpack.c.l.b16 %v4070
        %v4107 = vunpack.c.l.b16 %v4071
        %v4108 = vunpack.c.l.b16 %v4072
        %v4109 = vunpack.c.l.b16 %v4073
        %v4110 = vunpack.c.l.b16 %v4074
        %v4111 = vunpack.c.l.b16 %v4075
        %v4112 = vunpack.c.l.b16 %v4076
        %v4113 = vunpack.c.l.b16 %v4077
        %v4114 = vunpack.c.l.b16 %v4078
        %v4115 = vunpack.c.l.b16 %v4079
        %v4116 = vunpack.c.l.b16 %v4080
        %v4117 = vpack.c.b16 %v4102, %v4101
        %v4118 = vpack.c.b16 %v4104, %v4103
        %v4119 = vpack.c.b16 %v4106, %v4105
        %v4120 = vpack.c.b16 %v4108, %v4107
        %v4121 = vpack.c.b16 %v4110, %v4109
        %v4122 = vpack.c.b16 %v4112, %v4111
        %v4123 = vpack.c.b16 %v4114, %v4113
        %v4124 = vpack.c.b16 %v4116, %v4115
        %4133 = vmatprep.subr.bf16.mxu0 0
        %4134 = vmatpush1.bf16.msra.mxu0 %v4117
        %4135 = vmatprep.subr.bf16.mxu0 0
        %4136 = vmatpush1.bf16.msra.mxu0 %v4118
        %4137 = vmatprep.subr.bf16.mxu0 0
        %4138 = vmatpush1.bf16.msra.mxu0 %v4119
        %4139 = vmatprep.subr.bf16.mxu0 0
        %4140 = vmatpush1.bf16.msra.mxu0 %v4120
        %4141 = vmatprep.subr.bf16.mxu0 0
        %4142 = vmatpush1.bf16.msra.mxu0 %v4121
        %4143 = vmatprep.subr.bf16.mxu0 0
        %4144 = vmatpush1.bf16.msra.mxu0 %v4122
        %4145 = vmatprep.subr.bf16.mxu0 0
        %4146 = vmatpush1.bf16.msra.mxu0 %v4123
        %4147 = vmatprep.subr.bf16.mxu0 0
        %4148 = vmatpush1.bf16.msra.mxu0 %v4124
        %4149 = vmatprep.subr.bf16.mxu0 0
        %4150 = vmatpush1.bf16.msra.mxu0 0
        %4151 = vmatprep.subr.bf16.mxu0 0
        %4152 = vmatpush1.bf16.msra.mxu0 0
        %4153 = vmatprep.subr.bf16.mxu0 0
        %4154 = vmatpush1.bf16.msra.mxu0 0
        %4155 = vmatprep.subr.bf16.mxu0 0
        %4156 = vmatpush1.bf16.msra.mxu0 0
        %4157 = vmatprep.subr.bf16.mxu0 0
        %4158 = vmatpush1.bf16.msra.mxu0 0
        %4159 = vmatprep.subr.bf16.mxu0 0
        %4160 = vmatpush1.bf16.msra.mxu0 0
        %4161 = vmatprep.subr.bf16.mxu0 0
        %4162 = vmatpush1.bf16.msra.mxu0 0
        %4163 = vmatprep.subr.bf16.mxu0 0
        %4164 = vmatpush1.bf16.msra.mxu0 0
        %4165 = vmatprep.mubr.bf16.mxu0 0
        %4166 = vmatmul.mubr.bf16.gmra.mrb[0].mxu0 %v3782
        %v4167 = vpop.f32.mrb[0].mxu0
        %v4168 = vadd.f32 0.0, %v4167
        %v4169 = vpop.f32.mrb[0].mxu0
        %v4170 = vpop.f32.mrb[0].mxu0
        %v4171 = vadd.f32 0.0, %v4170
        %v4172 = vpop.f32.mrb[0].mxu0
        %4173 = vmatprep.mubr.bf16.mxu0 0
        %4174 = vmatmul.mubr.bf16.gmra.mrb[0].mxu0 %v3783
        %v4175 = vpop.f32.mrb[0].mxu0
        %v4176 = vadd.f32 0.0, %v4175
        %v4177 = vpop.f32.mrb[0].mxu0
        %v4178 = vpop.f32.mrb[0].mxu0
        %v4179 = vadd.f32 0.0, %v4178
        %v4180 = vpop.f32.mrb[0].mxu0
        %4181 = vmatprep.mubr.bf16.mxu0 0
        %4182 = vmatmul.mubr.bf16.gmra.mrb[0].mxu0 %v3784
        %v4183 = vpop.f32.mrb[0].mxu0
        %v4184 = vadd.f32 0.0, %v4183
        %v4185 = vpop.f32.mrb[0].mxu0
        %v4186 = vpop.f32.mrb[0].mxu0
        %v4187 = vadd.f32 0.0, %v4186
        %v4188 = vpop.f32.mrb[0].mxu0
        %4189 = vmatprep.mubr.bf16.mxu0 0
        %4190 = vmatmul.mubr.bf16.gmra.mrb[0].mxu0 %v3785
        %v4191 = vpop.f32.mrb[0].mxu0
        %v4192 = vadd.f32 0.0, %v4191
        %v4193 = vpop.f32.mrb[0].mxu0
        %v4194 = vpop.f32.mrb[0].mxu0
        %v4195 = vadd.f32 0.0, %v4194
        %v4196 = vpop.f32.mrb[0].mxu0
        %4197 = vmatprep.mubr.bf16.mxu0 0
        %4198 = vmatmul.mubr.bf16.gmra.mrb[0].mxu0 %v3786
        %v4199 = vpop.f32.mrb[0].mxu0
        %v4200 = vadd.f32 0.0, %v4199
        %v4201 = vpop.f32.mrb[0].mxu0
        %v4202 = vpop.f32.mrb[0].mxu0
        %v4203 = vadd.f32 0.0, %v4202
        %v4204 = vpop.f32.mrb[0].mxu0
        %4205 = vmatprep.mubr.bf16.mxu0 0
        %4206 = vmatmul.mubr.bf16.gmra.mrb[0].mxu0 %v3787
        %v4207 = vpop.f32.mrb[0].mxu0
        %v4208 = vadd.f32 0.0, %v4207
        %v4209 = vpop.f32.mrb[0].mxu0
        %v4210 = vpop.f32.mrb[0].mxu0
        %v4211 = vadd.f32 0.0, %v4210
        %v4212 = vpop.f32.mrb[0].mxu0
        %4213 = vmatprep.mubr.bf16.mxu0 0
        %4214 = vmatmul.mubr.bf16.gmra.mrb[0].mxu0 %v3788
        %v4215 = vpop.f32.mrb[0].mxu0
        %v4216 = vadd.f32 0.0, %v4215
        %v4217 = vpop.f32.mrb[0].mxu0
        %v4218 = vpop.f32.mrb[0].mxu0
        %v4219 = vadd.f32 0.0, %v4218
        %v4220 = vpop.f32.mrb[0].mxu0
        %4221 = vmatprep.mubr.bf16.mxu0 0
        %4222 = vmatmul.mubr.bf16.gmra.mrb[0].mxu0 %v3789
        %v4223 = vpop.f32.mrb[0].mxu0
        %v4224 = vadd.f32 0.0, %v4223
        %v4225 = vpop.f32.mrb[0].mxu0
        %v4226 = vpop.f32.mrb[0].mxu0
        %v4227 = vadd.f32 0.0, %v4226
        %v4228 = vpop.f32.mrb[0].mxu0
        %4229 = vmatprep.mubr.bf16.mxu0 0
        %4230 = vmatmul.mubr.bf16.gmra.mrb[0].mxu0 %v3790
        %v4231 = vpop.f32.mrb[0].mxu0
        %v4232 = vadd.f32 0.0, %v4231
        %v4233 = vpop.f32.mrb[0].mxu0
        %v4234 = vpop.f32.mrb[0].mxu0
        %v4235 = vadd.f32 0.0, %v4234
        %v4236 = vpop.f32.mrb[0].mxu0
        %4237 = vmatprep.mubr.bf16.mxu0 0
        %4238 = vmatmul.mubr.bf16.gmra.mrb[0].mxu0 %v3791
        %v4239 = vpop.f32.mrb[0].mxu0
        %v4240 = vadd.f32 0.0, %v4239
        %v4241 = vpop.f32.mrb[0].mxu0
        %v4242 = vpop.f32.mrb[0].mxu0
        %v4243 = vadd.f32 0.0, %v4242
        %v4244 = vpop.f32.mrb[0].mxu0
        %4245 = vmatprep.mubr.bf16.mxu0 0
        %4246 = vmatmul.mubr.bf16.gmra.mrb[0].mxu0 %v3792
        %v4247 = vpop.f32.mrb[0].mxu0
        %v4248 = vadd.f32 0.0, %v4247
        %v4249 = vpop.f32.mrb[0].mxu0
        %v4250 = vpop.f32.mrb[0].mxu0
        %v4251 = vadd.f32 0.0, %v4250
        %v4252 = vpop.f32.mrb[0].mxu0
        %4253 = vmatprep.mubr.bf16.mxu0 0
        %4254 = vmatmul.mubr.bf16.gmra.mrb[0].mxu0 %v3793
        %v4255 = vpop.f32.mrb[0].mxu0
        %v4256 = vadd.f32 0.0, %v4255
        %v4257 = vpop.f32.mrb[0].mxu0
        %v4258 = vpop.f32.mrb[0].mxu0
        %v4259 = vadd.f32 0.0, %v4258
        %v4260 = vpop.f32.mrb[0].mxu0
        %4261 = vmatprep.mubr.bf16.mxu0 0
        %4262 = vmatmul.mubr.bf16.gmra.mrb[0].mxu0 %v3794
        %v4263 = vpop.f32.mrb[0].mxu0
        %v4264 = vadd.f32 0.0, %v4263
        %v4265 = vpop.f32.mrb[0].mxu0
        %v4266 = vpop.f32.mrb[0].mxu0
        %v4267 = vadd.f32 0.0, %v4266
        %v4268 = vpop.f32.mrb[0].mxu0
        %4269 = vmatprep.mubr.bf16.mxu0 0
        %4270 = vmatmul.mubr.bf16.gmra.mrb[0].mxu0 %v3795
        %v4271 = vpop.f32.mrb[0].mxu0
        %v4272 = vadd.f32 0.0, %v4271
        %v4273 = vpop.f32.mrb[0].mxu0
        %v4274 = vpop.f32.mrb[0].mxu0
        %v4275 = vadd.f32 0.0, %v4274
        %v4276 = vpop.f32.mrb[0].mxu0
        %4277 = vmatprep.mubr.bf16.mxu0 0
        %4278 = vmatmul.mubr.bf16.gmra.mrb[0].mxu0 %v3796
        %v4279 = vpop.f32.mrb[0].mxu0
        %v4280 = vadd.f32 0.0, %v4279
        %v4281 = vpop.f32.mrb[0].mxu0
        %v4282 = vpop.f32.mrb[0].mxu0
        %v4283 = vadd.f32 0.0, %v4282
        %v4284 = vpop.f32.mrb[0].mxu0
        %4285 = vmatprep.mubr.bf16.mxu0 0
        %4286 = vmatmul.mubr.bf16.gmra.mrb[0].mxu0 %v4083
        %v4287 = vpop.f32.mrb[0].mxu0
        %v4288 = vadd.f32 0.0, %v4287
        %v4289 = vpop.f32.mrb[0].mxu0
        %v4290 = vpop.f32.mrb[0].mxu0
        %v4291 = vadd.f32 0.0, %v4290
        %v4292 = vpop.f32.mrb[0].mxu0
        %4293 = vdwg.mxu0
        %v4294 = vadd.f32 %v4022, %v4168
        %v4295 = vadd.f32 %v4023, %v4171
        %v4296 = vadd.f32 %v4024, %v4176
        %v4297 = vadd.f32 %v4025, %v4179
        %v4298 = vadd.f32 %v4026, %v4184
        %v4299 = vadd.f32 %v4027, %v4187
        %v4300 = vadd.f32 %v4028, %v4192
        %v4301 = vadd.f32 %v4029, %v4195
        %v4302 = vadd.f32 %v4030, %v4200
        %v4303 = vadd.f32 %v4031, %v4203
        %v4304 = vadd.f32 %v4032, %v4208
        %v4305 = vadd.f32 %v4033, %v4211
        %v4306 = vadd.f32 %v4034, %v4216
        %v4307 = vadd.f32 %v4035, %v4219
        %v4308 = vadd.f32 %v4036, %v4224
        %v4309 = vadd.f32 %v4037, %v4227
        %v4310 = vadd.f32 %v4038, %v4232
        %v4311 = vadd.f32 %v4039, %v4235
        %v4312 = vadd.f32 %v4040, %v4240
        %v4313 = vadd.f32 %v4041, %v4243
        %v4314 = vadd.f32 %v4042, %v4248
        %v4315 = vadd.f32 %v4043, %v4251
        %v4316 = vadd.f32 %v4044, %v4256
        %v4317 = vadd.f32 %v4045, %v4259
        %v4318 = vadd.f32 %v4046, %v4264
        %v4319 = vadd.f32 %v4047, %v4267
        %v4320 = vadd.f32 %v4048, %v4272
        %v4321 = vadd.f32 %v4049, %v4275
        %v4322 = vadd.f32 %v4050, %v4280
        %v4323 = vadd.f32 %v4051, %v4283
        %v4324 = vadd.f32 %v4052, %v4288
        %v4325 = vadd.f32 %v4053, %v4291
        %v4329 = vrot.slane %v3568, 5
        %v4330 = vrot.slane %v4329, 4
        %v4331 = vrot.slane %v2268, 5
        %v4332 = vsel %vm3619, %v4330, %v4331
        %v4333 = vrot.slane %v4331, 4
        %v4334 = vrot.slane %v2269, 5
        %v4335 = vsel %vm3619, %v4333, %v4334
        %s4336 = scalar_lea.vmem %s3, 512
        %v4337 = vld [vmem:[%s4336] sm:$0xf]
        %v4338 = vld [vmem:[%s4336 + $0x4] sm:$0xf]
        %v4339 = vld [vmem:[%s4336 + $0x8] sm:$0xf]
        %v4340 = vld [vmem:[%s4336 + $0xc] sm:$0xf]
        %v4341 = vld [vmem:[%s4336 + $0x10] sm:$0xf]
        %v4342 = vld [vmem:[%s4336 + $0x14] sm:$0xf]
        %v4343 = vld [vmem:[%s4336 + $0x18] sm:$0xf]
        %v4344 = vld [vmem:[%s4336 + $0x1c] sm:$0xf]
        %v4345 = vld [vmem:[%s4336 + $0x20] sm:$0xf]
        %v4346 = vld [vmem:[%s4336 + $0x24] sm:$0xf]
        %v4347 = vld [vmem:[%s4336 + $0x28] sm:$0xf]
        %v4348 = vld [vmem:[%s4336 + $0x2c] sm:$0xf]
        %v4349 = vld [vmem:[%s4336 + $0x30] sm:$0xf]
        %v4350 = vld [vmem:[%s4336 + $0x34] sm:$0xf]
        %v4351 = vld [vmem:[%s4336 + $0x38] sm:$0xf]
        %v4352 = vld [vmem:[%s4336 + $0x3c] sm:$0xf]
        %v4353 = vunpack.c.l.b16 %v4332
        %v4354 = vunpack.c.l.b16 %v4335
        %v4355 = vpack.c.b16 %v4354, %v4353
        %v4373 = vunpack.c.l.b16 %v4337
        %v4374 = vunpack.c.l.b16 %v4338
        %v4375 = vunpack.c.l.b16 %v4339
        %v4376 = vunpack.c.l.b16 %v4340
        %v4377 = vunpack.c.l.b16 %v4341
        %v4378 = vunpack.c.l.b16 %v4342
        %v4379 = vunpack.c.l.b16 %v4343
        %v4380 = vunpack.c.l.b16 %v4344
        %v4381 = vunpack.c.l.b16 %v4345
        %v4382 = vunpack.c.l.b16 %v4346
        %v4383 = vunpack.c.l.b16 %v4347
        %v4384 = vunpack.c.l.b16 %v4348
        %v4385 = vunpack.c.l.b16 %v4349
        %v4386 = vunpack.c.l.b16 %v4350
        %v4387 = vunpack.c.l.b16 %v4351
        %v4388 = vunpack.c.l.b16 %v4352
        %v4389 = vpack.c.b16 %v4374, %v4373
        %v4390 = vpack.c.b16 %v4376, %v4375
        %v4391 = vpack.c.b16 %v4378, %v4377
        %v4392 = vpack.c.b16 %v4380, %v4379
        %v4393 = vpack.c.b16 %v4382, %v4381
        %v4394 = vpack.c.b16 %v4384, %v4383
        %v4395 = vpack.c.b16 %v4386, %v4385
        %v4396 = vpack.c.b16 %v4388, %v4387
        %4405 = vmatprep.subr.bf16.mxu0 0
        %4406 = vmatpush1.bf16.msra.mxu0 %v4389
        %4407 = vmatprep.subr.bf16.mxu0 0
        %4408 = vmatpush1.bf16.msra.mxu0 %v4390
        %4409 = vmatprep.subr.bf16.mxu0 0
        %4410 = vmatpush1.bf16.msra.mxu0 %v4391
        %4411 = vmatprep.subr.bf16.mxu0 0
        %4412 = vmatpush1.bf16.msra.mxu0 %v4392
        %4413 = vmatprep.subr.bf16.mxu0 0
        %4414 = vmatpush1.bf16.msra.mxu0 %v4393
        %4415 = vmatprep.subr.bf16.mxu0 0
        %4416 = vmatpush1.bf16.msra.mxu0 %v4394
        %4417 = vmatprep.subr.bf16.mxu0 0
        %4418 = vmatpush1.bf16.msra.mxu0 %v4395
        %4419 = vmatprep.subr.bf16.mxu0 0
        %4420 = vmatpush1.bf16.msra.mxu0 %v4396
        %4421 = vmatprep.subr.bf16.mxu0 0
        %4422 = vmatpush1.bf16.msra.mxu0 0
        %4423 = vmatprep.subr.bf16.mxu0 0
        %4424 = vmatpush1.bf16.msra.mxu0 0
        %4425 = vmatprep.subr.bf16.mxu0 0
        %4426 = vmatpush1.bf16.msra.mxu0 0
        %4427 = vmatprep.subr.bf16.mxu0 0
        %4428 = vmatpush1.bf16.msra.mxu0 0
        %4429 = vmatprep.subr.bf16.mxu0 0
        %4430 = vmatpush1.bf16.msra.mxu0 0
        %4431 = vmatprep.subr.bf16.mxu0 0
        %4432 = vmatpush1.bf16.msra.mxu0 0
        %4433 = vmatprep.subr.bf16.mxu0 0
        %4434 = vmatpush1.bf16.msra.mxu0 0
        %4435 = vmatprep.subr.bf16.mxu0 0
        %4436 = vmatpush1.bf16.msra.mxu0 0
        %4437 = vmatprep.mubr.bf16.mxu0 0
        %4438 = vmatmul.mubr.bf16.gmra.mrb[0].mxu0 %v3783
        %v4439 = vpop.f32.mrb[0].mxu0
        %v4440 = vadd.f32 0.0, %v4439
        %v4441 = vpop.f32.mrb[0].mxu0
        %v4442 = vpop.f32.mrb[0].mxu0
        %v4443 = vadd.f32 0.0, %v4442
        %v4444 = vpop.f32.mrb[0].mxu0
        %4445 = vmatprep.mubr.bf16.mxu0 0
        %4446 = vmatmul.mubr.bf16.gmra.mrb[0].mxu0 %v3784
        %v4447 = vpop.f32.mrb[0].mxu0
        %v4448 = vadd.f32 0.0, %v4447
        %v4449 = vpop.f32.mrb[0].mxu0
        %v4450 = vpop.f32.mrb[0].mxu0
        %v4451 = vadd.f32 0.0, %v4450
        %v4452 = vpop.f32.mrb[0].mxu0
        %4453 = vmatprep.mubr.bf16.mxu0 0
        %4454 = vmatmul.mubr.bf16.gmra.mrb[0].mxu0 %v3785
        %v4455 = vpop.f32.mrb[0].mxu0
        %v4456 = vadd.f32 0.0, %v4455
        %v4457 = vpop.f32.mrb[0].mxu0
        %v4458 = vpop.f32.mrb[0].mxu0
        %v4459 = vadd.f32 0.0, %v4458
        %v4460 = vpop.f32.mrb[0].mxu0
        %4461 = vmatprep.mubr.bf16.mxu0 0
        %4462 = vmatmul.mubr.bf16.gmra.mrb[0].mxu0 %v3786
        %v4463 = vpop.f32.mrb[0].mxu0
        %v4464 = vadd.f32 0.0, %v4463
        %v4465 = vpop.f32.mrb[0].mxu0
        %v4466 = vpop.f32.mrb[0].mxu0
        %v4467 = vadd.f32 0.0, %v4466
        %v4468 = vpop.f32.mrb[0].mxu0
        %4469 = vmatprep.mubr.bf16.mxu0 0
        %4470 = vmatmul.mubr.bf16.gmra.mrb[0].mxu0 %v3787
        %v4471 = vpop.f32.mrb[0].mxu0
        %v4472 = vadd.f32 0.0, %v4471
        %v4473 = vpop.f32.mrb[0].mxu0
        %v4474 = vpop.f32.mrb[0].mxu0
        %v4475 = vadd.f32 0.0, %v4474
        %v4476 = vpop.f32.mrb[0].mxu0
        %4477 = vmatprep.mubr.bf16.mxu0 0
        %4478 = vmatmul.mubr.bf16.gmra.mrb[0].mxu0 %v3788
        %v4479 = vpop.f32.mrb[0].mxu0
        %v4480 = vadd.f32 0.0, %v4479
        %v4481 = vpop.f32.mrb[0].mxu0
        %v4482 = vpop.f32.mrb[0].mxu0
        %v4483 = vadd.f32 0.0, %v4482
        %v4484 = vpop.f32.mrb[0].mxu0
        %4485 = vmatprep.mubr.bf16.mxu0 0
        %4486 = vmatmul.mubr.bf16.gmra.mrb[0].mxu0 %v3789
        %v4487 = vpop.f32.mrb[0].mxu0
        %v4488 = vadd.f32 0.0, %v4487
        %v4489 = vpop.f32.mrb[0].mxu0
        %v4490 = vpop.f32.mrb[0].mxu0
        %v4491 = vadd.f32 0.0, %v4490
        %v4492 = vpop.f32.mrb[0].mxu0
        %4493 = vmatprep.mubr.bf16.mxu0 0
        %4494 = vmatmul.mubr.bf16.gmra.mrb[0].mxu0 %v3790
        %v4495 = vpop.f32.mrb[0].mxu0
        %v4496 = vadd.f32 0.0, %v4495
        %v4497 = vpop.f32.mrb[0].mxu0
        %v4498 = vpop.f32.mrb[0].mxu0
        %v4499 = vadd.f32 0.0, %v4498
        %v4500 = vpop.f32.mrb[0].mxu0
        %4501 = vmatprep.mubr.bf16.mxu0 0
        %4502 = vmatmul.mubr.bf16.gmra.mrb[0].mxu0 %v3791
        %v4503 = vpop.f32.mrb[0].mxu0
        %v4504 = vadd.f32 0.0, %v4503
        %v4505 = vpop.f32.mrb[0].mxu0
        %v4506 = vpop.f32.mrb[0].mxu0
        %v4507 = vadd.f32 0.0, %v4506
        %v4508 = vpop.f32.mrb[0].mxu0
        %4509 = vmatprep.mubr.bf16.mxu0 0
        %4510 = vmatmul.mubr.bf16.gmra.mrb[0].mxu0 %v3792
        %v4511 = vpop.f32.mrb[0].mxu0
        %v4512 = vadd.f32 0.0, %v4511
        %v4513 = vpop.f32.mrb[0].mxu0
        %v4514 = vpop.f32.mrb[0].mxu0
        %v4515 = vadd.f32 0.0, %v4514
        %v4516 = vpop.f32.mrb[0].mxu0
        %4517 = vmatprep.mubr.bf16.mxu0 0
        %4518 = vmatmul.mubr.bf16.gmra.mrb[0].mxu0 %v3793
        %v4519 = vpop.f32.mrb[0].mxu0
        %v4520 = vadd.f32 0.0, %v4519
        %v4521 = vpop.f32.mrb[0].mxu0
        %v4522 = vpop.f32.mrb[0].mxu0
        %v4523 = vadd.f32 0.0, %v4522
        %v4524 = vpop.f32.mrb[0].mxu0
        %4525 = vmatprep.mubr.bf16.mxu0 0
        %4526 = vmatmul.mubr.bf16.gmra.mrb[0].mxu0 %v3794
        %v4527 = vpop.f32.mrb[0].mxu0
        %v4528 = vadd.f32 0.0, %v4527
        %v4529 = vpop.f32.mrb[0].mxu0
        %v4530 = vpop.f32.mrb[0].mxu0
        %v4531 = vadd.f32 0.0, %v4530
        %v4532 = vpop.f32.mrb[0].mxu0
        %4533 = vmatprep.mubr.bf16.mxu0 0
        %4534 = vmatmul.mubr.bf16.gmra.mrb[0].mxu0 %v3795
        %v4535 = vpop.f32.mrb[0].mxu0
        %v4536 = vadd.f32 0.0, %v4535
        %v4537 = vpop.f32.mrb[0].mxu0
        %v4538 = vpop.f32.mrb[0].mxu0
        %v4539 = vadd.f32 0.0, %v4538
        %v4540 = vpop.f32.mrb[0].mxu0
        %4541 = vmatprep.mubr.bf16.mxu0 0
        %4542 = vmatmul.mubr.bf16.gmra.mrb[0].mxu0 %v3796
        %v4543 = vpop.f32.mrb[0].mxu0
        %v4544 = vadd.f32 0.0, %v4543
        %v4545 = vpop.f32.mrb[0].mxu0
        %v4546 = vpop.f32.mrb[0].mxu0
        %v4547 = vadd.f32 0.0, %v4546
        %v4548 = vpop.f32.mrb[0].mxu0
        %4549 = vmatprep.mubr.bf16.mxu0 0
        %4550 = vmatmul.mubr.bf16.gmra.mrb[0].mxu0 %v4083
        %v4551 = vpop.f32.mrb[0].mxu0
        %v4552 = vadd.f32 0.0, %v4551
        %v4553 = vpop.f32.mrb[0].mxu0
        %v4554 = vpop.f32.mrb[0].mxu0
        %v4555 = vadd.f32 0.0, %v4554
        %v4556 = vpop.f32.mrb[0].mxu0
        %4557 = vmatprep.mubr.bf16.mxu0 0
        %4558 = vmatmul.mubr.bf16.gmra.mrb[0].mxu0 %v4355
        %v4559 = vpop.f32.mrb[0].mxu0
        %v4560 = vadd.f32 0.0, %v4559
        %v4561 = vpop.f32.mrb[0].mxu0
        %v4562 = vpop.f32.mrb[0].mxu0
        %v4563 = vadd.f32 0.0, %v4562
        %v4564 = vpop.f32.mrb[0].mxu0
        %4565 = vdwg.mxu0
        %v4566 = vadd.f32 %v4294, %v4440
        %v4567 = vadd.f32 %v4295, %v4443
        %v4568 = vadd.f32 %v4296, %v4448
        %v4569 = vadd.f32 %v4297, %v4451
        %v4570 = vadd.f32 %v4298, %v4456
        %v4571 = vadd.f32 %v4299, %v4459
        %v4572 = vadd.f32 %v4300, %v4464
        %v4573 = vadd.f32 %v4301, %v4467
        %v4574 = vadd.f32 %v4302, %v4472
        %v4575 = vadd.f32 %v4303, %v4475
        %v4576 = vadd.f32 %v4304, %v4480
        %v4577 = vadd.f32 %v4305, %v4483
        %v4578 = vadd.f32 %v4306, %v4488
        %v4579 = vadd.f32 %v4307, %v4491
        %v4580 = vadd.f32 %v4308, %v4496
        %v4581 = vadd.f32 %v4309, %v4499
        %v4582 = vadd.f32 %v4310, %v4504
        %v4583 = vadd.f32 %v4311, %v4507
        %v4584 = vadd.f32 %v4312, %v4512
        %v4585 = vadd.f32 %v4313, %v4515
        %v4586 = vadd.f32 %v4314, %v4520
        %v4587 = vadd.f32 %v4315, %v4523
        %v4588 = vadd.f32 %v4316, %v4528
        %v4589 = vadd.f32 %v4317, %v4531
        %v4590 = vadd.f32 %v4318, %v4536
        %v4591 = vadd.f32 %v4319, %v4539
        %v4592 = vadd.f32 %v4320, %v4544
        %v4593 = vadd.f32 %v4321, %v4547
        %v4594 = vadd.f32 %v4322, %v4552
        %v4595 = vadd.f32 %v4323, %v4555
        %v4596 = vadd.f32 %v4324, %v4560
        %v4597 = vadd.f32 %v4325, %v4563
        %v4598 = vld [vmem:[%s4] sm:$0x1]
        %v4600 = vlaneseq
        %v4601 = vshrl.u32 %v4600, 7
        %v4602 = vsub.s32 0, %v4601
        %v4603 = vrot.slane %v4598, %v4602
        %v4605 = vadd.f32 %v4566, %v4603
        %v4606 = vadd.f32 %v4567, %v4603
        %v4607 = vadd.f32 %v4568, %v4603
        %v4608 = vadd.f32 %v4569, %v4603
        %v4609 = vadd.f32 %v4570, %v4603
        %v4610 = vadd.f32 %v4571, %v4603
        %v4611 = vadd.f32 %v4572, %v4603
        %v4612 = vadd.f32 %v4573, %v4603
        %v4613 = vadd.f32 %v4574, %v4603
        %v4614 = vadd.f32 %v4575, %v4603
        %v4615 = vadd.f32 %v4576, %v4603
        %v4616 = vadd.f32 %v4577, %v4603
        %v4617 = vadd.f32 %v4578, %v4603
        %v4618 = vadd.f32 %v4579, %v4603
        %v4619 = vadd.f32 %v4580, %v4603
        %v4620 = vadd.f32 %v4581, %v4603
        %v4621 = vadd.f32 %v4582, %v4603
        %v4622 = vadd.f32 %v4583, %v4603
        %v4623 = vadd.f32 %v4584, %v4603
        %v4624 = vadd.f32 %v4585, %v4603
        %v4625 = vadd.f32 %v4586, %v4603
        %v4626 = vadd.f32 %v4587, %v4603
        %v4627 = vadd.f32 %v4588, %v4603
        %v4628 = vadd.f32 %v4589, %v4603
        %v4629 = vadd.f32 %v4590, %v4603
        %v4630 = vadd.f32 %v4591, %v4603
        %v4631 = vadd.f32 %v4592, %v4603
        %v4632 = vadd.f32 %v4593, %v4603
        %v4633 = vadd.f32 %v4594, %v4603
        %v4634 = vadd.f32 %v4595, %v4603
        %v4635 = vadd.f32 %v4596, %v4603
        %v4636 = vadd.f32 %v4597, %v4603
        %v4637 = vmax.f32 %v4605, 0.0
        %v4638 = vmax.f32 %v4606, 0.0
        %v4639 = vmax.f32 %v4607, 0.0
        %v4640 = vmax.f32 %v4608, 0.0
        %v4641 = vmax.f32 %v4609, 0.0
        %v4642 = vmax.f32 %v4610, 0.0
        %v4643 = vmax.f32 %v4611, 0.0
        %v4644 = vmax.f32 %v4612, 0.0
        %v4645 = vmax.f32 %v4613, 0.0
        %v4646 = vmax.f32 %v4614, 0.0
        %v4647 = vmax.f32 %v4615, 0.0
        %v4648 = vmax.f32 %v4616, 0.0
        %v4649 = vmax.f32 %v4617, 0.0
        %v4650 = vmax.f32 %v4618, 0.0
        %v4651 = vmax.f32 %v4619, 0.0
        %v4652 = vmax.f32 %v4620, 0.0
        %v4653 = vmax.f32 %v4621, 0.0
        %v4654 = vmax.f32 %v4622, 0.0
        %v4655 = vmax.f32 %v4623, 0.0
        %v4656 = vmax.f32 %v4624, 0.0
        %v4657 = vmax.f32 %v4625, 0.0
        %v4658 = vmax.f32 %v4626, 0.0
        %v4659 = vmax.f32 %v4627, 0.0
        %v4660 = vmax.f32 %v4628, 0.0
        %v4661 = vmax.f32 %v4629, 0.0
        %v4662 = vmax.f32 %v4630, 0.0
        %v4663 = vmax.f32 %v4631, 0.0
        %v4664 = vmax.f32 %v4632, 0.0
        %v4665 = vmax.f32 %v4633, 0.0
        %v4666 = vmax.f32 %v4634, 0.0
        %v4667 = vmax.f32 %v4635, 0.0
        %v4668 = vmax.f32 %v4636, 0.0
        %v4669 = vpack.c.bf16 %v4638, %v4637
        %v4670 = vpack.c.bf16 %v4640, %v4639
        %v4671 = vpack.c.bf16 %v4642, %v4641
        %v4672 = vpack.c.bf16 %v4644, %v4643
        %v4673 = vpack.c.bf16 %v4646, %v4645
        %v4674 = vpack.c.bf16 %v4648, %v4647
        %v4675 = vpack.c.bf16 %v4650, %v4649
        %v4676 = vpack.c.bf16 %v4652, %v4651
        %v4677 = vpack.c.bf16 %v4654, %v4653
        %v4678 = vpack.c.bf16 %v4656, %v4655
        %v4679 = vpack.c.bf16 %v4658, %v4657
        %v4680 = vpack.c.bf16 %v4660, %v4659
        %v4681 = vpack.c.bf16 %v4662, %v4661
        %v4682 = vpack.c.bf16 %v4664, %v4663
        %v4683 = vpack.c.bf16 %v4666, %v4665
        %v4684 = vpack.c.bf16 %v4668, %v4667
        %v4701 = vunpack.c.l.b16 %v4669
        %v4702 = vunpack.c.h.b16 %v4669
        %v4703 = vunpack.c.l.b16 %v4670
        %v4704 = vunpack.c.h.b16 %v4670
        %v4705 = vunpack.c.l.b16 %v4671
        %v4706 = vunpack.c.h.b16 %v4671
        %v4707 = vunpack.c.l.b16 %v4672
        %v4708 = vunpack.c.h.b16 %v4672
        %v4709 = vunpack.c.l.b16 %v4673
        %v4710 = vunpack.c.h.b16 %v4673
        %v4711 = vunpack.c.l.b16 %v4674
        %v4712 = vunpack.c.h.b16 %v4674
        %v4713 = vunpack.c.l.b16 %v4675
        %v4714 = vunpack.c.h.b16 %v4675
        %v4715 = vunpack.c.l.b16 %v4676
        %v4716 = vunpack.c.h.b16 %v4676
        %v4717 = vunpack.c.l.b16 %v4677
        %v4718 = vunpack.c.h.b16 %v4677
        %v4719 = vunpack.c.l.b16 %v4678
        %v4720 = vunpack.c.h.b16 %v4678
        %v4721 = vunpack.c.l.b16 %v4679
        %v4722 = vunpack.c.h.b16 %v4679
        %v4723 = vunpack.c.l.b16 %v4680
        %v4724 = vunpack.c.h.b16 %v4680
        %v4725 = vunpack.c.l.b16 %v4681
        %v4726 = vunpack.c.h.b16 %v4681
        %v4727 = vunpack.c.l.b16 %v4682
        %v4728 = vunpack.c.h.b16 %v4682
        %v4729 = vunpack.c.l.b16 %v4683
        %v4730 = vunpack.c.h.b16 %v4683
        %v4731 = vunpack.c.l.b16 %v4684
        %v4732 = vunpack.c.h.b16 %v4684
        %v4733 = vpack.c.b16 %v4701, %v4701
        %v4734 = vpack.c.b16 %v4702, %v4702
        %v4735 = vpack.c.b16 %v4703, %v4703
        %v4736 = vpack.c.b16 %v4704, %v4704
        %v4737 = vpack.c.b16 %v4705, %v4705
        %v4738 = vpack.c.b16 %v4706, %v4706
        %v4739 = vpack.c.b16 %v4707, %v4707
        %v4740 = vpack.c.b16 %v4708, %v4708
        %v4741 = vpack.c.b16 %v4709, %v4709
        %v4742 = vpack.c.b16 %v4710, %v4710
        %v4743 = vpack.c.b16 %v4711, %v4711
        %v4744 = vpack.c.b16 %v4712, %v4712
        %v4745 = vpack.c.b16 %v4713, %v4713
        %v4746 = vpack.c.b16 %v4714, %v4714
        %v4747 = vpack.c.b16 %v4715, %v4715
        %v4748 = vpack.c.b16 %v4716, %v4716
        %v4749 = vpack.c.b16 %v4717, %v4717
        %v4750 = vpack.c.b16 %v4718, %v4718
        %v4751 = vpack.c.b16 %v4719, %v4719
        %v4752 = vpack.c.b16 %v4720, %v4720
        %v4753 = vpack.c.b16 %v4721, %v4721
        %v4754 = vpack.c.b16 %v4722, %v4722
        %v4755 = vpack.c.b16 %v4723, %v4723
        %v4756 = vpack.c.b16 %v4724, %v4724
        %v4757 = vpack.c.b16 %v4725, %v4725
        %v4758 = vpack.c.b16 %v4726, %v4726
        %v4759 = vpack.c.b16 %v4727, %v4727
        %v4760 = vpack.c.b16 %v4728, %v4728
        %v4761 = vpack.c.b16 %v4729, %v4729
        %v4762 = vpack.c.b16 %v4730, %v4730
        %v4763 = vpack.c.b16 %v4731, %v4731
        %v4764 = vpack.c.b16 %v4732, %v4732
        %v4766 = vshrl.u32 %v4733, 16
        %v4768 = vrot.slane %v4766, 7
        %v4769 = vshll.u32 %v4733, 16
        %v4771 = vor.u32 %v4768, %v4769
        %v4772 = vrot.slane %v4768, 4
        %v4774 = vshrl.u32 %v4734, 16
        %v4776 = vrot.slane %v4774, 7
        %v4777 = vshll.u32 %v4734, 16
        %v4779 = vor.u32 %v4776, %v4777
        %v4780 = vsel %vm927, %v4772, %v4779
        %v4781 = vrot.slane %v4776, 4
        %v4783 = vshrl.u32 %v4735, 16
        %v4785 = vrot.slane %v4783, 7
        %v4786 = vshll.u32 %v4735, 16
        %v4788 = vor.u32 %v4785, %v4786
        %v4789 = vrot.slane %v4785, 4
        %v4791 = vshrl.u32 %v4736, 16
        %v4793 = vrot.slane %v4791, 7
        %v4794 = vshll.u32 %v4736, 16
        %v4796 = vor.u32 %v4793, %v4794
        %v4797 = vsel %vm927, %v4789, %v4796
        %v4798 = vrot.slane %v4793, 4
        %v4800 = vshrl.u32 %v4737, 16
        %v4802 = vrot.slane %v4800, 7
        %v4803 = vshll.u32 %v4737, 16
        %v4805 = vor.u32 %v4802, %v4803
        %v4806 = vrot.slane %v4802, 4
        %v4808 = vshrl.u32 %v4738, 16
        %v4810 = vrot.slane %v4808, 7
        %v4811 = vshll.u32 %v4738, 16
        %v4813 = vor.u32 %v4810, %v4811
        %v4814 = vsel %vm927, %v4806, %v4813
        %v4815 = vrot.slane %v4810, 4
        %v4817 = vshrl.u32 %v4739, 16
        %v4819 = vrot.slane %v4817, 7
        %v4820 = vshll.u32 %v4739, 16
        %v4822 = vor.u32 %v4819, %v4820
        %v4823 = vrot.slane %v4819, 4
        %v4825 = vshrl.u32 %v4740, 16
        %v4827 = vrot.slane %v4825, 7
        %v4828 = vshll.u32 %v4740, 16
        %v4830 = vor.u32 %v4827, %v4828
        %v4831 = vsel %vm927, %v4823, %v4830
        %v4832 = vrot.slane %v4827, 4
        %v4834 = vshrl.u32 %v4741, 16
        %v4836 = vrot.slane %v4834, 7
        %v4837 = vshll.u32 %v4741, 16
        %v4839 = vor.u32 %v4836, %v4837
        %v4840 = vrot.slane %v4836, 4
        %v4842 = vshrl.u32 %v4742, 16
        %v4844 = vrot.slane %v4842, 7
        %v4845 = vshll.u32 %v4742, 16
        %v4847 = vor.u32 %v4844, %v4845
        %v4848 = vsel %vm927, %v4840, %v4847
        %v4849 = vrot.slane %v4844, 4
        %v4851 = vshrl.u32 %v4743, 16
        %v4853 = vrot.slane %v4851, 7
        %v4854 = vshll.u32 %v4743, 16
        %v4856 = vor.u32 %v4853, %v4854
        %v4857 = vrot.slane %v4853, 4
        %v4859 = vshrl.u32 %v4744, 16
        %v4861 = vrot.slane %v4859, 7
        %v4862 = vshll.u32 %v4744, 16
        %v4864 = vor.u32 %v4861, %v4862
        %v4865 = vsel %vm927, %v4857, %v4864
        %v4866 = vrot.slane %v4861, 4
        %v4868 = vshrl.u32 %v4745, 16
        %v4870 = vrot.slane %v4868, 7
        %v4871 = vshll.u32 %v4745, 16
        %v4873 = vor.u32 %v4870, %v4871
        %v4874 = vrot.slane %v4870, 4
        %v4876 = vshrl.u32 %v4746, 16
        %v4878 = vrot.slane %v4876, 7
        %v4879 = vshll.u32 %v4746, 16
        %v4881 = vor.u32 %v4878, %v4879
        %v4882 = vsel %vm927, %v4874, %v4881
        %v4883 = vrot.slane %v4878, 4
        %v4885 = vshrl.u32 %v4747, 16
        %v4887 = vrot.slane %v4885, 7
        %v4888 = vshll.u32 %v4747, 16
        %v4890 = vor.u32 %v4887, %v4888
        %v4891 = vrot.slane %v4887, 4
        %v4893 = vshrl.u32 %v4748, 16
        %v4895 = vrot.slane %v4893, 7
        %v4896 = vshll.u32 %v4748, 16
        %v4898 = vor.u32 %v4895, %v4896
        %v4899 = vsel %vm927, %v4891, %v4898
        %v4900 = vrot.slane %v4895, 4
        %v4902 = vshrl.u32 %v4749, 16
        %v4904 = vrot.slane %v4902, 7
        %v4905 = vshll.u32 %v4749, 16
        %v4907 = vor.u32 %v4904, %v4905
        %v4908 = vrot.slane %v4904, 4
        %v4910 = vshrl.u32 %v4750, 16
        %v4912 = vrot.slane %v4910, 7
        %v4913 = vshll.u32 %v4750, 16
        %v4915 = vor.u32 %v4912, %v4913
        %v4916 = vsel %vm927, %v4908, %v4915
        %v4917 = vrot.slane %v4912, 4
        %v4919 = vshrl.u32 %v4751, 16
        %v4921 = vrot.slane %v4919, 7
        %v4922 = vshll.u32 %v4751, 16
        %v4924 = vor.u32 %v4921, %v4922
        %v4925 = vrot.slane %v4921, 4
        %v4927 = vshrl.u32 %v4752, 16
        %v4929 = vrot.slane %v4927, 7
        %v4930 = vshll.u32 %v4752, 16
        %v4932 = vor.u32 %v4929, %v4930
        %v4933 = vsel %vm927, %v4925, %v4932
        %v4934 = vrot.slane %v4929, 4
        %v4936 = vshrl.u32 %v4753, 16
        %v4938 = vrot.slane %v4936, 7
        %v4939 = vshll.u32 %v4753, 16
        %v4941 = vor.u32 %v4938, %v4939
        %v4942 = vrot.slane %v4938, 4
        %v4944 = vshrl.u32 %v4754, 16
        %v4946 = vrot.slane %v4944, 7
        %v4947 = vshll.u32 %v4754, 16
        %v4949 = vor.u32 %v4946, %v4947
        %v4950 = vsel %vm927, %v4942, %v4949
        %v4951 = vrot.slane %v4946, 4
        %v4953 = vshrl.u32 %v4755, 16
        %v4955 = vrot.slane %v4953, 7
        %v4956 = vshll.u32 %v4755, 16
        %v4958 = vor.u32 %v4955, %v4956
        %v4959 = vrot.slane %v4955, 4
        %v4961 = vshrl.u32 %v4756, 16
        %v4963 = vrot.slane %v4961, 7
        %v4964 = vshll.u32 %v4756, 16
        %v4966 = vor.u32 %v4963, %v4964
        %v4967 = vsel %vm927, %v4959, %v4966
        %v4968 = vrot.slane %v4963, 4
        %v4970 = vshrl.u32 %v4757, 16
        %v4972 = vrot.slane %v4970, 7
        %v4973 = vshll.u32 %v4757, 16
        %v4975 = vor.u32 %v4972, %v4973
        %v4976 = vrot.slane %v4972, 4
        %v4978 = vshrl.u32 %v4758, 16
        %v4980 = vrot.slane %v4978, 7
        %v4981 = vshll.u32 %v4758, 16
        %v4983 = vor.u32 %v4980, %v4981
        %v4984 = vsel %vm927, %v4976, %v4983
        %v4985 = vrot.slane %v4980, 4
        %v4987 = vshrl.u32 %v4759, 16
        %v4989 = vrot.slane %v4987, 7
        %v4990 = vshll.u32 %v4759, 16
        %v4992 = vor.u32 %v4989, %v4990
        %v4993 = vrot.slane %v4989, 4
        %v4995 = vshrl.u32 %v4760, 16
        %v4997 = vrot.slane %v4995, 7
        %v4998 = vshll.u32 %v4760, 16
        %v5000 = vor.u32 %v4997, %v4998
        %v5001 = vsel %vm927, %v4993, %v5000
        %v5002 = vrot.slane %v4997, 4
        %v5004 = vshrl.u32 %v4761, 16
        %v5006 = vrot.slane %v5004, 7
        %v5007 = vshll.u32 %v4761, 16
        %v5009 = vor.u32 %v5006, %v5007
        %v5010 = vrot.slane %v5006, 4
        %v5012 = vshrl.u32 %v4762, 16
        %v5014 = vrot.slane %v5012, 7
        %v5015 = vshll.u32 %v4762, 16
        %v5017 = vor.u32 %v5014, %v5015
        %v5018 = vsel %vm927, %v5010, %v5017
        %v5019 = vrot.slane %v5014, 4
        %v5021 = vshrl.u32 %v4763, 16
        %v5023 = vrot.slane %v5021, 7
        %v5024 = vshll.u32 %v4763, 16
        %v5026 = vor.u32 %v5023, %v5024
        %v5027 = vrot.slane %v5023, 4
        %v5029 = vshrl.u32 %v4764, 16
        %v5031 = vrot.slane %v5029, 7
        %v5032 = vshll.u32 %v4764, 16
        %v5034 = vor.u32 %v5031, %v5032
        %v5035 = vsel %vm927, %v5027, %v5034
        %v5036 = vrot.slane %v5031, 4
        %s5085 = scalar_lea.vmem [#allocation3], 12
        %v5086 = vld [vmem:[%s5085] sm:$0xf]
        %v5087 = vsel %vm1250, %v4771, %v5086
        %5088 = vst [vmem:[%s5085] sm:$0xf] %v5087
        %5089 = vst [vmem:[%s5085 + $0x4] sm:$0xf] %v4780
        %v5090 = vld [vmem:[%s5085 + $0x8] sm:$0x1]
        %v5091 = vsel %vm287, %v4781, %v5090
        %5092 = vst [vmem:[%s5085 + $0x8] sm:$0x1] %v5091
        %v5093 = vld [vmem:[%s5085 + $0xc] sm:$0xf]
        %v5094 = vsel %vm1250, %v4788, %v5093
        %5095 = vst [vmem:[%s5085 + $0xc] sm:$0xf] %v5094
        %5096 = vst [vmem:[%s5085 + $0x10] sm:$0xf] %v4797
        %v5097 = vld [vmem:[%s5085 + $0x14] sm:$0x1]
        %v5098 = vsel %vm287, %v4798, %v5097
        %5099 = vst [vmem:[%s5085 + $0x14] sm:$0x1] %v5098
        %v5100 = vld [vmem:[%s5085 + $0x18] sm:$0xf]
        %v5101 = vsel %vm1250, %v4805, %v5100
        %5102 = vst [vmem:[%s5085 + $0x18] sm:$0xf] %v5101
        %5103 = vst [vmem:[%s5085 + $0x1c] sm:$0xf] %v4814
        %v5104 = vld [vmem:[%s5085 + $0x20] sm:$0x1]
        %v5105 = vsel %vm287, %v4815, %v5104
        %5106 = vst [vmem:[%s5085 + $0x20] sm:$0x1] %v5105
        %v5107 = vld [vmem:[%s5085 + $0x24] sm:$0xf]
        %v5108 = vsel %vm1250, %v4822, %v5107
        %5109 = vst [vmem:[%s5085 + $0x24] sm:$0xf] %v5108
        %5110 = vst [vmem:[%s5085 + $0x28] sm:$0xf] %v4831
        %v5111 = vld [vmem:[%s5085 + $0x2c] sm:$0x1]
        %v5112 = vsel %vm287, %v4832, %v5111
        %5113 = vst [vmem:[%s5085 + $0x2c] sm:$0x1] %v5112
        %v5114 = vld [vmem:[%s5085 + $0x30] sm:$0xf]
        %v5115 = vsel %vm1250, %v4839, %v5114
        %5116 = vst [vmem:[%s5085 + $0x30] sm:$0xf] %v5115
        %5117 = vst [vmem:[%s5085 + $0x34] sm:$0xf] %v4848
        %v5118 = vld [vmem:[%s5085 + $0x38] sm:$0x1]
        %v5119 = vsel %vm287, %v4849, %v5118
        %5120 = vst [vmem:[%s5085 + $0x38] sm:$0x1] %v5119
        %v5121 = vld [vmem:[%s5085 + $0x3c] sm:$0xf]
        %v5122 = vsel %vm1250, %v4856, %v5121
        %5123 = vst [vmem:[%s5085 + $0x3c] sm:$0xf] %v5122
        %5124 = vst [vmem:[%s5085 + $0x40] sm:$0xf] %v4865
        %v5125 = vld [vmem:[%s5085 + $0x44] sm:$0x1]
        %v5126 = vsel %vm287, %v4866, %v5125
        %5127 = vst [vmem:[%s5085 + $0x44] sm:$0x1] %v5126
        %v5128 = vld [vmem:[%s5085 + $0x48] sm:$0xf]
        %v5129 = vsel %vm1250, %v4873, %v5128
        %5130 = vst [vmem:[%s5085 + $0x48] sm:$0xf] %v5129
        %5131 = vst [vmem:[%s5085 + $0x4c] sm:$0xf] %v4882
        %v5132 = vld [vmem:[%s5085 + $0x50] sm:$0x1]
        %v5133 = vsel %vm287, %v4883, %v5132
        %5134 = vst [vmem:[%s5085 + $0x50] sm:$0x1] %v5133
        %v5135 = vld [vmem:[%s5085 + $0x54] sm:$0xf]
        %v5136 = vsel %vm1250, %v4890, %v5135
        %5137 = vst [vmem:[%s5085 + $0x54] sm:$0xf] %v5136
        %5138 = vst [vmem:[%s5085 + $0x58] sm:$0xf] %v4899
        %v5139 = vld [vmem:[%s5085 + $0x5c] sm:$0x1]
        %v5140 = vsel %vm287, %v4900, %v5139
        %5141 = vst [vmem:[%s5085 + $0x5c] sm:$0x1] %v5140
        %v5142 = vld [vmem:[%s5085 + $0x60] sm:$0xf]
        %v5143 = vsel %vm1250, %v4907, %v5142
        %5144 = vst [vmem:[%s5085 + $0x60] sm:$0xf] %v5143
        %5145 = vst [vmem:[%s5085 + $0x64] sm:$0xf] %v4916
        %v5146 = vld [vmem:[%s5085 + $0x68] sm:$0x1]
        %v5147 = vsel %vm287, %v4917, %v5146
        %5148 = vst [vmem:[%s5085 + $0x68] sm:$0x1] %v5147
        %v5149 = vld [vmem:[%s5085 + $0x6c] sm:$0xf]
        %v5150 = vsel %vm1250, %v4924, %v5149
        %5151 = vst [vmem:[%s5085 + $0x6c] sm:$0xf] %v5150
        %5152 = vst [vmem:[%s5085 + $0x70] sm:$0xf] %v4933
        %v5153 = vld [vmem:[%s5085 + $0x74] sm:$0x1]
        %v5154 = vsel %vm287, %v4934, %v5153
        %5155 = vst [vmem:[%s5085 + $0x74] sm:$0x1] %v5154
        %v5156 = vld [vmem:[%s5085 + $0x78] sm:$0xf]
        %v5157 = vsel %vm1250, %v4941, %v5156
        %5158 = vst [vmem:[%s5085 + $0x78] sm:$0xf] %v5157
        %5159 = vst [vmem:[%s5085 + $0x7c] sm:$0xf] %v4950
        %v5160 = vld [vmem:[%s5085 + $0x80] sm:$0x1]
        %v5161 = vsel %vm287, %v4951, %v5160
        %5162 = vst [vmem:[%s5085 + $0x80] sm:$0x1] %v5161
        %v5163 = vld [vmem:[%s5085 + $0x84] sm:$0xf]
        %v5164 = vsel %vm1250, %v4958, %v5163
        %5165 = vst [vmem:[%s5085 + $0x84] sm:$0xf] %v5164
        %5166 = vst [vmem:[%s5085 + $0x88] sm:$0xf] %v4967
        %v5167 = vld [vmem:[%s5085 + $0x8c] sm:$0x1]
        %v5168 = vsel %vm287, %v4968, %v5167
        %5169 = vst [vmem:[%s5085 + $0x8c] sm:$0x1] %v5168
        %v5170 = vld [vmem:[%s5085 + $0x90] sm:$0xf]
        %v5171 = vsel %vm1250, %v4975, %v5170
        %5172 = vst [vmem:[%s5085 + $0x90] sm:$0xf] %v5171
        %5173 = vst [vmem:[%s5085 + $0x94] sm:$0xf] %v4984
        %v5174 = vld [vmem:[%s5085 + $0x98] sm:$0x1]
        %v5175 = vsel %vm287, %v4985, %v5174
        %5176 = vst [vmem:[%s5085 + $0x98] sm:$0x1] %v5175
        %v5177 = vld [vmem:[%s5085 + $0x9c] sm:$0xf]
        %v5178 = vsel %vm1250, %v4992, %v5177
        %5179 = vst [vmem:[%s5085 + $0x9c] sm:$0xf] %v5178
        %5180 = vst [vmem:[%s5085 + $0xa0] sm:$0xf] %v5001
        %v5181 = vld [vmem:[%s5085 + $0xa4] sm:$0x1]
        %v5182 = vsel %vm287, %v5002, %v5181
        %5183 = vst [vmem:[%s5085 + $0xa4] sm:$0x1] %v5182
        %v5184 = vld [vmem:[%s5085 + $0xa8] sm:$0xf]
        %v5185 = vsel %vm1250, %v5009, %v5184
        %5186 = vst [vmem:[%s5085 + $0xa8] sm:$0xf] %v5185
        %5187 = vst [vmem:[%s5085 + $0xac] sm:$0xf] %v5018
        %v5188 = vld [vmem:[%s5085 + $0xb0] sm:$0x1]
        %v5189 = vsel %vm287, %v5019, %v5188
        %5190 = vst [vmem:[%s5085 + $0xb0] sm:$0x1] %v5189
        %v5191 = vld [vmem:[%s5085 + $0xb4] sm:$0xf]
        %v5192 = vsel %vm1250, %v5026, %v5191
        %5193 = vst [vmem:[%s5085 + $0xb4] sm:$0xf] %v5192
        %5194 = vst [vmem:[%s5085 + $0xb8] sm:$0xf] %v5035
        %v5195 = vld [vmem:[%s5085 + $0xbc] sm:$0x1]
        %v5196 = vsel %vm287, %v5036, %v5195
        %5197 = vst [vmem:[%s5085 + $0xbc] sm:$0x1] %v5196
        %v5198 = vld [vmem:[#allocation3] sm:$0xf]
        %v5199 = vld [vmem:[#allocation3 + $0x4] sm:$0xf]
        %v5200 = vld [vmem:[#allocation3 + $0xc] sm:$0xf]
        %v5201 = vld [vmem:[#allocation3 + $0x10] sm:$0xf]
        %v5202 = vld [vmem:[#allocation3 + $0x18] sm:$0xf]
        %v5203 = vld [vmem:[#allocation3 + $0x1c] sm:$0xf]
        %v5204 = vld [vmem:[#allocation3 + $0x24] sm:$0xf]
        %v5205 = vld [vmem:[#allocation3 + $0x28] sm:$0xf]
        %v5206 = vld [vmem:[#allocation3 + $0x30] sm:$0xf]
        %v5207 = vld [vmem:[#allocation3 + $0x34] sm:$0xf]
        %v5208 = vld [vmem:[#allocation3 + $0x3c] sm:$0xf]
        %v5209 = vld [vmem:[#allocation3 + $0x40] sm:$0xf]
        %v5210 = vld [vmem:[#allocation3 + $0x48] sm:$0xf]
        %v5211 = vld [vmem:[#allocation3 + $0x4c] sm:$0xf]
        %v5212 = vld [vmem:[#allocation3 + $0x54] sm:$0xf]
        %v5213 = vld [vmem:[#allocation3 + $0x58] sm:$0xf]
        %v5214 = vld [vmem:[#allocation3 + $0x60] sm:$0xf]
        %v5215 = vld [vmem:[#allocation3 + $0x64] sm:$0xf]
        %v5216 = vld [vmem:[#allocation3 + $0x6c] sm:$0xf]
        %v5217 = vld [vmem:[#allocation3 + $0x70] sm:$0xf]
        %v5218 = vld [vmem:[#allocation3 + $0x78] sm:$0xf]
        %v5219 = vld [vmem:[#allocation3 + $0x7c] sm:$0xf]
        %v5220 = vld [vmem:[#allocation3 + $0x84] sm:$0xf]
        %v5221 = vld [vmem:[#allocation3 + $0x88] sm:$0xf]
        %v5222 = vld [vmem:[#allocation3 + $0x90] sm:$0xf]
        %v5223 = vld [vmem:[#allocation3 + $0x94] sm:$0xf]
        %v5224 = vld [vmem:[#allocation3 + $0x9c] sm:$0xf]
        %v5225 = vld [vmem:[#allocation3 + $0xa0] sm:$0xf]
        %v5226 = vld [vmem:[#allocation3 + $0xa8] sm:$0xf]
        %v5227 = vld [vmem:[#allocation3 + $0xac] sm:$0xf]
        %v5228 = vld [vmem:[#allocation3 + $0xb4] sm:$0xf]
        %v5229 = vld [vmem:[#allocation3 + $0xb8] sm:$0xf]
        %v5230 = vld [vmem:[#allocation3 + $0xc0] sm:$0xf]
        %v5231 = vld [vmem:[#allocation3 + $0xc4] sm:$0xf]
        %v5232 = vld [vmem:[#allocation3 + $0xcc] sm:$0xf]
        %v5233 = vld [vmem:[#allocation3 + $0xd0] sm:$0xf]
        %v5234 = vld [vmem:[%s5] sm:$0xf]
        %v5235 = vld [vmem:[%s5 + $0x4] sm:$0xf]
        %v5236 = vld [vmem:[%s5 + $0x8] sm:$0xf]
        %v5237 = vld [vmem:[%s5 + $0xc] sm:$0xf]
        %v5238 = vld [vmem:[%s5 + $0x10] sm:$0xf]
        %v5239 = vld [vmem:[%s5 + $0x14] sm:$0xf]
        %v5240 = vld [vmem:[%s5 + $0x18] sm:$0xf]
        %v5241 = vld [vmem:[%s5 + $0x1c] sm:$0xf]
        %v5242 = vld [vmem:[%s5 + $0x20] sm:$0xf]
        %v5243 = vld [vmem:[%s5 + $0x24] sm:$0xf]
        %v5244 = vld [vmem:[%s5 + $0x28] sm:$0xf]
        %v5245 = vld [vmem:[%s5 + $0x2c] sm:$0xf]
        %v5246 = vld [vmem:[%s5 + $0x30] sm:$0xf]
        %v5247 = vld [vmem:[%s5 + $0x34] sm:$0xf]
        %v5248 = vld [vmem:[%s5 + $0x38] sm:$0xf]
        %v5249 = vld [vmem:[%s5 + $0x3c] sm:$0xf]
        %s5250 = scalar_lea.vmem %s5, 192
        %v5251 = vld [vmem:[%s5250] sm:$0xf]
        %v5252 = vld [vmem:[%s5250 + $0x4] sm:$0xf]
        %v5253 = vld [vmem:[%s5250 + $0x8] sm:$0xf]
        %v5254 = vld [vmem:[%s5250 + $0xc] sm:$0xf]
        %v5255 = vld [vmem:[%s5250 + $0x10] sm:$0xf]
        %v5256 = vld [vmem:[%s5250 + $0x14] sm:$0xf]
        %v5257 = vld [vmem:[%s5250 + $0x18] sm:$0xf]
        %v5258 = vld [vmem:[%s5250 + $0x1c] sm:$0xf]
        %v5259 = vld [vmem:[%s5250 + $0x20] sm:$0xf]
        %v5260 = vld [vmem:[%s5250 + $0x24] sm:$0xf]
        %v5261 = vld [vmem:[%s5250 + $0x28] sm:$0xf]
        %v5262 = vld [vmem:[%s5250 + $0x2c] sm:$0xf]
        %v5263 = vld [vmem:[%s5250 + $0x30] sm:$0xf]
        %v5264 = vld [vmem:[%s5250 + $0x34] sm:$0xf]
        %v5265 = vld [vmem:[%s5250 + $0x38] sm:$0xf]
        %v5266 = vld [vmem:[%s5250 + $0x3c] sm:$0xf]
        %v5299 = vunpack.c.l.b16 %v5200
        %v5300 = vunpack.c.l.b16 %v5201
        %v5301 = vunpack.c.l.b16 %v5202
        %v5302 = vunpack.c.l.b16 %v5203
        %v5303 = vunpack.c.l.b16 %v5204
        %v5304 = vunpack.c.l.b16 %v5205
        %v5305 = vunpack.c.l.b16 %v5206
        %v5306 = vunpack.c.l.b16 %v5207
        %v5307 = vunpack.c.l.b16 %v5208
        %v5308 = vunpack.c.l.b16 %v5209
        %v5309 = vunpack.c.l.b16 %v5210
        %v5310 = vunpack.c.l.b16 %v5211
        %v5311 = vunpack.c.l.b16 %v5212
        %v5312 = vunpack.c.l.b16 %v5213
        %v5313 = vunpack.c.l.b16 %v5214
        %v5314 = vunpack.c.l.b16 %v5215
        %v5315 = vunpack.c.l.b16 %v5216
        %v5316 = vunpack.c.l.b16 %v5217
        %v5317 = vunpack.c.l.b16 %v5218
        %v5318 = vunpack.c.l.b16 %v5219
        %v5319 = vunpack.c.l.b16 %v5220
        %v5320 = vunpack.c.l.b16 %v5221
        %v5321 = vunpack.c.l.b16 %v5222
        %v5322 = vunpack.c.l.b16 %v5223
        %v5323 = vunpack.c.l.b16 %v5224
        %v5324 = vunpack.c.l.b16 %v5225
        %v5325 = vunpack.c.l.b16 %v5226
        %v5326 = vunpack.c.l.b16 %v5227
        %v5327 = vunpack.c.l.b16 %v5228
        %v5328 = vunpack.c.l.b16 %v5229
        %v5329 = vunpack.c.l.b16 %v5230
        %v5330 = vunpack.c.l.b16 %v5231
        %v5331 = vpack.c.b16 %v5300, %v5299
        %v5332 = vpack.c.b16 %v5302, %v5301
        %v5333 = vpack.c.b16 %v5304, %v5303
        %v5334 = vpack.c.b16 %v5306, %v5305
        %v5335 = vpack.c.b16 %v5308, %v5307
        %v5336 = vpack.c.b16 %v5310, %v5309
        %v5337 = vpack.c.b16 %v5312, %v5311
        %v5338 = vpack.c.b16 %v5314, %v5313
        %v5339 = vpack.c.b16 %v5316, %v5315
        %v5340 = vpack.c.b16 %v5318, %v5317
        %v5341 = vpack.c.b16 %v5320, %v5319
        %v5342 = vpack.c.b16 %v5322, %v5321
        %v5343 = vpack.c.b16 %v5324, %v5323
        %v5344 = vpack.c.b16 %v5326, %v5325
        %v5345 = vpack.c.b16 %v5328, %v5327
        %v5346 = vpack.c.b16 %v5330, %v5329
        %v5379 = vunpack.c.l.b16 %v5251
        %v5380 = vunpack.c.l.b16 %v5252
        %v5381 = vunpack.c.l.b16 %v5253
        %v5382 = vunpack.c.l.b16 %v5254
        %v5383 = vunpack.c.l.b16 %v5255
        %v5384 = vunpack.c.l.b16 %v5256
        %v5385 = vunpack.c.l.b16 %v5257
        %v5386 = vunpack.c.l.b16 %v5258
        %v5387 = vunpack.c.l.b16 %v5259
        %v5388 = vunpack.c.l.b16 %v5260
        %v5389 = vunpack.c.l.b16 %v5261
        %v5390 = vunpack.c.l.b16 %v5262
        %v5391 = vunpack.c.l.b16 %v5263
        %v5392 = vunpack.c.l.b16 %v5264
        %v5393 = vunpack.c.l.b16 %v5265
        %v5394 = vunpack.c.l.b16 %v5266
        %v5395 = vpack.c.b16 %v5380, %v5379
        %v5396 = vpack.c.b16 %v5382, %v5381
        %v5397 = vpack.c.b16 %v5384, %v5383
        %v5398 = vpack.c.b16 %v5386, %v5385
        %v5399 = vpack.c.b16 %v5388, %v5387
        %v5400 = vpack.c.b16 %v5390, %v5389
        %v5401 = vpack.c.b16 %v5392, %v5391
        %v5402 = vpack.c.b16 %v5394, %v5393
        %5411 = vmatprep.subr.bf16.mxu0 0
        %5412 = vmatpush1.bf16.msra.mxu0 %v5395
        %5413 = vmatprep.subr.bf16.mxu0 0
        %5414 = vmatpush1.bf16.msra.mxu0 %v5396
        %5415 = vmatprep.subr.bf16.mxu0 0
        %5416 = vmatpush1.bf16.msra.mxu0 %v5397
        %5417 = vmatprep.subr.bf16.mxu0 0
        %5418 = vmatpush1.bf16.msra.mxu0 %v5398
        %5419 = vmatprep.subr.bf16.mxu0 0
        %5420 = vmatpush1.bf16.msra.mxu0 %v5399
        %5421 = vmatprep.subr.bf16.mxu0 0
        %5422 = vmatpush1.bf16.msra.mxu0 %v5400
        %5423 = vmatprep.subr.bf16.mxu0 0
        %5424 = vmatpush1.bf16.msra.mxu0 %v5401
        %5425 = vmatprep.subr.bf16.mxu0 0
        %5426 = vmatpush1.bf16.msra.mxu0 %v5402
        %5427 = vmatprep.subr.bf16.mxu0 0
        %5428 = vmatpush1.bf16.msra.mxu0 0
        %5429 = vmatprep.subr.bf16.mxu0 0
        %5430 = vmatpush1.bf16.msra.mxu0 0
        %5431 = vmatprep.subr.bf16.mxu0 0
        %5432 = vmatpush1.bf16.msra.mxu0 0
        %5433 = vmatprep.subr.bf16.mxu0 0
        %5434 = vmatpush1.bf16.msra.mxu0 0
        %5435 = vmatprep.subr.bf16.mxu0 0
        %5436 = vmatpush1.bf16.msra.mxu0 0
        %5437 = vmatprep.subr.bf16.mxu0 0
        %5438 = vmatpush1.bf16.msra.mxu0 0
        %5439 = vmatprep.subr.bf16.mxu0 0
        %5440 = vmatpush1.bf16.msra.mxu0 0
        %5441 = vmatprep.subr.bf16.mxu0 0
        %5442 = vmatpush1.bf16.msra.mxu0 0
        %5443 = vmatprep.mubr.bf16.mxu0 0
        %5444 = vmatmul.mubr.bf16.gmra.mrb[0].mxu0 %v5331
        %v5445 = vpop.f32.mrb[0].mxu0
        %v5446 = vadd.f32 0.0, %v5445
        %v5447 = vpop.f32.mrb[0].mxu0
        %v5448 = vpop.f32.mrb[0].mxu0
        %v5449 = vadd.f32 0.0, %v5448
        %v5450 = vpop.f32.mrb[0].mxu0
        %5451 = vmatprep.mubr.bf16.mxu0 0
        %5452 = vmatmul.mubr.bf16.gmra.mrb[0].mxu0 %v5332
        %v5453 = vpop.f32.mrb[0].mxu0
        %v5454 = vadd.f32 0.0, %v5453
        %v5455 = vpop.f32.mrb[0].mxu0
        %v5456 = vpop.f32.mrb[0].mxu0
        %v5457 = vadd.f32 0.0, %v5456
        %v5458 = vpop.f32.mrb[0].mxu0
        %5459 = vmatprep.mubr.bf16.mxu0 0
        %5460 = vmatmul.mubr.bf16.gmra.mrb[0].mxu0 %v5333
        %v5461 = vpop.f32.mrb[0].mxu0
        %v5462 = vadd.f32 0.0, %v5461
        %v5463 = vpop.f32.mrb[0].mxu0
        %v5464 = vpop.f32.mrb[0].mxu0
        %v5465 = vadd.f32 0.0, %v5464
        %v5466 = vpop.f32.mrb[0].mxu0
        %5467 = vmatprep.mubr.bf16.mxu0 0
        %5468 = vmatmul.mubr.bf16.gmra.mrb[0].mxu0 %v5334
        %v5469 = vpop.f32.mrb[0].mxu0
        %v5470 = vadd.f32 0.0, %v5469
        %v5471 = vpop.f32.mrb[0].mxu0
        %v5472 = vpop.f32.mrb[0].mxu0
        %v5473 = vadd.f32 0.0, %v5472
        %v5474 = vpop.f32.mrb[0].mxu0
        %5475 = vmatprep.mubr.bf16.mxu0 0
        %5476 = vmatmul.mubr.bf16.gmra.mrb[0].mxu0 %v5335
        %v5477 = vpop.f32.mrb[0].mxu0
        %v5478 = vadd.f32 0.0, %v5477
        %v5479 = vpop.f32.mrb[0].mxu0
        %v5480 = vpop.f32.mrb[0].mxu0
        %v5481 = vadd.f32 0.0, %v5480
        %v5482 = vpop.f32.mrb[0].mxu0
        %5483 = vmatprep.mubr.bf16.mxu0 0
        %5484 = vmatmul.mubr.bf16.gmra.mrb[0].mxu0 %v5336
        %v5485 = vpop.f32.mrb[0].mxu0
        %v5486 = vadd.f32 0.0, %v5485
        %v5487 = vpop.f32.mrb[0].mxu0
        %v5488 = vpop.f32.mrb[0].mxu0
        %v5489 = vadd.f32 0.0, %v5488
        %v5490 = vpop.f32.mrb[0].mxu0
        %5491 = vmatprep.mubr.bf16.mxu0 0
        %5492 = vmatmul.mubr.bf16.gmra.mrb[0].mxu0 %v5337
        %v5493 = vpop.f32.mrb[0].mxu0
        %v5494 = vadd.f32 0.0, %v5493
        %v5495 = vpop.f32.mrb[0].mxu0
        %v5496 = vpop.f32.mrb[0].mxu0
        %v5497 = vadd.f32 0.0, %v5496
        %v5498 = vpop.f32.mrb[0].mxu0
        %5499 = vmatprep.mubr.bf16.mxu0 0
        %5500 = vmatmul.mubr.bf16.gmra.mrb[0].mxu0 %v5338
        %v5501 = vpop.f32.mrb[0].mxu0
        %v5502 = vadd.f32 0.0, %v5501
        %v5503 = vpop.f32.mrb[0].mxu0
        %v5504 = vpop.f32.mrb[0].mxu0
        %v5505 = vadd.f32 0.0, %v5504
        %v5506 = vpop.f32.mrb[0].mxu0
        %5507 = vmatprep.mubr.bf16.mxu0 0
        %5508 = vmatmul.mubr.bf16.gmra.mrb[0].mxu0 %v5339
        %v5509 = vpop.f32.mrb[0].mxu0
        %v5510 = vadd.f32 0.0, %v5509
        %v5511 = vpop.f32.mrb[0].mxu0
        %v5512 = vpop.f32.mrb[0].mxu0
        %v5513 = vadd.f32 0.0, %v5512
        %v5514 = vpop.f32.mrb[0].mxu0
        %5515 = vmatprep.mubr.bf16.mxu0 0
        %5516 = vmatmul.mubr.bf16.gmra.mrb[0].mxu0 %v5340
        %v5517 = vpop.f32.mrb[0].mxu0
        %v5518 = vadd.f32 0.0, %v5517
        %v5519 = vpop.f32.mrb[0].mxu0
        %v5520 = vpop.f32.mrb[0].mxu0
        %v5521 = vadd.f32 0.0, %v5520
        %v5522 = vpop.f32.mrb[0].mxu0
        %5523 = vmatprep.mubr.bf16.mxu0 0
        %5524 = vmatmul.mubr.bf16.gmra.mrb[0].mxu0 %v5341
        %v5525 = vpop.f32.mrb[0].mxu0
        %v5526 = vadd.f32 0.0, %v5525
        %v5527 = vpop.f32.mrb[0].mxu0
        %v5528 = vpop.f32.mrb[0].mxu0
        %v5529 = vadd.f32 0.0, %v5528
        %v5530 = vpop.f32.mrb[0].mxu0
        %5531 = vmatprep.mubr.bf16.mxu0 0
        %5532 = vmatmul.mubr.bf16.gmra.mrb[0].mxu0 %v5342
        %v5533 = vpop.f32.mrb[0].mxu0
        %v5534 = vadd.f32 0.0, %v5533
        %v5535 = vpop.f32.mrb[0].mxu0
        %v5536 = vpop.f32.mrb[0].mxu0
        %v5537 = vadd.f32 0.0, %v5536
        %v5538 = vpop.f32.mrb[0].mxu0
        %5539 = vmatprep.mubr.bf16.mxu0 0
        %5540 = vmatmul.mubr.bf16.gmra.mrb[0].mxu0 %v5343
        %v5541 = vpop.f32.mrb[0].mxu0
        %v5542 = vadd.f32 0.0, %v5541
        %v5543 = vpop.f32.mrb[0].mxu0
        %v5544 = vpop.f32.mrb[0].mxu0
        %v5545 = vadd.f32 0.0, %v5544
        %v5546 = vpop.f32.mrb[0].mxu0
        %5547 = vmatprep.mubr.bf16.mxu0 0
        %5548 = vmatmul.mubr.bf16.gmra.mrb[0].mxu0 %v5344
        %v5549 = vpop.f32.mrb[0].mxu0
        %v5550 = vadd.f32 0.0, %v5549
        %v5551 = vpop.f32.mrb[0].mxu0
        %v5552 = vpop.f32.mrb[0].mxu0
        %v5553 = vadd.f32 0.0, %v5552
        %v5554 = vpop.f32.mrb[0].mxu0
        %5555 = vmatprep.mubr.bf16.mxu0 0
        %5556 = vmatmul.mubr.bf16.gmra.mrb[0].mxu0 %v5345
        %v5557 = vpop.f32.mrb[0].mxu0
        %v5558 = vadd.f32 0.0, %v5557
        %v5559 = vpop.f32.mrb[0].mxu0
        %v5560 = vpop.f32.mrb[0].mxu0
        %v5561 = vadd.f32 0.0, %v5560
        %v5562 = vpop.f32.mrb[0].mxu0
        %5563 = vmatprep.mubr.bf16.mxu0 0
        %5564 = vmatmul.mubr.bf16.gmra.mrb[0].mxu0 %v5346
        %v5565 = vpop.f32.mrb[0].mxu0
        %v5566 = vadd.f32 0.0, %v5565
        %v5567 = vpop.f32.mrb[0].mxu0
        %v5568 = vpop.f32.mrb[0].mxu0
        %v5569 = vadd.f32 0.0, %v5568
        %v5570 = vpop.f32.mrb[0].mxu0
        %5571 = vdwg.mxu0
        %v5574 = vunpack.c.l.b16 %v5198
        %v5575 = vunpack.c.l.b16 %v5199
        %v5576 = vpack.c.b16 %v5575, %v5574
        %v5594 = vunpack.c.l.b16 %v5234
        %v5595 = vunpack.c.l.b16 %v5235
        %v5596 = vunpack.c.l.b16 %v5236
        %v5597 = vunpack.c.l.b16 %v5237
        %v5598 = vunpack.c.l.b16 %v5238
        %v5599 = vunpack.c.l.b16 %v5239
        %v5600 = vunpack.c.l.b16 %v5240
        %v5601 = vunpack.c.l.b16 %v5241
        %v5602 = vunpack.c.l.b16 %v5242
        %v5603 = vunpack.c.l.b16 %v5243
        %v5604 = vunpack.c.l.b16 %v5244
        %v5605 = vunpack.c.l.b16 %v5245
        %v5606 = vunpack.c.l.b16 %v5246
        %v5607 = vunpack.c.l.b16 %v5247
        %v5608 = vunpack.c.l.b16 %v5248
        %v5609 = vunpack.c.l.b16 %v5249
        %v5610 = vpack.c.b16 %v5595, %v5594
        %v5611 = vpack.c.b16 %v5597, %v5596
        %v5612 = vpack.c.b16 %v5599, %v5598
        %v5613 = vpack.c.b16 %v5601, %v5600
        %v5614 = vpack.c.b16 %v5603, %v5602
        %v5615 = vpack.c.b16 %v5605, %v5604
        %v5616 = vpack.c.b16 %v5607, %v5606
        %v5617 = vpack.c.b16 %v5609, %v5608
        %5626 = vmatprep.subr.bf16.mxu0 0
        %5627 = vmatpush1.bf16.msra.mxu0 %v5610
        %5628 = vmatprep.subr.bf16.mxu0 0
        %5629 = vmatpush1.bf16.msra.mxu0 %v5611
        %5630 = vmatprep.subr.bf16.mxu0 0
        %5631 = vmatpush1.bf16.msra.mxu0 %v5612
        %5632 = vmatprep.subr.bf16.mxu0 0
        %5633 = vmatpush1.bf16.msra.mxu0 %v5613
        %5634 = vmatprep.subr.bf16.mxu0 0
        %5635 = vmatpush1.bf16.msra.mxu0 %v5614
        %5636 = vmatprep.subr.bf16.mxu0 0
        %5637 = vmatpush1.bf16.msra.mxu0 %v5615
        %5638 = vmatprep.subr.bf16.mxu0 0
        %5639 = vmatpush1.bf16.msra.mxu0 %v5616
        %5640 = vmatprep.subr.bf16.mxu0 0
        %5641 = vmatpush1.bf16.msra.mxu0 %v5617
        %5642 = vmatprep.subr.bf16.mxu0 0
        %5643 = vmatpush1.bf16.msra.mxu0 0
        %5644 = vmatprep.subr.bf16.mxu0 0
        %5645 = vmatpush1.bf16.msra.mxu0 0
        %5646 = vmatprep.subr.bf16.mxu0 0
        %5647 = vmatpush1.bf16.msra.mxu0 0
        %5648 = vmatprep.subr.bf16.mxu0 0
        %5649 = vmatpush1.bf16.msra.mxu0 0
        %5650 = vmatprep.subr.bf16.mxu0 0
        %5651 = vmatpush1.bf16.msra.mxu0 0
        %5652 = vmatprep.subr.bf16.mxu0 0
        %5653 = vmatpush1.bf16.msra.mxu0 0
        %5654 = vmatprep.subr.bf16.mxu0 0
        %5655 = vmatpush1.bf16.msra.mxu0 0
        %5656 = vmatprep.subr.bf16.mxu0 0
        %5657 = vmatpush1.bf16.msra.mxu0 0
        %5658 = vmatprep.mubr.bf16.mxu0 0
        %5659 = vmatmul.mubr.bf16.gmra.mrb[0].mxu0 %v5576
        %v5660 = vpop.f32.mrb[0].mxu0
        %v5661 = vadd.f32 %v5446, %v5660
        %v5662 = vpop.f32.mrb[0].mxu0
        %v5663 = vpop.f32.mrb[0].mxu0
        %v5664 = vadd.f32 %v5449, %v5663
        %v5665 = vpop.f32.mrb[0].mxu0
        %5666 = vmatprep.mubr.bf16.mxu0 0
        %5667 = vmatmul.mubr.bf16.gmra.mrb[0].mxu0 %v5331
        %v5668 = vpop.f32.mrb[0].mxu0
        %v5669 = vadd.f32 %v5454, %v5668
        %v5670 = vpop.f32.mrb[0].mxu0
        %v5671 = vpop.f32.mrb[0].mxu0
        %v5672 = vadd.f32 %v5457, %v5671
        %v5673 = vpop.f32.mrb[0].mxu0
        %5674 = vmatprep.mubr.bf16.mxu0 0
        %5675 = vmatmul.mubr.bf16.gmra.mrb[0].mxu0 %v5332
        %v5676 = vpop.f32.mrb[0].mxu0
        %v5677 = vadd.f32 %v5462, %v5676
        %v5678 = vpop.f32.mrb[0].mxu0
        %v5679 = vpop.f32.mrb[0].mxu0
        %v5680 = vadd.f32 %v5465, %v5679
        %v5681 = vpop.f32.mrb[0].mxu0
        %5682 = vmatprep.mubr.bf16.mxu0 0
        %5683 = vmatmul.mubr.bf16.gmra.mrb[0].mxu0 %v5333
        %v5684 = vpop.f32.mrb[0].mxu0
        %v5685 = vadd.f32 %v5470, %v5684
        %v5686 = vpop.f32.mrb[0].mxu0
        %v5687 = vpop.f32.mrb[0].mxu0
        %v5688 = vadd.f32 %v5473, %v5687
        %v5689 = vpop.f32.mrb[0].mxu0
        %5690 = vmatprep.mubr.bf16.mxu0 0
        %5691 = vmatmul.mubr.bf16.gmra.mrb[0].mxu0 %v5334
        %v5692 = vpop.f32.mrb[0].mxu0
        %v5693 = vadd.f32 %v5478, %v5692
        %v5694 = vpop.f32.mrb[0].mxu0
        %v5695 = vpop.f32.mrb[0].mxu0
        %v5696 = vadd.f32 %v5481, %v5695
        %v5697 = vpop.f32.mrb[0].mxu0
        %5698 = vmatprep.mubr.bf16.mxu0 0
        %5699 = vmatmul.mubr.bf16.gmra.mrb[0].mxu0 %v5335
        %v5700 = vpop.f32.mrb[0].mxu0
        %v5701 = vadd.f32 %v5486, %v5700
        %v5702 = vpop.f32.mrb[0].mxu0
        %v5703 = vpop.f32.mrb[0].mxu0
        %v5704 = vadd.f32 %v5489, %v5703
        %v5705 = vpop.f32.mrb[0].mxu0
        %5706 = vmatprep.mubr.bf16.mxu0 0
        %5707 = vmatmul.mubr.bf16.gmra.mrb[0].mxu0 %v5336
        %v5708 = vpop.f32.mrb[0].mxu0
        %v5709 = vadd.f32 %v5494, %v5708
        %v5710 = vpop.f32.mrb[0].mxu0
        %v5711 = vpop.f32.mrb[0].mxu0
        %v5712 = vadd.f32 %v5497, %v5711
        %v5713 = vpop.f32.mrb[0].mxu0
        %5714 = vmatprep.mubr.bf16.mxu0 0
        %5715 = vmatmul.mubr.bf16.gmra.mrb[0].mxu0 %v5337
        %v5716 = vpop.f32.mrb[0].mxu0
        %v5717 = vadd.f32 %v5502, %v5716
        %v5718 = vpop.f32.mrb[0].mxu0
        %v5719 = vpop.f32.mrb[0].mxu0
        %v5720 = vadd.f32 %v5505, %v5719
        %v5721 = vpop.f32.mrb[0].mxu0
        %5722 = vmatprep.mubr.bf16.mxu0 0
        %5723 = vmatmul.mubr.bf16.gmra.mrb[0].mxu0 %v5338
        %v5724 = vpop.f32.mrb[0].mxu0
        %v5725 = vadd.f32 %v5510, %v5724
        %v5726 = vpop.f32.mrb[0].mxu0
        %v5727 = vpop.f32.mrb[0].mxu0
        %v5728 = vadd.f32 %v5513, %v5727
        %v5729 = vpop.f32.mrb[0].mxu0
        %5730 = vmatprep.mubr.bf16.mxu0 0
        %5731 = vmatmul.mubr.bf16.gmra.mrb[0].mxu0 %v5339
        %v5732 = vpop.f32.mrb[0].mxu0
        %v5733 = vadd.f32 %v5518, %v5732
        %v5734 = vpop.f32.mrb[0].mxu0
        %v5735 = vpop.f32.mrb[0].mxu0
        %v5736 = vadd.f32 %v5521, %v5735
        %v5737 = vpop.f32.mrb[0].mxu0
        %5738 = vmatprep.mubr.bf16.mxu0 0
        %5739 = vmatmul.mubr.bf16.gmra.mrb[0].mxu0 %v5340
        %v5740 = vpop.f32.mrb[0].mxu0
        %v5741 = vadd.f32 %v5526, %v5740
        %v5742 = vpop.f32.mrb[0].mxu0
        %v5743 = vpop.f32.mrb[0].mxu0
        %v5744 = vadd.f32 %v5529, %v5743
        %v5745 = vpop.f32.mrb[0].mxu0
        %5746 = vmatprep.mubr.bf16.mxu0 0
        %5747 = vmatmul.mubr.bf16.gmra.mrb[0].mxu0 %v5341
        %v5748 = vpop.f32.mrb[0].mxu0
        %v5749 = vadd.f32 %v5534, %v5748
        %v5750 = vpop.f32.mrb[0].mxu0
        %v5751 = vpop.f32.mrb[0].mxu0
        %v5752 = vadd.f32 %v5537, %v5751
        %v5753 = vpop.f32.mrb[0].mxu0
        %5754 = vmatprep.mubr.bf16.mxu0 0
        %5755 = vmatmul.mubr.bf16.gmra.mrb[0].mxu0 %v5342
        %v5756 = vpop.f32.mrb[0].mxu0
        %v5757 = vadd.f32 %v5542, %v5756
        %v5758 = vpop.f32.mrb[0].mxu0
        %v5759 = vpop.f32.mrb[0].mxu0
        %v5760 = vadd.f32 %v5545, %v5759
        %v5761 = vpop.f32.mrb[0].mxu0
        %5762 = vmatprep.mubr.bf16.mxu0 0
        %5763 = vmatmul.mubr.bf16.gmra.mrb[0].mxu0 %v5343
        %v5764 = vpop.f32.mrb[0].mxu0
        %v5765 = vadd.f32 %v5550, %v5764
        %v5766 = vpop.f32.mrb[0].mxu0
        %v5767 = vpop.f32.mrb[0].mxu0
        %v5768 = vadd.f32 %v5553, %v5767
        %v5769 = vpop.f32.mrb[0].mxu0
        %5770 = vmatprep.mubr.bf16.mxu0 0
        %5771 = vmatmul.mubr.bf16.gmra.mrb[0].mxu0 %v5344
        %v5772 = vpop.f32.mrb[0].mxu0
        %v5773 = vadd.f32 %v5558, %v5772
        %v5774 = vpop.f32.mrb[0].mxu0
        %v5775 = vpop.f32.mrb[0].mxu0
        %v5776 = vadd.f32 %v5561, %v5775
        %v5777 = vpop.f32.mrb[0].mxu0
        %5778 = vmatprep.mubr.bf16.mxu0 0
        %5779 = vmatmul.mubr.bf16.gmra.mrb[0].mxu0 %v5345
        %v5780 = vpop.f32.mrb[0].mxu0
        %v5781 = vadd.f32 %v5566, %v5780
        %v5782 = vpop.f32.mrb[0].mxu0
        %v5783 = vpop.f32.mrb[0].mxu0
        %v5784 = vadd.f32 %v5569, %v5783
        %v5785 = vpop.f32.mrb[0].mxu0
        %5786 = vdwg.mxu0
        %s5787 = scalar_lea.vmem %s5, 384
        %v5788 = vld [vmem:[%s5787] sm:$0xf]
        %v5789 = vld [vmem:[%s5787 + $0x4] sm:$0xf]
        %v5790 = vld [vmem:[%s5787 + $0x8] sm:$0xf]
        %v5791 = vld [vmem:[%s5787 + $0xc] sm:$0xf]
        %v5792 = vld [vmem:[%s5787 + $0x10] sm:$0xf]
        %v5793 = vld [vmem:[%s5787 + $0x14] sm:$0xf]
        %v5794 = vld [vmem:[%s5787 + $0x18] sm:$0xf]
        %v5795 = vld [vmem:[%s5787 + $0x1c] sm:$0xf]
        %v5796 = vld [vmem:[%s5787 + $0x20] sm:$0xf]
        %v5797 = vld [vmem:[%s5787 + $0x24] sm:$0xf]
        %v5798 = vld [vmem:[%s5787 + $0x28] sm:$0xf]
        %v5799 = vld [vmem:[%s5787 + $0x2c] sm:$0xf]
        %v5800 = vld [vmem:[%s5787 + $0x30] sm:$0xf]
        %v5801 = vld [vmem:[%s5787 + $0x34] sm:$0xf]
        %v5802 = vld [vmem:[%s5787 + $0x38] sm:$0xf]
        %v5803 = vld [vmem:[%s5787 + $0x3c] sm:$0xf]
        %v5806 = vunpack.c.l.b16 %v5232
        %v5807 = vunpack.c.l.b16 %v5233
        %v5808 = vpack.c.b16 %v5807, %v5806
        %v5826 = vunpack.c.l.b16 %v5788
        %v5827 = vunpack.c.l.b16 %v5789
        %v5828 = vunpack.c.l.b16 %v5790
        %v5829 = vunpack.c.l.b16 %v5791
        %v5830 = vunpack.c.l.b16 %v5792
        %v5831 = vunpack.c.l.b16 %v5793
        %v5832 = vunpack.c.l.b16 %v5794
        %v5833 = vunpack.c.l.b16 %v5795
        %v5834 = vunpack.c.l.b16 %v5796
        %v5835 = vunpack.c.l.b16 %v5797
        %v5836 = vunpack.c.l.b16 %v5798
        %v5837 = vunpack.c.l.b16 %v5799
        %v5838 = vunpack.c.l.b16 %v5800
        %v5839 = vunpack.c.l.b16 %v5801
        %v5840 = vunpack.c.l.b16 %v5802
        %v5841 = vunpack.c.l.b16 %v5803
        %v5842 = vpack.c.b16 %v5827, %v5826
        %v5843 = vpack.c.b16 %v5829, %v5828
        %v5844 = vpack.c.b16 %v5831, %v5830
        %v5845 = vpack.c.b16 %v5833, %v5832
        %v5846 = vpack.c.b16 %v5835, %v5834
        %v5847 = vpack.c.b16 %v5837, %v5836
        %v5848 = vpack.c.b16 %v5839, %v5838
        %v5849 = vpack.c.b16 %v5841, %v5840
        %5858 = vmatprep.subr.bf16.mxu0 0
        %5859 = vmatpush1.bf16.msra.mxu0 %v5842
        %5860 = vmatprep.subr.bf16.mxu0 0
        %5861 = vmatpush1.bf16.msra.mxu0 %v5843
        %5862 = vmatprep.subr.bf16.mxu0 0
        %5863 = vmatpush1.bf16.msra.mxu0 %v5844
        %5864 = vmatprep.subr.bf16.mxu0 0
        %5865 = vmatpush1.bf16.msra.mxu0 %v5845
        %5866 = vmatprep.subr.bf16.mxu0 0
        %5867 = vmatpush1.bf16.msra.mxu0 %v5846
        %5868 = vmatprep.subr.bf16.mxu0 0
        %5869 = vmatpush1.bf16.msra.mxu0 %v5847
        %5870 = vmatprep.subr.bf16.mxu0 0
        %5871 = vmatpush1.bf16.msra.mxu0 %v5848
        %5872 = vmatprep.subr.bf16.mxu0 0
        %5873 = vmatpush1.bf16.msra.mxu0 %v5849
        %5874 = vmatprep.subr.bf16.mxu0 0
        %5875 = vmatpush1.bf16.msra.mxu0 0
        %5876 = vmatprep.subr.bf16.mxu0 0
        %5877 = vmatpush1.bf16.msra.mxu0 0
        %5878 = vmatprep.subr.bf16.mxu0 0
        %5879 = vmatpush1.bf16.msra.mxu0 0
        %5880 = vmatprep.subr.bf16.mxu0 0
        %5881 = vmatpush1.bf16.msra.mxu0 0
        %5882 = vmatprep.subr.bf16.mxu0 0
        %5883 = vmatpush1.bf16.msra.mxu0 0
        %5884 = vmatprep.subr.bf16.mxu0 0
        %5885 = vmatpush1.bf16.msra.mxu0 0
        %5886 = vmatprep.subr.bf16.mxu0 0
        %5887 = vmatpush1.bf16.msra.mxu0 0
        %5888 = vmatprep.subr.bf16.mxu0 0
        %5889 = vmatpush1.bf16.msra.mxu0 0
        %5890 = vmatprep.mubr.bf16.mxu0 0
        %5891 = vmatmul.mubr.bf16.gmra.mrb[0].mxu0 %v5332
        %v5892 = vpop.f32.mrb[0].mxu0
        %v5893 = vadd.f32 0.0, %v5892
        %v5894 = vpop.f32.mrb[0].mxu0
        %v5895 = vpop.f32.mrb[0].mxu0
        %v5896 = vadd.f32 0.0, %v5895
        %v5897 = vpop.f32.mrb[0].mxu0
        %5898 = vmatprep.mubr.bf16.mxu0 0
        %5899 = vmatmul.mubr.bf16.gmra.mrb[0].mxu0 %v5333
        %v5900 = vpop.f32.mrb[0].mxu0
        %v5901 = vadd.f32 0.0, %v5900
        %v5902 = vpop.f32.mrb[0].mxu0
        %v5903 = vpop.f32.mrb[0].mxu0
        %v5904 = vadd.f32 0.0, %v5903
        %v5905 = vpop.f32.mrb[0].mxu0
        %5906 = vmatprep.mubr.bf16.mxu0 0
        %5907 = vmatmul.mubr.bf16.gmra.mrb[0].mxu0 %v5334
        %v5908 = vpop.f32.mrb[0].mxu0
        %v5909 = vadd.f32 0.0, %v5908
        %v5910 = vpop.f32.mrb[0].mxu0
        %v5911 = vpop.f32.mrb[0].mxu0
        %v5912 = vadd.f32 0.0, %v5911
        %v5913 = vpop.f32.mrb[0].mxu0
        %5914 = vmatprep.mubr.bf16.mxu0 0
        %5915 = vmatmul.mubr.bf16.gmra.mrb[0].mxu0 %v5335
        %v5916 = vpop.f32.mrb[0].mxu0
        %v5917 = vadd.f32 0.0, %v5916
        %v5918 = vpop.f32.mrb[0].mxu0
        %v5919 = vpop.f32.mrb[0].mxu0
        %v5920 = vadd.f32 0.0, %v5919
        %v5921 = vpop.f32.mrb[0].mxu0
        %5922 = vmatprep.mubr.bf16.mxu0 0
        %5923 = vmatmul.mubr.bf16.gmra.mrb[0].mxu0 %v5336
        %v5924 = vpop.f32.mrb[0].mxu0
        %v5925 = vadd.f32 0.0, %v5924
        %v5926 = vpop.f32.mrb[0].mxu0
        %v5927 = vpop.f32.mrb[0].mxu0
        %v5928 = vadd.f32 0.0, %v5927
        %v5929 = vpop.f32.mrb[0].mxu0
        %5930 = vmatprep.mubr.bf16.mxu0 0
        %5931 = vmatmul.mubr.bf16.gmra.mrb[0].mxu0 %v5337
        %v5932 = vpop.f32.mrb[0].mxu0
        %v5933 = vadd.f32 0.0, %v5932
        %v5934 = vpop.f32.mrb[0].mxu0
        %v5935 = vpop.f32.mrb[0].mxu0
        %v5936 = vadd.f32 0.0, %v5935
        %v5937 = vpop.f32.mrb[0].mxu0
        %5938 = vmatprep.mubr.bf16.mxu0 0
        %5939 = vmatmul.mubr.bf16.gmra.mrb[0].mxu0 %v5338
        %v5940 = vpop.f32.mrb[0].mxu0
        %v5941 = vadd.f32 0.0, %v5940
        %v5942 = vpop.f32.mrb[0].mxu0
        %v5943 = vpop.f32.mrb[0].mxu0
        %v5944 = vadd.f32 0.0, %v5943
        %v5945 = vpop.f32.mrb[0].mxu0
        %5946 = vmatprep.mubr.bf16.mxu0 0
        %5947 = vmatmul.mubr.bf16.gmra.mrb[0].mxu0 %v5339
        %v5948 = vpop.f32.mrb[0].mxu0
        %v5949 = vadd.f32 0.0, %v5948
        %v5950 = vpop.f32.mrb[0].mxu0
        %v5951 = vpop.f32.mrb[0].mxu0
        %v5952 = vadd.f32 0.0, %v5951
        %v5953 = vpop.f32.mrb[0].mxu0
        %5954 = vmatprep.mubr.bf16.mxu0 0
        %5955 = vmatmul.mubr.bf16.gmra.mrb[0].mxu0 %v5340
        %v5956 = vpop.f32.mrb[0].mxu0
        %v5957 = vadd.f32 0.0, %v5956
        %v5958 = vpop.f32.mrb[0].mxu0
        %v5959 = vpop.f32.mrb[0].mxu0
        %v5960 = vadd.f32 0.0, %v5959
        %v5961 = vpop.f32.mrb[0].mxu0
        %5962 = vmatprep.mubr.bf16.mxu0 0
        %5963 = vmatmul.mubr.bf16.gmra.mrb[0].mxu0 %v5341
        %v5964 = vpop.f32.mrb[0].mxu0
        %v5965 = vadd.f32 0.0, %v5964
        %v5966 = vpop.f32.mrb[0].mxu0
        %v5967 = vpop.f32.mrb[0].mxu0
        %v5968 = vadd.f32 0.0, %v5967
        %v5969 = vpop.f32.mrb[0].mxu0
        %5970 = vmatprep.mubr.bf16.mxu0 0
        %5971 = vmatmul.mubr.bf16.gmra.mrb[0].mxu0 %v5342
        %v5972 = vpop.f32.mrb[0].mxu0
        %v5973 = vadd.f32 0.0, %v5972
        %v5974 = vpop.f32.mrb[0].mxu0
        %v5975 = vpop.f32.mrb[0].mxu0
        %v5976 = vadd.f32 0.0, %v5975
        %v5977 = vpop.f32.mrb[0].mxu0
        %5978 = vmatprep.mubr.bf16.mxu0 0
        %5979 = vmatmul.mubr.bf16.gmra.mrb[0].mxu0 %v5343
        %v5980 = vpop.f32.mrb[0].mxu0
        %v5981 = vadd.f32 0.0, %v5980
        %v5982 = vpop.f32.mrb[0].mxu0
        %v5983 = vpop.f32.mrb[0].mxu0
        %v5984 = vadd.f32 0.0, %v5983
        %v5985 = vpop.f32.mrb[0].mxu0
        %5986 = vmatprep.mubr.bf16.mxu0 0
        %5987 = vmatmul.mubr.bf16.gmra.mrb[0].mxu0 %v5344
        %v5988 = vpop.f32.mrb[0].mxu0
        %v5989 = vadd.f32 0.0, %v5988
        %v5990 = vpop.f32.mrb[0].mxu0
        %v5991 = vpop.f32.mrb[0].mxu0
        %v5992 = vadd.f32 0.0, %v5991
        %v5993 = vpop.f32.mrb[0].mxu0
        %5994 = vmatprep.mubr.bf16.mxu0 0
        %5995 = vmatmul.mubr.bf16.gmra.mrb[0].mxu0 %v5345
        %v5996 = vpop.f32.mrb[0].mxu0
        %v5997 = vadd.f32 0.0, %v5996
        %v5998 = vpop.f32.mrb[0].mxu0
        %v5999 = vpop.f32.mrb[0].mxu0
        %v6000 = vadd.f32 0.0, %v5999
        %v6001 = vpop.f32.mrb[0].mxu0
        %6002 = vmatprep.mubr.bf16.mxu0 0
        %6003 = vmatmul.mubr.bf16.gmra.mrb[0].mxu0 %v5346
        %v6004 = vpop.f32.mrb[0].mxu0
        %v6005 = vadd.f32 0.0, %v6004
        %v6006 = vpop.f32.mrb[0].mxu0
        %v6007 = vpop.f32.mrb[0].mxu0
        %v6008 = vadd.f32 0.0, %v6007
        %v6009 = vpop.f32.mrb[0].mxu0
        %6010 = vmatprep.mubr.bf16.mxu0 0
        %6011 = vmatmul.mubr.bf16.gmra.mrb[0].mxu0 %v5808
        %v6012 = vpop.f32.mrb[0].mxu0
        %v6013 = vadd.f32 0.0, %v6012
        %v6014 = vpop.f32.mrb[0].mxu0
        %v6015 = vpop.f32.mrb[0].mxu0
        %v6016 = vadd.f32 0.0, %v6015
        %v6017 = vpop.f32.mrb[0].mxu0
        %6018 = vdwg.mxu0
        %v6019 = vadd.f32 %v5661, %v5893
        %v6020 = vadd.f32 %v5664, %v5896
        %v6021 = vadd.f32 %v5669, %v5901
        %v6022 = vadd.f32 %v5672, %v5904
        %v6023 = vadd.f32 %v5677, %v5909
        %v6024 = vadd.f32 %v5680, %v5912
        %v6025 = vadd.f32 %v5685, %v5917
        %v6026 = vadd.f32 %v5688, %v5920
        %v6027 = vadd.f32 %v5693, %v5925
        %v6028 = vadd.f32 %v5696, %v5928
        %v6029 = vadd.f32 %v5701, %v5933
        %v6030 = vadd.f32 %v5704, %v5936
        %v6031 = vadd.f32 %v5709, %v5941
        %v6032 = vadd.f32 %v5712, %v5944
        %v6033 = vadd.f32 %v5717, %v5949
        %v6034 = vadd.f32 %v5720, %v5952
        %v6035 = vadd.f32 %v5725, %v5957
        %v6036 = vadd.f32 %v5728, %v5960
        %v6037 = vadd.f32 %v5733, %v5965
        %v6038 = vadd.f32 %v5736, %v5968
        %v6039 = vadd.f32 %v5741, %v5973
        %v6040 = vadd.f32 %v5744, %v5976
        %v6041 = vadd.f32 %v5749, %v5981
        %v6042 = vadd.f32 %v5752, %v5984
        %v6043 = vadd.f32 %v5757, %v5989
        %v6044 = vadd.f32 %v5760, %v5992
        %v6045 = vadd.f32 %v5765, %v5997
        %v6046 = vadd.f32 %v5768, %v6000
        %v6047 = vadd.f32 %v5773, %v6005
        %v6048 = vadd.f32 %v5776, %v6008
        %v6049 = vadd.f32 %v5781, %v6013
        %v6050 = vadd.f32 %v5784, %v6016
        %v6051 = vld [vmem:[#allocation3] sm:$0xf]
        %v6052 = vld [vmem:[#allocation3 + $0x4] sm:$0xf]
        %v6053 = vld [vmem:[#allocation3 + $0x8] sm:$0x1]
        %v6054 = vld [vmem:[#allocation3 + $0xc] sm:$0xf]
        %v6055 = vld [vmem:[#allocation3 + $0x10] sm:$0xf]
        %v6056 = vld [vmem:[#allocation3 + $0x14] sm:$0x1]
        %v6057 = vld [vmem:[#allocation3 + $0x18] sm:$0xf]
        %v6058 = vld [vmem:[#allocation3 + $0x1c] sm:$0xf]
        %v6059 = vld [vmem:[#allocation3 + $0x20] sm:$0x1]
        %v6060 = vld [vmem:[#allocation3 + $0x24] sm:$0xf]
        %v6061 = vld [vmem:[#allocation3 + $0x28] sm:$0xf]
        %v6062 = vld [vmem:[#allocation3 + $0x2c] sm:$0x1]
        %v6063 = vld [vmem:[#allocation3 + $0x30] sm:$0xf]
        %v6064 = vld [vmem:[#allocation3 + $0x34] sm:$0xf]
        %v6065 = vld [vmem:[#allocation3 + $0x38] sm:$0x1]
        %v6066 = vld [vmem:[#allocation3 + $0x3c] sm:$0xf]
        %v6067 = vld [vmem:[#allocation3 + $0x40] sm:$0xf]
        %v6068 = vld [vmem:[#allocation3 + $0x44] sm:$0x1]
        %v6069 = vld [vmem:[#allocation3 + $0x48] sm:$0xf]
        %v6070 = vld [vmem:[#allocation3 + $0x4c] sm:$0xf]
        %v6071 = vld [vmem:[#allocation3 + $0x50] sm:$0x1]
        %v6072 = vld [vmem:[#allocation3 + $0x54] sm:$0xf]
        %v6073 = vld [vmem:[#allocation3 + $0x58] sm:$0xf]
        %v6074 = vld [vmem:[#allocation3 + $0x5c] sm:$0x1]
        %v6075 = vld [vmem:[#allocation3 + $0x60] sm:$0xf]
        %v6076 = vld [vmem:[#allocation3 + $0x64] sm:$0xf]
        %v6077 = vld [vmem:[#allocation3 + $0x68] sm:$0x1]
        %v6078 = vld [vmem:[#allocation3 + $0x6c] sm:$0xf]
        %v6079 = vld [vmem:[#allocation3 + $0x70] sm:$0xf]
        %v6080 = vld [vmem:[#allocation3 + $0x74] sm:$0x1]
        %v6081 = vld [vmem:[#allocation3 + $0x78] sm:$0xf]
        %v6082 = vld [vmem:[#allocation3 + $0x7c] sm:$0xf]
        %v6083 = vld [vmem:[#allocation3 + $0x80] sm:$0x1]
        %v6084 = vld [vmem:[#allocation3 + $0x84] sm:$0xf]
        %v6085 = vld [vmem:[#allocation3 + $0x88] sm:$0xf]
        %v6086 = vld [vmem:[#allocation3 + $0x8c] sm:$0x1]
        %v6087 = vld [vmem:[#allocation3 + $0x90] sm:$0xf]
        %v6088 = vld [vmem:[#allocation3 + $0x94] sm:$0xf]
        %v6089 = vld [vmem:[#allocation3 + $0x98] sm:$0x1]
        %v6090 = vld [vmem:[#allocation3 + $0x9c] sm:$0xf]
        %v6091 = vld [vmem:[#allocation3 + $0xa0] sm:$0xf]
        %v6092 = vld [vmem:[#allocation3 + $0xa4] sm:$0x1]
        %v6093 = vld [vmem:[#allocation3 + $0xa8] sm:$0xf]
        %v6094 = vld [vmem:[#allocation3 + $0xac] sm:$0xf]
        %v6095 = vld [vmem:[#allocation3 + $0xb0] sm:$0x1]
        %v6096 = vld [vmem:[#allocation3 + $0xb4] sm:$0xf]
        %v6097 = vld [vmem:[#allocation3 + $0xb8] sm:$0xf]
        %v6098 = vld [vmem:[#allocation3 + $0xbc] sm:$0x1]
        %v6099 = vld [vmem:[#allocation3 + $0xc0] sm:$0xf]
        %v6100 = vld [vmem:[#allocation3 + $0xc4] sm:$0xf]
        %v6101 = vld [vmem:[#allocation3 + $0xc8] sm:$0x1]
        %v6102 = vld [vmem:[#allocation3 + $0xcc] sm:$0xf]
        %v6103 = vld [vmem:[#allocation3 + $0xd0] sm:$0xf]
        %v6104 = vld [vmem:[#allocation3 + $0xd4] sm:$0x1]
        %v6106 = vshrl.u32 %v6051, 16
        %v6108 = vrot.slane %v6106, 4
        %v6109 = vshll.u32 %v6051, 16
        %v6111 = vrot.slane %v6109, 5
        %v6112 = vor.u32 %v6108, %v6111
        %v6113 = vrot.slane %v6112, 4
        %v6115 = vshll.u32 %v6052, 16
        %v6117 = vrot.slane %v6115, 5
        %v6118 = vsel %vm2272, %v6113, %v6117
        %v6119 = vshrl.u32 %v6052, 16
        %v6121 = vrot.slane %v6119, 4
        %v6122 = vor.u32 %v6121, %v6117
        %v6123 = vrot.slane %v6122, 4
        %v6125 = vshll.u32 %v6053, 16
        %v6127 = vrot.slane %v6125, 5
        %v6128 = vsel %vm2272, %v6123, %v6127
        %v6130 = vshrl.u32 %v6054, 16
        %v6132 = vrot.slane %v6130, 4
        %v6133 = vshll.u32 %v6054, 16
        %v6135 = vrot.slane %v6133, 5
        %v6136 = vor.u32 %v6132, %v6135
        %v6137 = vrot.slane %v6136, 4
        %v6139 = vshll.u32 %v6055, 16
        %v6141 = vrot.slane %v6139, 5
        %v6142 = vsel %vm2272, %v6137, %v6141
        %v6143 = vshrl.u32 %v6055, 16
        %v6145 = vrot.slane %v6143, 4
        %v6146 = vor.u32 %v6145, %v6141
        %v6147 = vrot.slane %v6146, 4
        %v6149 = vshll.u32 %v6056, 16
        %v6151 = vrot.slane %v6149, 5
        %v6152 = vsel %vm2272, %v6147, %v6151
        %v6154 = vshrl.u32 %v6057, 16
        %v6156 = vrot.slane %v6154, 4
        %v6157 = vshll.u32 %v6057, 16
        %v6159 = vrot.slane %v6157, 5
        %v6160 = vor.u32 %v6156, %v6159
        %v6161 = vrot.slane %v6160, 4
        %v6163 = vshll.u32 %v6058, 16
        %v6165 = vrot.slane %v6163, 5
        %v6166 = vsel %vm2272, %v6161, %v6165
        %v6167 = vshrl.u32 %v6058, 16
        %v6169 = vrot.slane %v6167, 4
        %v6170 = vor.u32 %v6169, %v6165
        %v6171 = vrot.slane %v6170, 4
        %v6173 = vshll.u32 %v6059, 16
        %v6175 = vrot.slane %v6173, 5
        %v6176 = vsel %vm2272, %v6171, %v6175
        %v6178 = vshrl.u32 %v6060, 16
        %v6180 = vrot.slane %v6178, 4
        %v6181 = vshll.u32 %v6060, 16
        %v6183 = vrot.slane %v6181, 5
        %v6184 = vor.u32 %v6180, %v6183
        %v6185 = vrot.slane %v6184, 4
        %v6187 = vshll.u32 %v6061, 16
        %v6189 = vrot.slane %v6187, 5
        %v6190 = vsel %vm2272, %v6185, %v6189
        %v6191 = vshrl.u32 %v6061, 16
        %v6193 = vrot.slane %v6191, 4
        %v6194 = vor.u32 %v6193, %v6189
        %v6195 = vrot.slane %v6194, 4
        %v6197 = vshll.u32 %v6062, 16
        %v6199 = vrot.slane %v6197, 5
        %v6200 = vsel %vm2272, %v6195, %v6199
        %v6202 = vshrl.u32 %v6063, 16
        %v6204 = vrot.slane %v6202, 4
        %v6205 = vshll.u32 %v6063, 16
        %v6207 = vrot.slane %v6205, 5
        %v6208 = vor.u32 %v6204, %v6207
        %v6209 = vrot.slane %v6208, 4
        %v6211 = vshll.u32 %v6064, 16
        %v6213 = vrot.slane %v6211, 5
        %v6214 = vsel %vm2272, %v6209, %v6213
        %v6215 = vshrl.u32 %v6064, 16
        %v6217 = vrot.slane %v6215, 4
        %v6218 = vor.u32 %v6217, %v6213
        %v6219 = vrot.slane %v6218, 4
        %v6221 = vshll.u32 %v6065, 16
        %v6223 = vrot.slane %v6221, 5
        %v6224 = vsel %vm2272, %v6219, %v6223
        %v6226 = vshrl.u32 %v6066, 16
        %v6228 = vrot.slane %v6226, 4
        %v6229 = vshll.u32 %v6066, 16
        %v6231 = vrot.slane %v6229, 5
        %v6232 = vor.u32 %v6228, %v6231
        %v6233 = vrot.slane %v6232, 4
        %v6235 = vshll.u32 %v6067, 16
        %v6237 = vrot.slane %v6235, 5
        %v6238 = vsel %vm2272, %v6233, %v6237
        %v6239 = vshrl.u32 %v6067, 16
        %v6241 = vrot.slane %v6239, 4
        %v6242 = vor.u32 %v6241, %v6237
        %v6243 = vrot.slane %v6242, 4
        %v6245 = vshll.u32 %v6068, 16
        %v6247 = vrot.slane %v6245, 5
        %v6248 = vsel %vm2272, %v6243, %v6247
        %v6250 = vshrl.u32 %v6069, 16
        %v6252 = vrot.slane %v6250, 4
        %v6253 = vshll.u32 %v6069, 16
        %v6255 = vrot.slane %v6253, 5
        %v6256 = vor.u32 %v6252, %v6255
        %v6257 = vrot.slane %v6256, 4
        %v6259 = vshll.u32 %v6070, 16
        %v6261 = vrot.slane %v6259, 5
        %v6262 = vsel %vm2272, %v6257, %v6261
        %v6263 = vshrl.u32 %v6070, 16
        %v6265 = vrot.slane %v6263, 4
        %v6266 = vor.u32 %v6265, %v6261
        %v6267 = vrot.slane %v6266, 4
        %v6269 = vshll.u32 %v6071, 16
        %v6271 = vrot.slane %v6269, 5
        %v6272 = vsel %vm2272, %v6267, %v6271
        %v6274 = vshrl.u32 %v6072, 16
        %v6276 = vrot.slane %v6274, 4
        %v6277 = vshll.u32 %v6072, 16
        %v6279 = vrot.slane %v6277, 5
        %v6280 = vor.u32 %v6276, %v6279
        %v6281 = vrot.slane %v6280, 4
        %v6283 = vshll.u32 %v6073, 16
        %v6285 = vrot.slane %v6283, 5
        %v6286 = vsel %vm2272, %v6281, %v6285
        %v6287 = vshrl.u32 %v6073, 16
        %v6289 = vrot.slane %v6287, 4
        %v6290 = vor.u32 %v6289, %v6285
        %v6291 = vrot.slane %v6290, 4
        %v6293 = vshll.u32 %v6074, 16
        %v6295 = vrot.slane %v6293, 5
        %v6296 = vsel %vm2272, %v6291, %v6295
        %v6298 = vshrl.u32 %v6075, 16
        %v6300 = vrot.slane %v6298, 4
        %v6301 = vshll.u32 %v6075, 16
        %v6303 = vrot.slane %v6301, 5
        %v6304 = vor.u32 %v6300, %v6303
        %v6305 = vrot.slane %v6304, 4
        %v6307 = vshll.u32 %v6076, 16
        %v6309 = vrot.slane %v6307, 5
        %v6310 = vsel %vm2272, %v6305, %v6309
        %v6311 = vshrl.u32 %v6076, 16
        %v6313 = vrot.slane %v6311, 4
        %v6314 = vor.u32 %v6313, %v6309
        %v6315 = vrot.slane %v6314, 4
        %v6317 = vshll.u32 %v6077, 16
        %v6319 = vrot.slane %v6317, 5
        %v6320 = vsel %vm2272, %v6315, %v6319
        %v6322 = vshrl.u32 %v6078, 16
        %v6324 = vrot.slane %v6322, 4
        %v6325 = vshll.u32 %v6078, 16
        %v6327 = vrot.slane %v6325, 5
        %v6328 = vor.u32 %v6324, %v6327
        %v6329 = vrot.slane %v6328, 4
        %v6331 = vshll.u32 %v6079, 16
        %v6333 = vrot.slane %v6331, 5
        %v6334 = vsel %vm2272, %v6329, %v6333
        %v6335 = vshrl.u32 %v6079, 16
        %v6337 = vrot.slane %v6335, 4
        %v6338 = vor.u32 %v6337, %v6333
        %v6339 = vrot.slane %v6338, 4
        %v6341 = vshll.u32 %v6080, 16
        %v6343 = vrot.slane %v6341, 5
        %v6344 = vsel %vm2272, %v6339, %v6343
        %v6346 = vshrl.u32 %v6081, 16
        %v6348 = vrot.slane %v6346, 4
        %v6349 = vshll.u32 %v6081, 16
        %v6351 = vrot.slane %v6349, 5
        %v6352 = vor.u32 %v6348, %v6351
        %v6353 = vrot.slane %v6352, 4
        %v6355 = vshll.u32 %v6082, 16
        %v6357 = vrot.slane %v6355, 5
        %v6358 = vsel %vm2272, %v6353, %v6357
        %v6359 = vshrl.u32 %v6082, 16
        %v6361 = vrot.slane %v6359, 4
        %v6362 = vor.u32 %v6361, %v6357
        %v6363 = vrot.slane %v6362, 4
        %v6365 = vshll.u32 %v6083, 16
        %v6367 = vrot.slane %v6365, 5
        %v6368 = vsel %vm2272, %v6363, %v6367
        %v6370 = vshrl.u32 %v6084, 16
        %v6372 = vrot.slane %v6370, 4
        %v6373 = vshll.u32 %v6084, 16
        %v6375 = vrot.slane %v6373, 5
        %v6376 = vor.u32 %v6372, %v6375
        %v6377 = vrot.slane %v6376, 4
        %v6379 = vshll.u32 %v6085, 16
        %v6381 = vrot.slane %v6379, 5
        %v6382 = vsel %vm2272, %v6377, %v6381
        %v6383 = vshrl.u32 %v6085, 16
        %v6385 = vrot.slane %v6383, 4
        %v6386 = vor.u32 %v6385, %v6381
        %v6387 = vrot.slane %v6386, 4
        %v6389 = vshll.u32 %v6086, 16
        %v6391 = vrot.slane %v6389, 5
        %v6392 = vsel %vm2272, %v6387, %v6391
        %v6394 = vshrl.u32 %v6087, 16
        %v6396 = vrot.slane %v6394, 4
        %v6397 = vshll.u32 %v6087, 16
        %v6399 = vrot.slane %v6397, 5
        %v6400 = vor.u32 %v6396, %v6399
        %v6401 = vrot.slane %v6400, 4
        %v6403 = vshll.u32 %v6088, 16
        %v6405 = vrot.slane %v6403, 5
        %v6406 = vsel %vm2272, %v6401, %v6405
        %v6407 = vshrl.u32 %v6088, 16
        %v6409 = vrot.slane %v6407, 4
        %v6410 = vor.u32 %v6409, %v6405
        %v6411 = vrot.slane %v6410, 4
        %v6413 = vshll.u32 %v6089, 16
        %v6415 = vrot.slane %v6413, 5
        %v6416 = vsel %vm2272, %v6411, %v6415
        %v6418 = vshrl.u32 %v6090, 16
        %v6420 = vrot.slane %v6418, 4
        %v6421 = vshll.u32 %v6090, 16
        %v6423 = vrot.slane %v6421, 5
        %v6424 = vor.u32 %v6420, %v6423
        %v6425 = vrot.slane %v6424, 4
        %v6427 = vshll.u32 %v6091, 16
        %v6429 = vrot.slane %v6427, 5
        %v6430 = vsel %vm2272, %v6425, %v6429
        %v6431 = vshrl.u32 %v6091, 16
        %v6433 = vrot.slane %v6431, 4
        %v6434 = vor.u32 %v6433, %v6429
        %v6435 = vrot.slane %v6434, 4
        %v6437 = vshll.u32 %v6092, 16
        %v6439 = vrot.slane %v6437, 5
        %v6440 = vsel %vm2272, %v6435, %v6439
        %v6442 = vshrl.u32 %v6093, 16
        %v6444 = vrot.slane %v6442, 4
        %v6445 = vshll.u32 %v6093, 16
        %v6447 = vrot.slane %v6445, 5
        %v6448 = vor.u32 %v6444, %v6447
        %v6449 = vrot.slane %v6448, 4
        %v6451 = vshll.u32 %v6094, 16
        %v6453 = vrot.slane %v6451, 5
        %v6454 = vsel %vm2272, %v6449, %v6453
        %v6455 = vshrl.u32 %v6094, 16
        %v6457 = vrot.slane %v6455, 4
        %v6458 = vor.u32 %v6457, %v6453
        %v6459 = vrot.slane %v6458, 4
        %v6461 = vshll.u32 %v6095, 16
        %v6463 = vrot.slane %v6461, 5
        %v6464 = vsel %vm2272, %v6459, %v6463
        %v6466 = vshrl.u32 %v6096, 16
        %v6468 = vrot.slane %v6466, 4
        %v6469 = vshll.u32 %v6096, 16
        %v6471 = vrot.slane %v6469, 5
        %v6472 = vor.u32 %v6468, %v6471
        %v6473 = vrot.slane %v6472, 4
        %v6475 = vshll.u32 %v6097, 16
        %v6477 = vrot.slane %v6475, 5
        %v6478 = vsel %vm2272, %v6473, %v6477
        %v6479 = vshrl.u32 %v6097, 16
        %v6481 = vrot.slane %v6479, 4
        %v6482 = vor.u32 %v6481, %v6477
        %v6483 = vrot.slane %v6482, 4
        %v6485 = vshll.u32 %v6098, 16
        %v6487 = vrot.slane %v6485, 5
        %v6488 = vsel %vm2272, %v6483, %v6487
        %s6489 = scalar_lea.vmem %s5, 64
        %v6490 = vld [vmem:[%s6489] sm:$0xf]
        %v6491 = vld [vmem:[%s6489 + $0x4] sm:$0xf]
        %v6492 = vld [vmem:[%s6489 + $0x8] sm:$0xf]
        %v6493 = vld [vmem:[%s6489 + $0xc] sm:$0xf]
        %v6494 = vld [vmem:[%s6489 + $0x10] sm:$0xf]
        %v6495 = vld [vmem:[%s6489 + $0x14] sm:$0xf]
        %v6496 = vld [vmem:[%s6489 + $0x18] sm:$0xf]
        %v6497 = vld [vmem:[%s6489 + $0x1c] sm:$0xf]
        %v6498 = vld [vmem:[%s6489 + $0x20] sm:$0xf]
        %v6499 = vld [vmem:[%s6489 + $0x24] sm:$0xf]
        %v6500 = vld [vmem:[%s6489 + $0x28] sm:$0xf]
        %v6501 = vld [vmem:[%s6489 + $0x2c] sm:$0xf]
        %v6502 = vld [vmem:[%s6489 + $0x30] sm:$0xf]
        %v6503 = vld [vmem:[%s6489 + $0x34] sm:$0xf]
        %v6504 = vld [vmem:[%s6489 + $0x38] sm:$0xf]
        %v6505 = vld [vmem:[%s6489 + $0x3c] sm:$0xf]
        %v6506 = vunpack.c.l.b16 %v6118
        %v6507 = vunpack.c.l.b16 %v6128
        %v6508 = vunpack.c.l.b16 %v6142
        %v6509 = vunpack.c.l.b16 %v6152
        %v6510 = vunpack.c.l.b16 %v6166
        %v6511 = vunpack.c.l.b16 %v6176
        %v6512 = vunpack.c.l.b16 %v6190
        %v6513 = vunpack.c.l.b16 %v6200
        %v6514 = vunpack.c.l.b16 %v6214
        %v6515 = vunpack.c.l.b16 %v6224
        %v6516 = vunpack.c.l.b16 %v6238
        %v6517 = vunpack.c.l.b16 %v6248
        %v6518 = vunpack.c.l.b16 %v6262
        %v6519 = vunpack.c.l.b16 %v6272
        %v6520 = vunpack.c.l.b16 %v6286
        %v6521 = vunpack.c.l.b16 %v6296
        %v6522 = vunpack.c.l.b16 %v6310
        %v6523 = vunpack.c.l.b16 %v6320
        %v6524 = vunpack.c.l.b16 %v6334
        %v6525 = vunpack.c.l.b16 %v6344
        %v6526 = vunpack.c.l.b16 %v6358
        %v6527 = vunpack.c.l.b16 %v6368
        %v6528 = vunpack.c.l.b16 %v6382
        %v6529 = vunpack.c.l.b16 %v6392
        %v6530 = vunpack.c.l.b16 %v6406
        %v6531 = vunpack.c.l.b16 %v6416
        %v6532 = vunpack.c.l.b16 %v6430
        %v6533 = vunpack.c.l.b16 %v6440
        %v6534 = vunpack.c.l.b16 %v6454
        %v6535 = vunpack.c.l.b16 %v6464
        %v6536 = vunpack.c.l.b16 %v6478
        %v6537 = vunpack.c.l.b16 %v6488
        %v6538 = vpack.c.b16 %v6507, %v6506
        %v6539 = vpack.c.b16 %v6509, %v6508
        %v6540 = vpack.c.b16 %v6511, %v6510
        %v6541 = vpack.c.b16 %v6513, %v6512
        %v6542 = vpack.c.b16 %v6515, %v6514
        %v6543 = vpack.c.b16 %v6517, %v6516
        %v6544 = vpack.c.b16 %v6519, %v6518
        %v6545 = vpack.c.b16 %v6521, %v6520
        %v6546 = vpack.c.b16 %v6523, %v6522
        %v6547 = vpack.c.b16 %v6525, %v6524
        %v6548 = vpack.c.b16 %v6527, %v6526
        %v6549 = vpack.c.b16 %v6529, %v6528
        %v6550 = vpack.c.b16 %v6531, %v6530
        %v6551 = vpack.c.b16 %v6533, %v6532
        %v6552 = vpack.c.b16 %v6535, %v6534
        %v6553 = vpack.c.b16 %v6537, %v6536
        %v6586 = vunpack.c.l.b16 %v6490
        %v6587 = vunpack.c.l.b16 %v6491
        %v6588 = vunpack.c.l.b16 %v6492
        %v6589 = vunpack.c.l.b16 %v6493
        %v6590 = vunpack.c.l.b16 %v6494
        %v6591 = vunpack.c.l.b16 %v6495
        %v6592 = vunpack.c.l.b16 %v6496
        %v6593 = vunpack.c.l.b16 %v6497
        %v6594 = vunpack.c.l.b16 %v6498
        %v6595 = vunpack.c.l.b16 %v6499
        %v6596 = vunpack.c.l.b16 %v6500
        %v6597 = vunpack.c.l.b16 %v6501
        %v6598 = vunpack.c.l.b16 %v6502
        %v6599 = vunpack.c.l.b16 %v6503
        %v6600 = vunpack.c.l.b16 %v6504
        %v6601 = vunpack.c.l.b16 %v6505
        %v6602 = vpack.c.b16 %v6587, %v6586
        %v6603 = vpack.c.b16 %v6589, %v6588
        %v6604 = vpack.c.b16 %v6591, %v6590
        %v6605 = vpack.c.b16 %v6593, %v6592
        %v6606 = vpack.c.b16 %v6595, %v6594
        %v6607 = vpack.c.b16 %v6597, %v6596
        %v6608 = vpack.c.b16 %v6599, %v6598
        %v6609 = vpack.c.b16 %v6601, %v6600
        %6618 = vmatprep.subr.bf16.mxu0 0
        %6619 = vmatpush1.bf16.msra.mxu0 %v6602
        %6620 = vmatprep.subr.bf16.mxu0 0
        %6621 = vmatpush1.bf16.msra.mxu0 %v6603
        %6622 = vmatprep.subr.bf16.mxu0 0
        %6623 = vmatpush1.bf16.msra.mxu0 %v6604
        %6624 = vmatprep.subr.bf16.mxu0 0
        %6625 = vmatpush1.bf16.msra.mxu0 %v6605
        %6626 = vmatprep.subr.bf16.mxu0 0
        %6627 = vmatpush1.bf16.msra.mxu0 %v6606
        %6628 = vmatprep.subr.bf16.mxu0 0
        %6629 = vmatpush1.bf16.msra.mxu0 %v6607
        %6630 = vmatprep.subr.bf16.mxu0 0
        %6631 = vmatpush1.bf16.msra.mxu0 %v6608
        %6632 = vmatprep.subr.bf16.mxu0 0
        %6633 = vmatpush1.bf16.msra.mxu0 %v6609
        %6634 = vmatprep.subr.bf16.mxu0 0
        %6635 = vmatpush1.bf16.msra.mxu0 0
        %6636 = vmatprep.subr.bf16.mxu0 0
        %6637 = vmatpush1.bf16.msra.mxu0 0
        %6638 = vmatprep.subr.bf16.mxu0 0
        %6639 = vmatpush1.bf16.msra.mxu0 0
        %6640 = vmatprep.subr.bf16.mxu0 0
        %6641 = vmatpush1.bf16.msra.mxu0 0
        %6642 = vmatprep.subr.bf16.mxu0 0
        %6643 = vmatpush1.bf16.msra.mxu0 0
        %6644 = vmatprep.subr.bf16.mxu0 0
        %6645 = vmatpush1.bf16.msra.mxu0 0
        %6646 = vmatprep.subr.bf16.mxu0 0
        %6647 = vmatpush1.bf16.msra.mxu0 0
        %6648 = vmatprep.subr.bf16.mxu0 0
        %6649 = vmatpush1.bf16.msra.mxu0 0
        %6650 = vmatprep.mubr.bf16.mxu0 0
        %6651 = vmatmul.mubr.bf16.gmra.mrb[0].mxu0 %v6538
        %v6652 = vpop.f32.mrb[0].mxu0
        %v6653 = vadd.f32 0.0, %v6652
        %v6654 = vpop.f32.mrb[0].mxu0
        %v6655 = vpop.f32.mrb[0].mxu0
        %v6656 = vadd.f32 0.0, %v6655
        %v6657 = vpop.f32.mrb[0].mxu0
        %6658 = vmatprep.mubr.bf16.mxu0 0
        %6659 = vmatmul.mubr.bf16.gmra.mrb[0].mxu0 %v6539
        %v6660 = vpop.f32.mrb[0].mxu0
        %v6661 = vadd.f32 0.0, %v6660
        %v6662 = vpop.f32.mrb[0].mxu0
        %v6663 = vpop.f32.mrb[0].mxu0
        %v6664 = vadd.f32 0.0, %v6663
        %v6665 = vpop.f32.mrb[0].mxu0
        %6666 = vmatprep.mubr.bf16.mxu0 0
        %6667 = vmatmul.mubr.bf16.gmra.mrb[0].mxu0 %v6540
        %v6668 = vpop.f32.mrb[0].mxu0
        %v6669 = vadd.f32 0.0, %v6668
        %v6670 = vpop.f32.mrb[0].mxu0
        %v6671 = vpop.f32.mrb[0].mxu0
        %v6672 = vadd.f32 0.0, %v6671
        %v6673 = vpop.f32.mrb[0].mxu0
        %6674 = vmatprep.mubr.bf16.mxu0 0
        %6675 = vmatmul.mubr.bf16.gmra.mrb[0].mxu0 %v6541
        %v6676 = vpop.f32.mrb[0].mxu0
        %v6677 = vadd.f32 0.0, %v6676
        %v6678 = vpop.f32.mrb[0].mxu0
        %v6679 = vpop.f32.mrb[0].mxu0
        %v6680 = vadd.f32 0.0, %v6679
        %v6681 = vpop.f32.mrb[0].mxu0
        %6682 = vmatprep.mubr.bf16.mxu0 0
        %6683 = vmatmul.mubr.bf16.gmra.mrb[0].mxu0 %v6542
        %v6684 = vpop.f32.mrb[0].mxu0
        %v6685 = vadd.f32 0.0, %v6684
        %v6686 = vpop.f32.mrb[0].mxu0
        %v6687 = vpop.f32.mrb[0].mxu0
        %v6688 = vadd.f32 0.0, %v6687
        %v6689 = vpop.f32.mrb[0].mxu0
        %6690 = vmatprep.mubr.bf16.mxu0 0
        %6691 = vmatmul.mubr.bf16.gmra.mrb[0].mxu0 %v6543
        %v6692 = vpop.f32.mrb[0].mxu0
        %v6693 = vadd.f32 0.0, %v6692
        %v6694 = vpop.f32.mrb[0].mxu0
        %v6695 = vpop.f32.mrb[0].mxu0
        %v6696 = vadd.f32 0.0, %v6695
        %v6697 = vpop.f32.mrb[0].mxu0
        %6698 = vmatprep.mubr.bf16.mxu0 0
        %6699 = vmatmul.mubr.bf16.gmra.mrb[0].mxu0 %v6544
        %v6700 = vpop.f32.mrb[0].mxu0
        %v6701 = vadd.f32 0.0, %v6700
        %v6702 = vpop.f32.mrb[0].mxu0
        %v6703 = vpop.f32.mrb[0].mxu0
        %v6704 = vadd.f32 0.0, %v6703
        %v6705 = vpop.f32.mrb[0].mxu0
        %6706 = vmatprep.mubr.bf16.mxu0 0
        %6707 = vmatmul.mubr.bf16.gmra.mrb[0].mxu0 %v6545
        %v6708 = vpop.f32.mrb[0].mxu0
        %v6709 = vadd.f32 0.0, %v6708
        %v6710 = vpop.f32.mrb[0].mxu0
        %v6711 = vpop.f32.mrb[0].mxu0
        %v6712 = vadd.f32 0.0, %v6711
        %v6713 = vpop.f32.mrb[0].mxu0
        %6714 = vmatprep.mubr.bf16.mxu0 0
        %6715 = vmatmul.mubr.bf16.gmra.mrb[0].mxu0 %v6546
        %v6716 = vpop.f32.mrb[0].mxu0
        %v6717 = vadd.f32 0.0, %v6716
        %v6718 = vpop.f32.mrb[0].mxu0
        %v6719 = vpop.f32.mrb[0].mxu0
        %v6720 = vadd.f32 0.0, %v6719
        %v6721 = vpop.f32.mrb[0].mxu0
        %6722 = vmatprep.mubr.bf16.mxu0 0
        %6723 = vmatmul.mubr.bf16.gmra.mrb[0].mxu0 %v6547
        %v6724 = vpop.f32.mrb[0].mxu0
        %v6725 = vadd.f32 0.0, %v6724
        %v6726 = vpop.f32.mrb[0].mxu0
        %v6727 = vpop.f32.mrb[0].mxu0
        %v6728 = vadd.f32 0.0, %v6727
        %v6729 = vpop.f32.mrb[0].mxu0
        %6730 = vmatprep.mubr.bf16.mxu0 0
        %6731 = vmatmul.mubr.bf16.gmra.mrb[0].mxu0 %v6548
        %v6732 = vpop.f32.mrb[0].mxu0
        %v6733 = vadd.f32 0.0, %v6732
        %v6734 = vpop.f32.mrb[0].mxu0
        %v6735 = vpop.f32.mrb[0].mxu0
        %v6736 = vadd.f32 0.0, %v6735
        %v6737 = vpop.f32.mrb[0].mxu0
        %6738 = vmatprep.mubr.bf16.mxu0 0
        %6739 = vmatmul.mubr.bf16.gmra.mrb[0].mxu0 %v6549
        %v6740 = vpop.f32.mrb[0].mxu0
        %v6741 = vadd.f32 0.0, %v6740
        %v6742 = vpop.f32.mrb[0].mxu0
        %v6743 = vpop.f32.mrb[0].mxu0
        %v6744 = vadd.f32 0.0, %v6743
        %v6745 = vpop.f32.mrb[0].mxu0
        %6746 = vmatprep.mubr.bf16.mxu0 0
        %6747 = vmatmul.mubr.bf16.gmra.mrb[0].mxu0 %v6550
        %v6748 = vpop.f32.mrb[0].mxu0
        %v6749 = vadd.f32 0.0, %v6748
        %v6750 = vpop.f32.mrb[0].mxu0
        %v6751 = vpop.f32.mrb[0].mxu0
        %v6752 = vadd.f32 0.0, %v6751
        %v6753 = vpop.f32.mrb[0].mxu0
        %6754 = vmatprep.mubr.bf16.mxu0 0
        %6755 = vmatmul.mubr.bf16.gmra.mrb[0].mxu0 %v6551
        %v6756 = vpop.f32.mrb[0].mxu0
        %v6757 = vadd.f32 0.0, %v6756
        %v6758 = vpop.f32.mrb[0].mxu0
        %v6759 = vpop.f32.mrb[0].mxu0
        %v6760 = vadd.f32 0.0, %v6759
        %v6761 = vpop.f32.mrb[0].mxu0
        %6762 = vmatprep.mubr.bf16.mxu0 0
        %6763 = vmatmul.mubr.bf16.gmra.mrb[0].mxu0 %v6552
        %v6764 = vpop.f32.mrb[0].mxu0
        %v6765 = vadd.f32 0.0, %v6764
        %v6766 = vpop.f32.mrb[0].mxu0
        %v6767 = vpop.f32.mrb[0].mxu0
        %v6768 = vadd.f32 0.0, %v6767
        %v6769 = vpop.f32.mrb[0].mxu0
        %6770 = vmatprep.mubr.bf16.mxu0 0
        %6771 = vmatmul.mubr.bf16.gmra.mrb[0].mxu0 %v6553
        %v6772 = vpop.f32.mrb[0].mxu0
        %v6773 = vadd.f32 0.0, %v6772
        %v6774 = vpop.f32.mrb[0].mxu0
        %v6775 = vpop.f32.mrb[0].mxu0
        %v6776 = vadd.f32 0.0, %v6775
        %v6777 = vpop.f32.mrb[0].mxu0
        %6778 = vdwg.mxu0
        %v6779 = vadd.f32 %v6019, %v6653
        %v6780 = vadd.f32 %v6020, %v6656
        %v6781 = vadd.f32 %v6021, %v6661
        %v6782 = vadd.f32 %v6022, %v6664
        %v6783 = vadd.f32 %v6023, %v6669
        %v6784 = vadd.f32 %v6024, %v6672
        %v6785 = vadd.f32 %v6025, %v6677
        %v6786 = vadd.f32 %v6026, %v6680
        %v6787 = vadd.f32 %v6027, %v6685
        %v6788 = vadd.f32 %v6028, %v6688
        %v6789 = vadd.f32 %v6029, %v6693
        %v6790 = vadd.f32 %v6030, %v6696
        %v6791 = vadd.f32 %v6031, %v6701
        %v6792 = vadd.f32 %v6032, %v6704
        %v6793 = vadd.f32 %v6033, %v6709
        %v6794 = vadd.f32 %v6034, %v6712
        %v6795 = vadd.f32 %v6035, %v6717
        %v6796 = vadd.f32 %v6036, %v6720
        %v6797 = vadd.f32 %v6037, %v6725
        %v6798 = vadd.f32 %v6038, %v6728
        %v6799 = vadd.f32 %v6039, %v6733
        %v6800 = vadd.f32 %v6040, %v6736
        %v6801 = vadd.f32 %v6041, %v6741
        %v6802 = vadd.f32 %v6042, %v6744
        %v6803 = vadd.f32 %v6043, %v6749
        %v6804 = vadd.f32 %v6044, %v6752
        %v6805 = vadd.f32 %v6045, %v6757
        %v6806 = vadd.f32 %v6046, %v6760
        %v6807 = vadd.f32 %v6047, %v6765
        %v6808 = vadd.f32 %v6048, %v6768
        %v6809 = vadd.f32 %v6049, %v6773
        %v6810 = vadd.f32 %v6050, %v6776
        %v6812 = vshrl.u32 %v6099, 16
        %v6814 = vrot.slane %v6812, 4
        %v6815 = vshll.u32 %v6099, 16
        %v6817 = vrot.slane %v6815, 5
        %v6818 = vor.u32 %v6814, %v6817
        %v6819 = vrot.slane %v6818, 4
        %v6821 = vshll.u32 %v6100, 16
        %v6823 = vrot.slane %v6821, 5
        %v6824 = vsel %vm2272, %v6819, %v6823
        %v6825 = vshrl.u32 %v6100, 16
        %v6827 = vrot.slane %v6825, 4
        %v6828 = vor.u32 %v6827, %v6823
        %v6829 = vrot.slane %v6828, 4
        %v6831 = vshll.u32 %v6101, 16
        %v6833 = vrot.slane %v6831, 5
        %v6834 = vsel %vm2272, %v6829, %v6833
        %s6835 = scalar_lea.vmem %s5, 256
        %v6836 = vld [vmem:[%s6835] sm:$0xf]
        %v6837 = vld [vmem:[%s6835 + $0x4] sm:$0xf]
        %v6838 = vld [vmem:[%s6835 + $0x8] sm:$0xf]
        %v6839 = vld [vmem:[%s6835 + $0xc] sm:$0xf]
        %v6840 = vld [vmem:[%s6835 + $0x10] sm:$0xf]
        %v6841 = vld [vmem:[%s6835 + $0x14] sm:$0xf]
        %v6842 = vld [vmem:[%s6835 + $0x18] sm:$0xf]
        %v6843 = vld [vmem:[%s6835 + $0x1c] sm:$0xf]
        %v6844 = vld [vmem:[%s6835 + $0x20] sm:$0xf]
        %v6845 = vld [vmem:[%s6835 + $0x24] sm:$0xf]
        %v6846 = vld [vmem:[%s6835 + $0x28] sm:$0xf]
        %v6847 = vld [vmem:[%s6835 + $0x2c] sm:$0xf]
        %v6848 = vld [vmem:[%s6835 + $0x30] sm:$0xf]
        %v6849 = vld [vmem:[%s6835 + $0x34] sm:$0xf]
        %v6850 = vld [vmem:[%s6835 + $0x38] sm:$0xf]
        %v6851 = vld [vmem:[%s6835 + $0x3c] sm:$0xf]
        %v6852 = vunpack.c.l.b16 %v6824
        %v6853 = vunpack.c.l.b16 %v6834
        %v6854 = vpack.c.b16 %v6853, %v6852
        %v6872 = vunpack.c.l.b16 %v6836
        %v6873 = vunpack.c.l.b16 %v6837
        %v6874 = vunpack.c.l.b16 %v6838
        %v6875 = vunpack.c.l.b16 %v6839
        %v6876 = vunpack.c.l.b16 %v6840
        %v6877 = vunpack.c.l.b16 %v6841
        %v6878 = vunpack.c.l.b16 %v6842
        %v6879 = vunpack.c.l.b16 %v6843
        %v6880 = vunpack.c.l.b16 %v6844
        %v6881 = vunpack.c.l.b16 %v6845
        %v6882 = vunpack.c.l.b16 %v6846
        %v6883 = vunpack.c.l.b16 %v6847
        %v6884 = vunpack.c.l.b16 %v6848
        %v6885 = vunpack.c.l.b16 %v6849
        %v6886 = vunpack.c.l.b16 %v6850
        %v6887 = vunpack.c.l.b16 %v6851
        %v6888 = vpack.c.b16 %v6873, %v6872
        %v6889 = vpack.c.b16 %v6875, %v6874
        %v6890 = vpack.c.b16 %v6877, %v6876
        %v6891 = vpack.c.b16 %v6879, %v6878
        %v6892 = vpack.c.b16 %v6881, %v6880
        %v6893 = vpack.c.b16 %v6883, %v6882
        %v6894 = vpack.c.b16 %v6885, %v6884
        %v6895 = vpack.c.b16 %v6887, %v6886
        %6904 = vmatprep.subr.bf16.mxu0 0
        %6905 = vmatpush1.bf16.msra.mxu0 %v6888
        %6906 = vmatprep.subr.bf16.mxu0 0
        %6907 = vmatpush1.bf16.msra.mxu0 %v6889
        %6908 = vmatprep.subr.bf16.mxu0 0
        %6909 = vmatpush1.bf16.msra.mxu0 %v6890
        %6910 = vmatprep.subr.bf16.mxu0 0
        %6911 = vmatpush1.bf16.msra.mxu0 %v6891
        %6912 = vmatprep.subr.bf16.mxu0 0
        %6913 = vmatpush1.bf16.msra.mxu0 %v6892
        %6914 = vmatprep.subr.bf16.mxu0 0
        %6915 = vmatpush1.bf16.msra.mxu0 %v6893
        %6916 = vmatprep.subr.bf16.mxu0 0
        %6917 = vmatpush1.bf16.msra.mxu0 %v6894
        %6918 = vmatprep.subr.bf16.mxu0 0
        %6919 = vmatpush1.bf16.msra.mxu0 %v6895
        %6920 = vmatprep.subr.bf16.mxu0 0
        %6921 = vmatpush1.bf16.msra.mxu0 0
        %6922 = vmatprep.subr.bf16.mxu0 0
        %6923 = vmatpush1.bf16.msra.mxu0 0
        %6924 = vmatprep.subr.bf16.mxu0 0
        %6925 = vmatpush1.bf16.msra.mxu0 0
        %6926 = vmatprep.subr.bf16.mxu0 0
        %6927 = vmatpush1.bf16.msra.mxu0 0
        %6928 = vmatprep.subr.bf16.mxu0 0
        %6929 = vmatpush1.bf16.msra.mxu0 0
        %6930 = vmatprep.subr.bf16.mxu0 0
        %6931 = vmatpush1.bf16.msra.mxu0 0
        %6932 = vmatprep.subr.bf16.mxu0 0
        %6933 = vmatpush1.bf16.msra.mxu0 0
        %6934 = vmatprep.subr.bf16.mxu0 0
        %6935 = vmatpush1.bf16.msra.mxu0 0
        %6936 = vmatprep.mubr.bf16.mxu0 0
        %6937 = vmatmul.mubr.bf16.gmra.mrb[0].mxu0 %v6539
        %v6938 = vpop.f32.mrb[0].mxu0
        %v6939 = vadd.f32 0.0, %v6938
        %v6940 = vpop.f32.mrb[0].mxu0
        %v6941 = vpop.f32.mrb[0].mxu0
        %v6942 = vadd.f32 0.0, %v6941
        %v6943 = vpop.f32.mrb[0].mxu0
        %6944 = vmatprep.mubr.bf16.mxu0 0
        %6945 = vmatmul.mubr.bf16.gmra.mrb[0].mxu0 %v6540
        %v6946 = vpop.f32.mrb[0].mxu0
        %v6947 = vadd.f32 0.0, %v6946
        %v6948 = vpop.f32.mrb[0].mxu0
        %v6949 = vpop.f32.mrb[0].mxu0
        %v6950 = vadd.f32 0.0, %v6949
        %v6951 = vpop.f32.mrb[0].mxu0
        %6952 = vmatprep.mubr.bf16.mxu0 0
        %6953 = vmatmul.mubr.bf16.gmra.mrb[0].mxu0 %v6541
        %v6954 = vpop.f32.mrb[0].mxu0
        %v6955 = vadd.f32 0.0, %v6954
        %v6956 = vpop.f32.mrb[0].mxu0
        %v6957 = vpop.f32.mrb[0].mxu0
        %v6958 = vadd.f32 0.0, %v6957
        %v6959 = vpop.f32.mrb[0].mxu0
        %6960 = vmatprep.mubr.bf16.mxu0 0
        %6961 = vmatmul.mubr.bf16.gmra.mrb[0].mxu0 %v6542
        %v6962 = vpop.f32.mrb[0].mxu0
        %v6963 = vadd.f32 0.0, %v6962
        %v6964 = vpop.f32.mrb[0].mxu0
        %v6965 = vpop.f32.mrb[0].mxu0
        %v6966 = vadd.f32 0.0, %v6965
        %v6967 = vpop.f32.mrb[0].mxu0
        %6968 = vmatprep.mubr.bf16.mxu0 0
        %6969 = vmatmul.mubr.bf16.gmra.mrb[0].mxu0 %v6543
        %v6970 = vpop.f32.mrb[0].mxu0
        %v6971 = vadd.f32 0.0, %v6970
        %v6972 = vpop.f32.mrb[0].mxu0
        %v6973 = vpop.f32.mrb[0].mxu0
        %v6974 = vadd.f32 0.0, %v6973
        %v6975 = vpop.f32.mrb[0].mxu0
        %6976 = vmatprep.mubr.bf16.mxu0 0
        %6977 = vmatmul.mubr.bf16.gmra.mrb[0].mxu0 %v6544
        %v6978 = vpop.f32.mrb[0].mxu0
        %v6979 = vadd.f32 0.0, %v6978
        %v6980 = vpop.f32.mrb[0].mxu0
        %v6981 = vpop.f32.mrb[0].mxu0
        %v6982 = vadd.f32 0.0, %v6981
        %v6983 = vpop.f32.mrb[0].mxu0
        %6984 = vmatprep.mubr.bf16.mxu0 0
        %6985 = vmatmul.mubr.bf16.gmra.mrb[0].mxu0 %v6545
        %v6986 = vpop.f32.mrb[0].mxu0
        %v6987 = vadd.f32 0.0, %v6986
        %v6988 = vpop.f32.mrb[0].mxu0
        %v6989 = vpop.f32.mrb[0].mxu0
        %v6990 = vadd.f32 0.0, %v6989
        %v6991 = vpop.f32.mrb[0].mxu0
        %6992 = vmatprep.mubr.bf16.mxu0 0
        %6993 = vmatmul.mubr.bf16.gmra.mrb[0].mxu0 %v6546
        %v6994 = vpop.f32.mrb[0].mxu0
        %v6995 = vadd.f32 0.0, %v6994
        %v6996 = vpop.f32.mrb[0].mxu0
        %v6997 = vpop.f32.mrb[0].mxu0
        %v6998 = vadd.f32 0.0, %v6997
        %v6999 = vpop.f32.mrb[0].mxu0
        %7000 = vmatprep.mubr.bf16.mxu0 0
        %7001 = vmatmul.mubr.bf16.gmra.mrb[0].mxu0 %v6547
        %v7002 = vpop.f32.mrb[0].mxu0
        %v7003 = vadd.f32 0.0, %v7002
        %v7004 = vpop.f32.mrb[0].mxu0
        %v7005 = vpop.f32.mrb[0].mxu0
        %v7006 = vadd.f32 0.0, %v7005
        %v7007 = vpop.f32.mrb[0].mxu0
        %7008 = vmatprep.mubr.bf16.mxu0 0
        %7009 = vmatmul.mubr.bf16.gmra.mrb[0].mxu0 %v6548
        %v7010 = vpop.f32.mrb[0].mxu0
        %v7011 = vadd.f32 0.0, %v7010
        %v7012 = vpop.f32.mrb[0].mxu0
        %v7013 = vpop.f32.mrb[0].mxu0
        %v7014 = vadd.f32 0.0, %v7013
        %v7015 = vpop.f32.mrb[0].mxu0
        %7016 = vmatprep.mubr.bf16.mxu0 0
        %7017 = vmatmul.mubr.bf16.gmra.mrb[0].mxu0 %v6549
        %v7018 = vpop.f32.mrb[0].mxu0
        %v7019 = vadd.f32 0.0, %v7018
        %v7020 = vpop.f32.mrb[0].mxu0
        %v7021 = vpop.f32.mrb[0].mxu0
        %v7022 = vadd.f32 0.0, %v7021
        %v7023 = vpop.f32.mrb[0].mxu0
        %7024 = vmatprep.mubr.bf16.mxu0 0
        %7025 = vmatmul.mubr.bf16.gmra.mrb[0].mxu0 %v6550
        %v7026 = vpop.f32.mrb[0].mxu0
        %v7027 = vadd.f32 0.0, %v7026
        %v7028 = vpop.f32.mrb[0].mxu0
        %v7029 = vpop.f32.mrb[0].mxu0
        %v7030 = vadd.f32 0.0, %v7029
        %v7031 = vpop.f32.mrb[0].mxu0
        %7032 = vmatprep.mubr.bf16.mxu0 0
        %7033 = vmatmul.mubr.bf16.gmra.mrb[0].mxu0 %v6551
        %v7034 = vpop.f32.mrb[0].mxu0
        %v7035 = vadd.f32 0.0, %v7034
        %v7036 = vpop.f32.mrb[0].mxu0
        %v7037 = vpop.f32.mrb[0].mxu0
        %v7038 = vadd.f32 0.0, %v7037
        %v7039 = vpop.f32.mrb[0].mxu0
        %7040 = vmatprep.mubr.bf16.mxu0 0
        %7041 = vmatmul.mubr.bf16.gmra.mrb[0].mxu0 %v6552
        %v7042 = vpop.f32.mrb[0].mxu0
        %v7043 = vadd.f32 0.0, %v7042
        %v7044 = vpop.f32.mrb[0].mxu0
        %v7045 = vpop.f32.mrb[0].mxu0
        %v7046 = vadd.f32 0.0, %v7045
        %v7047 = vpop.f32.mrb[0].mxu0
        %7048 = vmatprep.mubr.bf16.mxu0 0
        %7049 = vmatmul.mubr.bf16.gmra.mrb[0].mxu0 %v6553
        %v7050 = vpop.f32.mrb[0].mxu0
        %v7051 = vadd.f32 0.0, %v7050
        %v7052 = vpop.f32.mrb[0].mxu0
        %v7053 = vpop.f32.mrb[0].mxu0
        %v7054 = vadd.f32 0.0, %v7053
        %v7055 = vpop.f32.mrb[0].mxu0
        %7056 = vmatprep.mubr.bf16.mxu0 0
        %7057 = vmatmul.mubr.bf16.gmra.mrb[0].mxu0 %v6854
        %v7058 = vpop.f32.mrb[0].mxu0
        %v7059 = vadd.f32 0.0, %v7058
        %v7060 = vpop.f32.mrb[0].mxu0
        %v7061 = vpop.f32.mrb[0].mxu0
        %v7062 = vadd.f32 0.0, %v7061
        %v7063 = vpop.f32.mrb[0].mxu0
        %7064 = vdwg.mxu0
        %v7065 = vadd.f32 %v6779, %v6939
        %v7066 = vadd.f32 %v6780, %v6942
        %v7067 = vadd.f32 %v6781, %v6947
        %v7068 = vadd.f32 %v6782, %v6950
        %v7069 = vadd.f32 %v6783, %v6955
        %v7070 = vadd.f32 %v6784, %v6958
        %v7071 = vadd.f32 %v6785, %v6963
        %v7072 = vadd.f32 %v6786, %v6966
        %v7073 = vadd.f32 %v6787, %v6971
        %v7074 = vadd.f32 %v6788, %v6974
        %v7075 = vadd.f32 %v6789, %v6979
        %v7076 = vadd.f32 %v6790, %v6982
        %v7077 = vadd.f32 %v6791, %v6987
        %v7078 = vadd.f32 %v6792, %v6990
        %v7079 = vadd.f32 %v6793, %v6995
        %v7080 = vadd.f32 %v6794, %v6998
        %v7081 = vadd.f32 %v6795, %v7003
        %v7082 = vadd.f32 %v6796, %v7006
        %v7083 = vadd.f32 %v6797, %v7011
        %v7084 = vadd.f32 %v6798, %v7014
        %v7085 = vadd.f32 %v6799, %v7019
        %v7086 = vadd.f32 %v6800, %v7022
        %v7087 = vadd.f32 %v6801, %v7027
        %v7088 = vadd.f32 %v6802, %v7030
        %v7089 = vadd.f32 %v6803, %v7035
        %v7090 = vadd.f32 %v6804, %v7038
        %v7091 = vadd.f32 %v6805, %v7043
        %v7092 = vadd.f32 %v6806, %v7046
        %v7093 = vadd.f32 %v6807, %v7051
        %v7094 = vadd.f32 %v6808, %v7054
        %v7095 = vadd.f32 %v6809, %v7059
        %v7096 = vadd.f32 %v6810, %v7062
        %v7098 = vshrl.u32 %v6102, 16
        %v7100 = vrot.slane %v7098, 4
        %v7101 = vshll.u32 %v6102, 16
        %v7103 = vrot.slane %v7101, 5
        %v7104 = vor.u32 %v7100, %v7103
        %v7105 = vrot.slane %v7104, 4
        %v7107 = vshll.u32 %v6103, 16
        %v7109 = vrot.slane %v7107, 5
        %v7110 = vsel %vm2272, %v7105, %v7109
        %v7111 = vshrl.u32 %v6103, 16
        %v7113 = vrot.slane %v7111, 4
        %v7114 = vor.u32 %v7113, %v7109
        %v7115 = vrot.slane %v7114, 4
        %v7117 = vshll.u32 %v6104, 16
        %v7119 = vrot.slane %v7117, 5
        %v7120 = vsel %vm2272, %v7115, %v7119
        %s7121 = scalar_lea.vmem %s5, 448
        %v7122 = vld [vmem:[%s7121] sm:$0xf]
        %v7123 = vld [vmem:[%s7121 + $0x4] sm:$0xf]
        %v7124 = vld [vmem:[%s7121 + $0x8] sm:$0xf]
        %v7125 = vld [vmem:[%s7121 + $0xc] sm:$0xf]
        %v7126 = vld [vmem:[%s7121 + $0x10] sm:$0xf]
        %v7127 = vld [vmem:[%s7121 + $0x14] sm:$0xf]
        %v7128 = vld [vmem:[%s7121 + $0x18] sm:$0xf]
        %v7129 = vld [vmem:[%s7121 + $0x1c] sm:$0xf]
        %v7130 = vld [vmem:[%s7121 + $0x20] sm:$0xf]
        %v7131 = vld [vmem:[%s7121 + $0x24] sm:$0xf]
        %v7132 = vld [vmem:[%s7121 + $0x28] sm:$0xf]
        %v7133 = vld [vmem:[%s7121 + $0x2c] sm:$0xf]
        %v7134 = vld [vmem:[%s7121 + $0x30] sm:$0xf]
        %v7135 = vld [vmem:[%s7121 + $0x34] sm:$0xf]
        %v7136 = vld [vmem:[%s7121 + $0x38] sm:$0xf]
        %v7137 = vld [vmem:[%s7121 + $0x3c] sm:$0xf]
        %v7138 = vunpack.c.l.b16 %v7110
        %v7139 = vunpack.c.l.b16 %v7120
        %v7140 = vpack.c.b16 %v7139, %v7138
        %v7158 = vunpack.c.l.b16 %v7122
        %v7159 = vunpack.c.l.b16 %v7123
        %v7160 = vunpack.c.l.b16 %v7124
        %v7161 = vunpack.c.l.b16 %v7125
        %v7162 = vunpack.c.l.b16 %v7126
        %v7163 = vunpack.c.l.b16 %v7127
        %v7164 = vunpack.c.l.b16 %v7128
        %v7165 = vunpack.c.l.b16 %v7129
        %v7166 = vunpack.c.l.b16 %v7130
        %v7167 = vunpack.c.l.b16 %v7131
        %v7168 = vunpack.c.l.b16 %v7132
        %v7169 = vunpack.c.l.b16 %v7133
        %v7170 = vunpack.c.l.b16 %v7134
        %v7171 = vunpack.c.l.b16 %v7135
        %v7172 = vunpack.c.l.b16 %v7136
        %v7173 = vunpack.c.l.b16 %v7137
        %v7174 = vpack.c.b16 %v7159, %v7158
        %v7175 = vpack.c.b16 %v7161, %v7160
        %v7176 = vpack.c.b16 %v7163, %v7162
        %v7177 = vpack.c.b16 %v7165, %v7164
        %v7178 = vpack.c.b16 %v7167, %v7166
        %v7179 = vpack.c.b16 %v7169, %v7168
        %v7180 = vpack.c.b16 %v7171, %v7170
        %v7181 = vpack.c.b16 %v7173, %v7172
        %7190 = vmatprep.subr.bf16.mxu0 0
        %7191 = vmatpush1.bf16.msra.mxu0 %v7174
        %7192 = vmatprep.subr.bf16.mxu0 0
        %7193 = vmatpush1.bf16.msra.mxu0 %v7175
        %7194 = vmatprep.subr.bf16.mxu0 0
        %7195 = vmatpush1.bf16.msra.mxu0 %v7176
        %7196 = vmatprep.subr.bf16.mxu0 0
        %7197 = vmatpush1.bf16.msra.mxu0 %v7177
        %7198 = vmatprep.subr.bf16.mxu0 0
        %7199 = vmatpush1.bf16.msra.mxu0 %v7178
        %7200 = vmatprep.subr.bf16.mxu0 0
        %7201 = vmatpush1.bf16.msra.mxu0 %v7179
        %7202 = vmatprep.subr.bf16.mxu0 0
        %7203 = vmatpush1.bf16.msra.mxu0 %v7180
        %7204 = vmatprep.subr.bf16.mxu0 0
        %7205 = vmatpush1.bf16.msra.mxu0 %v7181
        %7206 = vmatprep.subr.bf16.mxu0 0
        %7207 = vmatpush1.bf16.msra.mxu0 0
        %7208 = vmatprep.subr.bf16.mxu0 0
        %7209 = vmatpush1.bf16.msra.mxu0 0
        %7210 = vmatprep.subr.bf16.mxu0 0
        %7211 = vmatpush1.bf16.msra.mxu0 0
        %7212 = vmatprep.subr.bf16.mxu0 0
        %7213 = vmatpush1.bf16.msra.mxu0 0
        %7214 = vmatprep.subr.bf16.mxu0 0
        %7215 = vmatpush1.bf16.msra.mxu0 0
        %7216 = vmatprep.subr.bf16.mxu0 0
        %7217 = vmatpush1.bf16.msra.mxu0 0
        %7218 = vmatprep.subr.bf16.mxu0 0
        %7219 = vmatpush1.bf16.msra.mxu0 0
        %7220 = vmatprep.subr.bf16.mxu0 0
        %7221 = vmatpush1.bf16.msra.mxu0 0
        %7222 = vmatprep.mubr.bf16.mxu0 0
        %7223 = vmatmul.mubr.bf16.gmra.mrb[0].mxu0 %v6540
        %v7224 = vpop.f32.mrb[0].mxu0
        %v7225 = vadd.f32 0.0, %v7224
        %v7226 = vpop.f32.mrb[0].mxu0
        %v7227 = vpop.f32.mrb[0].mxu0
        %v7228 = vadd.f32 0.0, %v7227
        %v7229 = vpop.f32.mrb[0].mxu0
        %7230 = vmatprep.mubr.bf16.mxu0 0
        %7231 = vmatmul.mubr.bf16.gmra.mrb[0].mxu0 %v6541
        %v7232 = vpop.f32.mrb[0].mxu0
        %v7233 = vadd.f32 0.0, %v7232
        %v7234 = vpop.f32.mrb[0].mxu0
        %v7235 = vpop.f32.mrb[0].mxu0
        %v7236 = vadd.f32 0.0, %v7235
        %v7237 = vpop.f32.mrb[0].mxu0
        %7238 = vmatprep.mubr.bf16.mxu0 0
        %7239 = vmatmul.mubr.bf16.gmra.mrb[0].mxu0 %v6542
        %v7240 = vpop.f32.mrb[0].mxu0
        %v7241 = vadd.f32 0.0, %v7240
        %v7242 = vpop.f32.mrb[0].mxu0
        %v7243 = vpop.f32.mrb[0].mxu0
        %v7244 = vadd.f32 0.0, %v7243
        %v7245 = vpop.f32.mrb[0].mxu0
        %7246 = vmatprep.mubr.bf16.mxu0 0
        %7247 = vmatmul.mubr.bf16.gmra.mrb[0].mxu0 %v6543
        %v7248 = vpop.f32.mrb[0].mxu0
        %v7249 = vadd.f32 0.0, %v7248
        %v7250 = vpop.f32.mrb[0].mxu0
        %v7251 = vpop.f32.mrb[0].mxu0
        %v7252 = vadd.f32 0.0, %v7251
        %v7253 = vpop.f32.mrb[0].mxu0
        %7254 = vmatprep.mubr.bf16.mxu0 0
        %7255 = vmatmul.mubr.bf16.gmra.mrb[0].mxu0 %v6544
        %v7256 = vpop.f32.mrb[0].mxu0
        %v7257 = vadd.f32 0.0, %v7256
        %v7258 = vpop.f32.mrb[0].mxu0
        %v7259 = vpop.f32.mrb[0].mxu0
        %v7260 = vadd.f32 0.0, %v7259
        %v7261 = vpop.f32.mrb[0].mxu0
        %7262 = vmatprep.mubr.bf16.mxu0 0
        %7263 = vmatmul.mubr.bf16.gmra.mrb[0].mxu0 %v6545
        %v7264 = vpop.f32.mrb[0].mxu0
        %v7265 = vadd.f32 0.0, %v7264
        %v7266 = vpop.f32.mrb[0].mxu0
        %v7267 = vpop.f32.mrb[0].mxu0
        %v7268 = vadd.f32 0.0, %v7267
        %v7269 = vpop.f32.mrb[0].mxu0
        %7270 = vmatprep.mubr.bf16.mxu0 0
        %7271 = vmatmul.mubr.bf16.gmra.mrb[0].mxu0 %v6546
        %v7272 = vpop.f32.mrb[0].mxu0
        %v7273 = vadd.f32 0.0, %v7272
        %v7274 = vpop.f32.mrb[0].mxu0
        %v7275 = vpop.f32.mrb[0].mxu0
        %v7276 = vadd.f32 0.0, %v7275
        %v7277 = vpop.f32.mrb[0].mxu0
        %7278 = vmatprep.mubr.bf16.mxu0 0
        %7279 = vmatmul.mubr.bf16.gmra.mrb[0].mxu0 %v6547
        %v7280 = vpop.f32.mrb[0].mxu0
        %v7281 = vadd.f32 0.0, %v7280
        %v7282 = vpop.f32.mrb[0].mxu0
        %v7283 = vpop.f32.mrb[0].mxu0
        %v7284 = vadd.f32 0.0, %v7283
        %v7285 = vpop.f32.mrb[0].mxu0
        %7286 = vmatprep.mubr.bf16.mxu0 0
        %7287 = vmatmul.mubr.bf16.gmra.mrb[0].mxu0 %v6548
        %v7288 = vpop.f32.mrb[0].mxu0
        %v7289 = vadd.f32 0.0, %v7288
        %v7290 = vpop.f32.mrb[0].mxu0
        %v7291 = vpop.f32.mrb[0].mxu0
        %v7292 = vadd.f32 0.0, %v7291
        %v7293 = vpop.f32.mrb[0].mxu0
        %7294 = vmatprep.mubr.bf16.mxu0 0
        %7295 = vmatmul.mubr.bf16.gmra.mrb[0].mxu0 %v6549
        %v7296 = vpop.f32.mrb[0].mxu0
        %v7297 = vadd.f32 0.0, %v7296
        %v7298 = vpop.f32.mrb[0].mxu0
        %v7299 = vpop.f32.mrb[0].mxu0
        %v7300 = vadd.f32 0.0, %v7299
        %v7301 = vpop.f32.mrb[0].mxu0
        %7302 = vmatprep.mubr.bf16.mxu0 0
        %7303 = vmatmul.mubr.bf16.gmra.mrb[0].mxu0 %v6550
        %v7304 = vpop.f32.mrb[0].mxu0
        %v7305 = vadd.f32 0.0, %v7304
        %v7306 = vpop.f32.mrb[0].mxu0
        %v7307 = vpop.f32.mrb[0].mxu0
        %v7308 = vadd.f32 0.0, %v7307
        %v7309 = vpop.f32.mrb[0].mxu0
        %7310 = vmatprep.mubr.bf16.mxu0 0
        %7311 = vmatmul.mubr.bf16.gmra.mrb[0].mxu0 %v6551
        %v7312 = vpop.f32.mrb[0].mxu0
        %v7313 = vadd.f32 0.0, %v7312
        %v7314 = vpop.f32.mrb[0].mxu0
        %v7315 = vpop.f32.mrb[0].mxu0
        %v7316 = vadd.f32 0.0, %v7315
        %v7317 = vpop.f32.mrb[0].mxu0
        %7318 = vmatprep.mubr.bf16.mxu0 0
        %7319 = vmatmul.mubr.bf16.gmra.mrb[0].mxu0 %v6552
        %v7320 = vpop.f32.mrb[0].mxu0
        %v7321 = vadd.f32 0.0, %v7320
        %v7322 = vpop.f32.mrb[0].mxu0
        %v7323 = vpop.f32.mrb[0].mxu0
        %v7324 = vadd.f32 0.0, %v7323
        %v7325 = vpop.f32.mrb[0].mxu0
        %7326 = vmatprep.mubr.bf16.mxu0 0
        %7327 = vmatmul.mubr.bf16.gmra.mrb[0].mxu0 %v6553
        %v7328 = vpop.f32.mrb[0].mxu0
        %v7329 = vadd.f32 0.0, %v7328
        %v7330 = vpop.f32.mrb[0].mxu0
        %v7331 = vpop.f32.mrb[0].mxu0
        %v7332 = vadd.f32 0.0, %v7331
        %v7333 = vpop.f32.mrb[0].mxu0
        %7334 = vmatprep.mubr.bf16.mxu0 0
        %7335 = vmatmul.mubr.bf16.gmra.mrb[0].mxu0 %v6854
        %v7336 = vpop.f32.mrb[0].mxu0
        %v7337 = vadd.f32 0.0, %v7336
        %v7338 = vpop.f32.mrb[0].mxu0
        %v7339 = vpop.f32.mrb[0].mxu0
        %v7340 = vadd.f32 0.0, %v7339
        %v7341 = vpop.f32.mrb[0].mxu0
        %7342 = vmatprep.mubr.bf16.mxu0 0
        %7343 = vmatmul.mubr.bf16.gmra.mrb[0].mxu0 %v7140
        %v7344 = vpop.f32.mrb[0].mxu0
        %v7345 = vadd.f32 0.0, %v7344
        %v7346 = vpop.f32.mrb[0].mxu0
        %v7347 = vpop.f32.mrb[0].mxu0
        %v7348 = vadd.f32 0.0, %v7347
        %v7349 = vpop.f32.mrb[0].mxu0
        %7350 = vdwg.mxu0
        %v7351 = vadd.f32 %v7065, %v7225
        %v7352 = vadd.f32 %v7066, %v7228
        %v7353 = vadd.f32 %v7067, %v7233
        %v7354 = vadd.f32 %v7068, %v7236
        %v7355 = vadd.f32 %v7069, %v7241
        %v7356 = vadd.f32 %v7070, %v7244
        %v7357 = vadd.f32 %v7071, %v7249
        %v7358 = vadd.f32 %v7072, %v7252
        %v7359 = vadd.f32 %v7073, %v7257
        %v7360 = vadd.f32 %v7074, %v7260
        %v7361 = vadd.f32 %v7075, %v7265
        %v7362 = vadd.f32 %v7076, %v7268
        %v7363 = vadd.f32 %v7077, %v7273
        %v7364 = vadd.f32 %v7078, %v7276
        %v7365 = vadd.f32 %v7079, %v7281
        %v7366 = vadd.f32 %v7080, %v7284
        %v7367 = vadd.f32 %v7081, %v7289
        %v7368 = vadd.f32 %v7082, %v7292
        %v7369 = vadd.f32 %v7083, %v7297
        %v7370 = vadd.f32 %v7084, %v7300
        %v7371 = vadd.f32 %v7085, %v7305
        %v7372 = vadd.f32 %v7086, %v7308
        %v7373 = vadd.f32 %v7087, %v7313
        %v7374 = vadd.f32 %v7088, %v7316
        %v7375 = vadd.f32 %v7089, %v7321
        %v7376 = vadd.f32 %v7090, %v7324
        %v7377 = vadd.f32 %v7091, %v7329
        %v7378 = vadd.f32 %v7092, %v7332
        %v7379 = vadd.f32 %v7093, %v7337
        %v7380 = vadd.f32 %v7094, %v7340
        %v7381 = vadd.f32 %v7095, %v7345
        %v7382 = vadd.f32 %v7096, %v7348
        %v7383 = vld [vmem:[#allocation3] sm:$0xe]
        %v7384 = vld [vmem:[#allocation3 + $0xc] sm:$0xe]
        %v7385 = vld [vmem:[#allocation3 + $0x18] sm:$0xe]
        %v7386 = vld [vmem:[#allocation3 + $0x24] sm:$0xe]
        %v7387 = vld [vmem:[#allocation3 + $0x30] sm:$0xe]
        %v7388 = vld [vmem:[#allocation3 + $0x3c] sm:$0xe]
        %v7389 = vld [vmem:[#allocation3 + $0x48] sm:$0xe]
        %v7390 = vld [vmem:[#allocation3 + $0x54] sm:$0xe]
        %v7391 = vld [vmem:[#allocation3 + $0x60] sm:$0xe]
        %v7392 = vld [vmem:[#allocation3 + $0x6c] sm:$0xe]
        %v7393 = vld [vmem:[#allocation3 + $0x78] sm:$0xe]
        %v7394 = vld [vmem:[#allocation3 + $0x84] sm:$0xe]
        %v7395 = vld [vmem:[#allocation3 + $0x90] sm:$0xe]
        %v7396 = vld [vmem:[#allocation3 + $0x9c] sm:$0xe]
        %v7397 = vld [vmem:[#allocation3 + $0xa8] sm:$0xe]
        %v7398 = vld [vmem:[#allocation3 + $0xb4] sm:$0xe]
        %v7399 = vld [vmem:[#allocation3 + $0xc0] sm:$0xe]
        %v7400 = vld [vmem:[#allocation3 + $0xcc] sm:$0xe]
        %v7449 = vrot.slane %v7383, 5
        %v7450 = vrot.slane %v7449, 4
        %v7451 = vrot.slane %v6052, 5
        %v7452 = vsel %vm3619, %v7450, %v7451
        %v7453 = vrot.slane %v7451, 4
        %v7454 = vrot.slane %v6053, 5
        %v7455 = vsel %vm3619, %v7453, %v7454
        %v7456 = vrot.slane %v7384, 5
        %v7457 = vrot.slane %v7456, 4
        %v7458 = vrot.slane %v6055, 5
        %v7459 = vsel %vm3619, %v7457, %v7458
        %v7460 = vrot.slane %v7458, 4
        %v7461 = vrot.slane %v6056, 5
        %v7462 = vsel %vm3619, %v7460, %v7461
        %v7463 = vrot.slane %v7385, 5
        %v7464 = vrot.slane %v7463, 4
        %v7465 = vrot.slane %v6058, 5
        %v7466 = vsel %vm3619, %v7464, %v7465
        %v7467 = vrot.slane %v7465, 4
        %v7468 = vrot.slane %v6059, 5
        %v7469 = vsel %vm3619, %v7467, %v7468
        %v7470 = vrot.slane %v7386, 5
        %v7471 = vrot.slane %v7470, 4
        %v7472 = vrot.slane %v6061, 5
        %v7473 = vsel %vm3619, %v7471, %v7472
        %v7474 = vrot.slane %v7472, 4
        %v7475 = vrot.slane %v6062, 5
        %v7476 = vsel %vm3619, %v7474, %v7475
        %v7477 = vrot.slane %v7387, 5
        %v7478 = vrot.slane %v7477, 4
        %v7479 = vrot.slane %v6064, 5
        %v7480 = vsel %vm3619, %v7478, %v7479
        %v7481 = vrot.slane %v7479, 4
        %v7482 = vrot.slane %v6065, 5
        %v7483 = vsel %vm3619, %v7481, %v7482
        %v7484 = vrot.slane %v7388, 5
        %v7485 = vrot.slane %v7484, 4
        %v7486 = vrot.slane %v6067, 5
        %v7487 = vsel %vm3619, %v7485, %v7486
        %v7488 = vrot.slane %v7486, 4
        %v7489 = vrot.slane %v6068, 5
        %v7490 = vsel %vm3619, %v7488, %v7489
        %v7491 = vrot.slane %v7389, 5
        %v7492 = vrot.slane %v7491, 4
        %v7493 = vrot.slane %v6070, 5
        %v7494 = vsel %vm3619, %v7492, %v7493
        %v7495 = vrot.slane %v7493, 4
        %v7496 = vrot.slane %v6071, 5
        %v7497 = vsel %vm3619, %v7495, %v7496
        %v7498 = vrot.slane %v7390, 5
        %v7499 = vrot.slane %v7498, 4
        %v7500 = vrot.slane %v6073, 5
        %v7501 = vsel %vm3619, %v7499, %v7500
        %v7502 = vrot.slane %v7500, 4
        %v7503 = vrot.slane %v6074, 5
        %v7504 = vsel %vm3619, %v7502, %v7503
        %v7505 = vrot.slane %v7391, 5
        %v7506 = vrot.slane %v7505, 4
        %v7507 = vrot.slane %v6076, 5
        %v7508 = vsel %vm3619, %v7506, %v7507
        %v7509 = vrot.slane %v7507, 4
        %v7510 = vrot.slane %v6077, 5
        %v7511 = vsel %vm3619, %v7509, %v7510
        %v7512 = vrot.slane %v7392, 5
        %v7513 = vrot.slane %v7512, 4
        %v7514 = vrot.slane %v6079, 5
        %v7515 = vsel %vm3619, %v7513, %v7514
        %v7516 = vrot.slane %v7514, 4
        %v7517 = vrot.slane %v6080, 5
        %v7518 = vsel %vm3619, %v7516, %v7517
        %v7519 = vrot.slane %v7393, 5
        %v7520 = vrot.slane %v7519, 4
        %v7521 = vrot.slane %v6082, 5
        %v7522 = vsel %vm3619, %v7520, %v7521
        %v7523 = vrot.slane %v7521, 4
        %v7524 = vrot.slane %v6083, 5
        %v7525 = vsel %vm3619, %v7523, %v7524
        %v7526 = vrot.slane %v7394, 5
        %v7527 = vrot.slane %v7526, 4
        %v7528 = vrot.slane %v6085, 5
        %v7529 = vsel %vm3619, %v7527, %v7528
        %v7530 = vrot.slane %v7528, 4
        %v7531 = vrot.slane %v6086, 5
        %v7532 = vsel %vm3619, %v7530, %v7531
        %v7533 = vrot.slane %v7395, 5
        %v7534 = vrot.slane %v7533, 4
        %v7535 = vrot.slane %v6088, 5
        %v7536 = vsel %vm3619, %v7534, %v7535
        %v7537 = vrot.slane %v7535, 4
        %v7538 = vrot.slane %v6089, 5
        %v7539 = vsel %vm3619, %v7537, %v7538
        %v7540 = vrot.slane %v7396, 5
        %v7541 = vrot.slane %v7540, 4
        %v7542 = vrot.slane %v6091, 5
        %v7543 = vsel %vm3619, %v7541, %v7542
        %v7544 = vrot.slane %v7542, 4
        %v7545 = vrot.slane %v6092, 5
        %v7546 = vsel %vm3619, %v7544, %v7545
        %v7547 = vrot.slane %v7397, 5
        %v7548 = vrot.slane %v7547, 4
        %v7549 = vrot.slane %v6094, 5
        %v7550 = vsel %vm3619, %v7548, %v7549
        %v7551 = vrot.slane %v7549, 4
        %v7552 = vrot.slane %v6095, 5
        %v7553 = vsel %vm3619, %v7551, %v7552
        %v7554 = vrot.slane %v7398, 5
        %v7555 = vrot.slane %v7554, 4
        %v7556 = vrot.slane %v6097, 5
        %v7557 = vsel %vm3619, %v7555, %v7556
        %v7558 = vrot.slane %v7556, 4
        %v7559 = vrot.slane %v6098, 5
        %v7560 = vsel %vm3619, %v7558, %v7559
        %s7561 = scalar_lea.vmem %s5, 128
        %v7562 = vld [vmem:[%s7561] sm:$0xf]
        %v7563 = vld [vmem:[%s7561 + $0x4] sm:$0xf]
        %v7564 = vld [vmem:[%s7561 + $0x8] sm:$0xf]
        %v7565 = vld [vmem:[%s7561 + $0xc] sm:$0xf]
        %v7566 = vld [vmem:[%s7561 + $0x10] sm:$0xf]
        %v7567 = vld [vmem:[%s7561 + $0x14] sm:$0xf]
        %v7568 = vld [vmem:[%s7561 + $0x18] sm:$0xf]
        %v7569 = vld [vmem:[%s7561 + $0x1c] sm:$0xf]
        %v7570 = vld [vmem:[%s7561 + $0x20] sm:$0xf]
        %v7571 = vld [vmem:[%s7561 + $0x24] sm:$0xf]
        %v7572 = vld [vmem:[%s7561 + $0x28] sm:$0xf]
        %v7573 = vld [vmem:[%s7561 + $0x2c] sm:$0xf]
        %v7574 = vld [vmem:[%s7561 + $0x30] sm:$0xf]
        %v7575 = vld [vmem:[%s7561 + $0x34] sm:$0xf]
        %v7576 = vld [vmem:[%s7561 + $0x38] sm:$0xf]
        %v7577 = vld [vmem:[%s7561 + $0x3c] sm:$0xf]
        %v7578 = vunpack.c.l.b16 %v7452
        %v7579 = vunpack.c.l.b16 %v7455
        %v7580 = vunpack.c.l.b16 %v7459
        %v7581 = vunpack.c.l.b16 %v7462
        %v7582 = vunpack.c.l.b16 %v7466
        %v7583 = vunpack.c.l.b16 %v7469
        %v7584 = vunpack.c.l.b16 %v7473
        %v7585 = vunpack.c.l.b16 %v7476
        %v7586 = vunpack.c.l.b16 %v7480
        %v7587 = vunpack.c.l.b16 %v7483
        %v7588 = vunpack.c.l.b16 %v7487
        %v7589 = vunpack.c.l.b16 %v7490
        %v7590 = vunpack.c.l.b16 %v7494
        %v7591 = vunpack.c.l.b16 %v7497
        %v7592 = vunpack.c.l.b16 %v7501
        %v7593 = vunpack.c.l.b16 %v7504
        %v7594 = vunpack.c.l.b16 %v7508
        %v7595 = vunpack.c.l.b16 %v7511
        %v7596 = vunpack.c.l.b16 %v7515
        %v7597 = vunpack.c.l.b16 %v7518
        %v7598 = vunpack.c.l.b16 %v7522
        %v7599 = vunpack.c.l.b16 %v7525
        %v7600 = vunpack.c.l.b16 %v7529
        %v7601 = vunpack.c.l.b16 %v7532
        %v7602 = vunpack.c.l.b16 %v7536
        %v7603 = vunpack.c.l.b16 %v7539
        %v7604 = vunpack.c.l.b16 %v7543
        %v7605 = vunpack.c.l.b16 %v7546
        %v7606 = vunpack.c.l.b16 %v7550
        %v7607 = vunpack.c.l.b16 %v7553
        %v7608 = vunpack.c.l.b16 %v7557
        %v7609 = vunpack.c.l.b16 %v7560
        %v7610 = vpack.c.b16 %v7579, %v7578
        %v7611 = vpack.c.b16 %v7581, %v7580
        %v7612 = vpack.c.b16 %v7583, %v7582
        %v7613 = vpack.c.b16 %v7585, %v7584
        %v7614 = vpack.c.b16 %v7587, %v7586
        %v7615 = vpack.c.b16 %v7589, %v7588
        %v7616 = vpack.c.b16 %v7591, %v7590
        %v7617 = vpack.c.b16 %v7593, %v7592
        %v7618 = vpack.c.b16 %v7595, %v7594
        %v7619 = vpack.c.b16 %v7597, %v7596
        %v7620 = vpack.c.b16 %v7599, %v7598
        %v7621 = vpack.c.b16 %v7601, %v7600
        %v7622 = vpack.c.b16 %v7603, %v7602
        %v7623 = vpack.c.b16 %v7605, %v7604
        %v7624 = vpack.c.b16 %v7607, %v7606
        %v7625 = vpack.c.b16 %v7609, %v7608
        %v7658 = vunpack.c.l.b16 %v7562
        %v7659 = vunpack.c.l.b16 %v7563
        %v7660 = vunpack.c.l.b16 %v7564
        %v7661 = vunpack.c.l.b16 %v7565
        %v7662 = vunpack.c.l.b16 %v7566
        %v7663 = vunpack.c.l.b16 %v7567
        %v7664 = vunpack.c.l.b16 %v7568
        %v7665 = vunpack.c.l.b16 %v7569
        %v7666 = vunpack.c.l.b16 %v7570
        %v7667 = vunpack.c.l.b16 %v7571
        %v7668 = vunpack.c.l.b16 %v7572
        %v7669 = vunpack.c.l.b16 %v7573
        %v7670 = vunpack.c.l.b16 %v7574
        %v7671 = vunpack.c.l.b16 %v7575
        %v7672 = vunpack.c.l.b16 %v7576
        %v7673 = vunpack.c.l.b16 %v7577
        %v7674 = vpack.c.b16 %v7659, %v7658
        %v7675 = vpack.c.b16 %v7661, %v7660
        %v7676 = vpack.c.b16 %v7663, %v7662
        %v7677 = vpack.c.b16 %v7665, %v7664
        %v7678 = vpack.c.b16 %v7667, %v7666
        %v7679 = vpack.c.b16 %v7669, %v7668
        %v7680 = vpack.c.b16 %v7671, %v7670
        %v7681 = vpack.c.b16 %v7673, %v7672
        %7690 = vmatprep.subr.bf16.mxu0 0
        %7691 = vmatpush1.bf16.msra.mxu0 %v7674
        %7692 = vmatprep.subr.bf16.mxu0 0
        %7693 = vmatpush1.bf16.msra.mxu0 %v7675
        %7694 = vmatprep.subr.bf16.mxu0 0
        %7695 = vmatpush1.bf16.msra.mxu0 %v7676
        %7696 = vmatprep.subr.bf16.mxu0 0
        %7697 = vmatpush1.bf16.msra.mxu0 %v7677
        %7698 = vmatprep.subr.bf16.mxu0 0
        %7699 = vmatpush1.bf16.msra.mxu0 %v7678
        %7700 = vmatprep.subr.bf16.mxu0 0
        %7701 = vmatpush1.bf16.msra.mxu0 %v7679
        %7702 = vmatprep.subr.bf16.mxu0 0
        %7703 = vmatpush1.bf16.msra.mxu0 %v7680
        %7704 = vmatprep.subr.bf16.mxu0 0
        %7705 = vmatpush1.bf16.msra.mxu0 %v7681
        %7706 = vmatprep.subr.bf16.mxu0 0
        %7707 = vmatpush1.bf16.msra.mxu0 0
        %7708 = vmatprep.subr.bf16.mxu0 0
        %7709 = vmatpush1.bf16.msra.mxu0 0
        %7710 = vmatprep.subr.bf16.mxu0 0
        %7711 = vmatpush1.bf16.msra.mxu0 0
        %7712 = vmatprep.subr.bf16.mxu0 0
        %7713 = vmatpush1.bf16.msra.mxu0 0
        %7714 = vmatprep.subr.bf16.mxu0 0
        %7715 = vmatpush1.bf16.msra.mxu0 0
        %7716 = vmatprep.subr.bf16.mxu0 0
        %7717 = vmatpush1.bf16.msra.mxu0 0
        %7718 = vmatprep.subr.bf16.mxu0 0
        %7719 = vmatpush1.bf16.msra.mxu0 0
        %7720 = vmatprep.subr.bf16.mxu0 0
        %7721 = vmatpush1.bf16.msra.mxu0 0
        %7722 = vmatprep.mubr.bf16.mxu0 0
        %7723 = vmatmul.mubr.bf16.gmra.mrb[0].mxu0 %v7610
        %v7724 = vpop.f32.mrb[0].mxu0
        %v7725 = vadd.f32 0.0, %v7724
        %v7726 = vpop.f32.mrb[0].mxu0
        %v7727 = vpop.f32.mrb[0].mxu0
        %v7728 = vadd.f32 0.0, %v7727
        %v7729 = vpop.f32.mrb[0].mxu0
        %7730 = vmatprep.mubr.bf16.mxu0 0
        %7731 = vmatmul.mubr.bf16.gmra.mrb[0].mxu0 %v7611
        %v7732 = vpop.f32.mrb[0].mxu0
        %v7733 = vadd.f32 0.0, %v7732
        %v7734 = vpop.f32.mrb[0].mxu0
        %v7735 = vpop.f32.mrb[0].mxu0
        %v7736 = vadd.f32 0.0, %v7735
        %v7737 = vpop.f32.mrb[0].mxu0
        %7738 = vmatprep.mubr.bf16.mxu0 0
        %7739 = vmatmul.mubr.bf16.gmra.mrb[0].mxu0 %v7612
        %v7740 = vpop.f32.mrb[0].mxu0
        %v7741 = vadd.f32 0.0, %v7740
        %v7742 = vpop.f32.mrb[0].mxu0
        %v7743 = vpop.f32.mrb[0].mxu0
        %v7744 = vadd.f32 0.0, %v7743
        %v7745 = vpop.f32.mrb[0].mxu0
        %7746 = vmatprep.mubr.bf16.mxu0 0
        %7747 = vmatmul.mubr.bf16.gmra.mrb[0].mxu0 %v7613
        %v7748 = vpop.f32.mrb[0].mxu0
        %v7749 = vadd.f32 0.0, %v7748
        %v7750 = vpop.f32.mrb[0].mxu0
        %v7751 = vpop.f32.mrb[0].mxu0
        %v7752 = vadd.f32 0.0, %v7751
        %v7753 = vpop.f32.mrb[0].mxu0
        %7754 = vmatprep.mubr.bf16.mxu0 0
        %7755 = vmatmul.mubr.bf16.gmra.mrb[0].mxu0 %v7614
        %v7756 = vpop.f32.mrb[0].mxu0
        %v7757 = vadd.f32 0.0, %v7756
        %v7758 = vpop.f32.mrb[0].mxu0
        %v7759 = vpop.f32.mrb[0].mxu0
        %v7760 = vadd.f32 0.0, %v7759
        %v7761 = vpop.f32.mrb[0].mxu0
        %7762 = vmatprep.mubr.bf16.mxu0 0
        %7763 = vmatmul.mubr.bf16.gmra.mrb[0].mxu0 %v7615
        %v7764 = vpop.f32.mrb[0].mxu0
        %v7765 = vadd.f32 0.0, %v7764
        %v7766 = vpop.f32.mrb[0].mxu0
        %v7767 = vpop.f32.mrb[0].mxu0
        %v7768 = vadd.f32 0.0, %v7767
        %v7769 = vpop.f32.mrb[0].mxu0
        %7770 = vmatprep.mubr.bf16.mxu0 0
        %7771 = vmatmul.mubr.bf16.gmra.mrb[0].mxu0 %v7616
        %v7772 = vpop.f32.mrb[0].mxu0
        %v7773 = vadd.f32 0.0, %v7772
        %v7774 = vpop.f32.mrb[0].mxu0
        %v7775 = vpop.f32.mrb[0].mxu0
        %v7776 = vadd.f32 0.0, %v7775
        %v7777 = vpop.f32.mrb[0].mxu0
        %7778 = vmatprep.mubr.bf16.mxu0 0
        %7779 = vmatmul.mubr.bf16.gmra.mrb[0].mxu0 %v7617
        %v7780 = vpop.f32.mrb[0].mxu0
        %v7781 = vadd.f32 0.0, %v7780
        %v7782 = vpop.f32.mrb[0].mxu0
        %v7783 = vpop.f32.mrb[0].mxu0
        %v7784 = vadd.f32 0.0, %v7783
        %v7785 = vpop.f32.mrb[0].mxu0
        %7786 = vmatprep.mubr.bf16.mxu0 0
        %7787 = vmatmul.mubr.bf16.gmra.mrb[0].mxu0 %v7618
        %v7788 = vpop.f32.mrb[0].mxu0
        %v7789 = vadd.f32 0.0, %v7788
        %v7790 = vpop.f32.mrb[0].mxu0
        %v7791 = vpop.f32.mrb[0].mxu0
        %v7792 = vadd.f32 0.0, %v7791
        %v7793 = vpop.f32.mrb[0].mxu0
        %7794 = vmatprep.mubr.bf16.mxu0 0
        %7795 = vmatmul.mubr.bf16.gmra.mrb[0].mxu0 %v7619
        %v7796 = vpop.f32.mrb[0].mxu0
        %v7797 = vadd.f32 0.0, %v7796
        %v7798 = vpop.f32.mrb[0].mxu0
        %v7799 = vpop.f32.mrb[0].mxu0
        %v7800 = vadd.f32 0.0, %v7799
        %v7801 = vpop.f32.mrb[0].mxu0
        %7802 = vmatprep.mubr.bf16.mxu0 0
        %7803 = vmatmul.mubr.bf16.gmra.mrb[0].mxu0 %v7620
        %v7804 = vpop.f32.mrb[0].mxu0
        %v7805 = vadd.f32 0.0, %v7804
        %v7806 = vpop.f32.mrb[0].mxu0
        %v7807 = vpop.f32.mrb[0].mxu0
        %v7808 = vadd.f32 0.0, %v7807
        %v7809 = vpop.f32.mrb[0].mxu0
        %7810 = vmatprep.mubr.bf16.mxu0 0
        %7811 = vmatmul.mubr.bf16.gmra.mrb[0].mxu0 %v7621
        %v7812 = vpop.f32.mrb[0].mxu0
        %v7813 = vadd.f32 0.0, %v7812
        %v7814 = vpop.f32.mrb[0].mxu0
        %v7815 = vpop.f32.mrb[0].mxu0
        %v7816 = vadd.f32 0.0, %v7815
        %v7817 = vpop.f32.mrb[0].mxu0
        %7818 = vmatprep.mubr.bf16.mxu0 0
        %7819 = vmatmul.mubr.bf16.gmra.mrb[0].mxu0 %v7622
        %v7820 = vpop.f32.mrb[0].mxu0
        %v7821 = vadd.f32 0.0, %v7820
        %v7822 = vpop.f32.mrb[0].mxu0
        %v7823 = vpop.f32.mrb[0].mxu0
        %v7824 = vadd.f32 0.0, %v7823
        %v7825 = vpop.f32.mrb[0].mxu0
        %7826 = vmatprep.mubr.bf16.mxu0 0
        %7827 = vmatmul.mubr.bf16.gmra.mrb[0].mxu0 %v7623
        %v7828 = vpop.f32.mrb[0].mxu0
        %v7829 = vadd.f32 0.0, %v7828
        %v7830 = vpop.f32.mrb[0].mxu0
        %v7831 = vpop.f32.mrb[0].mxu0
        %v7832 = vadd.f32 0.0, %v7831
        %v7833 = vpop.f32.mrb[0].mxu0
        %7834 = vmatprep.mubr.bf16.mxu0 0
        %7835 = vmatmul.mubr.bf16.gmra.mrb[0].mxu0 %v7624
        %v7836 = vpop.f32.mrb[0].mxu0
        %v7837 = vadd.f32 0.0, %v7836
        %v7838 = vpop.f32.mrb[0].mxu0
        %v7839 = vpop.f32.mrb[0].mxu0
        %v7840 = vadd.f32 0.0, %v7839
        %v7841 = vpop.f32.mrb[0].mxu0
        %7842 = vmatprep.mubr.bf16.mxu0 0
        %7843 = vmatmul.mubr.bf16.gmra.mrb[0].mxu0 %v7625
        %v7844 = vpop.f32.mrb[0].mxu0
        %v7845 = vadd.f32 0.0, %v7844
        %v7846 = vpop.f32.mrb[0].mxu0
        %v7847 = vpop.f32.mrb[0].mxu0
        %v7848 = vadd.f32 0.0, %v7847
        %v7849 = vpop.f32.mrb[0].mxu0
        %7850 = vdwg.mxu0
        %v7851 = vadd.f32 %v7351, %v7725
        %v7852 = vadd.f32 %v7352, %v7728
        %v7853 = vadd.f32 %v7353, %v7733
        %v7854 = vadd.f32 %v7354, %v7736
        %v7855 = vadd.f32 %v7355, %v7741
        %v7856 = vadd.f32 %v7356, %v7744
        %v7857 = vadd.f32 %v7357, %v7749
        %v7858 = vadd.f32 %v7358, %v7752
        %v7859 = vadd.f32 %v7359, %v7757
        %v7860 = vadd.f32 %v7360, %v7760
        %v7861 = vadd.f32 %v7361, %v7765
        %v7862 = vadd.f32 %v7362, %v7768
        %v7863 = vadd.f32 %v7363, %v7773
        %v7864 = vadd.f32 %v7364, %v7776
        %v7865 = vadd.f32 %v7365, %v7781
        %v7866 = vadd.f32 %v7366, %v7784
        %v7867 = vadd.f32 %v7367, %v7789
        %v7868 = vadd.f32 %v7368, %v7792
        %v7869 = vadd.f32 %v7369, %v7797
        %v7870 = vadd.f32 %v7370, %v7800
        %v7871 = vadd.f32 %v7371, %v7805
        %v7872 = vadd.f32 %v7372, %v7808
        %v7873 = vadd.f32 %v7373, %v7813
        %v7874 = vadd.f32 %v7374, %v7816
        %v7875 = vadd.f32 %v7375, %v7821
        %v7876 = vadd.f32 %v7376, %v7824
        %v7877 = vadd.f32 %v7377, %v7829
        %v7878 = vadd.f32 %v7378, %v7832
        %v7879 = vadd.f32 %v7379, %v7837
        %v7880 = vadd.f32 %v7380, %v7840
        %v7881 = vadd.f32 %v7381, %v7845
        %v7882 = vadd.f32 %v7382, %v7848
        %v7886 = vrot.slane %v7399, 5
        %v7887 = vrot.slane %v7886, 4
        %v7888 = vrot.slane %v6100, 5
        %v7889 = vsel %vm3619, %v7887, %v7888
        %v7890 = vrot.slane %v7888, 4
        %v7891 = vrot.slane %v6101, 5
        %v7892 = vsel %vm3619, %v7890, %v7891
        %s7893 = scalar_lea.vmem %s5, 320
        %v7894 = vld [vmem:[%s7893] sm:$0xf]
        %v7895 = vld [vmem:[%s7893 + $0x4] sm:$0xf]
        %v7896 = vld [vmem:[%s7893 + $0x8] sm:$0xf]
        %v7897 = vld [vmem:[%s7893 + $0xc] sm:$0xf]
        %v7898 = vld [vmem:[%s7893 + $0x10] sm:$0xf]
        %v7899 = vld [vmem:[%s7893 + $0x14] sm:$0xf]
        %v7900 = vld [vmem:[%s7893 + $0x18] sm:$0xf]
        %v7901 = vld [vmem:[%s7893 + $0x1c] sm:$0xf]
        %v7902 = vld [vmem:[%s7893 + $0x20] sm:$0xf]
        %v7903 = vld [vmem:[%s7893 + $0x24] sm:$0xf]
        %v7904 = vld [vmem:[%s7893 + $0x28] sm:$0xf]
        %v7905 = vld [vmem:[%s7893 + $0x2c] sm:$0xf]
        %v7906 = vld [vmem:[%s7893 + $0x30] sm:$0xf]
        %v7907 = vld [vmem:[%s7893 + $0x34] sm:$0xf]
        %v7908 = vld [vmem:[%s7893 + $0x38] sm:$0xf]
        %v7909 = vld [vmem:[%s7893 + $0x3c] sm:$0xf]
        %v7910 = vunpack.c.l.b16 %v7889
        %v7911 = vunpack.c.l.b16 %v7892
        %v7912 = vpack.c.b16 %v7911, %v7910
        %v7930 = vunpack.c.l.b16 %v7894
        %v7931 = vunpack.c.l.b16 %v7895
        %v7932 = vunpack.c.l.b16 %v7896
        %v7933 = vunpack.c.l.b16 %v7897
        %v7934 = vunpack.c.l.b16 %v7898
        %v7935 = vunpack.c.l.b16 %v7899
        %v7936 = vunpack.c.l.b16 %v7900
        %v7937 = vunpack.c.l.b16 %v7901
        %v7938 = vunpack.c.l.b16 %v7902
        %v7939 = vunpack.c.l.b16 %v7903
        %v7940 = vunpack.c.l.b16 %v7904
        %v7941 = vunpack.c.l.b16 %v7905
        %v7942 = vunpack.c.l.b16 %v7906
        %v7943 = vunpack.c.l.b16 %v7907
        %v7944 = vunpack.c.l.b16 %v7908
        %v7945 = vunpack.c.l.b16 %v7909
        %v7946 = vpack.c.b16 %v7931, %v7930
        %v7947 = vpack.c.b16 %v7933, %v7932
        %v7948 = vpack.c.b16 %v7935, %v7934
        %v7949 = vpack.c.b16 %v7937, %v7936
        %v7950 = vpack.c.b16 %v7939, %v7938
        %v7951 = vpack.c.b16 %v7941, %v7940
        %v7952 = vpack.c.b16 %v7943, %v7942
        %v7953 = vpack.c.b16 %v7945, %v7944
        %7962 = vmatprep.subr.bf16.mxu0 0
        %7963 = vmatpush1.bf16.msra.mxu0 %v7946
        %7964 = vmatprep.subr.bf16.mxu0 0
        %7965 = vmatpush1.bf16.msra.mxu0 %v7947
        %7966 = vmatprep.subr.bf16.mxu0 0
        %7967 = vmatpush1.bf16.msra.mxu0 %v7948
        %7968 = vmatprep.subr.bf16.mxu0 0
        %7969 = vmatpush1.bf16.msra.mxu0 %v7949
        %7970 = vmatprep.subr.bf16.mxu0 0
        %7971 = vmatpush1.bf16.msra.mxu0 %v7950
        %7972 = vmatprep.subr.bf16.mxu0 0
        %7973 = vmatpush1.bf16.msra.mxu0 %v7951
        %7974 = vmatprep.subr.bf16.mxu0 0
        %7975 = vmatpush1.bf16.msra.mxu0 %v7952
        %7976 = vmatprep.subr.bf16.mxu0 0
        %7977 = vmatpush1.bf16.msra.mxu0 %v7953
        %7978 = vmatprep.subr.bf16.mxu0 0
        %7979 = vmatpush1.bf16.msra.mxu0 0
        %7980 = vmatprep.subr.bf16.mxu0 0
        %7981 = vmatpush1.bf16.msra.mxu0 0
        %7982 = vmatprep.subr.bf16.mxu0 0
        %7983 = vmatpush1.bf16.msra.mxu0 0
        %7984 = vmatprep.subr.bf16.mxu0 0
        %7985 = vmatpush1.bf16.msra.mxu0 0
        %7986 = vmatprep.subr.bf16.mxu0 0
        %7987 = vmatpush1.bf16.msra.mxu0 0
        %7988 = vmatprep.subr.bf16.mxu0 0
        %7989 = vmatpush1.bf16.msra.mxu0 0
        %7990 = vmatprep.subr.bf16.mxu0 0
        %7991 = vmatpush1.bf16.msra.mxu0 0
        %7992 = vmatprep.subr.bf16.mxu0 0
        %7993 = vmatpush1.bf16.msra.mxu0 0
        %7994 = vmatprep.mubr.bf16.mxu0 0
        %7995 = vmatmul.mubr.bf16.gmra.mrb[0].mxu0 %v7611
        %v7996 = vpop.f32.mrb[0].mxu0
        %v7997 = vadd.f32 0.0, %v7996
        %v7998 = vpop.f32.mrb[0].mxu0
        %v7999 = vpop.f32.mrb[0].mxu0
        %v8000 = vadd.f32 0.0, %v7999
        %v8001 = vpop.f32.mrb[0].mxu0
        %8002 = vmatprep.mubr.bf16.mxu0 0
        %8003 = vmatmul.mubr.bf16.gmra.mrb[0].mxu0 %v7612
        %v8004 = vpop.f32.mrb[0].mxu0
        %v8005 = vadd.f32 0.0, %v8004
        %v8006 = vpop.f32.mrb[0].mxu0
        %v8007 = vpop.f32.mrb[0].mxu0
        %v8008 = vadd.f32 0.0, %v8007
        %v8009 = vpop.f32.mrb[0].mxu0
        %8010 = vmatprep.mubr.bf16.mxu0 0
        %8011 = vmatmul.mubr.bf16.gmra.mrb[0].mxu0 %v7613
        %v8012 = vpop.f32.mrb[0].mxu0
        %v8013 = vadd.f32 0.0, %v8012
        %v8014 = vpop.f32.mrb[0].mxu0
        %v8015 = vpop.f32.mrb[0].mxu0
        %v8016 = vadd.f32 0.0, %v8015
        %v8017 = vpop.f32.mrb[0].mxu0
        %8018 = vmatprep.mubr.bf16.mxu0 0
        %8019 = vmatmul.mubr.bf16.gmra.mrb[0].mxu0 %v7614
        %v8020 = vpop.f32.mrb[0].mxu0
        %v8021 = vadd.f32 0.0, %v8020
        %v8022 = vpop.f32.mrb[0].mxu0
        %v8023 = vpop.f32.mrb[0].mxu0
        %v8024 = vadd.f32 0.0, %v8023
        %v8025 = vpop.f32.mrb[0].mxu0
        %8026 = vmatprep.mubr.bf16.mxu0 0
        %8027 = vmatmul.mubr.bf16.gmra.mrb[0].mxu0 %v7615
        %v8028 = vpop.f32.mrb[0].mxu0
        %v8029 = vadd.f32 0.0, %v8028
        %v8030 = vpop.f32.mrb[0].mxu0
        %v8031 = vpop.f32.mrb[0].mxu0
        %v8032 = vadd.f32 0.0, %v8031
        %v8033 = vpop.f32.mrb[0].mxu0
        %8034 = vmatprep.mubr.bf16.mxu0 0
        %8035 = vmatmul.mubr.bf16.gmra.mrb[0].mxu0 %v7616
        %v8036 = vpop.f32.mrb[0].mxu0
        %v8037 = vadd.f32 0.0, %v8036
        %v8038 = vpop.f32.mrb[0].mxu0
        %v8039 = vpop.f32.mrb[0].mxu0
        %v8040 = vadd.f32 0.0, %v8039
        %v8041 = vpop.f32.mrb[0].mxu0
        %8042 = vmatprep.mubr.bf16.mxu0 0
        %8043 = vmatmul.mubr.bf16.gmra.mrb[0].mxu0 %v7617
        %v8044 = vpop.f32.mrb[0].mxu0
        %v8045 = vadd.f32 0.0, %v8044
        %v8046 = vpop.f32.mrb[0].mxu0
        %v8047 = vpop.f32.mrb[0].mxu0
        %v8048 = vadd.f32 0.0, %v8047
        %v8049 = vpop.f32.mrb[0].mxu0
        %8050 = vmatprep.mubr.bf16.mxu0 0
        %8051 = vmatmul.mubr.bf16.gmra.mrb[0].mxu0 %v7618
        %v8052 = vpop.f32.mrb[0].mxu0
        %v8053 = vadd.f32 0.0, %v8052
        %v8054 = vpop.f32.mrb[0].mxu0
        %v8055 = vpop.f32.mrb[0].mxu0
        %v8056 = vadd.f32 0.0, %v8055
        %v8057 = vpop.f32.mrb[0].mxu0
        %8058 = vmatprep.mubr.bf16.mxu0 0
        %8059 = vmatmul.mubr.bf16.gmra.mrb[0].mxu0 %v7619
        %v8060 = vpop.f32.mrb[0].mxu0
        %v8061 = vadd.f32 0.0, %v8060
        %v8062 = vpop.f32.mrb[0].mxu0
        %v8063 = vpop.f32.mrb[0].mxu0
        %v8064 = vadd.f32 0.0, %v8063
        %v8065 = vpop.f32.mrb[0].mxu0
        %8066 = vmatprep.mubr.bf16.mxu0 0
        %8067 = vmatmul.mubr.bf16.gmra.mrb[0].mxu0 %v7620
        %v8068 = vpop.f32.mrb[0].mxu0
        %v8069 = vadd.f32 0.0, %v8068
        %v8070 = vpop.f32.mrb[0].mxu0
        %v8071 = vpop.f32.mrb[0].mxu0
        %v8072 = vadd.f32 0.0, %v8071
        %v8073 = vpop.f32.mrb[0].mxu0
        %8074 = vmatprep.mubr.bf16.mxu0 0
        %8075 = vmatmul.mubr.bf16.gmra.mrb[0].mxu0 %v7621
        %v8076 = vpop.f32.mrb[0].mxu0
        %v8077 = vadd.f32 0.0, %v8076
        %v8078 = vpop.f32.mrb[0].mxu0
        %v8079 = vpop.f32.mrb[0].mxu0
        %v8080 = vadd.f32 0.0, %v8079
        %v8081 = vpop.f32.mrb[0].mxu0
        %8082 = vmatprep.mubr.bf16.mxu0 0
        %8083 = vmatmul.mubr.bf16.gmra.mrb[0].mxu0 %v7622
        %v8084 = vpop.f32.mrb[0].mxu0
        %v8085 = vadd.f32 0.0, %v8084
        %v8086 = vpop.f32.mrb[0].mxu0
        %v8087 = vpop.f32.mrb[0].mxu0
        %v8088 = vadd.f32 0.0, %v8087
        %v8089 = vpop.f32.mrb[0].mxu0
        %8090 = vmatprep.mubr.bf16.mxu0 0
        %8091 = vmatmul.mubr.bf16.gmra.mrb[0].mxu0 %v7623
        %v8092 = vpop.f32.mrb[0].mxu0
        %v8093 = vadd.f32 0.0, %v8092
        %v8094 = vpop.f32.mrb[0].mxu0
        %v8095 = vpop.f32.mrb[0].mxu0
        %v8096 = vadd.f32 0.0, %v8095
        %v8097 = vpop.f32.mrb[0].mxu0
        %8098 = vmatprep.mubr.bf16.mxu0 0
        %8099 = vmatmul.mubr.bf16.gmra.mrb[0].mxu0 %v7624
        %v8100 = vpop.f32.mrb[0].mxu0
        %v8101 = vadd.f32 0.0, %v8100
        %v8102 = vpop.f32.mrb[0].mxu0
        %v8103 = vpop.f32.mrb[0].mxu0
        %v8104 = vadd.f32 0.0, %v8103
        %v8105 = vpop.f32.mrb[0].mxu0
        %8106 = vmatprep.mubr.bf16.mxu0 0
        %8107 = vmatmul.mubr.bf16.gmra.mrb[0].mxu0 %v7625
        %v8108 = vpop.f32.mrb[0].mxu0
        %v8109 = vadd.f32 0.0, %v8108
        %v8110 = vpop.f32.mrb[0].mxu0
        %v8111 = vpop.f32.mrb[0].mxu0
        %v8112 = vadd.f32 0.0, %v8111
        %v8113 = vpop.f32.mrb[0].mxu0
        %8114 = vmatprep.mubr.bf16.mxu0 0
        %8115 = vmatmul.mubr.bf16.gmra.mrb[0].mxu0 %v7912
        %v8116 = vpop.f32.mrb[0].mxu0
        %v8117 = vadd.f32 0.0, %v8116
        %v8118 = vpop.f32.mrb[0].mxu0
        %v8119 = vpop.f32.mrb[0].mxu0
        %v8120 = vadd.f32 0.0, %v8119
        %v8121 = vpop.f32.mrb[0].mxu0
        %8122 = vdwg.mxu0
        %v8123 = vadd.f32 %v7851, %v7997
        %v8124 = vadd.f32 %v7852, %v8000
        %v8125 = vadd.f32 %v7853, %v8005
        %v8126 = vadd.f32 %v7854, %v8008
        %v8127 = vadd.f32 %v7855, %v8013
        %v8128 = vadd.f32 %v7856, %v8016
        %v8129 = vadd.f32 %v7857, %v8021
        %v8130 = vadd.f32 %v7858, %v8024
        %v8131 = vadd.f32 %v7859, %v8029
        %v8132 = vadd.f32 %v7860, %v8032
        %v8133 = vadd.f32 %v7861, %v8037
        %v8134 = vadd.f32 %v7862, %v8040
        %v8135 = vadd.f32 %v7863, %v8045
        %v8136 = vadd.f32 %v7864, %v8048
        %v8137 = vadd.f32 %v7865, %v8053
        %v8138 = vadd.f32 %v7866, %v8056
        %v8139 = vadd.f32 %v7867, %v8061
        %v8140 = vadd.f32 %v7868, %v8064
        %v8141 = vadd.f32 %v7869, %v8069
        %v8142 = vadd.f32 %v7870, %v8072
        %v8143 = vadd.f32 %v7871, %v8077
        %v8144 = vadd.f32 %v7872, %v8080
        %v8145 = vadd.f32 %v7873, %v8085
        %v8146 = vadd.f32 %v7874, %v8088
        %v8147 = vadd.f32 %v7875, %v8093
        %v8148 = vadd.f32 %v7876, %v8096
        %v8149 = vadd.f32 %v7877, %v8101
        %v8150 = vadd.f32 %v7878, %v8104
        %v8151 = vadd.f32 %v7879, %v8109
        %v8152 = vadd.f32 %v7880, %v8112
        %v8153 = vadd.f32 %v7881, %v8117
        %v8154 = vadd.f32 %v7882, %v8120
        %v8158 = vrot.slane %v7400, 5
        %v8159 = vrot.slane %v8158, 4
        %v8160 = vrot.slane %v6103, 5
        %v8161 = vsel %vm3619, %v8159, %v8160
        %v8162 = vrot.slane %v8160, 4
        %v8163 = vrot.slane %v6104, 5
        %v8164 = vsel %vm3619, %v8162, %v8163
        %s8165 = scalar_lea.vmem %s5, 512
        %v8166 = vld [vmem:[%s8165] sm:$0xf]
        %v8167 = vld [vmem:[%s8165 + $0x4] sm:$0xf]
        %v8168 = vld [vmem:[%s8165 + $0x8] sm:$0xf]
        %v8169 = vld [vmem:[%s8165 + $0xc] sm:$0xf]
        %v8170 = vld [vmem:[%s8165 + $0x10] sm:$0xf]
        %v8171 = vld [vmem:[%s8165 + $0x14] sm:$0xf]
        %v8172 = vld [vmem:[%s8165 + $0x18] sm:$0xf]
        %v8173 = vld [vmem:[%s8165 + $0x1c] sm:$0xf]
        %v8174 = vld [vmem:[%s8165 + $0x20] sm:$0xf]
        %v8175 = vld [vmem:[%s8165 + $0x24] sm:$0xf]
        %v8176 = vld [vmem:[%s8165 + $0x28] sm:$0xf]
        %v8177 = vld [vmem:[%s8165 + $0x2c] sm:$0xf]
        %v8178 = vld [vmem:[%s8165 + $0x30] sm:$0xf]
        %v8179 = vld [vmem:[%s8165 + $0x34] sm:$0xf]
        %v8180 = vld [vmem:[%s8165 + $0x38] sm:$0xf]
        %v8181 = vld [vmem:[%s8165 + $0x3c] sm:$0xf]
        %v8182 = vunpack.c.l.b16 %v8161
        %v8183 = vunpack.c.l.b16 %v8164
        %v8184 = vpack.c.b16 %v8183, %v8182
        %v8202 = vunpack.c.l.b16 %v8166
        %v8203 = vunpack.c.l.b16 %v8167
        %v8204 = vunpack.c.l.b16 %v8168
        %v8205 = vunpack.c.l.b16 %v8169
        %v8206 = vunpack.c.l.b16 %v8170
        %v8207 = vunpack.c.l.b16 %v8171
        %v8208 = vunpack.c.l.b16 %v8172
        %v8209 = vunpack.c.l.b16 %v8173
        %v8210 = vunpack.c.l.b16 %v8174
        %v8211 = vunpack.c.l.b16 %v8175
        %v8212 = vunpack.c.l.b16 %v8176
        %v8213 = vunpack.c.l.b16 %v8177
        %v8214 = vunpack.c.l.b16 %v8178
        %v8215 = vunpack.c.l.b16 %v8179
        %v8216 = vunpack.c.l.b16 %v8180
        %v8217 = vunpack.c.l.b16 %v8181
        %v8218 = vpack.c.b16 %v8203, %v8202
        %v8219 = vpack.c.b16 %v8205, %v8204
        %v8220 = vpack.c.b16 %v8207, %v8206
        %v8221 = vpack.c.b16 %v8209, %v8208
        %v8222 = vpack.c.b16 %v8211, %v8210
        %v8223 = vpack.c.b16 %v8213, %v8212
        %v8224 = vpack.c.b16 %v8215, %v8214
        %v8225 = vpack.c.b16 %v8217, %v8216
        %8234 = vmatprep.subr.bf16.mxu0 0
        %8235 = vmatpush1.bf16.msra.mxu0 %v8218
        %8236 = vmatprep.subr.bf16.mxu0 0
        %8237 = vmatpush1.bf16.msra.mxu0 %v8219
        %8238 = vmatprep.subr.bf16.mxu0 0
        %8239 = vmatpush1.bf16.msra.mxu0 %v8220
        %8240 = vmatprep.subr.bf16.mxu0 0
        %8241 = vmatpush1.bf16.msra.mxu0 %v8221
        %8242 = vmatprep.subr.bf16.mxu0 0
        %8243 = vmatpush1.bf16.msra.mxu0 %v8222
        %8244 = vmatprep.subr.bf16.mxu0 0
        %8245 = vmatpush1.bf16.msra.mxu0 %v8223
        %8246 = vmatprep.subr.bf16.mxu0 0
        %8247 = vmatpush1.bf16.msra.mxu0 %v8224
        %8248 = vmatprep.subr.bf16.mxu0 0
        %8249 = vmatpush1.bf16.msra.mxu0 %v8225
        %8250 = vmatprep.subr.bf16.mxu0 0
        %8251 = vmatpush1.bf16.msra.mxu0 0
        %8252 = vmatprep.subr.bf16.mxu0 0
        %8253 = vmatpush1.bf16.msra.mxu0 0
        %8254 = vmatprep.subr.bf16.mxu0 0
        %8255 = vmatpush1.bf16.msra.mxu0 0
        %8256 = vmatprep.subr.bf16.mxu0 0
        %8257 = vmatpush1.bf16.msra.mxu0 0
        %8258 = vmatprep.subr.bf16.mxu0 0
        %8259 = vmatpush1.bf16.msra.mxu0 0
        %8260 = vmatprep.subr.bf16.mxu0 0
        %8261 = vmatpush1.bf16.msra.mxu0 0
        %8262 = vmatprep.subr.bf16.mxu0 0
        %8263 = vmatpush1.bf16.msra.mxu0 0
        %8264 = vmatprep.subr.bf16.mxu0 0
        %8265 = vmatpush1.bf16.msra.mxu0 0
        %8266 = vmatprep.mubr.bf16.mxu0 0
        %8267 = vmatmul.mubr.bf16.gmra.mrb[0].mxu0 %v7612
        %v8268 = vpop.f32.mrb[0].mxu0
        %v8269 = vadd.f32 0.0, %v8268
        %v8270 = vpop.f32.mrb[0].mxu0
        %v8271 = vpop.f32.mrb[0].mxu0
        %v8272 = vadd.f32 0.0, %v8271
        %v8273 = vpop.f32.mrb[0].mxu0
        %8274 = vmatprep.mubr.bf16.mxu0 0
        %8275 = vmatmul.mubr.bf16.gmra.mrb[0].mxu0 %v7613
        %v8276 = vpop.f32.mrb[0].mxu0
        %v8277 = vadd.f32 0.0, %v8276
        %v8278 = vpop.f32.mrb[0].mxu0
        %v8279 = vpop.f32.mrb[0].mxu0
        %v8280 = vadd.f32 0.0, %v8279
        %v8281 = vpop.f32.mrb[0].mxu0
        %8282 = vmatprep.mubr.bf16.mxu0 0
        %8283 = vmatmul.mubr.bf16.gmra.mrb[0].mxu0 %v7614
        %v8284 = vpop.f32.mrb[0].mxu0
        %v8285 = vadd.f32 0.0, %v8284
        %v8286 = vpop.f32.mrb[0].mxu0
        %v8287 = vpop.f32.mrb[0].mxu0
        %v8288 = vadd.f32 0.0, %v8287
        %v8289 = vpop.f32.mrb[0].mxu0
        %8290 = vmatprep.mubr.bf16.mxu0 0
        %8291 = vmatmul.mubr.bf16.gmra.mrb[0].mxu0 %v7615
        %v8292 = vpop.f32.mrb[0].mxu0
        %v8293 = vadd.f32 0.0, %v8292
        %v8294 = vpop.f32.mrb[0].mxu0
        %v8295 = vpop.f32.mrb[0].mxu0
        %v8296 = vadd.f32 0.0, %v8295
        %v8297 = vpop.f32.mrb[0].mxu0
        %8298 = vmatprep.mubr.bf16.mxu0 0
        %8299 = vmatmul.mubr.bf16.gmra.mrb[0].mxu0 %v7616
        %v8300 = vpop.f32.mrb[0].mxu0
        %v8301 = vadd.f32 0.0, %v8300
        %v8302 = vpop.f32.mrb[0].mxu0
        %v8303 = vpop.f32.mrb[0].mxu0
        %v8304 = vadd.f32 0.0, %v8303
        %v8305 = vpop.f32.mrb[0].mxu0
        %8306 = vmatprep.mubr.bf16.mxu0 0
        %8307 = vmatmul.mubr.bf16.gmra.mrb[0].mxu0 %v7617
        %v8308 = vpop.f32.mrb[0].mxu0
        %v8309 = vadd.f32 0.0, %v8308
        %v8310 = vpop.f32.mrb[0].mxu0
        %v8311 = vpop.f32.mrb[0].mxu0
        %v8312 = vadd.f32 0.0, %v8311
        %v8313 = vpop.f32.mrb[0].mxu0
        %8314 = vmatprep.mubr.bf16.mxu0 0
        %8315 = vmatmul.mubr.bf16.gmra.mrb[0].mxu0 %v7618
        %v8316 = vpop.f32.mrb[0].mxu0
        %v8317 = vadd.f32 0.0, %v8316
        %v8318 = vpop.f32.mrb[0].mxu0
        %v8319 = vpop.f32.mrb[0].mxu0
        %v8320 = vadd.f32 0.0, %v8319
        %v8321 = vpop.f32.mrb[0].mxu0
        %8322 = vmatprep.mubr.bf16.mxu0 0
        %8323 = vmatmul.mubr.bf16.gmra.mrb[0].mxu0 %v7619
        %v8324 = vpop.f32.mrb[0].mxu0
        %v8325 = vadd.f32 0.0, %v8324
        %v8326 = vpop.f32.mrb[0].mxu0
        %v8327 = vpop.f32.mrb[0].mxu0
        %v8328 = vadd.f32 0.0, %v8327
        %v8329 = vpop.f32.mrb[0].mxu0
        %8330 = vmatprep.mubr.bf16.mxu0 0
        %8331 = vmatmul.mubr.bf16.gmra.mrb[0].mxu0 %v7620
        %v8332 = vpop.f32.mrb[0].mxu0
        %v8333 = vadd.f32 0.0, %v8332
        %v8334 = vpop.f32.mrb[0].mxu0
        %v8335 = vpop.f32.mrb[0].mxu0
        %v8336 = vadd.f32 0.0, %v8335
        %v8337 = vpop.f32.mrb[0].mxu0
        %8338 = vmatprep.mubr.bf16.mxu0 0
        %8339 = vmatmul.mubr.bf16.gmra.mrb[0].mxu0 %v7621
        %v8340 = vpop.f32.mrb[0].mxu0
        %v8341 = vadd.f32 0.0, %v8340
        %v8342 = vpop.f32.mrb[0].mxu0
        %v8343 = vpop.f32.mrb[0].mxu0
        %v8344 = vadd.f32 0.0, %v8343
        %v8345 = vpop.f32.mrb[0].mxu0
        %8346 = vmatprep.mubr.bf16.mxu0 0
        %8347 = vmatmul.mubr.bf16.gmra.mrb[0].mxu0 %v7622
        %v8348 = vpop.f32.mrb[0].mxu0
        %v8349 = vadd.f32 0.0, %v8348
        %v8350 = vpop.f32.mrb[0].mxu0
        %v8351 = vpop.f32.mrb[0].mxu0
        %v8352 = vadd.f32 0.0, %v8351
        %v8353 = vpop.f32.mrb[0].mxu0
        %8354 = vmatprep.mubr.bf16.mxu0 0
        %8355 = vmatmul.mubr.bf16.gmra.mrb[0].mxu0 %v7623
        %v8356 = vpop.f32.mrb[0].mxu0
        %v8357 = vadd.f32 0.0, %v8356
        %v8358 = vpop.f32.mrb[0].mxu0
        %v8359 = vpop.f32.mrb[0].mxu0
        %v8360 = vadd.f32 0.0, %v8359
        %v8361 = vpop.f32.mrb[0].mxu0
        %8362 = vmatprep.mubr.bf16.mxu0 0
        %8363 = vmatmul.mubr.bf16.gmra.mrb[0].mxu0 %v7624
        %v8364 = vpop.f32.mrb[0].mxu0
        %v8365 = vadd.f32 0.0, %v8364
        %v8366 = vpop.f32.mrb[0].mxu0
        %v8367 = vpop.f32.mrb[0].mxu0
        %v8368 = vadd.f32 0.0, %v8367
        %v8369 = vpop.f32.mrb[0].mxu0
        %8370 = vmatprep.mubr.bf16.mxu0 0
        %8371 = vmatmul.mubr.bf16.gmra.mrb[0].mxu0 %v7625
        %v8372 = vpop.f32.mrb[0].mxu0
        %v8373 = vadd.f32 0.0, %v8372
        %v8374 = vpop.f32.mrb[0].mxu0
        %v8375 = vpop.f32.mrb[0].mxu0
        %v8376 = vadd.f32 0.0, %v8375
        %v8377 = vpop.f32.mrb[0].mxu0
        %8378 = vmatprep.mubr.bf16.mxu0 0
        %8379 = vmatmul.mubr.bf16.gmra.mrb[0].mxu0 %v7912
        %v8380 = vpop.f32.mrb[0].mxu0
        %v8381 = vadd.f32 0.0, %v8380
        %v8382 = vpop.f32.mrb[0].mxu0
        %v8383 = vpop.f32.mrb[0].mxu0
        %v8384 = vadd.f32 0.0, %v8383
        %v8385 = vpop.f32.mrb[0].mxu0
        %8386 = vmatprep.mubr.bf16.mxu0 0
        %8387 = vmatmul.mubr.bf16.gmra.mrb[0].mxu0 %v8184
        %v8388 = vpop.f32.mrb[0].mxu0
        %v8389 = vadd.f32 0.0, %v8388
        %v8390 = vpop.f32.mrb[0].mxu0
        %v8391 = vpop.f32.mrb[0].mxu0
        %v8392 = vadd.f32 0.0, %v8391
        %v8393 = vpop.f32.mrb[0].mxu0
        %8394 = vdwg.mxu0
        %v8395 = vadd.f32 %v8123, %v8269
        %v8396 = vadd.f32 %v8124, %v8272
        %v8397 = vadd.f32 %v8125, %v8277
        %v8398 = vadd.f32 %v8126, %v8280
        %v8399 = vadd.f32 %v8127, %v8285
        %v8400 = vadd.f32 %v8128, %v8288
        %v8401 = vadd.f32 %v8129, %v8293
        %v8402 = vadd.f32 %v8130, %v8296
        %v8403 = vadd.f32 %v8131, %v8301
        %v8404 = vadd.f32 %v8132, %v8304
        %v8405 = vadd.f32 %v8133, %v8309
        %v8406 = vadd.f32 %v8134, %v8312
        %v8407 = vadd.f32 %v8135, %v8317
        %v8408 = vadd.f32 %v8136, %v8320
        %v8409 = vadd.f32 %v8137, %v8325
        %v8410 = vadd.f32 %v8138, %v8328
        %v8411 = vadd.f32 %v8139, %v8333
        %v8412 = vadd.f32 %v8140, %v8336
        %v8413 = vadd.f32 %v8141, %v8341
        %v8414 = vadd.f32 %v8142, %v8344
        %v8415 = vadd.f32 %v8143, %v8349
        %v8416 = vadd.f32 %v8144, %v8352
        %v8417 = vadd.f32 %v8145, %v8357
        %v8418 = vadd.f32 %v8146, %v8360
        %v8419 = vadd.f32 %v8147, %v8365
        %v8420 = vadd.f32 %v8148, %v8368
        %v8421 = vadd.f32 %v8149, %v8373
        %v8422 = vadd.f32 %v8150, %v8376
        %v8423 = vadd.f32 %v8151, %v8381
        %v8424 = vadd.f32 %v8152, %v8384
        %v8425 = vadd.f32 %v8153, %v8389
        %v8426 = vadd.f32 %v8154, %v8392
        %v8427 = vld [vmem:[%s6] sm:$0x1]
        %v8429 = vlaneseq
        %v8430 = vshrl.u32 %v8429, 7
        %v8431 = vsub.s32 0, %v8430
        %v8432 = vrot.slane %v8427, %v8431
        %v8434 = vadd.f32 %v8395, %v8432
        %v8435 = vadd.f32 %v8396, %v8432
        %v8436 = vadd.f32 %v8397, %v8432
        %v8437 = vadd.f32 %v8398, %v8432
        %v8438 = vadd.f32 %v8399, %v8432
        %v8439 = vadd.f32 %v8400, %v8432
        %v8440 = vadd.f32 %v8401, %v8432
        %v8441 = vadd.f32 %v8402, %v8432
        %v8442 = vadd.f32 %v8403, %v8432
        %v8443 = vadd.f32 %v8404, %v8432
        %v8444 = vadd.f32 %v8405, %v8432
        %v8445 = vadd.f32 %v8406, %v8432
        %v8446 = vadd.f32 %v8407, %v8432
        %v8447 = vadd.f32 %v8408, %v8432
        %v8448 = vadd.f32 %v8409, %v8432
        %v8449 = vadd.f32 %v8410, %v8432
        %v8450 = vadd.f32 %v8411, %v8432
        %v8451 = vadd.f32 %v8412, %v8432
        %v8452 = vadd.f32 %v8413, %v8432
        %v8453 = vadd.f32 %v8414, %v8432
        %v8454 = vadd.f32 %v8415, %v8432
        %v8455 = vadd.f32 %v8416, %v8432
        %v8456 = vadd.f32 %v8417, %v8432
        %v8457 = vadd.f32 %v8418, %v8432
        %v8458 = vadd.f32 %v8419, %v8432
        %v8459 = vadd.f32 %v8420, %v8432
        %v8460 = vadd.f32 %v8421, %v8432
        %v8461 = vadd.f32 %v8422, %v8432
        %v8462 = vadd.f32 %v8423, %v8432
        %v8463 = vadd.f32 %v8424, %v8432
        %v8464 = vadd.f32 %v8425, %v8432
        %v8465 = vadd.f32 %v8426, %v8432
        %v8466 = vmax.f32 %v8434, 0.0
        %v8467 = vmax.f32 %v8435, 0.0
        %v8468 = vmax.f32 %v8436, 0.0
        %v8469 = vmax.f32 %v8437, 0.0
        %v8470 = vmax.f32 %v8438, 0.0
        %v8471 = vmax.f32 %v8439, 0.0
        %v8472 = vmax.f32 %v8440, 0.0
        %v8473 = vmax.f32 %v8441, 0.0
        %v8474 = vmax.f32 %v8442, 0.0
        %v8475 = vmax.f32 %v8443, 0.0
        %v8476 = vmax.f32 %v8444, 0.0
        %v8477 = vmax.f32 %v8445, 0.0
        %v8478 = vmax.f32 %v8446, 0.0
        %v8479 = vmax.f32 %v8447, 0.0
        %v8480 = vmax.f32 %v8448, 0.0
        %v8481 = vmax.f32 %v8449, 0.0
        %v8482 = vmax.f32 %v8450, 0.0
        %v8483 = vmax.f32 %v8451, 0.0
        %v8484 = vmax.f32 %v8452, 0.0
        %v8485 = vmax.f32 %v8453, 0.0
        %v8486 = vmax.f32 %v8454, 0.0
        %v8487 = vmax.f32 %v8455, 0.0
        %v8488 = vmax.f32 %v8456, 0.0
        %v8489 = vmax.f32 %v8457, 0.0
        %v8490 = vmax.f32 %v8458, 0.0
        %v8491 = vmax.f32 %v8459, 0.0
        %v8492 = vmax.f32 %v8460, 0.0
        %v8493 = vmax.f32 %v8461, 0.0
        %v8494 = vmax.f32 %v8462, 0.0
        %v8495 = vmax.f32 %v8463, 0.0
        %v8496 = vmax.f32 %v8464, 0.0
        %v8497 = vmax.f32 %v8465, 0.0
        %v8498 = vld [vmem:[%s276] sm:$0xff]
        %v8499 = vld [vmem:[%s276 + $0x8] sm:$0xff]
        %v8500 = vld [vmem:[%s276 + $0x10] sm:$0xff]
        %v8501 = vld [vmem:[%s276 + $0x18] sm:$0xff]
        %v8502 = vld [vmem:[%s276 + $0x20] sm:$0xff]
        %v8503 = vld [vmem:[%s276 + $0x28] sm:$0xff]
        %v8504 = vld [vmem:[%s276 + $0x30] sm:$0xff]
        %v8505 = vld [vmem:[%s276 + $0x38] sm:$0xff]
        %v8506 = vld [vmem:[%s276 + $0x40] sm:$0xff]
        %v8507 = vld [vmem:[%s276 + $0x48] sm:$0xff]
        %v8508 = vld [vmem:[%s276 + $0x50] sm:$0xff]
        %v8509 = vld [vmem:[%s276 + $0x58] sm:$0xff]
        %v8510 = vld [vmem:[%s276 + $0x60] sm:$0xff]
        %v8511 = vld [vmem:[%s276 + $0x68] sm:$0xff]
        %v8512 = vld [vmem:[%s276 + $0x70] sm:$0xff]
        %v8513 = vld [vmem:[%s276 + $0x78] sm:$0xff]
        %v8514 = vld [vmem:[%s276 + $0x80] sm:$0xff]
        %v8515 = vld [vmem:[%s276 + $0x88] sm:$0xff]
        %v8516 = vld [vmem:[%s276 + $0x90] sm:$0xff]
        %v8517 = vld [vmem:[%s276 + $0x98] sm:$0xff]
        %v8518 = vld [vmem:[%s276 + $0xa0] sm:$0xff]
        %v8519 = vld [vmem:[%s276 + $0xa8] sm:$0xff]
        %v8520 = vld [vmem:[%s276 + $0xb0] sm:$0xff]
        %v8521 = vld [vmem:[%s276 + $0xb8] sm:$0xff]
        %v8522 = vld [vmem:[%s276 + $0xc0] sm:$0xff]
        %v8523 = vld [vmem:[%s276 + $0xc8] sm:$0xff]
        %v8524 = vld [vmem:[%s276 + $0xd0] sm:$0xff]
        %v8525 = vld [vmem:[%s276 + $0xd8] sm:$0xff]
        %v8526 = vld [vmem:[%s276 + $0xe0] sm:$0xff]
        %v8527 = vld [vmem:[%s276 + $0xe8] sm:$0xff]
        %v8528 = vld [vmem:[%s276 + $0xf0] sm:$0xff]
        %v8529 = vld [vmem:[%s276 + $0xf8] sm:$0xff]
        %v8530 = vmul.f32 %v8498, %v517
        %v8531 = vmul.f32 %v8499, %v517
        %v8532 = vmul.f32 %v8500, %v517
        %v8533 = vmul.f32 %v8501, %v517
        %v8534 = vmul.f32 %v8502, %v517
        %v8535 = vmul.f32 %v8503, %v517
        %v8536 = vmul.f32 %v8504, %v517
        %v8537 = vmul.f32 %v8505, %v517
        %v8538 = vmul.f32 %v8506, %v517
        %v8539 = vmul.f32 %v8507, %v517
        %v8540 = vmul.f32 %v8508, %v517
        %v8541 = vmul.f32 %v8509, %v517
        %v8542 = vmul.f32 %v8510, %v517
        %v8543 = vmul.f32 %v8511, %v517
        %v8544 = vmul.f32 %v8512, %v517
        %v8545 = vmul.f32 %v8513, %v517
        %v8546 = vmul.f32 %v8514, %v517
        %v8547 = vmul.f32 %v8515, %v517
        %v8548 = vmul.f32 %v8516, %v517
        %v8549 = vmul.f32 %v8517, %v517
        %v8550 = vmul.f32 %v8518, %v517
        %v8551 = vmul.f32 %v8519, %v517
        %v8552 = vmul.f32 %v8520, %v517
        %v8553 = vmul.f32 %v8521, %v517
        %v8554 = vmul.f32 %v8522, %v517
        %v8555 = vmul.f32 %v8523, %v517
        %v8556 = vmul.f32 %v8524, %v517
        %v8557 = vmul.f32 %v8525, %v517
        %v8558 = vmul.f32 %v8526, %v517
        %v8559 = vmul.f32 %v8527, %v517
        %v8560 = vmul.f32 %v8528, %v517
        %v8561 = vmul.f32 %v8529, %v517
        %v8562 = vadd.f32 %v8466, %v8530
        %v8563 = vadd.f32 %v8467, %v8531
        %v8564 = vadd.f32 %v8468, %v8532
        %v8565 = vadd.f32 %v8469, %v8533
        %v8566 = vadd.f32 %v8470, %v8534
        %v8567 = vadd.f32 %v8471, %v8535
        %v8568 = vadd.f32 %v8472, %v8536
        %v8569 = vadd.f32 %v8473, %v8537
        %v8570 = vadd.f32 %v8474, %v8538
        %v8571 = vadd.f32 %v8475, %v8539
        %v8572 = vadd.f32 %v8476, %v8540
        %v8573 = vadd.f32 %v8477, %v8541
        %v8574 = vadd.f32 %v8478, %v8542
        %v8575 = vadd.f32 %v8479, %v8543
        %v8576 = vadd.f32 %v8480, %v8544
        %v8577 = vadd.f32 %v8481, %v8545
        %v8578 = vadd.f32 %v8482, %v8546
        %v8579 = vadd.f32 %v8483, %v8547
        %v8580 = vadd.f32 %v8484, %v8548
        %v8581 = vadd.f32 %v8485, %v8549
        %v8582 = vadd.f32 %v8486, %v8550
        %v8583 = vadd.f32 %v8487, %v8551
        %v8584 = vadd.f32 %v8488, %v8552
        %v8585 = vadd.f32 %v8489, %v8553
        %v8586 = vadd.f32 %v8490, %v8554
        %v8587 = vadd.f32 %v8491, %v8555
        %v8588 = vadd.f32 %v8492, %v8556
        %v8589 = vadd.f32 %v8493, %v8557
        %v8590 = vadd.f32 %v8494, %v8558
        %v8591 = vadd.f32 %v8495, %v8559
        %v8592 = vadd.f32 %v8496, %v8560
        %v8593 = vadd.f32 %v8497, %v8561
        %8594 = vst [vmem:[%s271] sm:$0xff] %v8562
        %8595 = vst [vmem:[%s271 + $0x8] sm:$0xff] %v8563
        %8596 = vst [vmem:[%s271 + $0x10] sm:$0xff] %v8564
        %8597 = vst [vmem:[%s271 + $0x18] sm:$0xff] %v8565
        %8598 = vst [vmem:[%s271 + $0x20] sm:$0xff] %v8566
        %8599 = vst [vmem:[%s271 + $0x28] sm:$0xff] %v8567
        %8600 = vst [vmem:[%s271 + $0x30] sm:$0xff] %v8568
        %8601 = vst [vmem:[%s271 + $0x38] sm:$0xff] %v8569
        %8602 = vst [vmem:[%s271 + $0x40] sm:$0xff] %v8570
        %8603 = vst [vmem:[%s271 + $0x48] sm:$0xff] %v8571
        %8604 = vst [vmem:[%s271 + $0x50] sm:$0xff] %v8572
        %8605 = vst [vmem:[%s271 + $0x58] sm:$0xff] %v8573
        %8606 = vst [vmem:[%s271 + $0x60] sm:$0xff] %v8574
        %8607 = vst [vmem:[%s271 + $0x68] sm:$0xff] %v8575
        %8608 = vst [vmem:[%s271 + $0x70] sm:$0xff] %v8576
        %8609 = vst [vmem:[%s271 + $0x78] sm:$0xff] %v8577
        %8610 = vst [vmem:[%s271 + $0x80] sm:$0xff] %v8578
        %8611 = vst [vmem:[%s271 + $0x88] sm:$0xff] %v8579
        %8612 = vst [vmem:[%s271 + $0x90] sm:$0xff] %v8580
        %8613 = vst [vmem:[%s271 + $0x98] sm:$0xff] %v8581
        %8614 = vst [vmem:[%s271 + $0xa0] sm:$0xff] %v8582
        %8615 = vst [vmem:[%s271 + $0xa8] sm:$0xff] %v8583
        %8616 = vst [vmem:[%s271 + $0xb0] sm:$0xff] %v8584
        %8617 = vst [vmem:[%s271 + $0xb8] sm:$0xff] %v8585
        %8618 = vst [vmem:[%s271 + $0xc0] sm:$0xff] %v8586
        %8619 = vst [vmem:[%s271 + $0xc8] sm:$0xff] %v8587
        %8620 = vst [vmem:[%s271 + $0xd0] sm:$0xff] %v8588
        %8621 = vst [vmem:[%s271 + $0xd8] sm:$0xff] %v8589
        %8622 = vst [vmem:[%s271 + $0xe0] sm:$0xff] %v8590
        %8623 = vst [vmem:[%s271 + $0xe8] sm:$0xff] %v8591
        %8624 = vst [vmem:[%s271 + $0xf0] sm:$0xff] %v8592
        %8625 = vst [vmem:[%s271 + $0xf8] sm:$0xff] %v8593
        %s8626 = sand.u32 %s181, 1
        %s8627 = scalar_lea.sflag [#allocation5], %s8626
        %s8628 = sand.u32 %s181, 1
        %s8629 = smul.addr %s8628, 256
        %s8630 = scalar_lea.vmem [#allocation4], %s8629
        // Predicated region
        $region49: #{motion_encoder_forward.1} parent=47 // pred_check
          %p8631 = pneg %p191
        $region50: #{motion_encoder_forward.1} parent=47 // pred_check_branch
          %8633 = sbr.rel (%p8631) target = $region52
        $region51: #{motion_encoder_forward.1} parent=47 // pred_region
          %s8635 = ssub.s32 4096, 4096
          %8636 = vsyncadd %s8627, %s8635
          %s8637 = smul.addr %s21, 32
          %s8638 = smul.addr %s8637, 128
          %s8639 = scalar_lea.hbm %s7, %s8638
          %s8640 = sshll.u32 %s8630, 4
          %s8641 = int_to_ptr.vmem [resolvable:$true] %s8640
          %8646 = dma.vmem_to_hbm [thread:$0]  %s8641, 4096, %s8639, %s8627, 128, 128, 8
        $region52: #{motion_encoder_forward.1} parent=47 // pred_fallthru
          _
      $region48: #{motion_encoder_forward.1} parent=5 // pred_fallthru
        _
      %p8647 = scmp.le.s32.totalorder 2, %s16
      // Predicated region
      $region53: #{motion_encoder_forward.1} parent=5 // pred_check
        %p8648 = pneg %p8647
      $region54: #{motion_encoder_forward.1} parent=5 // pred_check_branch
        %8650 = sbr.rel (%p8648) target = $region56
      $region55: #{motion_encoder_forward.1} parent=5 // pred_region
        %s8651 = ssub.s32 %s16, 2
        // Predicated region
        $region57: #{motion_encoder_forward.1} parent=55 // pred_check
          %p8652 = pneg %p197
        $region58: #{motion_encoder_forward.1} parent=55 // pred_check_branch
          %8654 = sbr.rel (%p8652) target = $region60
        $region59: #{motion_encoder_forward.1} parent=55 // pred_region
          %s8655 = sand.u32 %s182, 1
          %s8656 = scalar_lea.sflag [#allocation5], %s8655
          %s8657 = sand.u32 %s182, 1
          %s8658 = smul.addr %s8657, 256
          %s8659 = scalar_lea.vmem [#allocation4], %s8658
          %8660 = dma.done %s8656, 4096
        $region60: #{motion_encoder_forward.1} parent=55 // pred_fallthru
          _
      $region56: #{motion_encoder_forward.1} parent=5 // pred_fallthru
        _
    $region6: #{motion_encoder_forward.1} parent=1 // loop_footer
      %s20 = sadd.s32 1, %s16
    $region7: #{motion_encoder_forward.1} parent=1 // loop_footer_branch
      %15 = sbr.rel target = $region3
    $region8: #{motion_encoder_forward.1} parent=1 // loop_exit
      _
    %8661 = vsyncpa [#allocation5], 1
    %s8662 = scalar_lea.sflag [#allocation5], 1
    %8663 = vsyncpa %s8662, 1

</llo_original>
